<compile_context>
chip_gen: v7x
topology: tpu7x:2x2x1
jax: 0.10.0
libtpu: 0.0.40
codegen_flags: <defaults>
</compile_context>

<pallas_src>
import functools

import jax
import jax.numpy as jnp
from jax import lax
from jax.experimental import pallas as pl
from jax.experimental.pallas import tpu as pltpu


# ----------------------------- Fused forward kernel --------------------------

def _fused_kernel(x_ref, *args):
    # x_ref : (NB, L, Cin0)                       -- NB samples handled this step
    # args  : 16 conv refs (w1,b1,w2,b2) x 4 blocks, 6 dense refs (w,b) x 3,
    #         then o_ref (NB, 1, 1), then pad_ref (L+2*pad, Cmax) VMEM scratch.
    #   conv w: (K, Cin, Cout)   conv b: (1, Cout)
    #   dense w: (Nin, Nout)     dense b: (1, Nout)
    conv_refs = args[0:16]
    d1w, d1b, d2w, d2b, d3w, d3b = args[16:22]
    o_ref = args[22]
    pad_ref = args[23]

    nb, L, _ = x_ref.shape
    K = conv_refs[0].shape[0]
    pad = K // 2
    cmax = pad_ref.shape[1]

    # Zero the pad rows once; the data rows [pad, pad+L) are fully overwritten
    # before every read, so the pad rows stay zero across all 8 convs / samples.
    zrow = jnp.zeros((pad, cmax), jnp.float32)
    pad_ref[:pad, :] = zrow
    pad_ref[pad + L:, :] = zrow

    feats = []
    for n in range(nb):                       # static unroll over samples
        h = x_ref[n]                          # (L, Cin0) f32
        for li in range(8):                   # 4 ConvBlocks x 2 convs (static)
            w_ref = conv_refs[2 * li]
            b_ref = conv_refs[2 * li + 1]
            cin = w_ref.shape[1]
            cout = w_ref.shape[2]
            # 'same' padding: store activation at row offset `pad` into the
            # pre-zeroed scratch, read back the padded (L+2*pad, cin) slab.
            pad_ref[pad:pad + L, :cin] = h
            xp = pad_ref[:, :cin]
            # conv1d('same') as K shifted MXU matmuls, f32 accumulation.
            acc = jnp.zeros((L, cout), jnp.float32)
            for k in range(K):
                acc = acc + jnp.dot(xp[k:k + L, :], w_ref[k],
                                    preferred_element_type=jnp.float32)
            h = jnp.maximum(acc + b_ref[...], 0.0)        # ReLU
        feats.append(jnp.mean(h, axis=0, keepdims=True))  # (1, Cmax) mean over L

    f = feats[0] if nb == 1 else jnp.concatenate(feats, axis=0)  # (NB, Cmax)

    # MLP head (dropout is identity at inference).
    h1 = jnp.maximum(
        jnp.dot(f, d1w[...], preferred_element_type=jnp.float32) + d1b[...], 0.0)
    h2 = jnp.maximum(
        jnp.dot(h1, d2w[...], preferred_element_type=jnp.float32) + d2b[...], 0.0)
    z = jnp.dot(h2, d3w[...], preferred_element_type=jnp.float32) + d3b[...]
    o_ref[:, 0, :] = jax.nn.sigmoid(z)                    # (NB, 1)


# --------------------------------- Wrapper -----------------------------------

def _multi_tensorcore_chip():
    """True on chips with >1 TensorCore per chip (v4/v5p megacore, v7x)."""
    try:
        kind = jax.devices()[0].device_kind.lower()
    except Exception:
        return False
    return ("v4" in kind) or ("v5p" in kind) or ("v7" in kind)


def _const_spec(a):
    nd = a.ndim
    return pl.BlockSpec(a.shape, lambda b, _nd=nd: (0,) * _nd)


@functools.partial(jax.jit, static_argnums=(2,))
def _forward_impl(params, x_ncl, batch_parallel):
    x = jnp.transpose(x_ncl, (0, 2, 1)).astype(jnp.float32)  # NCL -> NLC
    B, L, cin0 = x.shape

    conv_args = []
    for i in range(4):
        p = params[f"cb{i + 1}"]
        conv_args += [p["w1"], p["b1"], p["w2"], p["b2"]]
    d1w, d1b = params["dense1"]
    d2w, d2b = params["dense2"]
    d3w, d3b = params["denseOut"]
    dense_args = [d1w, d1b, d2w, d2b, d3w, d3b]

    K = conv_args[0].shape[0]
    pad = K // 2
    cmax = max(w.shape[2] for w in conv_args[0::2])

    if batch_parallel and B > 1:
        nb = 1        # one sample per grid step -> one sample per TensorCore
    else:
        nb = B        # whole batch in one grid step (single-TC chips)
    gb = B // nb

    in_specs = [pl.BlockSpec((nb, L, cin0), lambda b: (b, 0, 0))]
    in_specs += [_const_spec(a) for a in conv_args + dense_args]

    out = pl.pallas_call(
        _fused_kernel,
        out_shape=jax.ShapeDtypeStruct((B, 1, 1), jnp.float32),
        grid=(gb,),
        in_specs=in_specs,
        out_specs=pl.BlockSpec((nb, 1, 1), lambda b: (b, 0, 0)),
        scratch_shapes=[pltpu.VMEM((L + 2 * pad, cmax), jnp.float32)],
        compiler_params=pltpu.CompilerParams(
            dimension_semantics=("parallel",)),
    )(x, *conv_args, *dense_args)
    return out.reshape(B, 1)


def cnn_class_forward(params, x_ncl):
    """x_ncl: (B, C, L) like the PyTorch module. Returns (B, 1)."""
    return _forward_impl(params, x_ncl, _multi_tensorcore_chip())


# --------------------------- Parameter construction --------------------------

def _xavier_uniform_conv(key, k, cin, cout):
    # PyTorch conv weight (Cout, Cin, K): fan_in = Cin*K, fan_out = Cout*K.
    bound = (6.0 / (cin * k + cout * k)) ** 0.5
    # Stored directly in our (K, Cin, Cout) layout.
    return jax.random.uniform(key, (k, cin, cout), jnp.float32, -bound, bound)


def _uniform_bias(key, fan_in, n):
    bound = 1.0 / (fan_in ** 0.5)
    return jax.random.uniform(key, (1, n), jnp.float32, -bound, bound)


def _linear(key, n_in, n_out):
    kw, kb = jax.random.split(key)
    bound = 1.0 / (n_in ** 0.5)
    w = jax.random.uniform(kw, (n_in, n_out), jnp.float32, -bound, bound)
    b = jax.random.uniform(kb, (1, n_out), jnp.float32, -bound, bound)
    return w, b


def init_params(key, channels=2, kernel_size=3, n_fc=64,
                n_filters=(24, 48, 96, 192)):
    params = {}
    dims = [channels] + list(n_filters)
    keys = jax.random.split(key, 16)
    ki = 0
    for i in range(4):
        cin, c = dims[i], dims[i + 1]
        params[f"cb{i + 1}"] = dict(
            w1=_xavier_uniform_conv(keys[ki + 0], kernel_size, cin, c),
            b1=_uniform_bias(keys[ki + 1], cin * kernel_size, c),
            w2=_xavier_uniform_conv(keys[ki + 2], kernel_size, c, c),
            b2=_uniform_bias(keys[ki + 3], c * kernel_size, c),
        )
        ki += 4
    k1, k2, k3 = jax.random.split(keys[-1], 3)
    params["dense1"] = _linear(k1, n_filters[3], n_fc)
    params["dense2"] = _linear(k2, n_fc, n_fc)
    params["denseOut"] = _linear(k3, n_fc, 1)
    return params


# ------------------------------ Pure-JAX reference ---------------------------

def _ref_conv1d_same(x_ncl, w_kico, b):
    # w_kico: (K, Cin, Cout) -> OIH (Cout, Cin, K)
    w_oih = jnp.transpose(w_kico, (2, 1, 0))
    y = lax.conv_general_dilated(
        x_ncl, w_oih, window_strides=(1,), padding="SAME",
        dimension_numbers=("NCH", "OIH", "NCH"))
    return y + b.reshape(1, -1, 1)


def cnn_class_forward_ref(params, x_ncl):
    x = x_ncl.astype(jnp.float32)
    for i in range(4):
        p = params[f"cb{i + 1}"]
        x = jnp.maximum(_ref_conv1d_same(x, p["w1"], p["b1"]), 0.0)
        x = jnp.maximum(_ref_conv1d_same(x, p["w2"], p["b2"]), 0.0)
    f = jnp.mean(x, axis=-1)  # (B, C)
    w1, b1 = params["dense1"]
    w2, b2 = params["dense2"]
    w3, b3 = params["denseOut"]
    h = jnp.maximum(f @ w1 + b1, 0.0)
    h = jnp.maximum(h @ w2 + b2, 0.0)
    return jax.nn.sigmoid(h @ w3 + b3)


# ----------------------------------- Main ------------------------------------

if __name__ == "__main__":
    key = jax.random.PRNGKey(0)
    kp, kx = jax.random.split(key)

    B, C, L = 2, 2, 60  # batch, channels, sample_size (module defaults: C=2, L=60)
    params = init_params(kp, channels=C)
    x = jax.random.normal(kx, (B, C, L), dtype=jnp.float32)

    out = cnn_class_forward(params, x)
    out = jax.block_until_ready(out)

    ref = cnn_class_forward_ref(params, x)
    assert out.shape == (B, 1)
    assert jnp.all(jnp.isfinite(out))
    assert jnp.allclose(out, ref, atol=1e-4, rtol=1e-4)

    print("KERNEL_OK")
</pallas_src>

<mosaic_0001>
module attributes {stable_mosaic.version = 11 : i64} {
  func.func @_fused_kernel(%arg0: i32, %arg1: memref<2x60x2xf32, #tpu.memory_space<vmem>>, %arg2: memref<3x2x24xf32, #tpu.memory_space<vmem>>, %arg3: memref<1x24xf32, #tpu.memory_space<vmem>>, %arg4: memref<3x24x24xf32, #tpu.memory_space<vmem>>, %arg5: memref<1x24xf32, #tpu.memory_space<vmem>>, %arg6: memref<3x24x48xf32, #tpu.memory_space<vmem>>, %arg7: memref<1x48xf32, #tpu.memory_space<vmem>>, %arg8: memref<3x48x48xf32, #tpu.memory_space<vmem>>, %arg9: memref<1x48xf32, #tpu.memory_space<vmem>>, %arg10: memref<3x48x96xf32, #tpu.memory_space<vmem>>, %arg11: memref<1x96xf32, #tpu.memory_space<vmem>>, %arg12: memref<3x96x96xf32, #tpu.memory_space<vmem>>, %arg13: memref<1x96xf32, #tpu.memory_space<vmem>>, %arg14: memref<3x96x192xf32, #tpu.memory_space<vmem>>, %arg15: memref<1x192xf32, #tpu.memory_space<vmem>>, %arg16: memref<3x192x192xf32, #tpu.memory_space<vmem>>, %arg17: memref<1x192xf32, #tpu.memory_space<vmem>>, %arg18: memref<192x64xf32, #tpu.memory_space<vmem>>, %arg19: memref<1x64xf32, #tpu.memory_space<vmem>>, %arg20: memref<64x64xf32, #tpu.memory_space<vmem>>, %arg21: memref<1x64xf32, #tpu.memory_space<vmem>>, %arg22: memref<64x1xf32, #tpu.memory_space<vmem>>, %arg23: memref<1x1xf32, #tpu.memory_space<vmem>>, %arg24: memref<2x1x1xf32, #tpu.memory_space<vmem>>, %arg25: memref<62x192xf32, #tpu.memory_space<vmem>>) attributes {dimension_semantics = [#tpu.dimension_semantics<parallel>], iteration_bounds = array<i64: 1>, scalar_prefetch = 0 : i64, scratch_operands = 1 : i64, tpu.core_type = #tpu.core_type<tc>, window_params = [{transform_indices = @transform_0, window_bounds = array<i64: 2, 60, 2>}, {pipeline_mode = #tpu.pipeline_mode<synchronous>, transform_indices = @transform_1, window_bounds = array<i64: 3, 2, 24>}, {pipeline_mode = #tpu.pipeline_mode<synchronous>, transform_indices = @transform_2, window_bounds = array<i64: 1, 24>}, {pipeline_mode = #tpu.pipeline_mode<synchronous>, transform_indices = @transform_3, window_bounds = array<i64: 3, 24, 24>}, {pipeline_mode = #tpu.pipeline_mode<synchronous>, transform_indices = @transform_4, window_bounds = array<i64: 1, 24>}, {pipeline_mode = #tpu.pipeline_mode<synchronous>, transform_indices = @transform_5, window_bounds = array<i64: 3, 24, 48>}, {pipeline_mode = #tpu.pipeline_mode<synchronous>, transform_indices = @transform_6, window_bounds = array<i64: 1, 48>}, {pipeline_mode = #tpu.pipeline_mode<synchronous>, transform_indices = @transform_7, window_bounds = array<i64: 3, 48, 48>}, {pipeline_mode = #tpu.pipeline_mode<synchronous>, transform_indices = @transform_8, window_bounds = array<i64: 1, 48>}, {pipeline_mode = #tpu.pipeline_mode<synchronous>, transform_indices = @transform_9, window_bounds = array<i64: 3, 48, 96>}, {pipeline_mode = #tpu.pipeline_mode<synchronous>, transform_indices = @transform_10, window_bounds = array<i64: 1, 96>}, {pipeline_mode = #tpu.pipeline_mode<synchronous>, transform_indices = @transform_11, window_bounds = array<i64: 3, 96, 96>}, {pipeline_mode = #tpu.pipeline_mode<synchronous>, transform_indices = @transform_12, window_bounds = array<i64: 1, 96>}, {pipeline_mode = #tpu.pipeline_mode<synchronous>, transform_indices = @transform_13, window_bounds = array<i64: 3, 96, 192>}, {pipeline_mode = #tpu.pipeline_mode<synchronous>, transform_indices = @transform_14, window_bounds = array<i64: 1, 192>}, {pipeline_mode = #tpu.pipeline_mode<synchronous>, transform_indices = @transform_15, window_bounds = array<i64: 3, 192, 192>}, {pipeline_mode = #tpu.pipeline_mode<synchronous>, transform_indices = @transform_16, window_bounds = array<i64: 1, 192>}, {pipeline_mode = #tpu.pipeline_mode<synchronous>, transform_indices = @transform_17, window_bounds = array<i64: 192, 64>}, {pipeline_mode = #tpu.pipeline_mode<synchronous>, transform_indices = @transform_18, window_bounds = array<i64: 1, 64>}, {pipeline_mode = #tpu.pipeline_mode<synchronous>, transform_indices = @transform_19, window_bounds = array<i64: 64, 64>}, {pipeline_mode = #tpu.pipeline_mode<synchronous>, transform_indices = @transform_20, window_bounds = array<i64: 1, 64>}, {pipeline_mode = #tpu.pipeline_mode<synchronous>, transform_indices = @transform_21, window_bounds = array<i64: 64, 1>}, {pipeline_mode = #tpu.pipeline_mode<synchronous>, transform_indices = @transform_22, window_bounds = array<i64: 1, 1>}, {transform_indices = @transform_23, window_bounds = array<i64: 2, 1, 1>}]} {
    %cst = arith.constant 0.000000e+00 : f32
    %0 = vector.broadcast %cst : f32 to vector<1x192xf32>
    %c0 = arith.constant 0 : index
    %c0_0 = arith.constant 0 : index
    %1 = vector.load %arg25[%c0, %c0_0] : memref<62x192xf32, #tpu.memory_space<vmem>>, vector<1x192xf32>
    tpu.vector_store %arg25[%c0, %c0_0], %0 {strides = array<i32>} : memref<62x192xf32, #tpu.memory_space<vmem>>, vector<1x192xf32>,
    %c61 = arith.constant 61 : index
    %c0_1 = arith.constant 0 : index
    %2 = vector.load %arg25[%c61, %c0_1] : memref<62x192xf32, #tpu.memory_space<vmem>>, vector<1x192xf32>
    tpu.vector_store %arg25[%c61, %c0_1], %0 {strides = array<i32>} : memref<62x192xf32, #tpu.memory_space<vmem>>, vector<1x192xf32>,
    %c0_2 = arith.constant 0 : index
    %c0_3 = arith.constant 0 : index
    %c0_4 = arith.constant 0 : index
    %3 = vector.load %arg1[%c0_2, %c0_3, %c0_4] : memref<2x60x2xf32, #tpu.memory_space<vmem>>, vector<1x60x2xf32>
    %4 = vector.shape_cast %3 : vector<1x60x2xf32> to vector<60x2xf32>
    %c1 = arith.constant 1 : index
    %c0_5 = arith.constant 0 : index
    %5 = vector.load %arg25[%c1, %c0_5] : memref<62x192xf32, #tpu.memory_space<vmem>>, vector<60x2xf32>
    tpu.vector_store %arg25[%c1, %c0_5], %4 {strides = array<i32>} : memref<62x192xf32, #tpu.memory_space<vmem>>, vector<60x2xf32>,
    %c0_6 = arith.constant 0 : index
    %c0_7 = arith.constant 0 : index
    %6 = vector.load %arg25[%c0_6, %c0_7] : memref<62x192xf32, #tpu.memory_space<vmem>>, vector<62x2xf32>
    %cst_8 = arith.constant 0.000000e+00 : f32
    %7 = vector.broadcast %cst_8 : f32 to vector<60x24xf32>
    %8 = vector.extract_strided_slice %6 {offsets = [0, 0], sizes = [60, 2], strides = [1, 1]} : vector<62x2xf32> to vector<60x2xf32>
    %c0_9 = arith.constant 0 : index
    %c0_10 = arith.constant 0 : index
    %c0_11 = arith.constant 0 : index
    %9 = vector.load %arg2[%c0_9, %c0_10, %c0_11] : memref<3x2x24xf32, #tpu.memory_space<vmem>>, vector<1x2x24xf32>
    %10 = vector.shape_cast %9 : vector<1x2x24xf32> to vector<2x24xf32>
    %cst_12 = arith.constant dense<0.000000e+00> : vector<60x24xf32>
    %11 = tpu.matmul %8, %10, %cst_12 {dimension_numbers = #tpu.dot_dimension_numbers<[1], [0], [0], [1], [0, 0, 1, 1], [], []>} : vector<60x2xf32>, vector<2x24xf32>, vector<60x24xf32> -> vector<60x24xf32>
    %12 = arith.addf %7, %11 : vector<60x24xf32>
    %13 = vector.extract_strided_slice %6 {offsets = [1, 0], sizes = [60, 2], strides = [1, 1]} : vector<62x2xf32> to vector<60x2xf32>
    %c1_13 = arith.constant 1 : index
    %c0_14 = arith.constant 0 : index
    %c0_15 = arith.constant 0 : index
    %14 = vector.load %arg2[%c1_13, %c0_14, %c0_15] : memref<3x2x24xf32, #tpu.memory_space<vmem>>, vector<1x2x24xf32>
    %15 = vector.shape_cast %14 : vector<1x2x24xf32> to vector<2x24xf32>
    %cst_16 = arith.constant dense<0.000000e+00> : vector<60x24xf32>
    %16 = tpu.matmul %13, %15, %cst_16 {dimension_numbers = #tpu.dot_dimension_numbers<[1], [0], [0], [1], [0, 0, 1, 1], [], []>} : vector<60x2xf32>, vector<2x24xf32>, vector<60x24xf32> -> vector<60x24xf32>
    %17 = arith.addf %12, %16 : vector<60x24xf32>
    %18 = vector.extract_strided_slice %6 {offsets = [2, 0], sizes = [60, 2], strides = [1, 1]} : vector<62x2xf32> to vector<60x2xf32>
    %c2 = arith.constant 2 : index
    %c0_17 = arith.constant 0 : index
    %c0_18 = arith.constant 0 : index
    %19 = vector.load %arg2[%c2, %c0_17, %c0_18] : memref<3x2x24xf32, #tpu.memory_space<vmem>>, vector<1x2x24xf32>
    %20 = vector.shape_cast %19 : vector<1x2x24xf32> to vector<2x24xf32>
    %cst_19 = arith.constant dense<0.000000e+00> : vector<60x24xf32>
    %21 = tpu.matmul %18, %20, %cst_19 {dimension_numbers = #tpu.dot_dimension_numbers<[1], [0], [0], [1], [0, 0, 1, 1], [], []>} : vector<60x2xf32>, vector<2x24xf32>, vector<60x24xf32> -> vector<60x24xf32>
    %22 = arith.addf %17, %21 : vector<60x24xf32>
    %c0_20 = arith.constant 0 : index
    %c0_21 = arith.constant 0 : index
    %23 = vector.load %arg3[%c0_20, %c0_21] : memref<1x24xf32, #tpu.memory_space<vmem>>, vector<1x24xf32>
    %24 = vector.broadcast %23 : vector<1x24xf32> to vector<60x24xf32>
    %25 = arith.addf %22, %24 : vector<60x24xf32>
    %cst_22 = arith.constant 0.000000e+00 : f32
    %26 = vector.broadcast %cst_22 : f32 to vector<60x24xf32>
    %27 = arith.maximumf %25, %26 : vector<60x24xf32>
    %c1_23 = arith.constant 1 : index
    %c0_24 = arith.constant 0 : index
    %28 = vector.load %arg25[%c1_23, %c0_24] : memref<62x192xf32, #tpu.memory_space<vmem>>, vector<60x24xf32>
    tpu.vector_store %arg25[%c1_23, %c0_24], %27 {strides = array<i32>} : memref<62x192xf32, #tpu.memory_space<vmem>>, vector<60x24xf32>,
    %c0_25 = arith.constant 0 : index
    %c0_26 = arith.constant 0 : index
    %29 = vector.load %arg25[%c0_25, %c0_26] : memref<62x192xf32, #tpu.memory_space<vmem>>, vector<62x24xf32>
    %cst_27 = arith.constant 0.000000e+00 : f32
    %30 = vector.broadcast %cst_27 : f32 to vector<60x24xf32>
    %31 = vector.extract_strided_slice %29 {offsets = [0, 0], sizes = [60, 24], strides = [1, 1]} : vector<62x24xf32> to vector<60x24xf32>
    %c0_28 = arith.constant 0 : index
    %c0_29 = arith.constant 0 : index
    %c0_30 = arith.constant 0 : index
    %32 = vector.load %arg4[%c0_28, %c0_29, %c0_30] : memref<3x24x24xf32, #tpu.memory_space<vmem>>, vector<1x24x24xf32>
    %33 = vector.shape_cast %32 : vector<1x24x24xf32> to vector<24x24xf32>
    %cst_31 = arith.constant dense<0.000000e+00> : vector<60x24xf32>
    %34 = tpu.matmul %31, %33, %cst_31 {dimension_numbers = #tpu.dot_dimension_numbers<[1], [0], [0], [1], [0, 0, 1, 1], [], []>} : vector<60x24xf32>, vector<24x24xf32>, vector<60x24xf32> -> vector<60x24xf32>
    %35 = arith.addf %30, %34 : vector<60x24xf32>
    %36 = vector.extract_strided_slice %29 {offsets = [1, 0], sizes = [60, 24], strides = [1, 1]} : vector<62x24xf32> to vector<60x24xf32>
    %c1_32 = arith.constant 1 : index
    %c0_33 = arith.constant 0 : index
    %c0_34 = arith.constant 0 : index
    %37 = vector.load %arg4[%c1_32, %c0_33, %c0_34] : memref<3x24x24xf32, #tpu.memory_space<vmem>>, vector<1x24x24xf32>
    %38 = vector.shape_cast %37 : vector<1x24x24xf32> to vector<24x24xf32>
    %cst_35 = arith.constant dense<0.000000e+00> : vector<60x24xf32>
    %39 = tpu.matmul %36, %38, %cst_35 {dimension_numbers = #tpu.dot_dimension_numbers<[1], [0], [0], [1], [0, 0, 1, 1], [], []>} : vector<60x24xf32>, vector<24x24xf32>, vector<60x24xf32> -> vector<60x24xf32>
    %40 = arith.addf %35, %39 : vector<60x24xf32>
    %41 = vector.extract_strided_slice %29 {offsets = [2, 0], sizes = [60, 24], strides = [1, 1]} : vector<62x24xf32> to vector<60x24xf32>
    %c2_36 = arith.constant 2 : index
    %c0_37 = arith.constant 0 : index
    %c0_38 = arith.constant 0 : index
    %42 = vector.load %arg4[%c2_36, %c0_37, %c0_38] : memref<3x24x24xf32, #tpu.memory_space<vmem>>, vector<1x24x24xf32>
    %43 = vector.shape_cast %42 : vector<1x24x24xf32> to vector<24x24xf32>
    %cst_39 = arith.constant dense<0.000000e+00> : vector<60x24xf32>
    %44 = tpu.matmul %41, %43, %cst_39 {dimension_numbers = #tpu.dot_dimension_numbers<[1], [0], [0], [1], [0, 0, 1, 1], [], []>} : vector<60x24xf32>, vector<24x24xf32>, vector<60x24xf32> -> vector<60x24xf32>
    %45 = arith.addf %40, %44 : vector<60x24xf32>
    %c0_40 = arith.constant 0 : index
    %c0_41 = arith.constant 0 : index
    %46 = vector.load %arg5[%c0_40, %c0_41] : memref<1x24xf32, #tpu.memory_space<vmem>>, vector<1x24xf32>
    %47 = vector.broadcast %46 : vector<1x24xf32> to vector<60x24xf32>
    %48 = arith.addf %45, %47 : vector<60x24xf32>
    %cst_42 = arith.constant 0.000000e+00 : f32
    %49 = vector.broadcast %cst_42 : f32 to vector<60x24xf32>
    %50 = arith.maximumf %48, %49 : vector<60x24xf32>
    %c1_43 = arith.constant 1 : index
    %c0_44 = arith.constant 0 : index
    %51 = vector.load %arg25[%c1_43, %c0_44] : memref<62x192xf32, #tpu.memory_space<vmem>>, vector<60x24xf32>
    tpu.vector_store %arg25[%c1_43, %c0_44], %50 {strides = array<i32>} : memref<62x192xf32, #tpu.memory_space<vmem>>, vector<60x24xf32>,
    %c0_45 = arith.constant 0 : index
    %c0_46 = arith.constant 0 : index
    %52 = vector.load %arg25[%c0_45, %c0_46] : memref<62x192xf32, #tpu.memory_space<vmem>>, vector<62x24xf32>
    %cst_47 = arith.constant 0.000000e+00 : f32
    %53 = vector.broadcast %cst_47 : f32 to vector<60x48xf32>
    %54 = vector.extract_strided_slice %52 {offsets = [0, 0], sizes = [60, 24], strides = [1, 1]} : vector<62x24xf32> to vector<60x24xf32>
    %c0_48 = arith.constant 0 : index
    %c0_49 = arith.constant 0 : index
    %c0_50 = arith.constant 0 : index
    %55 = vector.load %arg6[%c0_48, %c0_49, %c0_50] : memref<3x24x48xf32, #tpu.memory_space<vmem>>, vector<1x24x48xf32>
    %56 = vector.shape_cast %55 : vector<1x24x48xf32> to vector<24x48xf32>
    %cst_51 = arith.constant dense<0.000000e+00> : vector<60x48xf32>
    %57 = tpu.matmul %54, %56, %cst_51 {dimension_numbers = #tpu.dot_dimension_numbers<[1], [0], [0], [1], [0, 0, 1, 1], [], []>} : vector<60x24xf32>, vector<24x48xf32>, vector<60x48xf32> -> vector<60x48xf32>
    %58 = arith.addf %53, %57 : vector<60x48xf32>
    %59 = vector.extract_strided_slice %52 {offsets = [1, 0], sizes = [60, 24], strides = [1, 1]} : vector<62x24xf32> to vector<60x24xf32>
    %c1_52 = arith.constant 1 : index
    %c0_53 = arith.constant 0 : index
    %c0_54 = arith.constant 0 : index
    %60 = vector.load %arg6[%c1_52, %c0_53, %c0_54] : memref<3x24x48xf32, #tpu.memory_space<vmem>>, vector<1x24x48xf32>
    %61 = vector.shape_cast %60 : vector<1x24x48xf32> to vector<24x48xf32>
    %cst_55 = arith.constant dense<0.000000e+00> : vector<60x48xf32>
    %62 = tpu.matmul %59, %61, %cst_55 {dimension_numbers = #tpu.dot_dimension_numbers<[1], [0], [0], [1], [0, 0, 1, 1], [], []>} : vector<60x24xf32>, vector<24x48xf32>, vector<60x48xf32> -> vector<60x48xf32>
    %63 = arith.addf %58, %62 : vector<60x48xf32>
    %64 = vector.extract_strided_slice %52 {offsets = [2, 0], sizes = [60, 24], strides = [1, 1]} : vector<62x24xf32> to vector<60x24xf32>
    %c2_56 = arith.constant 2 : index
    %c0_57 = arith.constant 0 : index
    %c0_58 = arith.constant 0 : index
    %65 = vector.load %arg6[%c2_56, %c0_57, %c0_58] : memref<3x24x48xf32, #tpu.memory_space<vmem>>, vector<1x24x48xf32>
    %66 = vector.shape_cast %65 : vector<1x24x48xf32> to vector<24x48xf32>
    %cst_59 = arith.constant dense<0.000000e+00> : vector<60x48xf32>
    %67 = tpu.matmul %64, %66, %cst_59 {dimension_numbers = #tpu.dot_dimension_numbers<[1], [0], [0], [1], [0, 0, 1, 1], [], []>} : vector<60x24xf32>, vector<24x48xf32>, vector<60x48xf32> -> vector<60x48xf32>
    %68 = arith.addf %63, %67 : vector<60x48xf32>
    %c0_60 = arith.constant 0 : index
    %c0_61 = arith.constant 0 : index
    %69 = vector.load %arg7[%c0_60, %c0_61] : memref<1x48xf32, #tpu.memory_space<vmem>>, vector<1x48xf32>
    %70 = vector.broadcast %69 : vector<1x48xf32> to vector<60x48xf32>
    %71 = arith.addf %68, %70 : vector<60x48xf32>
    %cst_62 = arith.constant 0.000000e+00 : f32
    %72 = vector.broadcast %cst_62 : f32 to vector<60x48xf32>
    %73 = arith.maximumf %71, %72 : vector<60x48xf32>
    %c1_63 = arith.constant 1 : index
    %c0_64 = arith.constant 0 : index
    %74 = vector.load %arg25[%c1_63, %c0_64] : memref<62x192xf32, #tpu.memory_space<vmem>>, vector<60x48xf32>
    tpu.vector_store %arg25[%c1_63, %c0_64], %73 {strides = array<i32>} : memref<62x192xf32, #tpu.memory_space<vmem>>, vector<60x48xf32>,
    %c0_65 = arith.constant 0 : index
    %c0_66 = arith.constant 0 : index
    %75 = vector.load %arg25[%c0_65, %c0_66] : memref<62x192xf32, #tpu.memory_space<vmem>>, vector<62x48xf32>
    %cst_67 = arith.constant 0.000000e+00 : f32
    %76 = vector.broadcast %cst_67 : f32 to vector<60x48xf32>
    %77 = vector.extract_strided_slice %75 {offsets = [0, 0], sizes = [60, 48], strides = [1, 1]} : vector<62x48xf32> to vector<60x48xf32>
    %c0_68 = arith.constant 0 : index
    %c0_69 = arith.constant 0 : index
    %c0_70 = arith.constant 0 : index
    %78 = vector.load %arg8[%c0_68, %c0_69, %c0_70] : memref<3x48x48xf32, #tpu.memory_space<vmem>>, vector<1x48x48xf32>
    %79 = vector.shape_cast %78 : vector<1x48x48xf32> to vector<48x48xf32>
    %cst_71 = arith.constant dense<0.000000e+00> : vector<60x48xf32>
    %80 = tpu.matmul %77, %79, %cst_71 {dimension_numbers = #tpu.dot_dimension_numbers<[1], [0], [0], [1], [0, 0, 1, 1], [], []>} : vector<60x48xf32>, vector<48x48xf32>, vector<60x48xf32> -> vector<60x48xf32>
    %81 = arith.addf %76, %80 : vector<60x48xf32>
    %82 = vector.extract_strided_slice %75 {offsets = [1, 0], sizes = [60, 48], strides = [1, 1]} : vector<62x48xf32> to vector<60x48xf32>
    %c1_72 = arith.constant 1 : index
    %c0_73 = arith.constant 0 : index
    %c0_74 = arith.constant 0 : index
    %83 = vector.load %arg8[%c1_72, %c0_73, %c0_74] : memref<3x48x48xf32, #tpu.memory_space<vmem>>, vector<1x48x48xf32>
    %84 = vector.shape_cast %83 : vector<1x48x48xf32> to vector<48x48xf32>
    %cst_75 = arith.constant dense<0.000000e+00> : vector<60x48xf32>
    %85 = tpu.matmul %82, %84, %cst_75 {dimension_numbers = #tpu.dot_dimension_numbers<[1], [0], [0], [1], [0, 0, 1, 1], [], []>} : vector<60x48xf32>, vector<48x48xf32>, vector<60x48xf32> -> vector<60x48xf32>
    %86 = arith.addf %81, %85 : vector<60x48xf32>
    %87 = vector.extract_strided_slice %75 {offsets = [2, 0], sizes = [60, 48], strides = [1, 1]} : vector<62x48xf32> to vector<60x48xf32>
    %c2_76 = arith.constant 2 : index
    %c0_77 = arith.constant 0 : index
    %c0_78 = arith.constant 0 : index
    %88 = vector.load %arg8[%c2_76, %c0_77, %c0_78] : memref<3x48x48xf32, #tpu.memory_space<vmem>>, vector<1x48x48xf32>
    %89 = vector.shape_cast %88 : vector<1x48x48xf32> to vector<48x48xf32>
    %cst_79 = arith.constant dense<0.000000e+00> : vector<60x48xf32>
    %90 = tpu.matmul %87, %89, %cst_79 {dimension_numbers = #tpu.dot_dimension_numbers<[1], [0], [0], [1], [0, 0, 1, 1], [], []>} : vector<60x48xf32>, vector<48x48xf32>, vector<60x48xf32> -> vector<60x48xf32>
    %91 = arith.addf %86, %90 : vector<60x48xf32>
    %c0_80 = arith.constant 0 : index
    %c0_81 = arith.constant 0 : index
    %92 = vector.load %arg9[%c0_80, %c0_81] : memref<1x48xf32, #tpu.memory_space<vmem>>, vector<1x48xf32>
    %93 = vector.broadcast %92 : vector<1x48xf32> to vector<60x48xf32>
    %94 = arith.addf %91, %93 : vector<60x48xf32>
    %cst_82 = arith.constant 0.000000e+00 : f32
    %95 = vector.broadcast %cst_82 : f32 to vector<60x48xf32>
    %96 = arith.maximumf %94, %95 : vector<60x48xf32>
    %c1_83 = arith.constant 1 : index
    %c0_84 = arith.constant 0 : index
    %97 = vector.load %arg25[%c1_83, %c0_84] : memref<62x192xf32, #tpu.memory_space<vmem>>, vector<60x48xf32>
    tpu.vector_store %arg25[%c1_83, %c0_84], %96 {strides = array<i32>} : memref<62x192xf32, #tpu.memory_space<vmem>>, vector<60x48xf32>,
    %c0_85 = arith.constant 0 : index
    %c0_86 = arith.constant 0 : index
    %98 = vector.load %arg25[%c0_85, %c0_86] : memref<62x192xf32, #tpu.memory_space<vmem>>, vector<62x48xf32>
    %cst_87 = arith.constant 0.000000e+00 : f32
    %99 = vector.broadcast %cst_87 : f32 to vector<60x96xf32>
    %100 = vector.extract_strided_slice %98 {offsets = [0, 0], sizes = [60, 48], strides = [1, 1]} : vector<62x48xf32> to vector<60x48xf32>
    %c0_88 = arith.constant 0 : index
    %c0_89 = arith.constant 0 : index
    %c0_90 = arith.constant 0 : index
    %101 = vector.load %arg10[%c0_88, %c0_89, %c0_90] : memref<3x48x96xf32, #tpu.memory_space<vmem>>, vector<1x48x96xf32>
    %102 = vector.shape_cast %101 : vector<1x48x96xf32> to vector<48x96xf32>
    %cst_91 = arith.constant dense<0.000000e+00> : vector<60x96xf32>
    %103 = tpu.matmul %100, %102, %cst_91 {dimension_numbers = #tpu.dot_dimension_numbers<[1], [0], [0], [1], [0, 0, 1, 1], [], []>} : vector<60x48xf32>, vector<48x96xf32>, vector<60x96xf32> -> vector<60x96xf32>
    %104 = arith.addf %99, %103 : vector<60x96xf32>
    %105 = vector.extract_strided_slice %98 {offsets = [1, 0], sizes = [60, 48], strides = [1, 1]} : vector<62x48xf32> to vector<60x48xf32>
    %c1_92 = arith.constant 1 : index
    %c0_93 = arith.constant 0 : index
    %c0_94 = arith.constant 0 : index
    %106 = vector.load %arg10[%c1_92, %c0_93, %c0_94] : memref<3x48x96xf32, #tpu.memory_space<vmem>>, vector<1x48x96xf32>
    %107 = vector.shape_cast %106 : vector<1x48x96xf32> to vector<48x96xf32>
    %cst_95 = arith.constant dense<0.000000e+00> : vector<60x96xf32>
    %108 = tpu.matmul %105, %107, %cst_95 {dimension_numbers = #tpu.dot_dimension_numbers<[1], [0], [0], [1], [0, 0, 1, 1], [], []>} : vector<60x48xf32>, vector<48x96xf32>, vector<60x96xf32> -> vector<60x96xf32>
    %109 = arith.addf %104, %108 : vector<60x96xf32>
    %110 = vector.extract_strided_slice %98 {offsets = [2, 0], sizes = [60, 48], strides = [1, 1]} : vector<62x48xf32> to vector<60x48xf32>
    %c2_96 = arith.constant 2 : index
    %c0_97 = arith.constant 0 : index
    %c0_98 = arith.constant 0 : index
    %111 = vector.load %arg10[%c2_96, %c0_97, %c0_98] : memref<3x48x96xf32, #tpu.memory_space<vmem>>, vector<1x48x96xf32>
    %112 = vector.shape_cast %111 : vector<1x48x96xf32> to vector<48x96xf32>
    %cst_99 = arith.constant dense<0.000000e+00> : vector<60x96xf32>
    %113 = tpu.matmul %110, %112, %cst_99 {dimension_numbers = #tpu.dot_dimension_numbers<[1], [0], [0], [1], [0, 0, 1, 1], [], []>} : vector<60x48xf32>, vector<48x96xf32>, vector<60x96xf32> -> vector<60x96xf32>
    %114 = arith.addf %109, %113 : vector<60x96xf32>
    %c0_100 = arith.constant 0 : index
    %c0_101 = arith.constant 0 : index
    %115 = vector.load %arg11[%c0_100, %c0_101] : memref<1x96xf32, #tpu.memory_space<vmem>>, vector<1x96xf32>
    %116 = vector.broadcast %115 : vector<1x96xf32> to vector<60x96xf32>
    %117 = arith.addf %114, %116 : vector<60x96xf32>
    %cst_102 = arith.constant 0.000000e+00 : f32
    %118 = vector.broadcast %cst_102 : f32 to vector<60x96xf32>
    %119 = arith.maximumf %117, %118 : vector<60x96xf32>
    %c1_103 = arith.constant 1 : index
    %c0_104 = arith.constant 0 : index
    %120 = vector.load %arg25[%c1_103, %c0_104] : memref<62x192xf32, #tpu.memory_space<vmem>>, vector<60x96xf32>
    tpu.vector_store %arg25[%c1_103, %c0_104], %119 {strides = array<i32>} : memref<62x192xf32, #tpu.memory_space<vmem>>, vector<60x96xf32>,
    %c0_105 = arith.constant 0 : index
    %c0_106 = arith.constant 0 : index
    %121 = vector.load %arg25[%c0_105, %c0_106] : memref<62x192xf32, #tpu.memory_space<vmem>>, vector<62x96xf32>
    %cst_107 = arith.constant 0.000000e+00 : f32
    %122 = vector.broadcast %cst_107 : f32 to vector<60x96xf32>
    %123 = vector.extract_strided_slice %121 {offsets = [0, 0], sizes = [60, 96], strides = [1, 1]} : vector<62x96xf32> to vector<60x96xf32>
    %c0_108 = arith.constant 0 : index
    %c0_109 = arith.constant 0 : index
    %c0_110 = arith.constant 0 : index
    %124 = vector.load %arg12[%c0_108, %c0_109, %c0_110] : memref<3x96x96xf32, #tpu.memory_space<vmem>>, vector<1x96x96xf32>
    %125 = vector.shape_cast %124 : vector<1x96x96xf32> to vector<96x96xf32>
    %cst_111 = arith.constant dense<0.000000e+00> : vector<60x96xf32>
    %126 = tpu.matmul %123, %125, %cst_111 {dimension_numbers = #tpu.dot_dimension_numbers<[1], [0], [0], [1], [0, 0, 1, 1], [], []>} : vector<60x96xf32>, vector<96x96xf32>, vector<60x96xf32> -> vector<60x96xf32>
    %127 = arith.addf %122, %126 : vector<60x96xf32>
    %128 = vector.extract_strided_slice %121 {offsets = [1, 0], sizes = [60, 96], strides = [1, 1]} : vector<62x96xf32> to vector<60x96xf32>
    %c1_112 = arith.constant 1 : index
    %c0_113 = arith.constant 0 : index
    %c0_114 = arith.constant 0 : index
    %129 = vector.load %arg12[%c1_112, %c0_113, %c0_114] : memref<3x96x96xf32, #tpu.memory_space<vmem>>, vector<1x96x96xf32>
    %130 = vector.shape_cast %129 : vector<1x96x96xf32> to vector<96x96xf32>
    %cst_115 = arith.constant dense<0.000000e+00> : vector<60x96xf32>
    %131 = tpu.matmul %128, %130, %cst_115 {dimension_numbers = #tpu.dot_dimension_numbers<[1], [0], [0], [1], [0, 0, 1, 1], [], []>} : vector<60x96xf32>, vector<96x96xf32>, vector<60x96xf32> -> vector<60x96xf32>
    %132 = arith.addf %127, %131 : vector<60x96xf32>
    %133 = vector.extract_strided_slice %121 {offsets = [2, 0], sizes = [60, 96], strides = [1, 1]} : vector<62x96xf32> to vector<60x96xf32>
    %c2_116 = arith.constant 2 : index
    %c0_117 = arith.constant 0 : index
    %c0_118 = arith.constant 0 : index
    %134 = vector.load %arg12[%c2_116, %c0_117, %c0_118] : memref<3x96x96xf32, #tpu.memory_space<vmem>>, vector<1x96x96xf32>
    %135 = vector.shape_cast %134 : vector<1x96x96xf32> to vector<96x96xf32>
    %cst_119 = arith.constant dense<0.000000e+00> : vector<60x96xf32>
    %136 = tpu.matmul %133, %135, %cst_119 {dimension_numbers = #tpu.dot_dimension_numbers<[1], [0], [0], [1], [0, 0, 1, 1], [], []>} : vector<60x96xf32>, vector<96x96xf32>, vector<60x96xf32> -> vector<60x96xf32>
    %137 = arith.addf %132, %136 : vector<60x96xf32>
    %c0_120 = arith.constant 0 : index
    %c0_121 = arith.constant 0 : index
    %138 = vector.load %arg13[%c0_120, %c0_121] : memref<1x96xf32, #tpu.memory_space<vmem>>, vector<1x96xf32>
    %139 = vector.broadcast %138 : vector<1x96xf32> to vector<60x96xf32>
    %140 = arith.addf %137, %139 : vector<60x96xf32>
    %cst_122 = arith.constant 0.000000e+00 : f32
    %141 = vector.broadcast %cst_122 : f32 to vector<60x96xf32>
    %142 = arith.maximumf %140, %141 : vector<60x96xf32>
    %c1_123 = arith.constant 1 : index
    %c0_124 = arith.constant 0 : index
    %143 = vector.load %arg25[%c1_123, %c0_124] : memref<62x192xf32, #tpu.memory_space<vmem>>, vector<60x96xf32>
    tpu.vector_store %arg25[%c1_123, %c0_124], %142 {strides = array<i32>} : memref<62x192xf32, #tpu.memory_space<vmem>>, vector<60x96xf32>,
    %c0_125 = arith.constant 0 : index
    %c0_126 = arith.constant 0 : index
    %144 = vector.load %arg25[%c0_125, %c0_126] : memref<62x192xf32, #tpu.memory_space<vmem>>, vector<62x96xf32>
    %cst_127 = arith.constant 0.000000e+00 : f32
    %145 = vector.broadcast %cst_127 : f32 to vector<60x192xf32>
    %146 = vector.extract_strided_slice %144 {offsets = [0, 0], sizes = [60, 96], strides = [1, 1]} : vector<62x96xf32> to vector<60x96xf32>
    %c0_128 = arith.constant 0 : index
    %c0_129 = arith.constant 0 : index
    %c0_130 = arith.constant 0 : index
    %147 = vector.load %arg14[%c0_128, %c0_129, %c0_130] : memref<3x96x192xf32, #tpu.memory_space<vmem>>, vector<1x96x192xf32>
    %148 = vector.shape_cast %147 : vector<1x96x192xf32> to vector<96x192xf32>
    %cst_131 = arith.constant dense<0.000000e+00> : vector<60x192xf32>
    %149 = tpu.matmul %146, %148, %cst_131 {dimension_numbers = #tpu.dot_dimension_numbers<[1], [0], [0], [1], [0, 0, 1, 1], [], []>} : vector<60x96xf32>, vector<96x192xf32>, vector<60x192xf32> -> vector<60x192xf32>
    %150 = arith.addf %145, %149 : vector<60x192xf32>
    %151 = vector.extract_strided_slice %144 {offsets = [1, 0], sizes = [60, 96], strides = [1, 1]} : vector<62x96xf32> to vector<60x96xf32>
    %c1_132 = arith.constant 1 : index
    %c0_133 = arith.constant 0 : index
    %c0_134 = arith.constant 0 : index
    %152 = vector.load %arg14[%c1_132, %c0_133, %c0_134] : memref<3x96x192xf32, #tpu.memory_space<vmem>>, vector<1x96x192xf32>
    %153 = vector.shape_cast %152 : vector<1x96x192xf32> to vector<96x192xf32>
    %cst_135 = arith.constant dense<0.000000e+00> : vector<60x192xf32>
    %154 = tpu.matmul %151, %153, %cst_135 {dimension_numbers = #tpu.dot_dimension_numbers<[1], [0], [0], [1], [0, 0, 1, 1], [], []>} : vector<60x96xf32>, vector<96x192xf32>, vector<60x192xf32> -> vector<60x192xf32>
    %155 = arith.addf %150, %154 : vector<60x192xf32>
    %156 = vector.extract_strided_slice %144 {offsets = [2, 0], sizes = [60, 96], strides = [1, 1]} : vector<62x96xf32> to vector<60x96xf32>
    %c2_136 = arith.constant 2 : index
    %c0_137 = arith.constant 0 : index
    %c0_138 = arith.constant 0 : index
    %157 = vector.load %arg14[%c2_136, %c0_137, %c0_138] : memref<3x96x192xf32, #tpu.memory_space<vmem>>, vector<1x96x192xf32>
    %158 = vector.shape_cast %157 : vector<1x96x192xf32> to vector<96x192xf32>
    %cst_139 = arith.constant dense<0.000000e+00> : vector<60x192xf32>
    %159 = tpu.matmul %156, %158, %cst_139 {dimension_numbers = #tpu.dot_dimension_numbers<[1], [0], [0], [1], [0, 0, 1, 1], [], []>} : vector<60x96xf32>, vector<96x192xf32>, vector<60x192xf32> -> vector<60x192xf32>
    %160 = arith.addf %155, %159 : vector<60x192xf32>
    %c0_140 = arith.constant 0 : index
    %c0_141 = arith.constant 0 : index
    %161 = vector.load %arg15[%c0_140, %c0_141] : memref<1x192xf32, #tpu.memory_space<vmem>>, vector<1x192xf32>
    %162 = vector.broadcast %161 : vector<1x192xf32> to vector<60x192xf32>
    %163 = arith.addf %160, %162 : vector<60x192xf32>
    %cst_142 = arith.constant 0.000000e+00 : f32
    %164 = vector.broadcast %cst_142 : f32 to vector<60x192xf32>
    %165 = arith.maximumf %163, %164 : vector<60x192xf32>
    %c1_143 = arith.constant 1 : index
    %c0_144 = arith.constant 0 : index
    %166 = vector.load %arg25[%c1_143, %c0_144] : memref<62x192xf32, #tpu.memory_space<vmem>>, vector<60x192xf32>
    tpu.vector_store %arg25[%c1_143, %c0_144], %165 {strides = array<i32>} : memref<62x192xf32, #tpu.memory_space<vmem>>, vector<60x192xf32>,
    %c0_145 = arith.constant 0 : index
    %c0_146 = arith.constant 0 : index
    %167 = vector.load %arg25[%c0_145, %c0_146] : memref<62x192xf32, #tpu.memory_space<vmem>>, vector<62x192xf32>
    %cst_147 = arith.constant 0.000000e+00 : f32
    %168 = vector.broadcast %cst_147 : f32 to vector<60x192xf32>
    %169 = vector.extract_strided_slice %167 {offsets = [0, 0], sizes = [60, 192], strides = [1, 1]} : vector<62x192xf32> to vector<60x192xf32>
    %c0_148 = arith.constant 0 : index
    %c0_149 = arith.constant 0 : index
    %c0_150 = arith.constant 0 : index
    %170 = vector.load %arg16[%c0_148, %c0_149, %c0_150] : memref<3x192x192xf32, #tpu.memory_space<vmem>>, vector<1x192x192xf32>
    %171 = vector.shape_cast %170 : vector<1x192x192xf32> to vector<192x192xf32>
    %cst_151 = arith.constant dense<0.000000e+00> : vector<60x192xf32>
    %172 = tpu.matmul %169, %171, %cst_151 {dimension_numbers = #tpu.dot_dimension_numbers<[1], [0], [0], [1], [0, 0, 1, 1], [], []>} : vector<60x192xf32>, vector<192x192xf32>, vector<60x192xf32> -> vector<60x192xf32>
    %173 = arith.addf %168, %172 : vector<60x192xf32>
    %174 = vector.extract_strided_slice %167 {offsets = [1, 0], sizes = [60, 192], strides = [1, 1]} : vector<62x192xf32> to vector<60x192xf32>
    %c1_152 = arith.constant 1 : index
    %c0_153 = arith.constant 0 : index
    %c0_154 = arith.constant 0 : index
    %175 = vector.load %arg16[%c1_152, %c0_153, %c0_154] : memref<3x192x192xf32, #tpu.memory_space<vmem>>, vector<1x192x192xf32>
    %176 = vector.shape_cast %175 : vector<1x192x192xf32> to vector<192x192xf32>
    %cst_155 = arith.constant dense<0.000000e+00> : vector<60x192xf32>
    %177 = tpu.matmul %174, %176, %cst_155 {dimension_numbers = #tpu.dot_dimension_numbers<[1], [0], [0], [1], [0, 0, 1, 1], [], []>} : vector<60x192xf32>, vector<192x192xf32>, vector<60x192xf32> -> vector<60x192xf32>
    %178 = arith.addf %173, %177 : vector<60x192xf32>
    %179 = vector.extract_strided_slice %167 {offsets = [2, 0], sizes = [60, 192], strides = [1, 1]} : vector<62x192xf32> to vector<60x192xf32>
    %c2_156 = arith.constant 2 : index
    %c0_157 = arith.constant 0 : index
    %c0_158 = arith.constant 0 : index
    %180 = vector.load %arg16[%c2_156, %c0_157, %c0_158] : memref<3x192x192xf32, #tpu.memory_space<vmem>>, vector<1x192x192xf32>
    %181 = vector.shape_cast %180 : vector<1x192x192xf32> to vector<192x192xf32>
    %cst_159 = arith.constant dense<0.000000e+00> : vector<60x192xf32>
    %182 = tpu.matmul %179, %181, %cst_159 {dimension_numbers = #tpu.dot_dimension_numbers<[1], [0], [0], [1], [0, 0, 1, 1], [], []>} : vector<60x192xf32>, vector<192x192xf32>, vector<60x192xf32> -> vector<60x192xf32>
    %183 = arith.addf %178, %182 : vector<60x192xf32>
    %c0_160 = arith.constant 0 : index
    %c0_161 = arith.constant 0 : index
    %184 = vector.load %arg17[%c0_160, %c0_161] : memref<1x192xf32, #tpu.memory_space<vmem>>, vector<1x192xf32>
    %185 = vector.broadcast %184 : vector<1x192xf32> to vector<60x192xf32>
    %186 = arith.addf %183, %185 : vector<60x192xf32>
    %cst_162 = arith.constant 0.000000e+00 : f32
    %187 = vector.broadcast %cst_162 : f32 to vector<60x192xf32>
    %188 = arith.maximumf %186, %187 : vector<60x192xf32>
    %cst_163 = arith.constant dense<0.000000e+00> : vector<192xf32>
    %189 = vector.multi_reduction <add>, %188, %cst_163 [0] : vector<60x192xf32> to vector<192xf32>
    %190 = vector.shape_cast %189 : vector<192xf32> to vector<1x192xf32>
    %cst_164 = arith.constant 6.000000e+01 : f32
    %191 = vector.broadcast %cst_164 : f32 to vector<1x192xf32>
    %192 = arith.divf %190, %191 : vector<1x192xf32>
    %c1_165 = arith.constant 1 : index
    %c0_166 = arith.constant 0 : index
    %c0_167 = arith.constant 0 : index
    %193 = vector.load %arg1[%c1_165, %c0_166, %c0_167] : memref<2x60x2xf32, #tpu.memory_space<vmem>>, vector<1x60x2xf32>
    %194 = vector.shape_cast %193 : vector<1x60x2xf32> to vector<60x2xf32>
    %c1_168 = arith.constant 1 : index
    %c0_169 = arith.constant 0 : index
    %195 = vector.load %arg25[%c1_168, %c0_169] : memref<62x192xf32, #tpu.memory_space<vmem>>, vector<60x2xf32>
    tpu.vector_store %arg25[%c1_168, %c0_169], %194 {strides = array<i32>} : memref<62x192xf32, #tpu.memory_space<vmem>>, vector<60x2xf32>,
    %c0_170 = arith.constant 0 : index
    %c0_171 = arith.constant 0 : index
    %196 = vector.load %arg25[%c0_170, %c0_171] : memref<62x192xf32, #tpu.memory_space<vmem>>, vector<62x2xf32>
    %cst_172 = arith.constant 0.000000e+00 : f32
    %197 = vector.broadcast %cst_172 : f32 to vector<60x24xf32>
    %198 = vector.extract_strided_slice %196 {offsets = [0, 0], sizes = [60, 2], strides = [1, 1]} : vector<62x2xf32> to vector<60x2xf32>
    %c0_173 = arith.constant 0 : index
    %c0_174 = arith.constant 0 : index
    %c0_175 = arith.constant 0 : index
    %199 = vector.load %arg2[%c0_173, %c0_174, %c0_175] : memref<3x2x24xf32, #tpu.memory_space<vmem>>, vector<1x2x24xf32>
    %200 = vector.shape_cast %199 : vector<1x2x24xf32> to vector<2x24xf32>
    %cst_176 = arith.constant dense<0.000000e+00> : vector<60x24xf32>
    %201 = tpu.matmul %198, %200, %cst_176 {dimension_numbers = #tpu.dot_dimension_numbers<[1], [0], [0], [1], [0, 0, 1, 1], [], []>} : vector<60x2xf32>, vector<2x24xf32>, vector<60x24xf32> -> vector<60x24xf32>
    %202 = arith.addf %197, %201 : vector<60x24xf32>
    %203 = vector.extract_strided_slice %196 {offsets = [1, 0], sizes = [60, 2], strides = [1, 1]} : vector<62x2xf32> to vector<60x2xf32>
    %c1_177 = arith.constant 1 : index
    %c0_178 = arith.constant 0 : index
    %c0_179 = arith.constant 0 : index
    %204 = vector.load %arg2[%c1_177, %c0_178, %c0_179] : memref<3x2x24xf32, #tpu.memory_space<vmem>>, vector<1x2x24xf32>
    %205 = vector.shape_cast %204 : vector<1x2x24xf32> to vector<2x24xf32>
    %cst_180 = arith.constant dense<0.000000e+00> : vector<60x24xf32>
    %206 = tpu.matmul %203, %205, %cst_180 {dimension_numbers = #tpu.dot_dimension_numbers<[1], [0], [0], [1], [0, 0, 1, 1], [], []>} : vector<60x2xf32>, vector<2x24xf32>, vector<60x24xf32> -> vector<60x24xf32>
    %207 = arith.addf %202, %206 : vector<60x24xf32>
    %208 = vector.extract_strided_slice %196 {offsets = [2, 0], sizes = [60, 2], strides = [1, 1]} : vector<62x2xf32> to vector<60x2xf32>
    %c2_181 = arith.constant 2 : index
    %c0_182 = arith.constant 0 : index
    %c0_183 = arith.constant 0 : index
    %209 = vector.load %arg2[%c2_181, %c0_182, %c0_183] : memref<3x2x24xf32, #tpu.memory_space<vmem>>, vector<1x2x24xf32>
    %210 = vector.shape_cast %209 : vector<1x2x24xf32> to vector<2x24xf32>
    %cst_184 = arith.constant dense<0.000000e+00> : vector<60x24xf32>
    %211 = tpu.matmul %208, %210, %cst_184 {dimension_numbers = #tpu.dot_dimension_numbers<[1], [0], [0], [1], [0, 0, 1, 1], [], []>} : vector<60x2xf32>, vector<2x24xf32>, vector<60x24xf32> -> vector<60x24xf32>
    %212 = arith.addf %207, %211 : vector<60x24xf32>
    %c0_185 = arith.constant 0 : index
    %c0_186 = arith.constant 0 : index
    %213 = vector.load %arg3[%c0_185, %c0_186] : memref<1x24xf32, #tpu.memory_space<vmem>>, vector<1x24xf32>
    %214 = vector.broadcast %213 : vector<1x24xf32> to vector<60x24xf32>
    %215 = arith.addf %212, %214 : vector<60x24xf32>
    %cst_187 = arith.constant 0.000000e+00 : f32
    %216 = vector.broadcast %cst_187 : f32 to vector<60x24xf32>
    %217 = arith.maximumf %215, %216 : vector<60x24xf32>
    %c1_188 = arith.constant 1 : index
    %c0_189 = arith.constant 0 : index
    %218 = vector.load %arg25[%c1_188, %c0_189] : memref<62x192xf32, #tpu.memory_space<vmem>>, vector<60x24xf32>
    tpu.vector_store %arg25[%c1_188, %c0_189], %217 {strides = array<i32>} : memref<62x192xf32, #tpu.memory_space<vmem>>, vector<60x24xf32>,
    %c0_190 = arith.constant 0 : index
    %c0_191 = arith.constant 0 : index
    %219 = vector.load %arg25[%c0_190, %c0_191] : memref<62x192xf32, #tpu.memory_space<vmem>>, vector<62x24xf32>
    %cst_192 = arith.constant 0.000000e+00 : f32
    %220 = vector.broadcast %cst_192 : f32 to vector<60x24xf32>
    %221 = vector.extract_strided_slice %219 {offsets = [0, 0], sizes = [60, 24], strides = [1, 1]} : vector<62x24xf32> to vector<60x24xf32>
    %c0_193 = arith.constant 0 : index
    %c0_194 = arith.constant 0 : index
    %c0_195 = arith.constant 0 : index
    %222 = vector.load %arg4[%c0_193, %c0_194, %c0_195] : memref<3x24x24xf32, #tpu.memory_space<vmem>>, vector<1x24x24xf32>
    %223 = vector.shape_cast %222 : vector<1x24x24xf32> to vector<24x24xf32>
    %cst_196 = arith.constant dense<0.000000e+00> : vector<60x24xf32>
    %224 = tpu.matmul %221, %223, %cst_196 {dimension_numbers = #tpu.dot_dimension_numbers<[1], [0], [0], [1], [0, 0, 1, 1], [], []>} : vector<60x24xf32>, vector<24x24xf32>, vector<60x24xf32> -> vector<60x24xf32>
    %225 = arith.addf %220, %224 : vector<60x24xf32>
    %226 = vector.extract_strided_slice %219 {offsets = [1, 0], sizes = [60, 24], strides = [1, 1]} : vector<62x24xf32> to vector<60x24xf32>
    %c1_197 = arith.constant 1 : index
    %c0_198 = arith.constant 0 : index
    %c0_199 = arith.constant 0 : index
    %227 = vector.load %arg4[%c1_197, %c0_198, %c0_199] : memref<3x24x24xf32, #tpu.memory_space<vmem>>, vector<1x24x24xf32>
    %228 = vector.shape_cast %227 : vector<1x24x24xf32> to vector<24x24xf32>
    %cst_200 = arith.constant dense<0.000000e+00> : vector<60x24xf32>
    %229 = tpu.matmul %226, %228, %cst_200 {dimension_numbers = #tpu.dot_dimension_numbers<[1], [0], [0], [1], [0, 0, 1, 1], [], []>} : vector<60x24xf32>, vector<24x24xf32>, vector<60x24xf32> -> vector<60x24xf32>
    %230 = arith.addf %225, %229 : vector<60x24xf32>
    %231 = vector.extract_strided_slice %219 {offsets = [2, 0], sizes = [60, 24], strides = [1, 1]} : vector<62x24xf32> to vector<60x24xf32>
    %c2_201 = arith.constant 2 : index
    %c0_202 = arith.constant 0 : index
    %c0_203 = arith.constant 0 : index
    %232 = vector.load %arg4[%c2_201, %c0_202, %c0_203] : memref<3x24x24xf32, #tpu.memory_space<vmem>>, vector<1x24x24xf32>
    %233 = vector.shape_cast %232 : vector<1x24x24xf32> to vector<24x24xf32>
    %cst_204 = arith.constant dense<0.000000e+00> : vector<60x24xf32>
    %234 = tpu.matmul %231, %233, %cst_204 {dimension_numbers = #tpu.dot_dimension_numbers<[1], [0], [0], [1], [0, 0, 1, 1], [], []>} : vector<60x24xf32>, vector<24x24xf32>, vector<60x24xf32> -> vector<60x24xf32>
    %235 = arith.addf %230, %234 : vector<60x24xf32>
    %c0_205 = arith.constant 0 : index
    %c0_206 = arith.constant 0 : index
    %236 = vector.load %arg5[%c0_205, %c0_206] : memref<1x24xf32, #tpu.memory_space<vmem>>, vector<1x24xf32>
    %237 = vector.broadcast %236 : vector<1x24xf32> to vector<60x24xf32>
    %238 = arith.addf %235, %237 : vector<60x24xf32>
    %cst_207 = arith.constant 0.000000e+00 : f32
    %239 = vector.broadcast %cst_207 : f32 to vector<60x24xf32>
    %240 = arith.maximumf %238, %239 : vector<60x24xf32>
    %c1_208 = arith.constant 1 : index
    %c0_209 = arith.constant 0 : index
    %241 = vector.load %arg25[%c1_208, %c0_209] : memref<62x192xf32, #tpu.memory_space<vmem>>, vector<60x24xf32>
    tpu.vector_store %arg25[%c1_208, %c0_209], %240 {strides = array<i32>} : memref<62x192xf32, #tpu.memory_space<vmem>>, vector<60x24xf32>,
    %c0_210 = arith.constant 0 : index
    %c0_211 = arith.constant 0 : index
    %242 = vector.load %arg25[%c0_210, %c0_211] : memref<62x192xf32, #tpu.memory_space<vmem>>, vector<62x24xf32>
    %cst_212 = arith.constant 0.000000e+00 : f32
    %243 = vector.broadcast %cst_212 : f32 to vector<60x48xf32>
    %244 = vector.extract_strided_slice %242 {offsets = [0, 0], sizes = [60, 24], strides = [1, 1]} : vector<62x24xf32> to vector<60x24xf32>
    %c0_213 = arith.constant 0 : index
    %c0_214 = arith.constant 0 : index
    %c0_215 = arith.constant 0 : index
    %245 = vector.load %arg6[%c0_213, %c0_214, %c0_215] : memref<3x24x48xf32, #tpu.memory_space<vmem>>, vector<1x24x48xf32>
    %246 = vector.shape_cast %245 : vector<1x24x48xf32> to vector<24x48xf32>
    %cst_216 = arith.constant dense<0.000000e+00> : vector<60x48xf32>
    %247 = tpu.matmul %244, %246, %cst_216 {dimension_numbers = #tpu.dot_dimension_numbers<[1], [0], [0], [1], [0, 0, 1, 1], [], []>} : vector<60x24xf32>, vector<24x48xf32>, vector<60x48xf32> -> vector<60x48xf32>
    %248 = arith.addf %243, %247 : vector<60x48xf32>
    %249 = vector.extract_strided_slice %242 {offsets = [1, 0], sizes = [60, 24], strides = [1, 1]} : vector<62x24xf32> to vector<60x24xf32>
    %c1_217 = arith.constant 1 : index
    %c0_218 = arith.constant 0 : index
    %c0_219 = arith.constant 0 : index
    %250 = vector.load %arg6[%c1_217, %c0_218, %c0_219] : memref<3x24x48xf32, #tpu.memory_space<vmem>>, vector<1x24x48xf32>
    %251 = vector.shape_cast %250 : vector<1x24x48xf32> to vector<24x48xf32>
    %cst_220 = arith.constant dense<0.000000e+00> : vector<60x48xf32>
    %252 = tpu.matmul %249, %251, %cst_220 {dimension_numbers = #tpu.dot_dimension_numbers<[1], [0], [0], [1], [0, 0, 1, 1], [], []>} : vector<60x24xf32>, vector<24x48xf32>, vector<60x48xf32> -> vector<60x48xf32>
    %253 = arith.addf %248, %252 : vector<60x48xf32>
    %254 = vector.extract_strided_slice %242 {offsets = [2, 0], sizes = [60, 24], strides = [1, 1]} : vector<62x24xf32> to vector<60x24xf32>
    %c2_221 = arith.constant 2 : index
    %c0_222 = arith.constant 0 : index
    %c0_223 = arith.constant 0 : index
    %255 = vector.load %arg6[%c2_221, %c0_222, %c0_223] : memref<3x24x48xf32, #tpu.memory_space<vmem>>, vector<1x24x48xf32>
    %256 = vector.shape_cast %255 : vector<1x24x48xf32> to vector<24x48xf32>
    %cst_224 = arith.constant dense<0.000000e+00> : vector<60x48xf32>
    %257 = tpu.matmul %254, %256, %cst_224 {dimension_numbers = #tpu.dot_dimension_numbers<[1], [0], [0], [1], [0, 0, 1, 1], [], []>} : vector<60x24xf32>, vector<24x48xf32>, vector<60x48xf32> -> vector<60x48xf32>
    %258 = arith.addf %253, %257 : vector<60x48xf32>
    %c0_225 = arith.constant 0 : index
    %c0_226 = arith.constant 0 : index
    %259 = vector.load %arg7[%c0_225, %c0_226] : memref<1x48xf32, #tpu.memory_space<vmem>>, vector<1x48xf32>
    %260 = vector.broadcast %259 : vector<1x48xf32> to vector<60x48xf32>
    %261 = arith.addf %258, %260 : vector<60x48xf32>
    %cst_227 = arith.constant 0.000000e+00 : f32
    %262 = vector.broadcast %cst_227 : f32 to vector<60x48xf32>
    %263 = arith.maximumf %261, %262 : vector<60x48xf32>
    %c1_228 = arith.constant 1 : index
    %c0_229 = arith.constant 0 : index
    %264 = vector.load %arg25[%c1_228, %c0_229] : memref<62x192xf32, #tpu.memory_space<vmem>>, vector<60x48xf32>
    tpu.vector_store %arg25[%c1_228, %c0_229], %263 {strides = array<i32>} : memref<62x192xf32, #tpu.memory_space<vmem>>, vector<60x48xf32>,
    %c0_230 = arith.constant 0 : index
    %c0_231 = arith.constant 0 : index
    %265 = vector.load %arg25[%c0_230, %c0_231] : memref<62x192xf32, #tpu.memory_space<vmem>>, vector<62x48xf32>
    %cst_232 = arith.constant 0.000000e+00 : f32
    %266 = vector.broadcast %cst_232 : f32 to vector<60x48xf32>
    %267 = vector.extract_strided_slice %265 {offsets = [0, 0], sizes = [60, 48], strides = [1, 1]} : vector<62x48xf32> to vector<60x48xf32>
    %c0_233 = arith.constant 0 : index
    %c0_234 = arith.constant 0 : index
    %c0_235 = arith.constant 0 : index
    %268 = vector.load %arg8[%c0_233, %c0_234, %c0_235] : memref<3x48x48xf32, #tpu.memory_space<vmem>>, vector<1x48x48xf32>
    %269 = vector.shape_cast %268 : vector<1x48x48xf32> to vector<48x48xf32>
    %cst_236 = arith.constant dense<0.000000e+00> : vector<60x48xf32>
    %270 = tpu.matmul %267, %269, %cst_236 {dimension_numbers = #tpu.dot_dimension_numbers<[1], [0], [0], [1], [0, 0, 1, 1], [], []>} : vector<60x48xf32>, vector<48x48xf32>, vector<60x48xf32> -> vector<60x48xf32>
    %271 = arith.addf %266, %270 : vector<60x48xf32>
    %272 = vector.extract_strided_slice %265 {offsets = [1, 0], sizes = [60, 48], strides = [1, 1]} : vector<62x48xf32> to vector<60x48xf32>
    %c1_237 = arith.constant 1 : index
    %c0_238 = arith.constant 0 : index
    %c0_239 = arith.constant 0 : index
    %273 = vector.load %arg8[%c1_237, %c0_238, %c0_239] : memref<3x48x48xf32, #tpu.memory_space<vmem>>, vector<1x48x48xf32>
    %274 = vector.shape_cast %273 : vector<1x48x48xf32> to vector<48x48xf32>
    %cst_240 = arith.constant dense<0.000000e+00> : vector<60x48xf32>
    %275 = tpu.matmul %272, %274, %cst_240 {dimension_numbers = #tpu.dot_dimension_numbers<[1], [0], [0], [1], [0, 0, 1, 1], [], []>} : vector<60x48xf32>, vector<48x48xf32>, vector<60x48xf32> -> vector<60x48xf32>
    %276 = arith.addf %271, %275 : vector<60x48xf32>
    %277 = vector.extract_strided_slice %265 {offsets = [2, 0], sizes = [60, 48], strides = [1, 1]} : vector<62x48xf32> to vector<60x48xf32>
    %c2_241 = arith.constant 2 : index
    %c0_242 = arith.constant 0 : index
    %c0_243 = arith.constant 0 : index
    %278 = vector.load %arg8[%c2_241, %c0_242, %c0_243] : memref<3x48x48xf32, #tpu.memory_space<vmem>>, vector<1x48x48xf32>
    %279 = vector.shape_cast %278 : vector<1x48x48xf32> to vector<48x48xf32>
    %cst_244 = arith.constant dense<0.000000e+00> : vector<60x48xf32>
    %280 = tpu.matmul %277, %279, %cst_244 {dimension_numbers = #tpu.dot_dimension_numbers<[1], [0], [0], [1], [0, 0, 1, 1], [], []>} : vector<60x48xf32>, vector<48x48xf32>, vector<60x48xf32> -> vector<60x48xf32>
    %281 = arith.addf %276, %280 : vector<60x48xf32>
    %c0_245 = arith.constant 0 : index
    %c0_246 = arith.constant 0 : index
    %282 = vector.load %arg9[%c0_245, %c0_246] : memref<1x48xf32, #tpu.memory_space<vmem>>, vector<1x48xf32>
    %283 = vector.broadcast %282 : vector<1x48xf32> to vector<60x48xf32>
    %284 = arith.addf %281, %283 : vector<60x48xf32>
    %cst_247 = arith.constant 0.000000e+00 : f32
    %285 = vector.broadcast %cst_247 : f32 to vector<60x48xf32>
    %286 = arith.maximumf %284, %285 : vector<60x48xf32>
    %c1_248 = arith.constant 1 : index
    %c0_249 = arith.constant 0 : index
    %287 = vector.load %arg25[%c1_248, %c0_249] : memref<62x192xf32, #tpu.memory_space<vmem>>, vector<60x48xf32>
    tpu.vector_store %arg25[%c1_248, %c0_249], %286 {strides = array<i32>} : memref<62x192xf32, #tpu.memory_space<vmem>>, vector<60x48xf32>,
    %c0_250 = arith.constant 0 : index
    %c0_251 = arith.constant 0 : index
    %288 = vector.load %arg25[%c0_250, %c0_251] : memref<62x192xf32, #tpu.memory_space<vmem>>, vector<62x48xf32>
    %cst_252 = arith.constant 0.000000e+00 : f32
    %289 = vector.broadcast %cst_252 : f32 to vector<60x96xf32>
    %290 = vector.extract_strided_slice %288 {offsets = [0, 0], sizes = [60, 48], strides = [1, 1]} : vector<62x48xf32> to vector<60x48xf32>
    %c0_253 = arith.constant 0 : index
    %c0_254 = arith.constant 0 : index
    %c0_255 = arith.constant 0 : index
    %291 = vector.load %arg10[%c0_253, %c0_254, %c0_255] : memref<3x48x96xf32, #tpu.memory_space<vmem>>, vector<1x48x96xf32>
    %292 = vector.shape_cast %291 : vector<1x48x96xf32> to vector<48x96xf32>
    %cst_256 = arith.constant dense<0.000000e+00> : vector<60x96xf32>
    %293 = tpu.matmul %290, %292, %cst_256 {dimension_numbers = #tpu.dot_dimension_numbers<[1], [0], [0], [1], [0, 0, 1, 1], [], []>} : vector<60x48xf32>, vector<48x96xf32>, vector<60x96xf32> -> vector<60x96xf32>
    %294 = arith.addf %289, %293 : vector<60x96xf32>
    %295 = vector.extract_strided_slice %288 {offsets = [1, 0], sizes = [60, 48], strides = [1, 1]} : vector<62x48xf32> to vector<60x48xf32>
    %c1_257 = arith.constant 1 : index
    %c0_258 = arith.constant 0 : index
    %c0_259 = arith.constant 0 : index
    %296 = vector.load %arg10[%c1_257, %c0_258, %c0_259] : memref<3x48x96xf32, #tpu.memory_space<vmem>>, vector<1x48x96xf32>
    %297 = vector.shape_cast %296 : vector<1x48x96xf32> to vector<48x96xf32>
    %cst_260 = arith.constant dense<0.000000e+00> : vector<60x96xf32>
    %298 = tpu.matmul %295, %297, %cst_260 {dimension_numbers = #tpu.dot_dimension_numbers<[1], [0], [0], [1], [0, 0, 1, 1], [], []>} : vector<60x48xf32>, vector<48x96xf32>, vector<60x96xf32> -> vector<60x96xf32>
    %299 = arith.addf %294, %298 : vector<60x96xf32>
    %300 = vector.extract_strided_slice %288 {offsets = [2, 0], sizes = [60, 48], strides = [1, 1]} : vector<62x48xf32> to vector<60x48xf32>
    %c2_261 = arith.constant 2 : index
    %c0_262 = arith.constant 0 : index
    %c0_263 = arith.constant 0 : index
    %301 = vector.load %arg10[%c2_261, %c0_262, %c0_263] : memref<3x48x96xf32, #tpu.memory_space<vmem>>, vector<1x48x96xf32>
    %302 = vector.shape_cast %301 : vector<1x48x96xf32> to vector<48x96xf32>
    %cst_264 = arith.constant dense<0.000000e+00> : vector<60x96xf32>
    %303 = tpu.matmul %300, %302, %cst_264 {dimension_numbers = #tpu.dot_dimension_numbers<[1], [0], [0], [1], [0, 0, 1, 1], [], []>} : vector<60x48xf32>, vector<48x96xf32>, vector<60x96xf32> -> vector<60x96xf32>
    %304 = arith.addf %299, %303 : vector<60x96xf32>
    %c0_265 = arith.constant 0 : index
    %c0_266 = arith.constant 0 : index
    %305 = vector.load %arg11[%c0_265, %c0_266] : memref<1x96xf32, #tpu.memory_space<vmem>>, vector<1x96xf32>
    %306 = vector.broadcast %305 : vector<1x96xf32> to vector<60x96xf32>
    %307 = arith.addf %304, %306 : vector<60x96xf32>
    %cst_267 = arith.constant 0.000000e+00 : f32
    %308 = vector.broadcast %cst_267 : f32 to vector<60x96xf32>
    %309 = arith.maximumf %307, %308 : vector<60x96xf32>
    %c1_268 = arith.constant 1 : index
    %c0_269 = arith.constant 0 : index
    %310 = vector.load %arg25[%c1_268, %c0_269] : memref<62x192xf32, #tpu.memory_space<vmem>>, vector<60x96xf32>
    tpu.vector_store %arg25[%c1_268, %c0_269], %309 {strides = array<i32>} : memref<62x192xf32, #tpu.memory_space<vmem>>, vector<60x96xf32>,
    %c0_270 = arith.constant 0 : index
    %c0_271 = arith.constant 0 : index
    %311 = vector.load %arg25[%c0_270, %c0_271] : memref<62x192xf32, #tpu.memory_space<vmem>>, vector<62x96xf32>
    %cst_272 = arith.constant 0.000000e+00 : f32
    %312 = vector.broadcast %cst_272 : f32 to vector<60x96xf32>
    %313 = vector.extract_strided_slice %311 {offsets = [0, 0], sizes = [60, 96], strides = [1, 1]} : vector<62x96xf32> to vector<60x96xf32>
    %c0_273 = arith.constant 0 : index
    %c0_274 = arith.constant 0 : index
    %c0_275 = arith.constant 0 : index
    %314 = vector.load %arg12[%c0_273, %c0_274, %c0_275] : memref<3x96x96xf32, #tpu.memory_space<vmem>>, vector<1x96x96xf32>
    %315 = vector.shape_cast %314 : vector<1x96x96xf32> to vector<96x96xf32>
    %cst_276 = arith.constant dense<0.000000e+00> : vector<60x96xf32>
    %316 = tpu.matmul %313, %315, %cst_276 {dimension_numbers = #tpu.dot_dimension_numbers<[1], [0], [0], [1], [0, 0, 1, 1], [], []>} : vector<60x96xf32>, vector<96x96xf32>, vector<60x96xf32> -> vector<60x96xf32>
    %317 = arith.addf %312, %316 : vector<60x96xf32>
    %318 = vector.extract_strided_slice %311 {offsets = [1, 0], sizes = [60, 96], strides = [1, 1]} : vector<62x96xf32> to vector<60x96xf32>
    %c1_277 = arith.constant 1 : index
    %c0_278 = arith.constant 0 : index
    %c0_279 = arith.constant 0 : index
    %319 = vector.load %arg12[%c1_277, %c0_278, %c0_279] : memref<3x96x96xf32, #tpu.memory_space<vmem>>, vector<1x96x96xf32>
    %320 = vector.shape_cast %319 : vector<1x96x96xf32> to vector<96x96xf32>
    %cst_280 = arith.constant dense<0.000000e+00> : vector<60x96xf32>
    %321 = tpu.matmul %318, %320, %cst_280 {dimension_numbers = #tpu.dot_dimension_numbers<[1], [0], [0], [1], [0, 0, 1, 1], [], []>} : vector<60x96xf32>, vector<96x96xf32>, vector<60x96xf32> -> vector<60x96xf32>
    %322 = arith.addf %317, %321 : vector<60x96xf32>
    %323 = vector.extract_strided_slice %311 {offsets = [2, 0], sizes = [60, 96], strides = [1, 1]} : vector<62x96xf32> to vector<60x96xf32>
    %c2_281 = arith.constant 2 : index
    %c0_282 = arith.constant 0 : index
    %c0_283 = arith.constant 0 : index
    %324 = vector.load %arg12[%c2_281, %c0_282, %c0_283] : memref<3x96x96xf32, #tpu.memory_space<vmem>>, vector<1x96x96xf32>
    %325 = vector.shape_cast %324 : vector<1x96x96xf32> to vector<96x96xf32>
    %cst_284 = arith.constant dense<0.000000e+00> : vector<60x96xf32>
    %326 = tpu.matmul %323, %325, %cst_284 {dimension_numbers = #tpu.dot_dimension_numbers<[1], [0], [0], [1], [0, 0, 1, 1], [], []>} : vector<60x96xf32>, vector<96x96xf32>, vector<60x96xf32> -> vector<60x96xf32>
    %327 = arith.addf %322, %326 : vector<60x96xf32>
    %c0_285 = arith.constant 0 : index
    %c0_286 = arith.constant 0 : index
    %328 = vector.load %arg13[%c0_285, %c0_286] : memref<1x96xf32, #tpu.memory_space<vmem>>, vector<1x96xf32>
    %329 = vector.broadcast %328 : vector<1x96xf32> to vector<60x96xf32>
    %330 = arith.addf %327, %329 : vector<60x96xf32>
    %cst_287 = arith.constant 0.000000e+00 : f32
    %331 = vector.broadcast %cst_287 : f32 to vector<60x96xf32>
    %332 = arith.maximumf %330, %331 : vector<60x96xf32>
    %c1_288 = arith.constant 1 : index
    %c0_289 = arith.constant 0 : index
    %333 = vector.load %arg25[%c1_288, %c0_289] : memref<62x192xf32, #tpu.memory_space<vmem>>, vector<60x96xf32>
    tpu.vector_store %arg25[%c1_288, %c0_289], %332 {strides = array<i32>} : memref<62x192xf32, #tpu.memory_space<vmem>>, vector<60x96xf32>,
    %c0_290 = arith.constant 0 : index
    %c0_291 = arith.constant 0 : index
    %334 = vector.load %arg25[%c0_290, %c0_291] : memref<62x192xf32, #tpu.memory_space<vmem>>, vector<62x96xf32>
    %cst_292 = arith.constant 0.000000e+00 : f32
    %335 = vector.broadcast %cst_292 : f32 to vector<60x192xf32>
    %336 = vector.extract_strided_slice %334 {offsets = [0, 0], sizes = [60, 96], strides = [1, 1]} : vector<62x96xf32> to vector<60x96xf32>
    %c0_293 = arith.constant 0 : index
    %c0_294 = arith.constant 0 : index
    %c0_295 = arith.constant 0 : index
    %337 = vector.load %arg14[%c0_293, %c0_294, %c0_295] : memref<3x96x192xf32, #tpu.memory_space<vmem>>, vector<1x96x192xf32>
    %338 = vector.shape_cast %337 : vector<1x96x192xf32> to vector<96x192xf32>
    %cst_296 = arith.constant dense<0.000000e+00> : vector<60x192xf32>
    %339 = tpu.matmul %336, %338, %cst_296 {dimension_numbers = #tpu.dot_dimension_numbers<[1], [0], [0], [1], [0, 0, 1, 1], [], []>} : vector<60x96xf32>, vector<96x192xf32>, vector<60x192xf32> -> vector<60x192xf32>
    %340 = arith.addf %335, %339 : vector<60x192xf32>
    %341 = vector.extract_strided_slice %334 {offsets = [1, 0], sizes = [60, 96], strides = [1, 1]} : vector<62x96xf32> to vector<60x96xf32>
    %c1_297 = arith.constant 1 : index
    %c0_298 = arith.constant 0 : index
    %c0_299 = arith.constant 0 : index
    %342 = vector.load %arg14[%c1_297, %c0_298, %c0_299] : memref<3x96x192xf32, #tpu.memory_space<vmem>>, vector<1x96x192xf32>
    %343 = vector.shape_cast %342 : vector<1x96x192xf32> to vector<96x192xf32>
    %cst_300 = arith.constant dense<0.000000e+00> : vector<60x192xf32>
    %344 = tpu.matmul %341, %343, %cst_300 {dimension_numbers = #tpu.dot_dimension_numbers<[1], [0], [0], [1], [0, 0, 1, 1], [], []>} : vector<60x96xf32>, vector<96x192xf32>, vector<60x192xf32> -> vector<60x192xf32>
    %345 = arith.addf %340, %344 : vector<60x192xf32>
    %346 = vector.extract_strided_slice %334 {offsets = [2, 0], sizes = [60, 96], strides = [1, 1]} : vector<62x96xf32> to vector<60x96xf32>
    %c2_301 = arith.constant 2 : index
    %c0_302 = arith.constant 0 : index
    %c0_303 = arith.constant 0 : index
    %347 = vector.load %arg14[%c2_301, %c0_302, %c0_303] : memref<3x96x192xf32, #tpu.memory_space<vmem>>, vector<1x96x192xf32>
    %348 = vector.shape_cast %347 : vector<1x96x192xf32> to vector<96x192xf32>
    %cst_304 = arith.constant dense<0.000000e+00> : vector<60x192xf32>
    %349 = tpu.matmul %346, %348, %cst_304 {dimension_numbers = #tpu.dot_dimension_numbers<[1], [0], [0], [1], [0, 0, 1, 1], [], []>} : vector<60x96xf32>, vector<96x192xf32>, vector<60x192xf32> -> vector<60x192xf32>
    %350 = arith.addf %345, %349 : vector<60x192xf32>
    %c0_305 = arith.constant 0 : index
    %c0_306 = arith.constant 0 : index
    %351 = vector.load %arg15[%c0_305, %c0_306] : memref<1x192xf32, #tpu.memory_space<vmem>>, vector<1x192xf32>
    %352 = vector.broadcast %351 : vector<1x192xf32> to vector<60x192xf32>
    %353 = arith.addf %350, %352 : vector<60x192xf32>
    %cst_307 = arith.constant 0.000000e+00 : f32
    %354 = vector.broadcast %cst_307 : f32 to vector<60x192xf32>
    %355 = arith.maximumf %353, %354 : vector<60x192xf32>
    %c1_308 = arith.constant 1 : index
    %c0_309 = arith.constant 0 : index
    %356 = vector.load %arg25[%c1_308, %c0_309] : memref<62x192xf32, #tpu.memory_space<vmem>>, vector<60x192xf32>
    tpu.vector_store %arg25[%c1_308, %c0_309], %355 {strides = array<i32>} : memref<62x192xf32, #tpu.memory_space<vmem>>, vector<60x192xf32>,
    %c0_310 = arith.constant 0 : index
    %c0_311 = arith.constant 0 : index
    %357 = vector.load %arg25[%c0_310, %c0_311] : memref<62x192xf32, #tpu.memory_space<vmem>>, vector<62x192xf32>
    %cst_312 = arith.constant 0.000000e+00 : f32
    %358 = vector.broadcast %cst_312 : f32 to vector<60x192xf32>
    %359 = vector.extract_strided_slice %357 {offsets = [0, 0], sizes = [60, 192], strides = [1, 1]} : vector<62x192xf32> to vector<60x192xf32>
    %c0_313 = arith.constant 0 : index
    %c0_314 = arith.constant 0 : index
    %c0_315 = arith.constant 0 : index
    %360 = vector.load %arg16[%c0_313, %c0_314, %c0_315] : memref<3x192x192xf32, #tpu.memory_space<vmem>>, vector<1x192x192xf32>
    %361 = vector.shape_cast %360 : vector<1x192x192xf32> to vector<192x192xf32>
    %cst_316 = arith.constant dense<0.000000e+00> : vector<60x192xf32>
    %362 = tpu.matmul %359, %361, %cst_316 {dimension_numbers = #tpu.dot_dimension_numbers<[1], [0], [0], [1], [0, 0, 1, 1], [], []>} : vector<60x192xf32>, vector<192x192xf32>, vector<60x192xf32> -> vector<60x192xf32>
    %363 = arith.addf %358, %362 : vector<60x192xf32>
    %364 = vector.extract_strided_slice %357 {offsets = [1, 0], sizes = [60, 192], strides = [1, 1]} : vector<62x192xf32> to vector<60x192xf32>
    %c1_317 = arith.constant 1 : index
    %c0_318 = arith.constant 0 : index
    %c0_319 = arith.constant 0 : index
    %365 = vector.load %arg16[%c1_317, %c0_318, %c0_319] : memref<3x192x192xf32, #tpu.memory_space<vmem>>, vector<1x192x192xf32>
    %366 = vector.shape_cast %365 : vector<1x192x192xf32> to vector<192x192xf32>
    %cst_320 = arith.constant dense<0.000000e+00> : vector<60x192xf32>
    %367 = tpu.matmul %364, %366, %cst_320 {dimension_numbers = #tpu.dot_dimension_numbers<[1], [0], [0], [1], [0, 0, 1, 1], [], []>} : vector<60x192xf32>, vector<192x192xf32>, vector<60x192xf32> -> vector<60x192xf32>
    %368 = arith.addf %363, %367 : vector<60x192xf32>
    %369 = vector.extract_strided_slice %357 {offsets = [2, 0], sizes = [60, 192], strides = [1, 1]} : vector<62x192xf32> to vector<60x192xf32>
    %c2_321 = arith.constant 2 : index
    %c0_322 = arith.constant 0 : index
    %c0_323 = arith.constant 0 : index
    %370 = vector.load %arg16[%c2_321, %c0_322, %c0_323] : memref<3x192x192xf32, #tpu.memory_space<vmem>>, vector<1x192x192xf32>
    %371 = vector.shape_cast %370 : vector<1x192x192xf32> to vector<192x192xf32>
    %cst_324 = arith.constant dense<0.000000e+00> : vector<60x192xf32>
    %372 = tpu.matmul %369, %371, %cst_324 {dimension_numbers = #tpu.dot_dimension_numbers<[1], [0], [0], [1], [0, 0, 1, 1], [], []>} : vector<60x192xf32>, vector<192x192xf32>, vector<60x192xf32> -> vector<60x192xf32>
    %373 = arith.addf %368, %372 : vector<60x192xf32>
    %c0_325 = arith.constant 0 : index
    %c0_326 = arith.constant 0 : index
    %374 = vector.load %arg17[%c0_325, %c0_326] : memref<1x192xf32, #tpu.memory_space<vmem>>, vector<1x192xf32>
    %375 = vector.broadcast %374 : vector<1x192xf32> to vector<60x192xf32>
    %376 = arith.addf %373, %375 : vector<60x192xf32>
    %cst_327 = arith.constant 0.000000e+00 : f32
    %377 = vector.broadcast %cst_327 : f32 to vector<60x192xf32>
    %378 = arith.maximumf %376, %377 : vector<60x192xf32>
    %cst_328 = arith.constant dense<0.000000e+00> : vector<192xf32>
    %379 = vector.multi_reduction <add>, %378, %cst_328 [0] : vector<60x192xf32> to vector<192xf32>
    %380 = vector.shape_cast %379 : vector<192xf32> to vector<1x192xf32>
    %cst_329 = arith.constant 6.000000e+01 : f32
    %381 = vector.broadcast %cst_329 : f32 to vector<1x192xf32>
    %382 = arith.divf %380, %381 : vector<1x192xf32>
    %383 = tpu.concatenate %192, %382 in 0 : vector<1x192xf32>, vector<1x192xf32> -> vector<2x192xf32>
    %c0_330 = arith.constant 0 : index
    %c0_331 = arith.constant 0 : index
    %384 = vector.load %arg18[%c0_330, %c0_331] : memref<192x64xf32, #tpu.memory_space<vmem>>, vector<192x64xf32>
    %cst_332 = arith.constant dense<0.000000e+00> : vector<2x64xf32>
    %385 = tpu.matmul %383, %384, %cst_332 {dimension_numbers = #tpu.dot_dimension_numbers<[1], [0], [0], [1], [0, 0, 1, 1], [], []>} : vector<2x192xf32>, vector<192x64xf32>, vector<2x64xf32> -> vector<2x64xf32>
    %c0_333 = arith.constant 0 : index
    %c0_334 = arith.constant 0 : index
    %386 = vector.load %arg19[%c0_333, %c0_334] : memref<1x64xf32, #tpu.memory_space<vmem>>, vector<1x64xf32>
    %387 = vector.broadcast %386 : vector<1x64xf32> to vector<2x64xf32>
    %388 = arith.addf %385, %387 : vector<2x64xf32>
    %cst_335 = arith.constant 0.000000e+00 : f32
    %389 = vector.broadcast %cst_335 : f32 to vector<2x64xf32>
    %390 = arith.maximumf %388, %389 : vector<2x64xf32>
    %c0_336 = arith.constant 0 : index
    %c0_337 = arith.constant 0 : index
    %391 = vector.load %arg20[%c0_336, %c0_337] : memref<64x64xf32, #tpu.memory_space<vmem>>, vector<64x64xf32>
    %cst_338 = arith.constant dense<0.000000e+00> : vector<2x64xf32>
    %392 = tpu.matmul %390, %391, %cst_338 {dimension_numbers = #tpu.dot_dimension_numbers<[1], [0], [0], [1], [0, 0, 1, 1], [], []>} : vector<2x64xf32>, vector<64x64xf32>, vector<2x64xf32> -> vector<2x64xf32>
    %c0_339 = arith.constant 0 : index
    %c0_340 = arith.constant 0 : index
    %393 = vector.load %arg21[%c0_339, %c0_340] : memref<1x64xf32, #tpu.memory_space<vmem>>, vector<1x64xf32>
    %394 = vector.broadcast %393 : vector<1x64xf32> to vector<2x64xf32>
    %395 = arith.addf %392, %394 : vector<2x64xf32>
    %cst_341 = arith.constant 0.000000e+00 : f32
    %396 = vector.broadcast %cst_341 : f32 to vector<2x64xf32>
    %397 = arith.maximumf %395, %396 : vector<2x64xf32>
    %c0_342 = arith.constant 0 : index
    %c0_343 = arith.constant 0 : index
    %398 = vector.load %arg22[%c0_342, %c0_343] : memref<64x1xf32, #tpu.memory_space<vmem>>, vector<64x1xf32>
    %cst_344 = arith.constant dense<0.000000e+00> : vector<2x1xf32>
    %399 = tpu.matmul %397, %398, %cst_344 {dimension_numbers = #tpu.dot_dimension_numbers<[1], [0], [0], [1], [0, 0, 1, 1], [], []>} : vector<2x64xf32>, vector<64x1xf32>, vector<2x1xf32> -> vector<2x1xf32>
    %c0_345 = arith.constant 0 : index
    %c0_346 = arith.constant 0 : index
    %400 = vector.load %arg23[%c0_345, %c0_346] : memref<1x1xf32, #tpu.memory_space<vmem>>, vector<1x1xf32>
    %401 = vector.broadcast %400 : vector<1x1xf32> to vector<2x1xf32>
    %402 = arith.addf %399, %401 : vector<2x1xf32>
    %403 = arith.negf %402 : vector<2x1xf32>
    %404 = math.exp %403 : vector<2x1xf32>
    %cst_347 = arith.constant 1.000000e+00 : f32
    %405 = vector.broadcast %cst_347 : f32 to vector<2x1xf32>
    %406 = arith.addf %405, %404 : vector<2x1xf32>
    %407 = arith.divf %405, %406 : vector<2x1xf32>
    %c0_348 = arith.constant 0 : index
    %c0_349 = arith.constant 0 : index
    %c0_350 = arith.constant 0 : index
    %408 = vector.load %arg24[%c0_348, %c0_349, %c0_350] : memref<2x1x1xf32, #tpu.memory_space<vmem>>, vector<2x1x1xf32>
    %409 = vector.shape_cast %408 : vector<2x1x1xf32> to vector<2x1xf32>
    %410 = vector.shape_cast %407 : vector<2x1xf32> to vector<2x1x1xf32>
    tpu.vector_store %arg24[%c0_348, %c0_349, %c0_350], %410 {strides = array<i32>} : memref<2x1x1xf32, #tpu.memory_space<vmem>>, vector<2x1x1xf32>,
    return
  }
  func.func @transform_0(%arg0: i32) -> (i32, i32, i32) {
    %c0_i32 = arith.constant 0 : i32
    %c0_i32_0 = arith.constant 0 : i32
    %c0_i32_1 = arith.constant 0 : i32
    return %arg0, %c0_i32, %c0_i32_0 : i32, i32, i32
  }
  func.func @transform_1(%arg0: i32) -> (i32, i32, i32) {
    %c0_i32 = arith.constant 0 : i32
    %c0_i32_0 = arith.constant 0 : i32
    %c0_i32_1 = arith.constant 0 : i32
    %c0_i32_2 = arith.constant 0 : i32
    return %c0_i32, %c0_i32_0, %c0_i32_1 : i32, i32, i32
  }
  func.func @transform_2(%arg0: i32) -> (i32, i32) {
    %c0_i32 = arith.constant 0 : i32
    %c0_i32_0 = arith.constant 0 : i32
    %c0_i32_1 = arith.constant 0 : i32
    return %c0_i32, %c0_i32_0 : i32, i32
  }
  func.func @transform_3(%arg0: i32) -> (i32, i32, i32) {
    %c0_i32 = arith.constant 0 : i32
    %c0_i32_0 = arith.constant 0 : i32
    %c0_i32_1 = arith.constant 0 : i32
    %c0_i32_2 = arith.constant 0 : i32
    return %c0_i32, %c0_i32_0, %c0_i32_1 : i32, i32, i32
  }
  func.func @transform_4(%arg0: i32) -> (i32, i32) {
    %c0_i32 = arith.constant 0 : i32
    %c0_i32_0 = arith.constant 0 : i32
    %c0_i32_1 = arith.constant 0 : i32
    return %c0_i32, %c0_i32_0 : i32, i32
  }
  func.func @transform_5(%arg0: i32) -> (i32, i32, i32) {
    %c0_i32 = arith.constant 0 : i32
    %c0_i32_0 = arith.constant 0 : i32
    %c0_i32_1 = arith.constant 0 : i32
    %c0_i32_2 = arith.constant 0 : i32
    return %c0_i32, %c0_i32_0, %c0_i32_1 : i32, i32, i32
  }
  func.func @transform_6(%arg0: i32) -> (i32, i32) {
    %c0_i32 = arith.constant 0 : i32
    %c0_i32_0 = arith.constant 0 : i32
    %c0_i32_1 = arith.constant 0 : i32
    return %c0_i32, %c0_i32_0 : i32, i32
  }
  func.func @transform_7(%arg0: i32) -> (i32, i32, i32) {
    %c0_i32 = arith.constant 0 : i32
    %c0_i32_0 = arith.constant 0 : i32
    %c0_i32_1 = arith.constant 0 : i32
    %c0_i32_2 = arith.constant 0 : i32
    return %c0_i32, %c0_i32_0, %c0_i32_1 : i32, i32, i32
  }
  func.func @transform_8(%arg0: i32) -> (i32, i32) {
    %c0_i32 = arith.constant 0 : i32
    %c0_i32_0 = arith.constant 0 : i32
    %c0_i32_1 = arith.constant 0 : i32
    return %c0_i32, %c0_i32_0 : i32, i32
  }
  func.func @transform_9(%arg0: i32) -> (i32, i32, i32) {
    %c0_i32 = arith.constant 0 : i32
    %c0_i32_0 = arith.constant 0 : i32
    %c0_i32_1 = arith.constant 0 : i32
    %c0_i32_2 = arith.constant 0 : i32
    return %c0_i32, %c0_i32_0, %c0_i32_1 : i32, i32, i32
  }
  func.func @transform_10(%arg0: i32) -> (i32, i32) {
    %c0_i32 = arith.constant 0 : i32
    %c0_i32_0 = arith.constant 0 : i32
    %c0_i32_1 = arith.constant 0 : i32
    return %c0_i32, %c0_i32_0 : i32, i32
  }
  func.func @transform_11(%arg0: i32) -> (i32, i32, i32) {
    %c0_i32 = arith.constant 0 : i32
    %c0_i32_0 = arith.constant 0 : i32
    %c0_i32_1 = arith.constant 0 : i32
    %c0_i32_2 = arith.constant 0 : i32
    return %c0_i32, %c0_i32_0, %c0_i32_1 : i32, i32, i32
  }
  func.func @transform_12(%arg0: i32) -> (i32, i32) {
    %c0_i32 = arith.constant 0 : i32
    %c0_i32_0 = arith.constant 0 : i32
    %c0_i32_1 = arith.constant 0 : i32
    return %c0_i32, %c0_i32_0 : i32, i32
  }
  func.func @transform_13(%arg0: i32) -> (i32, i32, i32) {
    %c0_i32 = arith.constant 0 : i32
    %c0_i32_0 = arith.constant 0 : i32
    %c0_i32_1 = arith.constant 0 : i32
    %c0_i32_2 = arith.constant 0 : i32
    return %c0_i32, %c0_i32_0, %c0_i32_1 : i32, i32, i32
  }
  func.func @transform_14(%arg0: i32) -> (i32, i32) {
    %c0_i32 = arith.constant 0 : i32
    %c0_i32_0 = arith.constant 0 : i32
    %c0_i32_1 = arith.constant 0 : i32
    return %c0_i32, %c0_i32_0 : i32, i32
  }
  func.func @transform_15(%arg0: i32) -> (i32, i32, i32) {
    %c0_i32 = arith.constant 0 : i32
    %c0_i32_0 = arith.constant 0 : i32
    %c0_i32_1 = arith.constant 0 : i32
    %c0_i32_2 = arith.constant 0 : i32
    return %c0_i32, %c0_i32_0, %c0_i32_1 : i32, i32, i32
  }
  func.func @transform_16(%arg0: i32) -> (i32, i32) {
    %c0_i32 = arith.constant 0 : i32
    %c0_i32_0 = arith.constant 0 : i32
    %c0_i32_1 = arith.constant 0 : i32
    return %c0_i32, %c0_i32_0 : i32, i32
  }
  func.func @transform_17(%arg0: i32) -> (i32, i32) {
    %c0_i32 = arith.constant 0 : i32
    %c0_i32_0 = arith.constant 0 : i32
    %c0_i32_1 = arith.constant 0 : i32
    return %c0_i32, %c0_i32_0 : i32, i32
  }
  func.func @transform_18(%arg0: i32) -> (i32, i32) {
    %c0_i32 = arith.constant 0 : i32
    %c0_i32_0 = arith.constant 0 : i32
    %c0_i32_1 = arith.constant 0 : i32
    return %c0_i32, %c0_i32_0 : i32, i32
  }
  func.func @transform_19(%arg0: i32) -> (i32, i32) {
    %c0_i32 = arith.constant 0 : i32
    %c0_i32_0 = arith.constant 0 : i32
    %c0_i32_1 = arith.constant 0 : i32
    return %c0_i32, %c0_i32_0 : i32, i32
  }
  func.func @transform_20(%arg0: i32) -> (i32, i32) {
    %c0_i32 = arith.constant 0 : i32
    %c0_i32_0 = arith.constant 0 : i32
    %c0_i32_1 = arith.constant 0 : i32
    return %c0_i32, %c0_i32_0 : i32, i32
  }
  func.func @transform_21(%arg0: i32) -> (i32, i32) {
    %c0_i32 = arith.constant 0 : i32
    %c0_i32_0 = arith.constant 0 : i32
    %c0_i32_1 = arith.constant 0 : i32
    return %c0_i32, %c0_i32_0 : i32, i32
  }
  func.func @transform_22(%arg0: i32) -> (i32, i32) {
    %c0_i32 = arith.constant 0 : i32
    %c0_i32_0 = arith.constant 0 : i32
    %c0_i32_1 = arith.constant 0 : i32
    return %c0_i32, %c0_i32_0 : i32, i32
  }
  func.func @transform_23(%arg0: i32) -> (i32, i32, i32) {
    %c0_i32 = arith.constant 0 : i32
    %c0_i32_0 = arith.constant 0 : i32
    %c0_i32_1 = arith.constant 0 : i32
    return %arg0, %c0_i32, %c0_i32_0 : i32, i32, i32
  }
}

</mosaic_0001>

<llo_original>
// kernel: _forward_impl.1
$region0: #{_forward_impl.1}
  #allocation0 [shape = 'u32[]', space=smem, size = 0x4, offset = 0x4, fixed_abs, tag = 'smem constant byte address 0x4 - core index']
  #allocation1 [shape = 'u32[144,128]{1,0:T(1,128)}', space=vmem, size = 0x12000, scoped, tag = 'internal scratch']
  #allocation2 [shape = 'f32[62,192]{1,0:T(8,128)}', space=vmem, size = 0x10000, scoped, tag = 'scratch operand']
  #allocation3 [shape = 'f32[1,1]{1,0:T(1,128)S(1)}', space=vmem, size = 0x200, scoped, tag = 'scoped memory for _forward_impl.1']
  %s0 = inlined_call_operand.vmem [shape: f32[2,60,2], index: 0, kind: input, shape index: {}]
  %s1 = inlined_call_operand.hbm [shape: f32[3,2,24], index: 1, kind: input, shape index: {}]
  %s2 = inlined_call_operand.hbm [shape: f32[1,24], index: 2, kind: input, shape index: {}]
  %s3 = inlined_call_operand.hbm [shape: f32[3,24,24], index: 3, kind: input, shape index: {}]
  %s4 = inlined_call_operand.hbm [shape: f32[1,24], index: 4, kind: input, shape index: {}]
  %s5 = inlined_call_operand.hbm [shape: f32[3,24,48], index: 5, kind: input, shape index: {}]
  %s6 = inlined_call_operand.hbm [shape: f32[1,48], index: 6, kind: input, shape index: {}]
  %s7 = inlined_call_operand.hbm [shape: f32[3,48,48], index: 7, kind: input, shape index: {}]
  %s8 = inlined_call_operand.hbm [shape: f32[1,48], index: 8, kind: input, shape index: {}]
  %s9 = inlined_call_operand.hbm [shape: f32[3,48,96], index: 9, kind: input, shape index: {}]
  %s10 = inlined_call_operand.hbm [shape: f32[1,96], index: 10, kind: input, shape index: {}]
  %s11 = inlined_call_operand.hbm [shape: f32[3,96,96], index: 11, kind: input, shape index: {}]
  %s12 = inlined_call_operand.hbm [shape: f32[1,96], index: 12, kind: input, shape index: {}]
  %s13 = inlined_call_operand.vmem [shape: f32[3,96,192], index: 13, kind: input, shape index: {}]
  %s14 = inlined_call_operand.hbm [shape: f32[1,192], index: 14, kind: input, shape index: {}]
  %s15 = inlined_call_operand.hbm [shape: f32[3,192,192], index: 15, kind: input, shape index: {}]
  %s16 = inlined_call_operand.hbm [shape: f32[1,192], index: 16, kind: input, shape index: {}]
  %s17 = inlined_call_operand.vmem [shape: f32[192,64], index: 17, kind: input, shape index: {}]
  %s18 = inlined_call_operand.vmem [shape: f32[1,64], index: 18, kind: input, shape index: {}]
  %s19 = inlined_call_operand.hbm [shape: f32[64,64], index: 19, kind: input, shape index: {}]
  %s20 = inlined_call_operand.vmem [shape: f32[1,64], index: 20, kind: input, shape index: {}]
  %s21 = inlined_call_operand.vmem [shape: f32[64,1], index: 21, kind: input, shape index: {}]
  %s22 = inlined_call_operand.<no memory space> [shape: f32[1,1], index: 22, kind: input, shape index: {}]
  %s23 = inlined_call_operand.vmem [shape: f32[2,1,1], index: 23, kind: output, shape index: {}]
  %s24 = sld [smem:[#allocation0]]
  $region166: #{_forward_impl.1} parent=0
    _
  %s26 = ssub.s32 1, %s24
  %s27 = scalar_select 0, %s26, %s24
  %v28 = vstv %s22
  %29 = vst [vmem:[#allocation3] sm:$0x1] %v28
  $region1: #{_forward_impl.1} parent=0
    #allocation4 [shape = 'u8[3072]{0}', space=vmem, size = 0xc00, scoped, tag = 'input window, operand 1, single buffered']
    #allocation5 [shape = 's32[1]{0}', space=sflag, size = 0x4, scoped, tag = 'scoped memory for _forward_impl.1']
    #allocation6 [shape = 'u8[512]{0}', space=vmem, size = 0x400, scoped, tag = 'input window, operand 2, single buffered']
    #allocation7 [shape = 's32[1]{0}', space=sflag, size = 0x4, scoped, tag = 'scoped memory for _forward_impl.1']
    #allocation8 [shape = 'u8[36864]{0}', space=vmem, size = 0x9000, scoped, tag = 'input window, operand 3, single buffered']
    #allocation9 [shape = 'u8[512]{0}', space=vmem, size = 0x400, scoped, tag = 'input window, operand 4, single buffered']
    #allocation10 [shape = 's32[1]{0}', space=sflag, size = 0x4, scoped, tag = 'scoped memory for _forward_impl.1']
    #allocation11 [shape = 'u8[36864]{0}', space=vmem, size = 0x9000, scoped, tag = 'input window, operand 5, single buffered']
    #allocation12 [shape = 'u8[512]{0}', space=vmem, size = 0x400, scoped, tag = 'input window, operand 6, single buffered']
    #allocation13 [shape = 's32[1]{0}', space=sflag, size = 0x4, scoped, tag = 'scoped memory for _forward_impl.1']
    #allocation14 [shape = 'u8[73728]{0}', space=vmem, size = 0x12000, scoped, tag = 'input window, operand 7, single buffered']
    #allocation15 [shape = 'u8[512]{0}', space=vmem, size = 0x400, scoped, tag = 'input window, operand 8, single buffered']
    #allocation16 [shape = 's32[1]{0}', space=sflag, size = 0x4, scoped, tag = 'scoped memory for _forward_impl.1']
    #allocation17 [shape = 'u8[73728]{0}', space=vmem, size = 0x12000, scoped, tag = 'input window, operand 9, single buffered']
    #allocation18 [shape = 'u8[512]{0}', space=vmem, size = 0x400, scoped, tag = 'input window, operand 10, single buffered']
    #allocation19 [shape = 's32[1]{0}', space=sflag, size = 0x4, scoped, tag = 'scoped memory for _forward_impl.1']
    #allocation20 [shape = 'u8[147456]{0}', space=vmem, size = 0x24000, scoped, tag = 'input window, operand 11, single buffered']
    #allocation21 [shape = 'u8[512]{0}', space=vmem, size = 0x400, scoped, tag = 'input window, operand 12, single buffered']
    #allocation22 [shape = 's32[1]{0}', space=sflag, size = 0x4, scoped, tag = 'scoped memory for _forward_impl.1']
    #allocation23 [shape = 'u8[1024]{0}', space=vmem, size = 0x400, scoped, tag = 'input window, operand 14, single buffered']
    #allocation24 [shape = 'u8[589824]{0}', space=vmem, size = 0x90000, scoped, tag = 'input window, operand 15, single buffered']
    #allocation25 [shape = 's32[1]{0}', space=sflag, size = 0x4, scoped, tag = 'scoped memory for _forward_impl.1']
    #allocation26 [shape = 'u8[1024]{0}', space=vmem, size = 0x400, scoped, tag = 'input window, operand 16, single buffered']
    #allocation27 [shape = 'u8[32768]{0}', space=vmem, size = 0x8000, scoped, tag = 'input window, operand 19, single buffered']
    #allocation28 [shape = 's32[1]{0}', space=sflag, size = 0x4, scoped, tag = 'scoped memory for _forward_impl.1']
    %30 = vsyncpa [#allocation5], 0
    %31 = vsyncpa [#allocation7], 0
    %32 = vsyncpa [#allocation10], 0
    %33 = vsyncpa [#allocation13], 0
    %34 = vsyncpa [#allocation16], 0
    %35 = vsyncpa [#allocation19], 0
    %36 = vsyncpa [#allocation22], 0
    %37 = vsyncpa [#allocation25], 0
    %38 = vsyncpa [#allocation28], 0
    // Predicated region
    $region2: #{_forward_impl.1} parent=1 // pred_check
      _
    $region3: #{_forward_impl.1} parent=1 // pred_check_branch
      %40 = sbr.rel (0) target = $region5
    $region4: #{_forward_impl.1} parent=1 // pred_region
      _
    $region5: #{_forward_impl.1} parent=1 // pred_fallthru
      _
    // Predicated region
    $region6: #{_forward_impl.1} parent=1 // pred_check
      _
    $region7: #{_forward_impl.1} parent=1 // pred_check_branch
      %42 = sbr.rel (0) target = $region9
    $region8: #{_forward_impl.1} parent=1 // pred_region
      %s44 = ssub.s32 96, 96
      %45 = vsyncadd [#allocation5], %s44
      %s46 = sshll.u32 [#allocation4], 4
      %s47 = int_to_ptr.vmem [resolvable:$true] %s46
      %52 = dma.hbm_to_vmem [thread:$0]  %s1, 96, %s47, [#allocation5], 32, 32, 2
    $region9: #{_forward_impl.1} parent=1 // pred_fallthru
      _
    // Predicated region
    $region10: #{_forward_impl.1} parent=1 // pred_check
      _
    $region11: #{_forward_impl.1} parent=1 // pred_check_branch
      %54 = sbr.rel (0) target = $region13
    $region12: #{_forward_impl.1} parent=1 // pred_region
      %s56 = ssub.s32 16, 16
      %57 = vsyncadd [#allocation7], %s56
      %s59 = sshll.u32 [#allocation6], 4
      %s60 = int_to_ptr.vmem [resolvable:$true] %s59
      %62 = dma.hbm_to_vmem [thread:$0]  %s2, 16, %s60, [#allocation7]
    $region13: #{_forward_impl.1} parent=1 // pred_fallthru
      _
    // Predicated region
    $region14: #{_forward_impl.1} parent=1 // pred_check
      _
    $region15: #{_forward_impl.1} parent=1 // pred_check_branch
      %64 = sbr.rel (0) target = $region17
    $region16: #{_forward_impl.1} parent=1 // pred_region
      %s66 = ssub.s32 1152, 1152
      %67 = vsyncadd [#allocation7], %s66
      %s68 = sshll.u32 [#allocation8], 4
      %s69 = int_to_ptr.vmem [resolvable:$true] %s68
      %74 = dma.hbm_to_vmem [thread:$0]  %s3, 1152, %s69, [#allocation7], 128, 128, 8
    $region17: #{_forward_impl.1} parent=1 // pred_fallthru
      _
    // Predicated region
    $region18: #{_forward_impl.1} parent=1 // pred_check
      _
    $region19: #{_forward_impl.1} parent=1 // pred_check_branch
      %76 = sbr.rel (0) target = $region21
    $region20: #{_forward_impl.1} parent=1 // pred_region
      %s78 = ssub.s32 16, 16
      %79 = vsyncadd [#allocation10], %s78
      %s81 = sshll.u32 [#allocation9], 4
      %s82 = int_to_ptr.vmem [resolvable:$true] %s81
      %84 = dma.hbm_to_vmem [thread:$0]  %s4, 16, %s82, [#allocation10]
    $region21: #{_forward_impl.1} parent=1 // pred_fallthru
      _
    // Predicated region
    $region22: #{_forward_impl.1} parent=1 // pred_check
      _
    $region23: #{_forward_impl.1} parent=1 // pred_check_branch
      %86 = sbr.rel (0) target = $region25
    $region24: #{_forward_impl.1} parent=1 // pred_region
      %s88 = ssub.s32 1152, 1152
      %89 = vsyncadd [#allocation10], %s88
      %s90 = sshll.u32 [#allocation11], 4
      %s91 = int_to_ptr.vmem [resolvable:$true] %s90
      %96 = dma.hbm_to_vmem [thread:$0]  %s5, 1152, %s91, [#allocation10], 128, 128, 8
    $region25: #{_forward_impl.1} parent=1 // pred_fallthru
      _
    // Predicated region
    $region26: #{_forward_impl.1} parent=1 // pred_check
      _
    $region27: #{_forward_impl.1} parent=1 // pred_check_branch
      %98 = sbr.rel (0) target = $region29
    $region28: #{_forward_impl.1} parent=1 // pred_region
      %s100 = ssub.s32 16, 16
      %101 = vsyncadd [#allocation13], %s100
      %s103 = sshll.u32 [#allocation12], 4
      %s104 = int_to_ptr.vmem [resolvable:$true] %s103
      %106 = dma.hbm_to_vmem [thread:$0]  %s6, 16, %s104, [#allocation13]
    $region29: #{_forward_impl.1} parent=1 // pred_fallthru
      _
    // Predicated region
    $region30: #{_forward_impl.1} parent=1 // pred_check
      _
    $region31: #{_forward_impl.1} parent=1 // pred_check_branch
      %108 = sbr.rel (0) target = $region33
    $region32: #{_forward_impl.1} parent=1 // pred_region
      %s110 = ssub.s32 2304, 2304
      %111 = vsyncadd [#allocation13], %s110
      %s112 = sshll.u32 [#allocation14], 4
      %s113 = int_to_ptr.vmem [resolvable:$true] %s112
      %118 = dma.hbm_to_vmem [thread:$0]  %s7, 2304, %s113, [#allocation13], 128, 128, 8
    $region33: #{_forward_impl.1} parent=1 // pred_fallthru
      _
    // Predicated region
    $region34: #{_forward_impl.1} parent=1 // pred_check
      _
    $region35: #{_forward_impl.1} parent=1 // pred_check_branch
      %120 = sbr.rel (0) target = $region37
    $region36: #{_forward_impl.1} parent=1 // pred_region
      %s122 = ssub.s32 16, 16
      %123 = vsyncadd [#allocation16], %s122
      %s125 = sshll.u32 [#allocation15], 4
      %s126 = int_to_ptr.vmem [resolvable:$true] %s125
      %128 = dma.hbm_to_vmem [thread:$0]  %s8, 16, %s126, [#allocation16]
    $region37: #{_forward_impl.1} parent=1 // pred_fallthru
      _
    // Predicated region
    $region38: #{_forward_impl.1} parent=1 // pred_check
      _
    $region39: #{_forward_impl.1} parent=1 // pred_check_branch
      %130 = sbr.rel (0) target = $region41
    $region40: #{_forward_impl.1} parent=1 // pred_region
      %s132 = ssub.s32 2304, 2304
      %133 = vsyncadd [#allocation16], %s132
      %s134 = sshll.u32 [#allocation17], 4
      %s135 = int_to_ptr.vmem [resolvable:$true] %s134
      %140 = dma.hbm_to_vmem [thread:$0]  %s9, 2304, %s135, [#allocation16], 128, 128, 8
    $region41: #{_forward_impl.1} parent=1 // pred_fallthru
      _
    // Predicated region
    $region42: #{_forward_impl.1} parent=1 // pred_check
      _
    $region43: #{_forward_impl.1} parent=1 // pred_check_branch
      %142 = sbr.rel (0) target = $region45
    $region44: #{_forward_impl.1} parent=1 // pred_region
      %s144 = ssub.s32 16, 16
      %145 = vsyncadd [#allocation19], %s144
      %s147 = sshll.u32 [#allocation18], 4
      %s148 = int_to_ptr.vmem [resolvable:$true] %s147
      %150 = dma.hbm_to_vmem [thread:$0]  %s10, 16, %s148, [#allocation19]
    $region45: #{_forward_impl.1} parent=1 // pred_fallthru
      _
    // Predicated region
    $region46: #{_forward_impl.1} parent=1 // pred_check
      _
    $region47: #{_forward_impl.1} parent=1 // pred_check_branch
      %152 = sbr.rel (0) target = $region49
    $region48: #{_forward_impl.1} parent=1 // pred_region
      %s154 = ssub.s32 4608, 4608
      %155 = vsyncadd [#allocation19], %s154
      %s156 = sshll.u32 [#allocation20], 4
      %s157 = int_to_ptr.vmem [resolvable:$true] %s156
      %162 = dma.hbm_to_vmem [thread:$0]  %s11, 4608, %s157, [#allocation19], 128, 128, 8
    $region49: #{_forward_impl.1} parent=1 // pred_fallthru
      _
    // Predicated region
    $region50: #{_forward_impl.1} parent=1 // pred_check
      _
    $region51: #{_forward_impl.1} parent=1 // pred_check_branch
      %164 = sbr.rel (0) target = $region53
    $region52: #{_forward_impl.1} parent=1 // pred_region
      %s166 = ssub.s32 16, 16
      %167 = vsyncadd [#allocation22], %s166
      %s169 = sshll.u32 [#allocation21], 4
      %s170 = int_to_ptr.vmem [resolvable:$true] %s169
      %172 = dma.hbm_to_vmem [thread:$0]  %s12, 16, %s170, [#allocation22]
    $region53: #{_forward_impl.1} parent=1 // pred_fallthru
      _
    // Predicated region
    $region54: #{_forward_impl.1} parent=1 // pred_check
      _
    $region55: #{_forward_impl.1} parent=1 // pred_check_branch
      %174 = sbr.rel (0) target = $region57
    $region56: #{_forward_impl.1} parent=1 // pred_region
      _
    $region57: #{_forward_impl.1} parent=1 // pred_fallthru
      _
    // Predicated region
    $region58: #{_forward_impl.1} parent=1 // pred_check
      _
    $region59: #{_forward_impl.1} parent=1 // pred_check_branch
      %176 = sbr.rel (0) target = $region61
    $region60: #{_forward_impl.1} parent=1 // pred_region
      %s178 = ssub.s32 32, 32
      %179 = vsyncadd [#allocation22], %s178
      %s181 = sshll.u32 [#allocation23], 4
      %s182 = int_to_ptr.vmem [resolvable:$true] %s181
      %184 = dma.hbm_to_vmem [thread:$0]  %s14, 32, %s182, [#allocation22]
    $region61: #{_forward_impl.1} parent=1 // pred_fallthru
      _
    // Predicated region
    $region62: #{_forward_impl.1} parent=1 // pred_check
      _
    $region63: #{_forward_impl.1} parent=1 // pred_check_branch
      %186 = sbr.rel (0) target = $region65
    $region64: #{_forward_impl.1} parent=1 // pred_region
      %s188 = ssub.s32 18432, 18432
      %189 = vsyncadd [#allocation25], %s188
      %s190 = sshll.u32 [#allocation24], 4
      %s191 = int_to_ptr.vmem [resolvable:$true] %s190
      %196 = dma.hbm_to_vmem [thread:$0]  %s15, 18432, %s191, [#allocation25], 256, 256, 16
    $region65: #{_forward_impl.1} parent=1 // pred_fallthru
      _
    // Predicated region
    $region66: #{_forward_impl.1} parent=1 // pred_check
      _
    $region67: #{_forward_impl.1} parent=1 // pred_check_branch
      %198 = sbr.rel (0) target = $region69
    $region68: #{_forward_impl.1} parent=1 // pred_region
      %s200 = ssub.s32 32, 32
      %201 = vsyncadd [#allocation25], %s200
      %s203 = sshll.u32 [#allocation26], 4
      %s204 = int_to_ptr.vmem [resolvable:$true] %s203
      %206 = dma.hbm_to_vmem [thread:$0]  %s16, 32, %s204, [#allocation25]
    $region69: #{_forward_impl.1} parent=1 // pred_fallthru
      _
    // Predicated region
    $region70: #{_forward_impl.1} parent=1 // pred_check
      _
    $region71: #{_forward_impl.1} parent=1 // pred_check_branch
      %208 = sbr.rel (0) target = $region73
    $region72: #{_forward_impl.1} parent=1 // pred_region
      _
    $region73: #{_forward_impl.1} parent=1 // pred_fallthru
      _
    // Predicated region
    $region74: #{_forward_impl.1} parent=1 // pred_check
      _
    $region75: #{_forward_impl.1} parent=1 // pred_check_branch
      %210 = sbr.rel (0) target = $region77
    $region76: #{_forward_impl.1} parent=1 // pred_region
      _
    $region77: #{_forward_impl.1} parent=1 // pred_fallthru
      _
    // Predicated region
    $region78: #{_forward_impl.1} parent=1 // pred_check
      _
    $region79: #{_forward_impl.1} parent=1 // pred_check_branch
      %212 = sbr.rel (0) target = $region81
    $region80: #{_forward_impl.1} parent=1 // pred_region
      %s214 = ssub.s32 1024, 1024
      %215 = vsyncadd [#allocation28], %s214
      %s216 = sshll.u32 [#allocation27], 4
      %s217 = int_to_ptr.vmem [resolvable:$true] %s216
      %222 = dma.hbm_to_vmem [thread:$0]  %s19, 1024, %s217, [#allocation28], 128, 128, 8
    $region81: #{_forward_impl.1} parent=1 // pred_fallthru
      _
    // Predicated region
    $region82: #{_forward_impl.1} parent=1 // pred_check
      _
    $region83: #{_forward_impl.1} parent=1 // pred_check_branch
      %224 = sbr.rel (0) target = $region85
    $region84: #{_forward_impl.1} parent=1 // pred_region
      _
    $region85: #{_forward_impl.1} parent=1 // pred_fallthru
      _
    // Predicated region
    $region86: #{_forward_impl.1} parent=1 // pred_check
      _
    $region87: #{_forward_impl.1} parent=1 // pred_check_branch
      %226 = sbr.rel (0) target = $region89
    $region88: #{_forward_impl.1} parent=1 // pred_region
      _
    $region89: #{_forward_impl.1} parent=1 // pred_fallthru
      _
    // Predicated region
    $region90: #{_forward_impl.1} parent=1 // pred_check
      _
    $region91: #{_forward_impl.1} parent=1 // pred_check_branch
      %228 = sbr.rel (0) target = $region93
    $region92: #{_forward_impl.1} parent=1 // pred_region
      _
    $region93: #{_forward_impl.1} parent=1 // pred_fallthru
      _
    // Predicated region
    $region94: #{_forward_impl.1} parent=1 // pred_check
      _
    $region95: #{_forward_impl.1} parent=1 // pred_check_branch
      %230 = sbr.rel (0) target = $region97
    $region96: #{_forward_impl.1} parent=1 // pred_region
      %231 = dma.done [#allocation5], 96
    $region97: #{_forward_impl.1} parent=1 // pred_fallthru
      _
    // Predicated region
    $region98: #{_forward_impl.1} parent=1 // pred_check
      _
    $region99: #{_forward_impl.1} parent=1 // pred_check_branch
      %233 = sbr.rel (0) target = $region101
    $region100: #{_forward_impl.1} parent=1 // pred_region
      %234 = dma.done [#allocation7], 16
    $region101: #{_forward_impl.1} parent=1 // pred_fallthru
      _
    // Predicated region
    $region102: #{_forward_impl.1} parent=1 // pred_check
      _
    $region103: #{_forward_impl.1} parent=1 // pred_check_branch
      %236 = sbr.rel (0) target = $region105
    $region104: #{_forward_impl.1} parent=1 // pred_region
      %237 = dma.done [#allocation7], 1152
    $region105: #{_forward_impl.1} parent=1 // pred_fallthru
      _
    // Predicated region
    $region106: #{_forward_impl.1} parent=1 // pred_check
      _
    $region107: #{_forward_impl.1} parent=1 // pred_check_branch
      %239 = sbr.rel (0) target = $region109
    $region108: #{_forward_impl.1} parent=1 // pred_region
      %240 = dma.done [#allocation10], 16
    $region109: #{_forward_impl.1} parent=1 // pred_fallthru
      _
    // Predicated region
    $region110: #{_forward_impl.1} parent=1 // pred_check
      _
    $region111: #{_forward_impl.1} parent=1 // pred_check_branch
      %242 = sbr.rel (0) target = $region113
    $region112: #{_forward_impl.1} parent=1 // pred_region
      %243 = dma.done [#allocation10], 1152
    $region113: #{_forward_impl.1} parent=1 // pred_fallthru
      _
    // Predicated region
    $region114: #{_forward_impl.1} parent=1 // pred_check
      _
    $region115: #{_forward_impl.1} parent=1 // pred_check_branch
      %245 = sbr.rel (0) target = $region117
    $region116: #{_forward_impl.1} parent=1 // pred_region
      %246 = dma.done [#allocation13], 16
    $region117: #{_forward_impl.1} parent=1 // pred_fallthru
      _
    // Predicated region
    $region118: #{_forward_impl.1} parent=1 // pred_check
      _
    $region119: #{_forward_impl.1} parent=1 // pred_check_branch
      %248 = sbr.rel (0) target = $region121
    $region120: #{_forward_impl.1} parent=1 // pred_region
      %249 = dma.done [#allocation13], 2304
    $region121: #{_forward_impl.1} parent=1 // pred_fallthru
      _
    // Predicated region
    $region122: #{_forward_impl.1} parent=1 // pred_check
      _
    $region123: #{_forward_impl.1} parent=1 // pred_check_branch
      %251 = sbr.rel (0) target = $region125
    $region124: #{_forward_impl.1} parent=1 // pred_region
      %252 = dma.done [#allocation16], 16
    $region125: #{_forward_impl.1} parent=1 // pred_fallthru
      _
    // Predicated region
    $region126: #{_forward_impl.1} parent=1 // pred_check
      _
    $region127: #{_forward_impl.1} parent=1 // pred_check_branch
      %254 = sbr.rel (0) target = $region129
    $region128: #{_forward_impl.1} parent=1 // pred_region
      %255 = dma.done [#allocation16], 2304
    $region129: #{_forward_impl.1} parent=1 // pred_fallthru
      _
    // Predicated region
    $region130: #{_forward_impl.1} parent=1 // pred_check
      _
    $region131: #{_forward_impl.1} parent=1 // pred_check_branch
      %257 = sbr.rel (0) target = $region133
    $region132: #{_forward_impl.1} parent=1 // pred_region
      %258 = dma.done [#allocation19], 16
    $region133: #{_forward_impl.1} parent=1 // pred_fallthru
      _
    // Predicated region
    $region134: #{_forward_impl.1} parent=1 // pred_check
      _
    $region135: #{_forward_impl.1} parent=1 // pred_check_branch
      %260 = sbr.rel (0) target = $region137
    $region136: #{_forward_impl.1} parent=1 // pred_region
      %261 = dma.done [#allocation19], 4608
    $region137: #{_forward_impl.1} parent=1 // pred_fallthru
      _
    // Predicated region
    $region138: #{_forward_impl.1} parent=1 // pred_check
      _
    $region139: #{_forward_impl.1} parent=1 // pred_check_branch
      %263 = sbr.rel (0) target = $region141
    $region140: #{_forward_impl.1} parent=1 // pred_region
      %264 = dma.done [#allocation22], 16
    $region141: #{_forward_impl.1} parent=1 // pred_fallthru
      _
    // Predicated region
    $region142: #{_forward_impl.1} parent=1 // pred_check
      _
    $region143: #{_forward_impl.1} parent=1 // pred_check_branch
      %266 = sbr.rel (0) target = $region145
    $region144: #{_forward_impl.1} parent=1 // pred_region
      %267 = dma.done [#allocation22], 32
    $region145: #{_forward_impl.1} parent=1 // pred_fallthru
      _
    // Predicated region
    $region146: #{_forward_impl.1} parent=1 // pred_check
      _
    $region147: #{_forward_impl.1} parent=1 // pred_check_branch
      %269 = sbr.rel (0) target = $region149
    $region148: #{_forward_impl.1} parent=1 // pred_region
      %270 = dma.done [#allocation25], 18432
    $region149: #{_forward_impl.1} parent=1 // pred_fallthru
      _
    // Predicated region
    $region150: #{_forward_impl.1} parent=1 // pred_check
      _
    $region151: #{_forward_impl.1} parent=1 // pred_check_branch
      %272 = sbr.rel (0) target = $region153
    $region152: #{_forward_impl.1} parent=1 // pred_region
      %273 = dma.done [#allocation25], 32
    $region153: #{_forward_impl.1} parent=1 // pred_fallthru
      _
    // Predicated region
    $region154: #{_forward_impl.1} parent=1 // pred_check
      _
    $region155: #{_forward_impl.1} parent=1 // pred_check_branch
      %275 = sbr.rel (0) target = $region157
    $region156: #{_forward_impl.1} parent=1 // pred_region
      %276 = dma.done [#allocation28], 1024
    $region157: #{_forward_impl.1} parent=1 // pred_fallthru
      _
    %v277 = vlaneseq
    %vm278 = vcmp.ge.s32.totalorder %v277, 0
    %vm279 = vcmp.lt.s32.totalorder %v277, 192
    %vm280 = vmand %vm278, %vm279
    %281 = vst.msk [vmem:[#allocation2] ss:$8 sm:$0x3] %vm280, 0.0
    %282 = vst.msk [vmem:[#allocation2] ss:$8 sm:$0x0] %vm280, 0.0
    %s283 = scalar_lea.vmem [#allocation2], 117
    %284 = vst.msk [vmem:[%s283] ss:$8 sm:$0x3] %vm280, 0.0
    %285 = vst.msk [vmem:[%s283] ss:$8 sm:$0x0] %vm280, 0.0
    %v286 = vld [vmem:[%s0] sm:$0xff]
    %v287 = vld [vmem:[%s0 + $0x8] sm:$0xff]
    %v288 = vld [vmem:[%s0 + $0x10] sm:$0xff]
    %v289 = vld [vmem:[%s0 + $0x18] sm:$0xff]
    %v290 = vld [vmem:[%s0 + $0x20] sm:$0xff]
    %v291 = vld [vmem:[%s0 + $0x28] sm:$0xff]
    %v292 = vld [vmem:[%s0 + $0x30] sm:$0xff]
    %v293 = vld [vmem:[%s0 + $0x38] sm:$0xf]
    %vm302 = vcmask 1040384
    %v303 = vrot.slane %v286, 7
    %v304 = vrot.slane %v287, 7
    %v305 = vsel %vm302, %v303, %v304
    %v306 = vrot.slane %v288, 7
    %v307 = vsel %vm302, %v304, %v306
    %v308 = vrot.slane %v289, 7
    %v309 = vsel %vm302, %v306, %v308
    %v310 = vrot.slane %v290, 7
    %v311 = vsel %vm302, %v308, %v310
    %v312 = vrot.slane %v291, 7
    %v313 = vsel %vm302, %v310, %v312
    %v314 = vrot.slane %v292, 7
    %v315 = vsel %vm302, %v312, %v314
    %v316 = vrot.slane %v293, 7
    %v317 = vsel %vm302, %v314, %v316
    %vm326 = vcmask 15361
    %327 = vst.msk [vmem:[#allocation2] sm:$0xfe] %vm326, %v303
    %vm328 = vcmask 15360
    %329 = vst.msk [vmem:[#allocation2 + $0x10] sm:$0xff] %vm328, %v305
    %330 = vst.msk [vmem:[#allocation2 + $0x20] sm:$0xff] %vm328, %v307
    %331 = vst.msk [vmem:[#allocation2 + $0x30] sm:$0xff] %vm328, %v309
    %332 = vst.msk [vmem:[#allocation2 + $0x40] sm:$0xff] %vm328, %v311
    %333 = vst.msk [vmem:[#allocation2 + $0x50] sm:$0xff] %vm328, %v313
    %334 = vst.msk [vmem:[#allocation2 + $0x60] sm:$0xff] %vm328, %v315
    %vm335 = vcmask 12288
    %336 = vst.msk [vmem:[#allocation2 + $0x70] sm:$0x1f] %vm335, %v317
    %v337 = vld [vmem:[#allocation2] sm:$0xff]
    %v338 = vld [vmem:[#allocation2 + $0x10] sm:$0xff]
    %v339 = vld [vmem:[#allocation2 + $0x20] sm:$0xff]
    %v340 = vld [vmem:[#allocation2 + $0x30] sm:$0xff]
    %v341 = vld [vmem:[#allocation2 + $0x40] sm:$0xff]
    %v342 = vld [vmem:[#allocation2 + $0x50] sm:$0xff]
    %v343 = vld [vmem:[#allocation2 + $0x60] sm:$0xff]
    %v344 = vld [vmem:[#allocation2 + $0x70] sm:$0x3f]
    %v345 = vld [vmem:[#allocation4] sm:$0x3]
    %s346 = scalar_lea.vmem [#allocation4], 2
    %v347 = vld [vmem:[%s346] sm:$0x3]
    %vm356 = vcmask 1046528
    %v357 = vrot.slane %v337, 1
    %v358 = vrot.slane %v338, 1
    %v359 = vsel %vm356, %v357, %v358
    %v360 = vrot.slane %v339, 1
    %v361 = vsel %vm356, %v358, %v360
    %v362 = vrot.slane %v340, 1
    %v363 = vsel %vm356, %v360, %v362
    %v364 = vrot.slane %v341, 1
    %v365 = vsel %vm356, %v362, %v364
    %v366 = vrot.slane %v342, 1
    %v367 = vsel %vm356, %v364, %v366
    %v368 = vrot.slane %v343, 1
    %v369 = vsel %vm356, %v366, %v368
    %v370 = vrot.slane %v344, 1
    %v371 = vsel %vm356, %v368, %v370
    %v372 = vsel %vm328, %v359, 0
    %v374 = vsel %vm328, %v361, 0
    %v376 = vsel %vm328, %v363, 0
    %v378 = vsel %vm328, %v365, 0
    %v380 = vsel %vm328, %v367, 0
    %v382 = vsel %vm328, %v369, 0
    %v384 = vsel %vm328, %v371, 0
    %v386 = vsel %vm328, %v370, 0
    %vm388 = vcmask 1041408
    %v390 = vsel %vm388, %v347, 0
    %392 = vmatprep.subr.mxu0 0.0
    %393 = vmatpush1.msra.mxu0 %v390
    %394 = vmatprep.subr.mxu0 0.0
    %395 = vmatpush1.msra.mxu0 0.0
    %396 = vmatprep.subr.mxu0 0.0
    %397 = vmatpush1.msra.mxu0 0.0
    %398 = vmatprep.subr.mxu0 0.0
    %399 = vmatpush1.msra.mxu0 0.0
    %400 = vmatprep.subr.mxu0 0.0
    %401 = vmatpush1.msra.mxu0 0.0
    %402 = vmatprep.subr.mxu0 0.0
    %403 = vmatpush1.msra.mxu0 0.0
    %404 = vmatprep.subr.mxu0 0.0
    %405 = vmatpush1.msra.mxu0 0.0
    %406 = vmatprep.subr.mxu0 0.0
    %407 = vmatpush1.msra.mxu0 0.0
    %408 = vmatprep.subr.mxu0 0.0
    %409 = vmatpush1.msra.mxu0 0.0
    %410 = vmatprep.subr.mxu0 0.0
    %411 = vmatpush1.msra.mxu0 0.0
    %412 = vmatprep.subr.mxu0 0.0
    %413 = vmatpush1.msra.mxu0 0.0
    %414 = vmatprep.subr.mxu0 0.0
    %415 = vmatpush1.msra.mxu0 0.0
    %416 = vmatprep.subr.mxu0 0.0
    %417 = vmatpush1.msra.mxu0 0.0
    %418 = vmatprep.subr.mxu0 0.0
    %419 = vmatpush1.msra.mxu0 0.0
    %420 = vmatprep.subr.mxu0 0.0
    %421 = vmatpush1.msra.mxu0 0.0
    %422 = vmatprep.subr.mxu0 0.0
    %423 = vmatpush1.msra.mxu0 0.0
    %424 = vmatprep.subr.mxu0 0.0
    %425 = vmatpush1.msra.mxu0 0.0
    %426 = vmatprep.subr.mxu0 0.0
    %427 = vmatpush1.msra.mxu0 0.0
    %428 = vmatprep.subr.mxu0 0.0
    %429 = vmatpush1.msra.mxu0 0.0
    %430 = vmatprep.subr.mxu0 0.0
    %431 = vmatpush1.msra.mxu0 0.0
    %432 = vmatprep.subr.mxu0 0.0
    %433 = vmatpush1.msra.mxu0 0.0
    %434 = vmatprep.subr.mxu0 0.0
    %435 = vmatpush1.msra.mxu0 0.0
    %436 = vmatprep.subr.mxu0 0.0
    %437 = vmatpush1.msra.mxu0 0.0
    %438 = vmatprep.subr.mxu0 0.0
    %439 = vmatpush1.msra.mxu0 0.0
    %440 = vmatprep.subr.mxu0 0.0
    %441 = vmatpush1.msra.mxu0 0.0
    %442 = vmatprep.subr.mxu0 0.0
    %443 = vmatpush1.msra.mxu0 0.0
    %444 = vmatprep.subr.mxu0 0.0
    %445 = vmatpush1.msra.mxu0 0.0
    %446 = vmatprep.subr.mxu0 0.0
    %447 = vmatpush1.msra.mxu0 0.0
    %448 = vmatprep.subr.mxu0 0.0
    %449 = vmatpush1.msra.mxu0 0.0
    %450 = vmatprep.subr.mxu0 0.0
    %451 = vmatpush1.msra.mxu0 0.0
    %452 = vmatprep.subr.mxu0 0.0
    %453 = vmatpush1.msra.mxu0 0.0
    %454 = vmatprep.subr.mxu0 0.0
    %455 = vmatpush1.msra.mxu0 0.0
    %456 = vmatprep.mubr.f32.mxu0 0.0
    %457 = vmatmul.mubr.f32.gmra.mrb[0].mxu0 %v372
    %v458 = vpop.f32.mrb[0].mxu0
    %v459 = vadd.f32 0.0, %v458
    %v460 = vpop.f32.mrb[0].mxu0
    %461 = vmatprep.mubr.f32.mxu0 0.0
    %462 = vmatmul.mubr.f32.gmra.mrb[0].mxu0 %v374
    %v463 = vpop.f32.mrb[0].mxu0
    %v464 = vadd.f32 0.0, %v463
    %v465 = vpop.f32.mrb[0].mxu0
    %466 = vmatprep.mubr.f32.mxu0 0.0
    %467 = vmatmul.mubr.f32.gmra.mrb[0].mxu0 %v376
    %v468 = vpop.f32.mrb[0].mxu0
    %v469 = vadd.f32 0.0, %v468
    %v470 = vpop.f32.mrb[0].mxu0
    %471 = vmatprep.mubr.f32.mxu0 0.0
    %472 = vmatmul.mubr.f32.gmra.mrb[0].mxu0 %v378
    %v473 = vpop.f32.mrb[0].mxu0
    %v474 = vadd.f32 0.0, %v473
    %v475 = vpop.f32.mrb[0].mxu0
    %476 = vmatprep.mubr.f32.mxu0 0.0
    %477 = vmatmul.mubr.f32.gmra.mrb[0].mxu0 %v380
    %v478 = vpop.f32.mrb[0].mxu0
    %v479 = vadd.f32 0.0, %v478
    %v480 = vpop.f32.mrb[0].mxu0
    %481 = vmatprep.mubr.f32.mxu0 0.0
    %482 = vmatmul.mubr.f32.gmra.mrb[0].mxu0 %v382
    %v483 = vpop.f32.mrb[0].mxu0
    %v484 = vadd.f32 0.0, %v483
    %v485 = vpop.f32.mrb[0].mxu0
    %486 = vmatprep.mubr.f32.mxu0 0.0
    %487 = vmatmul.mubr.f32.gmra.mrb[0].mxu0 %v384
    %v488 = vpop.f32.mrb[0].mxu0
    %v489 = vadd.f32 0.0, %v488
    %v490 = vpop.f32.mrb[0].mxu0
    %491 = vmatprep.mubr.f32.mxu0 0.0
    %492 = vmatmul.mubr.f32.gmra.mrb[0].mxu0 %v386
    %v493 = vpop.f32.mrb[0].mxu0
    %v494 = vadd.f32 0.0, %v493
    %v495 = vpop.f32.mrb[0].mxu0
    %496 = vdwg.mxu0
    %v497 = vsel %vm328, %v337, 0
    %v499 = vsel %vm328, %v338, 0
    %v501 = vsel %vm328, %v339, 0
    %v503 = vsel %vm328, %v340, 0
    %v505 = vsel %vm328, %v341, 0
    %v507 = vsel %vm328, %v342, 0
    %v509 = vsel %vm328, %v343, 0
    %v511 = vsel %vm328, %v344, 0
    %v514 = vsel %vm388, %v345, 0
    %516 = vmatprep.subr.mxu0 0.0
    %517 = vmatpush1.msra.mxu0 %v514
    %518 = vmatprep.subr.mxu0 0.0
    %519 = vmatpush1.msra.mxu0 0.0
    %520 = vmatprep.subr.mxu0 0.0
    %521 = vmatpush1.msra.mxu0 0.0
    %522 = vmatprep.subr.mxu0 0.0
    %523 = vmatpush1.msra.mxu0 0.0
    %524 = vmatprep.subr.mxu0 0.0
    %525 = vmatpush1.msra.mxu0 0.0
    %526 = vmatprep.subr.mxu0 0.0
    %527 = vmatpush1.msra.mxu0 0.0
    %528 = vmatprep.subr.mxu0 0.0
    %529 = vmatpush1.msra.mxu0 0.0
    %530 = vmatprep.subr.mxu0 0.0
    %531 = vmatpush1.msra.mxu0 0.0
    %532 = vmatprep.subr.mxu0 0.0
    %533 = vmatpush1.msra.mxu0 0.0
    %534 = vmatprep.subr.mxu0 0.0
    %535 = vmatpush1.msra.mxu0 0.0
    %536 = vmatprep.subr.mxu0 0.0
    %537 = vmatpush1.msra.mxu0 0.0
    %538 = vmatprep.subr.mxu0 0.0
    %539 = vmatpush1.msra.mxu0 0.0
    %540 = vmatprep.subr.mxu0 0.0
    %541 = vmatpush1.msra.mxu0 0.0
    %542 = vmatprep.subr.mxu0 0.0
    %543 = vmatpush1.msra.mxu0 0.0
    %544 = vmatprep.subr.mxu0 0.0
    %545 = vmatpush1.msra.mxu0 0.0
    %546 = vmatprep.subr.mxu0 0.0
    %547 = vmatpush1.msra.mxu0 0.0
    %548 = vmatprep.subr.mxu0 0.0
    %549 = vmatpush1.msra.mxu0 0.0
    %550 = vmatprep.subr.mxu0 0.0
    %551 = vmatpush1.msra.mxu0 0.0
    %552 = vmatprep.subr.mxu0 0.0
    %553 = vmatpush1.msra.mxu0 0.0
    %554 = vmatprep.subr.mxu0 0.0
    %555 = vmatpush1.msra.mxu0 0.0
    %556 = vmatprep.subr.mxu0 0.0
    %557 = vmatpush1.msra.mxu0 0.0
    %558 = vmatprep.subr.mxu0 0.0
    %559 = vmatpush1.msra.mxu0 0.0
    %560 = vmatprep.subr.mxu0 0.0
    %561 = vmatpush1.msra.mxu0 0.0
    %562 = vmatprep.subr.mxu0 0.0
    %563 = vmatpush1.msra.mxu0 0.0
    %564 = vmatprep.subr.mxu0 0.0
    %565 = vmatpush1.msra.mxu0 0.0
    %566 = vmatprep.subr.mxu0 0.0
    %567 = vmatpush1.msra.mxu0 0.0
    %568 = vmatprep.subr.mxu0 0.0
    %569 = vmatpush1.msra.mxu0 0.0
    %570 = vmatprep.subr.mxu0 0.0
    %571 = vmatpush1.msra.mxu0 0.0
    %572 = vmatprep.subr.mxu0 0.0
    %573 = vmatpush1.msra.mxu0 0.0
    %574 = vmatprep.subr.mxu0 0.0
    %575 = vmatpush1.msra.mxu0 0.0
    %576 = vmatprep.subr.mxu0 0.0
    %577 = vmatpush1.msra.mxu0 0.0
    %578 = vmatprep.subr.mxu0 0.0
    %579 = vmatpush1.msra.mxu0 0.0
    %580 = vmatprep.mubr.f32.mxu0 0.0
    %581 = vmatmul.mubr.f32.gmra.mrb[0].mxu0 %v497
    %v582 = vpop.f32.mrb[0].mxu0
    %v583 = vadd.f32 %v459, %v582
    %v584 = vpop.f32.mrb[0].mxu0
    %585 = vmatprep.mubr.f32.mxu0 0.0
    %586 = vmatmul.mubr.f32.gmra.mrb[0].mxu0 %v499
    %v587 = vpop.f32.mrb[0].mxu0
    %v588 = vadd.f32 %v464, %v587
    %v589 = vpop.f32.mrb[0].mxu0
    %590 = vmatprep.mubr.f32.mxu0 0.0
    %591 = vmatmul.mubr.f32.gmra.mrb[0].mxu0 %v501
    %v592 = vpop.f32.mrb[0].mxu0
    %v593 = vadd.f32 %v469, %v592
    %v594 = vpop.f32.mrb[0].mxu0
    %595 = vmatprep.mubr.f32.mxu0 0.0
    %596 = vmatmul.mubr.f32.gmra.mrb[0].mxu0 %v503
    %v597 = vpop.f32.mrb[0].mxu0
    %v598 = vadd.f32 %v474, %v597
    %v599 = vpop.f32.mrb[0].mxu0
    %600 = vmatprep.mubr.f32.mxu0 0.0
    %601 = vmatmul.mubr.f32.gmra.mrb[0].mxu0 %v505
    %v602 = vpop.f32.mrb[0].mxu0
    %v603 = vadd.f32 %v479, %v602
    %v604 = vpop.f32.mrb[0].mxu0
    %605 = vmatprep.mubr.f32.mxu0 0.0
    %606 = vmatmul.mubr.f32.gmra.mrb[0].mxu0 %v507
    %v607 = vpop.f32.mrb[0].mxu0
    %v608 = vadd.f32 %v484, %v607
    %v609 = vpop.f32.mrb[0].mxu0
    %610 = vmatprep.mubr.f32.mxu0 0.0
    %611 = vmatmul.mubr.f32.gmra.mrb[0].mxu0 %v509
    %v612 = vpop.f32.mrb[0].mxu0
    %v613 = vadd.f32 %v489, %v612
    %v614 = vpop.f32.mrb[0].mxu0
    %615 = vmatprep.mubr.f32.mxu0 0.0
    %616 = vmatmul.mubr.f32.gmra.mrb[0].mxu0 %v511
    %v617 = vpop.f32.mrb[0].mxu0
    %v618 = vadd.f32 %v494, %v617
    %v619 = vpop.f32.mrb[0].mxu0
    %620 = vdwg.mxu0
    %s621 = scalar_lea.vmem [#allocation4], 4
    %v622 = vld [vmem:[%s621] sm:$0x3]
    %vm623 = vcmask 1045504
    %v624 = vrot.slane %v337, 2
    %v625 = vrot.slane %v338, 2
    %v626 = vsel %vm623, %v624, %v625
    %v627 = vrot.slane %v339, 2
    %v628 = vsel %vm623, %v625, %v627
    %v629 = vrot.slane %v340, 2
    %v630 = vsel %vm623, %v627, %v629
    %v631 = vrot.slane %v341, 2
    %v632 = vsel %vm623, %v629, %v631
    %v633 = vrot.slane %v342, 2
    %v634 = vsel %vm623, %v631, %v633
    %v635 = vrot.slane %v343, 2
    %v636 = vsel %vm623, %v633, %v635
    %v637 = vrot.slane %v344, 2
    %v638 = vsel %vm623, %v635, %v637
    %v639 = vsel %vm328, %v626, 0
    %v641 = vsel %vm328, %v628, 0
    %v643 = vsel %vm328, %v630, 0
    %v645 = vsel %vm328, %v632, 0
    %v647 = vsel %vm328, %v634, 0
    %v649 = vsel %vm328, %v636, 0
    %v651 = vsel %vm328, %v638, 0
    %v653 = vsel %vm328, %v637, 0
    %v656 = vsel %vm388, %v622, 0
    %658 = vmatprep.subr.mxu0 0.0
    %659 = vmatpush1.msra.mxu0 %v656
    %660 = vmatprep.subr.mxu0 0.0
    %661 = vmatpush1.msra.mxu0 0.0
    %662 = vmatprep.subr.mxu0 0.0
    %663 = vmatpush1.msra.mxu0 0.0
    %664 = vmatprep.subr.mxu0 0.0
    %665 = vmatpush1.msra.mxu0 0.0
    %666 = vmatprep.subr.mxu0 0.0
    %667 = vmatpush1.msra.mxu0 0.0
    %668 = vmatprep.subr.mxu0 0.0
    %669 = vmatpush1.msra.mxu0 0.0
    %670 = vmatprep.subr.mxu0 0.0
    %671 = vmatpush1.msra.mxu0 0.0
    %672 = vmatprep.subr.mxu0 0.0
    %673 = vmatpush1.msra.mxu0 0.0
    %674 = vmatprep.subr.mxu0 0.0
    %675 = vmatpush1.msra.mxu0 0.0
    %676 = vmatprep.subr.mxu0 0.0
    %677 = vmatpush1.msra.mxu0 0.0
    %678 = vmatprep.subr.mxu0 0.0
    %679 = vmatpush1.msra.mxu0 0.0
    %680 = vmatprep.subr.mxu0 0.0
    %681 = vmatpush1.msra.mxu0 0.0
    %682 = vmatprep.subr.mxu0 0.0
    %683 = vmatpush1.msra.mxu0 0.0
    %684 = vmatprep.subr.mxu0 0.0
    %685 = vmatpush1.msra.mxu0 0.0
    %686 = vmatprep.subr.mxu0 0.0
    %687 = vmatpush1.msra.mxu0 0.0
    %688 = vmatprep.subr.mxu0 0.0
    %689 = vmatpush1.msra.mxu0 0.0
    %690 = vmatprep.subr.mxu0 0.0
    %691 = vmatpush1.msra.mxu0 0.0
    %692 = vmatprep.subr.mxu0 0.0
    %693 = vmatpush1.msra.mxu0 0.0
    %694 = vmatprep.subr.mxu0 0.0
    %695 = vmatpush1.msra.mxu0 0.0
    %696 = vmatprep.subr.mxu0 0.0
    %697 = vmatpush1.msra.mxu0 0.0
    %698 = vmatprep.subr.mxu0 0.0
    %699 = vmatpush1.msra.mxu0 0.0
    %700 = vmatprep.subr.mxu0 0.0
    %701 = vmatpush1.msra.mxu0 0.0
    %702 = vmatprep.subr.mxu0 0.0
    %703 = vmatpush1.msra.mxu0 0.0
    %704 = vmatprep.subr.mxu0 0.0
    %705 = vmatpush1.msra.mxu0 0.0
    %706 = vmatprep.subr.mxu0 0.0
    %707 = vmatpush1.msra.mxu0 0.0
    %708 = vmatprep.subr.mxu0 0.0
    %709 = vmatpush1.msra.mxu0 0.0
    %710 = vmatprep.subr.mxu0 0.0
    %711 = vmatpush1.msra.mxu0 0.0
    %712 = vmatprep.subr.mxu0 0.0
    %713 = vmatpush1.msra.mxu0 0.0
    %714 = vmatprep.subr.mxu0 0.0
    %715 = vmatpush1.msra.mxu0 0.0
    %716 = vmatprep.subr.mxu0 0.0
    %717 = vmatpush1.msra.mxu0 0.0
    %718 = vmatprep.subr.mxu0 0.0
    %719 = vmatpush1.msra.mxu0 0.0
    %720 = vmatprep.subr.mxu0 0.0
    %721 = vmatpush1.msra.mxu0 0.0
    %722 = vmatprep.mubr.f32.mxu0 0.0
    %723 = vmatmul.mubr.f32.gmra.mrb[0].mxu0 %v639
    %v724 = vpop.f32.mrb[0].mxu0
    %v725 = vadd.f32 0.0, %v724
    %v726 = vpop.f32.mrb[0].mxu0
    %727 = vmatprep.mubr.f32.mxu0 0.0
    %728 = vmatmul.mubr.f32.gmra.mrb[0].mxu0 %v641
    %v729 = vpop.f32.mrb[0].mxu0
    %v730 = vadd.f32 0.0, %v729
    %v731 = vpop.f32.mrb[0].mxu0
    %732 = vmatprep.mubr.f32.mxu0 0.0
    %733 = vmatmul.mubr.f32.gmra.mrb[0].mxu0 %v643
    %v734 = vpop.f32.mrb[0].mxu0
    %v735 = vadd.f32 0.0, %v734
    %v736 = vpop.f32.mrb[0].mxu0
    %737 = vmatprep.mubr.f32.mxu0 0.0
    %738 = vmatmul.mubr.f32.gmra.mrb[0].mxu0 %v645
    %v739 = vpop.f32.mrb[0].mxu0
    %v740 = vadd.f32 0.0, %v739
    %v741 = vpop.f32.mrb[0].mxu0
    %742 = vmatprep.mubr.f32.mxu0 0.0
    %743 = vmatmul.mubr.f32.gmra.mrb[0].mxu0 %v647
    %v744 = vpop.f32.mrb[0].mxu0
    %v745 = vadd.f32 0.0, %v744
    %v746 = vpop.f32.mrb[0].mxu0
    %747 = vmatprep.mubr.f32.mxu0 0.0
    %748 = vmatmul.mubr.f32.gmra.mrb[0].mxu0 %v649
    %v749 = vpop.f32.mrb[0].mxu0
    %v750 = vadd.f32 0.0, %v749
    %v751 = vpop.f32.mrb[0].mxu0
    %752 = vmatprep.mubr.f32.mxu0 0.0
    %753 = vmatmul.mubr.f32.gmra.mrb[0].mxu0 %v651
    %v754 = vpop.f32.mrb[0].mxu0
    %v755 = vadd.f32 0.0, %v754
    %v756 = vpop.f32.mrb[0].mxu0
    %757 = vmatprep.mubr.f32.mxu0 0.0
    %758 = vmatmul.mubr.f32.gmra.mrb[0].mxu0 %v653
    %v759 = vpop.f32.mrb[0].mxu0
    %v760 = vadd.f32 0.0, %v759
    %v761 = vpop.f32.mrb[0].mxu0
    %762 = vdwg.mxu0
    %v763 = vadd.f32 %v583, %v725
    %v764 = vadd.f32 %v588, %v730
    %v765 = vadd.f32 %v593, %v735
    %v766 = vadd.f32 %v598, %v740
    %v767 = vadd.f32 %v603, %v745
    %v768 = vadd.f32 %v608, %v750
    %v769 = vadd.f32 %v613, %v755
    %v770 = vadd.f32 %v618, %v760
    %v771 = vld [vmem:[#allocation6] sm:$0x1]
    %v773 = vlaneseq
    %v774 = vshrl.u32 %v773, 7
    %v775 = vsub.s32 0, %v774
    %v776 = vrot.slane %v771, %v775
    %v778 = vadd.f32 %v763, %v776
    %v779 = vadd.f32 %v764, %v776
    %v780 = vadd.f32 %v765, %v776
    %v781 = vadd.f32 %v766, %v776
    %v782 = vadd.f32 %v767, %v776
    %v783 = vadd.f32 %v768, %v776
    %v784 = vadd.f32 %v769, %v776
    %v785 = vadd.f32 %v770, %v776
    %v786 = vmax.f32 %v778, 0.0
    %v787 = vmax.f32 %v779, 0.0
    %v788 = vmax.f32 %v780, 0.0
    %v789 = vmax.f32 %v781, 0.0
    %v790 = vmax.f32 %v782, 0.0
    %v791 = vmax.f32 %v783, 0.0
    %v792 = vmax.f32 %v784, 0.0
    %v793 = vmax.f32 %v785, 0.0
    %v802 = vrot.slane %v786, 7
    %v803 = vrot.slane %v787, 7
    %v804 = vsel %vm302, %v802, %v803
    %v805 = vrot.slane %v788, 7
    %v806 = vsel %vm302, %v803, %v805
    %v807 = vrot.slane %v789, 7
    %v808 = vsel %vm302, %v805, %v807
    %v809 = vrot.slane %v790, 7
    %v810 = vsel %vm302, %v807, %v809
    %v811 = vrot.slane %v791, 7
    %v812 = vsel %vm302, %v809, %v811
    %v813 = vrot.slane %v792, 7
    %v814 = vsel %vm302, %v811, %v813
    %v815 = vrot.slane %v793, 7
    %v816 = vsel %vm302, %v813, %v815
    %vm825 = vcmask 195585
    %826 = vst.msk [vmem:[#allocation2] sm:$0xfe] %vm825, %v802
    %vm827 = vcmask 195584
    %828 = vst.msk [vmem:[#allocation2 + $0x10] sm:$0xff] %vm827, %v804
    %829 = vst.msk [vmem:[#allocation2 + $0x20] sm:$0xff] %vm827, %v806
    %830 = vst.msk [vmem:[#allocation2 + $0x30] sm:$0xff] %vm827, %v808
    %831 = vst.msk [vmem:[#allocation2 + $0x40] sm:$0xff] %vm827, %v810
    %832 = vst.msk [vmem:[#allocation2 + $0x50] sm:$0xff] %vm827, %v812
    %833 = vst.msk [vmem:[#allocation2 + $0x60] sm:$0xff] %vm827, %v814
    %vm834 = vcmask 192512
    %835 = vst.msk [vmem:[#allocation2 + $0x70] sm:$0x1f] %vm834, %v816
    %v836 = vld [vmem:[#allocation2] sm:$0xff]
    %v837 = vld [vmem:[#allocation2 + $0x10] sm:$0xff]
    %v838 = vld [vmem:[#allocation2 + $0x20] sm:$0xff]
    %v839 = vld [vmem:[#allocation2 + $0x30] sm:$0xff]
    %v840 = vld [vmem:[#allocation2 + $0x40] sm:$0xff]
    %v841 = vld [vmem:[#allocation2 + $0x50] sm:$0xff]
    %v842 = vld [vmem:[#allocation2 + $0x60] sm:$0xff]
    %v843 = vld [vmem:[#allocation2 + $0x70] sm:$0x3f]
    %v844 = vld [vmem:[#allocation8] sm:$0xff]
    %v845 = vld [vmem:[#allocation8 + $0x8] sm:$0xff]
    %v846 = vld [vmem:[#allocation8 + $0x10] sm:$0xff]
    %s847 = scalar_lea.vmem [#allocation8], 24
    %v848 = vld [vmem:[%s847] sm:$0xff]
    %v849 = vld [vmem:[%s847 + $0x8] sm:$0xff]
    %v850 = vld [vmem:[%s847 + $0x10] sm:$0xff]
    %v859 = vrot.slane %v836, 1
    %v860 = vrot.slane %v837, 1
    %v861 = vsel %vm356, %v859, %v860
    %v862 = vrot.slane %v838, 1
    %v863 = vsel %vm356, %v860, %v862
    %v864 = vrot.slane %v839, 1
    %v865 = vsel %vm356, %v862, %v864
    %v866 = vrot.slane %v840, 1
    %v867 = vsel %vm356, %v864, %v866
    %v868 = vrot.slane %v841, 1
    %v869 = vsel %vm356, %v866, %v868
    %v870 = vrot.slane %v842, 1
    %v871 = vsel %vm356, %v868, %v870
    %v872 = vrot.slane %v843, 1
    %v873 = vsel %vm356, %v870, %v872
    %v874 = vsel %vm827, %v861, 0
    %v876 = vsel %vm827, %v863, 0
    %v878 = vsel %vm827, %v865, 0
    %v880 = vsel %vm827, %v867, 0
    %v882 = vsel %vm827, %v869, 0
    %v884 = vsel %vm827, %v871, 0
    %v886 = vsel %vm827, %v873, 0
    %v888 = vsel %vm827, %v872, 0
    %890 = vmatprep.subr.mxu0 0.0
    %891 = vmatpush1.msra.mxu0 %v848
    %892 = vmatprep.subr.mxu0 0.0
    %893 = vmatpush1.msra.mxu0 %v849
    %894 = vmatprep.subr.mxu0 0.0
    %895 = vmatpush1.msra.mxu0 %v850
    %896 = vmatprep.subr.mxu0 0.0
    %897 = vmatpush1.msra.mxu0 0.0
    %898 = vmatprep.subr.mxu0 0.0
    %899 = vmatpush1.msra.mxu0 0.0
    %900 = vmatprep.subr.mxu0 0.0
    %901 = vmatpush1.msra.mxu0 0.0
    %902 = vmatprep.subr.mxu0 0.0
    %903 = vmatpush1.msra.mxu0 0.0
    %904 = vmatprep.subr.mxu0 0.0
    %905 = vmatpush1.msra.mxu0 0.0
    %906 = vmatprep.subr.mxu0 0.0
    %907 = vmatpush1.msra.mxu0 0.0
    %908 = vmatprep.subr.mxu0 0.0
    %909 = vmatpush1.msra.mxu0 0.0
    %910 = vmatprep.subr.mxu0 0.0
    %911 = vmatpush1.msra.mxu0 0.0
    %912 = vmatprep.subr.mxu0 0.0
    %913 = vmatpush1.msra.mxu0 0.0
    %914 = vmatprep.subr.mxu0 0.0
    %915 = vmatpush1.msra.mxu0 0.0
    %916 = vmatprep.subr.mxu0 0.0
    %917 = vmatpush1.msra.mxu0 0.0
    %918 = vmatprep.subr.mxu0 0.0
    %919 = vmatpush1.msra.mxu0 0.0
    %920 = vmatprep.subr.mxu0 0.0
    %921 = vmatpush1.msra.mxu0 0.0
    %922 = vmatprep.subr.mxu0 0.0
    %923 = vmatpush1.msra.mxu0 0.0
    %924 = vmatprep.subr.mxu0 0.0
    %925 = vmatpush1.msra.mxu0 0.0
    %926 = vmatprep.subr.mxu0 0.0
    %927 = vmatpush1.msra.mxu0 0.0
    %928 = vmatprep.subr.mxu0 0.0
    %929 = vmatpush1.msra.mxu0 0.0
    %930 = vmatprep.subr.mxu0 0.0
    %931 = vmatpush1.msra.mxu0 0.0
    %932 = vmatprep.subr.mxu0 0.0
    %933 = vmatpush1.msra.mxu0 0.0
    %934 = vmatprep.subr.mxu0 0.0
    %935 = vmatpush1.msra.mxu0 0.0
    %936 = vmatprep.subr.mxu0 0.0
    %937 = vmatpush1.msra.mxu0 0.0
    %938 = vmatprep.subr.mxu0 0.0
    %939 = vmatpush1.msra.mxu0 0.0
    %940 = vmatprep.subr.mxu0 0.0
    %941 = vmatpush1.msra.mxu0 0.0
    %942 = vmatprep.subr.mxu0 0.0
    %943 = vmatpush1.msra.mxu0 0.0
    %944 = vmatprep.subr.mxu0 0.0
    %945 = vmatpush1.msra.mxu0 0.0
    %946 = vmatprep.subr.mxu0 0.0
    %947 = vmatpush1.msra.mxu0 0.0
    %948 = vmatprep.subr.mxu0 0.0
    %949 = vmatpush1.msra.mxu0 0.0
    %950 = vmatprep.subr.mxu0 0.0
    %951 = vmatpush1.msra.mxu0 0.0
    %952 = vmatprep.subr.mxu0 0.0
    %953 = vmatpush1.msra.mxu0 0.0
    %954 = vmatprep.mubr.f32.mxu0 0.0
    %955 = vmatmul.mubr.f32.gmra.mrb[0].mxu0 %v874
    %v956 = vpop.f32.mrb[0].mxu0
    %v957 = vadd.f32 0.0, %v956
    %v958 = vpop.f32.mrb[0].mxu0
    %959 = vmatprep.mubr.f32.mxu0 0.0
    %960 = vmatmul.mubr.f32.gmra.mrb[0].mxu0 %v876
    %v961 = vpop.f32.mrb[0].mxu0
    %v962 = vadd.f32 0.0, %v961
    %v963 = vpop.f32.mrb[0].mxu0
    %964 = vmatprep.mubr.f32.mxu0 0.0
    %965 = vmatmul.mubr.f32.gmra.mrb[0].mxu0 %v878
    %v966 = vpop.f32.mrb[0].mxu0
    %v967 = vadd.f32 0.0, %v966
    %v968 = vpop.f32.mrb[0].mxu0
    %969 = vmatprep.mubr.f32.mxu0 0.0
    %970 = vmatmul.mubr.f32.gmra.mrb[0].mxu0 %v880
    %v971 = vpop.f32.mrb[0].mxu0
    %v972 = vadd.f32 0.0, %v971
    %v973 = vpop.f32.mrb[0].mxu0
    %974 = vmatprep.mubr.f32.mxu0 0.0
    %975 = vmatmul.mubr.f32.gmra.mrb[0].mxu0 %v882
    %v976 = vpop.f32.mrb[0].mxu0
    %v977 = vadd.f32 0.0, %v976
    %v978 = vpop.f32.mrb[0].mxu0
    %979 = vmatprep.mubr.f32.mxu0 0.0
    %980 = vmatmul.mubr.f32.gmra.mrb[0].mxu0 %v884
    %v981 = vpop.f32.mrb[0].mxu0
    %v982 = vadd.f32 0.0, %v981
    %v983 = vpop.f32.mrb[0].mxu0
    %984 = vmatprep.mubr.f32.mxu0 0.0
    %985 = vmatmul.mubr.f32.gmra.mrb[0].mxu0 %v886
    %v986 = vpop.f32.mrb[0].mxu0
    %v987 = vadd.f32 0.0, %v986
    %v988 = vpop.f32.mrb[0].mxu0
    %989 = vmatprep.mubr.f32.mxu0 0.0
    %990 = vmatmul.mubr.f32.gmra.mrb[0].mxu0 %v888
    %v991 = vpop.f32.mrb[0].mxu0
    %v992 = vadd.f32 0.0, %v991
    %v993 = vpop.f32.mrb[0].mxu0
    %994 = vdwg.mxu0
    %v995 = vsel %vm827, %v836, 0
    %v997 = vsel %vm827, %v837, 0
    %v999 = vsel %vm827, %v838, 0
    %v1001 = vsel %vm827, %v839, 0
    %v1003 = vsel %vm827, %v840, 0
    %v1005 = vsel %vm827, %v841, 0
    %v1007 = vsel %vm827, %v842, 0
    %v1009 = vsel %vm827, %v843, 0
    %1011 = vmatprep.subr.mxu0 0.0
    %1012 = vmatpush1.msra.mxu0 %v844
    %1013 = vmatprep.subr.mxu0 0.0
    %1014 = vmatpush1.msra.mxu0 %v845
    %1015 = vmatprep.subr.mxu0 0.0
    %1016 = vmatpush1.msra.mxu0 %v846
    %1017 = vmatprep.subr.mxu0 0.0
    %1018 = vmatpush1.msra.mxu0 0.0
    %1019 = vmatprep.subr.mxu0 0.0
    %1020 = vmatpush1.msra.mxu0 0.0
    %1021 = vmatprep.subr.mxu0 0.0
    %1022 = vmatpush1.msra.mxu0 0.0
    %1023 = vmatprep.subr.mxu0 0.0
    %1024 = vmatpush1.msra.mxu0 0.0
    %1025 = vmatprep.subr.mxu0 0.0
    %1026 = vmatpush1.msra.mxu0 0.0
    %1027 = vmatprep.subr.mxu0 0.0
    %1028 = vmatpush1.msra.mxu0 0.0
    %1029 = vmatprep.subr.mxu0 0.0
    %1030 = vmatpush1.msra.mxu0 0.0
    %1031 = vmatprep.subr.mxu0 0.0
    %1032 = vmatpush1.msra.mxu0 0.0
    %1033 = vmatprep.subr.mxu0 0.0
    %1034 = vmatpush1.msra.mxu0 0.0
    %1035 = vmatprep.subr.mxu0 0.0
    %1036 = vmatpush1.msra.mxu0 0.0
    %1037 = vmatprep.subr.mxu0 0.0
    %1038 = vmatpush1.msra.mxu0 0.0
    %1039 = vmatprep.subr.mxu0 0.0
    %1040 = vmatpush1.msra.mxu0 0.0
    %1041 = vmatprep.subr.mxu0 0.0
    %1042 = vmatpush1.msra.mxu0 0.0
    %1043 = vmatprep.subr.mxu0 0.0
    %1044 = vmatpush1.msra.mxu0 0.0
    %1045 = vmatprep.subr.mxu0 0.0
    %1046 = vmatpush1.msra.mxu0 0.0
    %1047 = vmatprep.subr.mxu0 0.0
    %1048 = vmatpush1.msra.mxu0 0.0
    %1049 = vmatprep.subr.mxu0 0.0
    %1050 = vmatpush1.msra.mxu0 0.0
    %1051 = vmatprep.subr.mxu0 0.0
    %1052 = vmatpush1.msra.mxu0 0.0
    %1053 = vmatprep.subr.mxu0 0.0
    %1054 = vmatpush1.msra.mxu0 0.0
    %1055 = vmatprep.subr.mxu0 0.0
    %1056 = vmatpush1.msra.mxu0 0.0
    %1057 = vmatprep.subr.mxu0 0.0
    %1058 = vmatpush1.msra.mxu0 0.0
    %1059 = vmatprep.subr.mxu0 0.0
    %1060 = vmatpush1.msra.mxu0 0.0
    %1061 = vmatprep.subr.mxu0 0.0
    %1062 = vmatpush1.msra.mxu0 0.0
    %1063 = vmatprep.subr.mxu0 0.0
    %1064 = vmatpush1.msra.mxu0 0.0
    %1065 = vmatprep.subr.mxu0 0.0
    %1066 = vmatpush1.msra.mxu0 0.0
    %1067 = vmatprep.subr.mxu0 0.0
    %1068 = vmatpush1.msra.mxu0 0.0
    %1069 = vmatprep.subr.mxu0 0.0
    %1070 = vmatpush1.msra.mxu0 0.0
    %1071 = vmatprep.subr.mxu0 0.0
    %1072 = vmatpush1.msra.mxu0 0.0
    %1073 = vmatprep.subr.mxu0 0.0
    %1074 = vmatpush1.msra.mxu0 0.0
    %1075 = vmatprep.mubr.f32.mxu0 0.0
    %1076 = vmatmul.mubr.f32.gmra.mrb[0].mxu0 %v995
    %v1077 = vpop.f32.mrb[0].mxu0
    %v1078 = vadd.f32 %v957, %v1077
    %v1079 = vpop.f32.mrb[0].mxu0
    %1080 = vmatprep.mubr.f32.mxu0 0.0
    %1081 = vmatmul.mubr.f32.gmra.mrb[0].mxu0 %v997
    %v1082 = vpop.f32.mrb[0].mxu0
    %v1083 = vadd.f32 %v962, %v1082
    %v1084 = vpop.f32.mrb[0].mxu0
    %1085 = vmatprep.mubr.f32.mxu0 0.0
    %1086 = vmatmul.mubr.f32.gmra.mrb[0].mxu0 %v999
    %v1087 = vpop.f32.mrb[0].mxu0
    %v1088 = vadd.f32 %v967, %v1087
    %v1089 = vpop.f32.mrb[0].mxu0
    %1090 = vmatprep.mubr.f32.mxu0 0.0
    %1091 = vmatmul.mubr.f32.gmra.mrb[0].mxu0 %v1001
    %v1092 = vpop.f32.mrb[0].mxu0
    %v1093 = vadd.f32 %v972, %v1092
    %v1094 = vpop.f32.mrb[0].mxu0
    %1095 = vmatprep.mubr.f32.mxu0 0.0
    %1096 = vmatmul.mubr.f32.gmra.mrb[0].mxu0 %v1003
    %v1097 = vpop.f32.mrb[0].mxu0
    %v1098 = vadd.f32 %v977, %v1097
    %v1099 = vpop.f32.mrb[0].mxu0
    %1100 = vmatprep.mubr.f32.mxu0 0.0
    %1101 = vmatmul.mubr.f32.gmra.mrb[0].mxu0 %v1005
    %v1102 = vpop.f32.mrb[0].mxu0
    %v1103 = vadd.f32 %v982, %v1102
    %v1104 = vpop.f32.mrb[0].mxu0
    %1105 = vmatprep.mubr.f32.mxu0 0.0
    %1106 = vmatmul.mubr.f32.gmra.mrb[0].mxu0 %v1007
    %v1107 = vpop.f32.mrb[0].mxu0
    %v1108 = vadd.f32 %v987, %v1107
    %v1109 = vpop.f32.mrb[0].mxu0
    %1110 = vmatprep.mubr.f32.mxu0 0.0
    %1111 = vmatmul.mubr.f32.gmra.mrb[0].mxu0 %v1009
    %v1112 = vpop.f32.mrb[0].mxu0
    %v1113 = vadd.f32 %v992, %v1112
    %v1114 = vpop.f32.mrb[0].mxu0
    %1115 = vdwg.mxu0
    %s1116 = scalar_lea.vmem [#allocation8], 48
    %v1117 = vld [vmem:[%s1116] sm:$0xff]
    %v1118 = vld [vmem:[%s1116 + $0x8] sm:$0xff]
    %v1119 = vld [vmem:[%s1116 + $0x10] sm:$0xff]
    %v1120 = vrot.slane %v836, 2
    %v1121 = vrot.slane %v837, 2
    %v1122 = vsel %vm623, %v1120, %v1121
    %v1123 = vrot.slane %v838, 2
    %v1124 = vsel %vm623, %v1121, %v1123
    %v1125 = vrot.slane %v839, 2
    %v1126 = vsel %vm623, %v1123, %v1125
    %v1127 = vrot.slane %v840, 2
    %v1128 = vsel %vm623, %v1125, %v1127
    %v1129 = vrot.slane %v841, 2
    %v1130 = vsel %vm623, %v1127, %v1129
    %v1131 = vrot.slane %v842, 2
    %v1132 = vsel %vm623, %v1129, %v1131
    %v1133 = vrot.slane %v843, 2
    %v1134 = vsel %vm623, %v1131, %v1133
    %v1135 = vsel %vm827, %v1122, 0
    %v1137 = vsel %vm827, %v1124, 0
    %v1139 = vsel %vm827, %v1126, 0
    %v1141 = vsel %vm827, %v1128, 0
    %v1143 = vsel %vm827, %v1130, 0
    %v1145 = vsel %vm827, %v1132, 0
    %v1147 = vsel %vm827, %v1134, 0
    %v1149 = vsel %vm827, %v1133, 0
    %1151 = vmatprep.subr.mxu0 0.0
    %1152 = vmatpush1.msra.mxu0 %v1117
    %1153 = vmatprep.subr.mxu0 0.0
    %1154 = vmatpush1.msra.mxu0 %v1118
    %1155 = vmatprep.subr.mxu0 0.0
    %1156 = vmatpush1.msra.mxu0 %v1119
    %1157 = vmatprep.subr.mxu0 0.0
    %1158 = vmatpush1.msra.mxu0 0.0
    %1159 = vmatprep.subr.mxu0 0.0
    %1160 = vmatpush1.msra.mxu0 0.0
    %1161 = vmatprep.subr.mxu0 0.0
    %1162 = vmatpush1.msra.mxu0 0.0
    %1163 = vmatprep.subr.mxu0 0.0
    %1164 = vmatpush1.msra.mxu0 0.0
    %1165 = vmatprep.subr.mxu0 0.0
    %1166 = vmatpush1.msra.mxu0 0.0
    %1167 = vmatprep.subr.mxu0 0.0
    %1168 = vmatpush1.msra.mxu0 0.0
    %1169 = vmatprep.subr.mxu0 0.0
    %1170 = vmatpush1.msra.mxu0 0.0
    %1171 = vmatprep.subr.mxu0 0.0
    %1172 = vmatpush1.msra.mxu0 0.0
    %1173 = vmatprep.subr.mxu0 0.0
    %1174 = vmatpush1.msra.mxu0 0.0
    %1175 = vmatprep.subr.mxu0 0.0
    %1176 = vmatpush1.msra.mxu0 0.0
    %1177 = vmatprep.subr.mxu0 0.0
    %1178 = vmatpush1.msra.mxu0 0.0
    %1179 = vmatprep.subr.mxu0 0.0
    %1180 = vmatpush1.msra.mxu0 0.0
    %1181 = vmatprep.subr.mxu0 0.0
    %1182 = vmatpush1.msra.mxu0 0.0
    %1183 = vmatprep.subr.mxu0 0.0
    %1184 = vmatpush1.msra.mxu0 0.0
    %1185 = vmatprep.subr.mxu0 0.0
    %1186 = vmatpush1.msra.mxu0 0.0
    %1187 = vmatprep.subr.mxu0 0.0
    %1188 = vmatpush1.msra.mxu0 0.0
    %1189 = vmatprep.subr.mxu0 0.0
    %1190 = vmatpush1.msra.mxu0 0.0
    %1191 = vmatprep.subr.mxu0 0.0
    %1192 = vmatpush1.msra.mxu0 0.0
    %1193 = vmatprep.subr.mxu0 0.0
    %1194 = vmatpush1.msra.mxu0 0.0
    %1195 = vmatprep.subr.mxu0 0.0
    %1196 = vmatpush1.msra.mxu0 0.0
    %1197 = vmatprep.subr.mxu0 0.0
    %1198 = vmatpush1.msra.mxu0 0.0
    %1199 = vmatprep.subr.mxu0 0.0
    %1200 = vmatpush1.msra.mxu0 0.0
    %1201 = vmatprep.subr.mxu0 0.0
    %1202 = vmatpush1.msra.mxu0 0.0
    %1203 = vmatprep.subr.mxu0 0.0
    %1204 = vmatpush1.msra.mxu0 0.0
    %1205 = vmatprep.subr.mxu0 0.0
    %1206 = vmatpush1.msra.mxu0 0.0
    %1207 = vmatprep.subr.mxu0 0.0
    %1208 = vmatpush1.msra.mxu0 0.0
    %1209 = vmatprep.subr.mxu0 0.0
    %1210 = vmatpush1.msra.mxu0 0.0
    %1211 = vmatprep.subr.mxu0 0.0
    %1212 = vmatpush1.msra.mxu0 0.0
    %1213 = vmatprep.subr.mxu0 0.0
    %1214 = vmatpush1.msra.mxu0 0.0
    %1215 = vmatprep.mubr.f32.mxu0 0.0
    %1216 = vmatmul.mubr.f32.gmra.mrb[0].mxu0 %v1135
    %v1217 = vpop.f32.mrb[0].mxu0
    %v1218 = vadd.f32 0.0, %v1217
    %v1219 = vpop.f32.mrb[0].mxu0
    %1220 = vmatprep.mubr.f32.mxu0 0.0
    %1221 = vmatmul.mubr.f32.gmra.mrb[0].mxu0 %v1137
    %v1222 = vpop.f32.mrb[0].mxu0
    %v1223 = vadd.f32 0.0, %v1222
    %v1224 = vpop.f32.mrb[0].mxu0
    %1225 = vmatprep.mubr.f32.mxu0 0.0
    %1226 = vmatmul.mubr.f32.gmra.mrb[0].mxu0 %v1139
    %v1227 = vpop.f32.mrb[0].mxu0
    %v1228 = vadd.f32 0.0, %v1227
    %v1229 = vpop.f32.mrb[0].mxu0
    %1230 = vmatprep.mubr.f32.mxu0 0.0
    %1231 = vmatmul.mubr.f32.gmra.mrb[0].mxu0 %v1141
    %v1232 = vpop.f32.mrb[0].mxu0
    %v1233 = vadd.f32 0.0, %v1232
    %v1234 = vpop.f32.mrb[0].mxu0
    %1235 = vmatprep.mubr.f32.mxu0 0.0
    %1236 = vmatmul.mubr.f32.gmra.mrb[0].mxu0 %v1143
    %v1237 = vpop.f32.mrb[0].mxu0
    %v1238 = vadd.f32 0.0, %v1237
    %v1239 = vpop.f32.mrb[0].mxu0
    %1240 = vmatprep.mubr.f32.mxu0 0.0
    %1241 = vmatmul.mubr.f32.gmra.mrb[0].mxu0 %v1145
    %v1242 = vpop.f32.mrb[0].mxu0
    %v1243 = vadd.f32 0.0, %v1242
    %v1244 = vpop.f32.mrb[0].mxu0
    %1245 = vmatprep.mubr.f32.mxu0 0.0
    %1246 = vmatmul.mubr.f32.gmra.mrb[0].mxu0 %v1147
    %v1247 = vpop.f32.mrb[0].mxu0
    %v1248 = vadd.f32 0.0, %v1247
    %v1249 = vpop.f32.mrb[0].mxu0
    %1250 = vmatprep.mubr.f32.mxu0 0.0
    %1251 = vmatmul.mubr.f32.gmra.mrb[0].mxu0 %v1149
    %v1252 = vpop.f32.mrb[0].mxu0
    %v1253 = vadd.f32 0.0, %v1252
    %v1254 = vpop.f32.mrb[0].mxu0
    %1255 = vdwg.mxu0
    %v1256 = vadd.f32 %v1078, %v1218
    %v1257 = vadd.f32 %v1083, %v1223
    %v1258 = vadd.f32 %v1088, %v1228
    %v1259 = vadd.f32 %v1093, %v1233
    %v1260 = vadd.f32 %v1098, %v1238
    %v1261 = vadd.f32 %v1103, %v1243
    %v1262 = vadd.f32 %v1108, %v1248
    %v1263 = vadd.f32 %v1113, %v1253
    %v1264 = vld [vmem:[#allocation9] sm:$0x1]
    %v1266 = vlaneseq
    %v1267 = vshrl.u32 %v1266, 7
    %v1268 = vsub.s32 0, %v1267
    %v1269 = vrot.slane %v1264, %v1268
    %v1271 = vadd.f32 %v1256, %v1269
    %v1272 = vadd.f32 %v1257, %v1269
    %v1273 = vadd.f32 %v1258, %v1269
    %v1274 = vadd.f32 %v1259, %v1269
    %v1275 = vadd.f32 %v1260, %v1269
    %v1276 = vadd.f32 %v1261, %v1269
    %v1277 = vadd.f32 %v1262, %v1269
    %v1278 = vadd.f32 %v1263, %v1269
    %v1279 = vmax.f32 %v1271, 0.0
    %v1280 = vmax.f32 %v1272, 0.0
    %v1281 = vmax.f32 %v1273, 0.0
    %v1282 = vmax.f32 %v1274, 0.0
    %v1283 = vmax.f32 %v1275, 0.0
    %v1284 = vmax.f32 %v1276, 0.0
    %v1285 = vmax.f32 %v1277, 0.0
    %v1286 = vmax.f32 %v1278, 0.0
    %v1295 = vrot.slane %v1279, 7
    %v1296 = vrot.slane %v1280, 7
    %v1297 = vsel %vm302, %v1295, %v1296
    %v1298 = vrot.slane %v1281, 7
    %v1299 = vsel %vm302, %v1296, %v1298
    %v1300 = vrot.slane %v1282, 7
    %v1301 = vsel %vm302, %v1298, %v1300
    %v1302 = vrot.slane %v1283, 7
    %v1303 = vsel %vm302, %v1300, %v1302
    %v1304 = vrot.slane %v1284, 7
    %v1305 = vsel %vm302, %v1302, %v1304
    %v1306 = vrot.slane %v1285, 7
    %v1307 = vsel %vm302, %v1304, %v1306
    %v1308 = vrot.slane %v1286, 7
    %v1309 = vsel %vm302, %v1306, %v1308
    %1318 = vst.msk [vmem:[#allocation2] sm:$0xfe] %vm825, %v1295
    %1319 = vst.msk [vmem:[#allocation2 + $0x10] sm:$0xff] %vm827, %v1297
    %1320 = vst.msk [vmem:[#allocation2 + $0x20] sm:$0xff] %vm827, %v1299
    %1321 = vst.msk [vmem:[#allocation2 + $0x30] sm:$0xff] %vm827, %v1301
    %1322 = vst.msk [vmem:[#allocation2 + $0x40] sm:$0xff] %vm827, %v1303
    %1323 = vst.msk [vmem:[#allocation2 + $0x50] sm:$0xff] %vm827, %v1305
    %1324 = vst.msk [vmem:[#allocation2 + $0x60] sm:$0xff] %vm827, %v1307
    %1325 = vst.msk [vmem:[#allocation2 + $0x70] sm:$0x1f] %vm834, %v1309
    %v1326 = vld [vmem:[#allocation2] sm:$0xff]
    %v1327 = vld [vmem:[#allocation2 + $0x10] sm:$0xff]
    %v1328 = vld [vmem:[#allocation2 + $0x20] sm:$0xff]
    %v1329 = vld [vmem:[#allocation2 + $0x30] sm:$0xff]
    %v1330 = vld [vmem:[#allocation2 + $0x40] sm:$0xff]
    %v1331 = vld [vmem:[#allocation2 + $0x50] sm:$0xff]
    %v1332 = vld [vmem:[#allocation2 + $0x60] sm:$0xff]
    %v1333 = vld [vmem:[#allocation2 + $0x70] sm:$0x3f]
    %v1334 = vld [vmem:[#allocation11] sm:$0xff]
    %v1335 = vld [vmem:[#allocation11 + $0x8] sm:$0xff]
    %v1336 = vld [vmem:[#allocation11 + $0x10] sm:$0xff]
    %s1337 = scalar_lea.vmem [#allocation11], 24
    %v1338 = vld [vmem:[%s1337] sm:$0xff]
    %v1339 = vld [vmem:[%s1337 + $0x8] sm:$0xff]
    %v1340 = vld [vmem:[%s1337 + $0x10] sm:$0xff]
    %v1349 = vrot.slane %v1326, 1
    %v1350 = vrot.slane %v1327, 1
    %v1351 = vsel %vm356, %v1349, %v1350
    %v1352 = vrot.slane %v1328, 1
    %v1353 = vsel %vm356, %v1350, %v1352
    %v1354 = vrot.slane %v1329, 1
    %v1355 = vsel %vm356, %v1352, %v1354
    %v1356 = vrot.slane %v1330, 1
    %v1357 = vsel %vm356, %v1354, %v1356
    %v1358 = vrot.slane %v1331, 1
    %v1359 = vsel %vm356, %v1356, %v1358
    %v1360 = vrot.slane %v1332, 1
    %v1361 = vsel %vm356, %v1358, %v1360
    %v1362 = vrot.slane %v1333, 1
    %v1363 = vsel %vm356, %v1360, %v1362
    %v1364 = vsel %vm827, %v1351, 0
    %v1366 = vsel %vm827, %v1353, 0
    %v1368 = vsel %vm827, %v1355, 0
    %v1370 = vsel %vm827, %v1357, 0
    %v1372 = vsel %vm827, %v1359, 0
    %v1374 = vsel %vm827, %v1361, 0
    %v1376 = vsel %vm827, %v1363, 0
    %v1378 = vsel %vm827, %v1362, 0
    %1380 = vmatprep.subr.mxu0 0.0
    %1381 = vmatpush1.msra.mxu0 %v1338
    %1382 = vmatprep.subr.mxu0 0.0
    %1383 = vmatpush1.msra.mxu0 %v1339
    %1384 = vmatprep.subr.mxu0 0.0
    %1385 = vmatpush1.msra.mxu0 %v1340
    %1386 = vmatprep.subr.mxu0 0.0
    %1387 = vmatpush1.msra.mxu0 0.0
    %1388 = vmatprep.subr.mxu0 0.0
    %1389 = vmatpush1.msra.mxu0 0.0
    %1390 = vmatprep.subr.mxu0 0.0
    %1391 = vmatpush1.msra.mxu0 0.0
    %1392 = vmatprep.subr.mxu0 0.0
    %1393 = vmatpush1.msra.mxu0 0.0
    %1394 = vmatprep.subr.mxu0 0.0
    %1395 = vmatpush1.msra.mxu0 0.0
    %1396 = vmatprep.subr.mxu0 0.0
    %1397 = vmatpush1.msra.mxu0 0.0
    %1398 = vmatprep.subr.mxu0 0.0
    %1399 = vmatpush1.msra.mxu0 0.0
    %1400 = vmatprep.subr.mxu0 0.0
    %1401 = vmatpush1.msra.mxu0 0.0
    %1402 = vmatprep.subr.mxu0 0.0
    %1403 = vmatpush1.msra.mxu0 0.0
    %1404 = vmatprep.subr.mxu0 0.0
    %1405 = vmatpush1.msra.mxu0 0.0
    %1406 = vmatprep.subr.mxu0 0.0
    %1407 = vmatpush1.msra.mxu0 0.0
    %1408 = vmatprep.subr.mxu0 0.0
    %1409 = vmatpush1.msra.mxu0 0.0
    %1410 = vmatprep.subr.mxu0 0.0
    %1411 = vmatpush1.msra.mxu0 0.0
    %1412 = vmatprep.subr.mxu0 0.0
    %1413 = vmatpush1.msra.mxu0 0.0
    %1414 = vmatprep.subr.mxu0 0.0
    %1415 = vmatpush1.msra.mxu0 0.0
    %1416 = vmatprep.subr.mxu0 0.0
    %1417 = vmatpush1.msra.mxu0 0.0
    %1418 = vmatprep.subr.mxu0 0.0
    %1419 = vmatpush1.msra.mxu0 0.0
    %1420 = vmatprep.subr.mxu0 0.0
    %1421 = vmatpush1.msra.mxu0 0.0
    %1422 = vmatprep.subr.mxu0 0.0
    %1423 = vmatpush1.msra.mxu0 0.0
    %1424 = vmatprep.subr.mxu0 0.0
    %1425 = vmatpush1.msra.mxu0 0.0
    %1426 = vmatprep.subr.mxu0 0.0
    %1427 = vmatpush1.msra.mxu0 0.0
    %1428 = vmatprep.subr.mxu0 0.0
    %1429 = vmatpush1.msra.mxu0 0.0
    %1430 = vmatprep.subr.mxu0 0.0
    %1431 = vmatpush1.msra.mxu0 0.0
    %1432 = vmatprep.subr.mxu0 0.0
    %1433 = vmatpush1.msra.mxu0 0.0
    %1434 = vmatprep.subr.mxu0 0.0
    %1435 = vmatpush1.msra.mxu0 0.0
    %1436 = vmatprep.subr.mxu0 0.0
    %1437 = vmatpush1.msra.mxu0 0.0
    %1438 = vmatprep.subr.mxu0 0.0
    %1439 = vmatpush1.msra.mxu0 0.0
    %1440 = vmatprep.subr.mxu0 0.0
    %1441 = vmatpush1.msra.mxu0 0.0
    %1442 = vmatprep.subr.mxu0 0.0
    %1443 = vmatpush1.msra.mxu0 0.0
    %1444 = vmatprep.mubr.f32.mxu0 0.0
    %1445 = vmatmul.mubr.f32.gmra.mrb[0].mxu0 %v1364
    %v1446 = vpop.f32.mrb[0].mxu0
    %v1447 = vadd.f32 0.0, %v1446
    %v1448 = vpop.f32.mrb[0].mxu0
    %1449 = vmatprep.mubr.f32.mxu0 0.0
    %1450 = vmatmul.mubr.f32.gmra.mrb[0].mxu0 %v1366
    %v1451 = vpop.f32.mrb[0].mxu0
    %v1452 = vadd.f32 0.0, %v1451
    %v1453 = vpop.f32.mrb[0].mxu0
    %1454 = vmatprep.mubr.f32.mxu0 0.0
    %1455 = vmatmul.mubr.f32.gmra.mrb[0].mxu0 %v1368
    %v1456 = vpop.f32.mrb[0].mxu0
    %v1457 = vadd.f32 0.0, %v1456
    %v1458 = vpop.f32.mrb[0].mxu0
    %1459 = vmatprep.mubr.f32.mxu0 0.0
    %1460 = vmatmul.mubr.f32.gmra.mrb[0].mxu0 %v1370
    %v1461 = vpop.f32.mrb[0].mxu0
    %v1462 = vadd.f32 0.0, %v1461
    %v1463 = vpop.f32.mrb[0].mxu0
    %1464 = vmatprep.mubr.f32.mxu0 0.0
    %1465 = vmatmul.mubr.f32.gmra.mrb[0].mxu0 %v1372
    %v1466 = vpop.f32.mrb[0].mxu0
    %v1467 = vadd.f32 0.0, %v1466
    %v1468 = vpop.f32.mrb[0].mxu0
    %1469 = vmatprep.mubr.f32.mxu0 0.0
    %1470 = vmatmul.mubr.f32.gmra.mrb[0].mxu0 %v1374
    %v1471 = vpop.f32.mrb[0].mxu0
    %v1472 = vadd.f32 0.0, %v1471
    %v1473 = vpop.f32.mrb[0].mxu0
    %1474 = vmatprep.mubr.f32.mxu0 0.0
    %1475 = vmatmul.mubr.f32.gmra.mrb[0].mxu0 %v1376
    %v1476 = vpop.f32.mrb[0].mxu0
    %v1477 = vadd.f32 0.0, %v1476
    %v1478 = vpop.f32.mrb[0].mxu0
    %1479 = vmatprep.mubr.f32.mxu0 0.0
    %1480 = vmatmul.mubr.f32.gmra.mrb[0].mxu0 %v1378
    %v1481 = vpop.f32.mrb[0].mxu0
    %v1482 = vadd.f32 0.0, %v1481
    %v1483 = vpop.f32.mrb[0].mxu0
    %1484 = vdwg.mxu0
    %v1485 = vsel %vm827, %v1326, 0
    %v1487 = vsel %vm827, %v1327, 0
    %v1489 = vsel %vm827, %v1328, 0
    %v1491 = vsel %vm827, %v1329, 0
    %v1493 = vsel %vm827, %v1330, 0
    %v1495 = vsel %vm827, %v1331, 0
    %v1497 = vsel %vm827, %v1332, 0
    %v1499 = vsel %vm827, %v1333, 0
    %1501 = vmatprep.subr.mxu0 0.0
    %1502 = vmatpush1.msra.mxu0 %v1334
    %1503 = vmatprep.subr.mxu0 0.0
    %1504 = vmatpush1.msra.mxu0 %v1335
    %1505 = vmatprep.subr.mxu0 0.0
    %1506 = vmatpush1.msra.mxu0 %v1336
    %1507 = vmatprep.subr.mxu0 0.0
    %1508 = vmatpush1.msra.mxu0 0.0
    %1509 = vmatprep.subr.mxu0 0.0
    %1510 = vmatpush1.msra.mxu0 0.0
    %1511 = vmatprep.subr.mxu0 0.0
    %1512 = vmatpush1.msra.mxu0 0.0
    %1513 = vmatprep.subr.mxu0 0.0
    %1514 = vmatpush1.msra.mxu0 0.0
    %1515 = vmatprep.subr.mxu0 0.0
    %1516 = vmatpush1.msra.mxu0 0.0
    %1517 = vmatprep.subr.mxu0 0.0
    %1518 = vmatpush1.msra.mxu0 0.0
    %1519 = vmatprep.subr.mxu0 0.0
    %1520 = vmatpush1.msra.mxu0 0.0
    %1521 = vmatprep.subr.mxu0 0.0
    %1522 = vmatpush1.msra.mxu0 0.0
    %1523 = vmatprep.subr.mxu0 0.0
    %1524 = vmatpush1.msra.mxu0 0.0
    %1525 = vmatprep.subr.mxu0 0.0
    %1526 = vmatpush1.msra.mxu0 0.0
    %1527 = vmatprep.subr.mxu0 0.0
    %1528 = vmatpush1.msra.mxu0 0.0
    %1529 = vmatprep.subr.mxu0 0.0
    %1530 = vmatpush1.msra.mxu0 0.0
    %1531 = vmatprep.subr.mxu0 0.0
    %1532 = vmatpush1.msra.mxu0 0.0
    %1533 = vmatprep.subr.mxu0 0.0
    %1534 = vmatpush1.msra.mxu0 0.0
    %1535 = vmatprep.subr.mxu0 0.0
    %1536 = vmatpush1.msra.mxu0 0.0
    %1537 = vmatprep.subr.mxu0 0.0
    %1538 = vmatpush1.msra.mxu0 0.0
    %1539 = vmatprep.subr.mxu0 0.0
    %1540 = vmatpush1.msra.mxu0 0.0
    %1541 = vmatprep.subr.mxu0 0.0
    %1542 = vmatpush1.msra.mxu0 0.0
    %1543 = vmatprep.subr.mxu0 0.0
    %1544 = vmatpush1.msra.mxu0 0.0
    %1545 = vmatprep.subr.mxu0 0.0
    %1546 = vmatpush1.msra.mxu0 0.0
    %1547 = vmatprep.subr.mxu0 0.0
    %1548 = vmatpush1.msra.mxu0 0.0
    %1549 = vmatprep.subr.mxu0 0.0
    %1550 = vmatpush1.msra.mxu0 0.0
    %1551 = vmatprep.subr.mxu0 0.0
    %1552 = vmatpush1.msra.mxu0 0.0
    %1553 = vmatprep.subr.mxu0 0.0
    %1554 = vmatpush1.msra.mxu0 0.0
    %1555 = vmatprep.subr.mxu0 0.0
    %1556 = vmatpush1.msra.mxu0 0.0
    %1557 = vmatprep.subr.mxu0 0.0
    %1558 = vmatpush1.msra.mxu0 0.0
    %1559 = vmatprep.subr.mxu0 0.0
    %1560 = vmatpush1.msra.mxu0 0.0
    %1561 = vmatprep.subr.mxu0 0.0
    %1562 = vmatpush1.msra.mxu0 0.0
    %1563 = vmatprep.subr.mxu0 0.0
    %1564 = vmatpush1.msra.mxu0 0.0
    %1565 = vmatprep.mubr.f32.mxu0 0.0
    %1566 = vmatmul.mubr.f32.gmra.mrb[0].mxu0 %v1485
    %v1567 = vpop.f32.mrb[0].mxu0
    %v1568 = vadd.f32 %v1447, %v1567
    %v1569 = vpop.f32.mrb[0].mxu0
    %1570 = vmatprep.mubr.f32.mxu0 0.0
    %1571 = vmatmul.mubr.f32.gmra.mrb[0].mxu0 %v1487
    %v1572 = vpop.f32.mrb[0].mxu0
    %v1573 = vadd.f32 %v1452, %v1572
    %v1574 = vpop.f32.mrb[0].mxu0
    %1575 = vmatprep.mubr.f32.mxu0 0.0
    %1576 = vmatmul.mubr.f32.gmra.mrb[0].mxu0 %v1489
    %v1577 = vpop.f32.mrb[0].mxu0
    %v1578 = vadd.f32 %v1457, %v1577
    %v1579 = vpop.f32.mrb[0].mxu0
    %1580 = vmatprep.mubr.f32.mxu0 0.0
    %1581 = vmatmul.mubr.f32.gmra.mrb[0].mxu0 %v1491
    %v1582 = vpop.f32.mrb[0].mxu0
    %v1583 = vadd.f32 %v1462, %v1582
    %v1584 = vpop.f32.mrb[0].mxu0
    %1585 = vmatprep.mubr.f32.mxu0 0.0
    %1586 = vmatmul.mubr.f32.gmra.mrb[0].mxu0 %v1493
    %v1587 = vpop.f32.mrb[0].mxu0
    %v1588 = vadd.f32 %v1467, %v1587
    %v1589 = vpop.f32.mrb[0].mxu0
    %1590 = vmatprep.mubr.f32.mxu0 0.0
    %1591 = vmatmul.mubr.f32.gmra.mrb[0].mxu0 %v1495
    %v1592 = vpop.f32.mrb[0].mxu0
    %v1593 = vadd.f32 %v1472, %v1592
    %v1594 = vpop.f32.mrb[0].mxu0
    %1595 = vmatprep.mubr.f32.mxu0 0.0
    %1596 = vmatmul.mubr.f32.gmra.mrb[0].mxu0 %v1497
    %v1597 = vpop.f32.mrb[0].mxu0
    %v1598 = vadd.f32 %v1477, %v1597
    %v1599 = vpop.f32.mrb[0].mxu0
    %1600 = vmatprep.mubr.f32.mxu0 0.0
    %1601 = vmatmul.mubr.f32.gmra.mrb[0].mxu0 %v1499
    %v1602 = vpop.f32.mrb[0].mxu0
    %v1603 = vadd.f32 %v1482, %v1602
    %v1604 = vpop.f32.mrb[0].mxu0
    %1605 = vdwg.mxu0
    %s1606 = scalar_lea.vmem [#allocation11], 48
    %v1607 = vld [vmem:[%s1606] sm:$0xff]
    %v1608 = vld [vmem:[%s1606 + $0x8] sm:$0xff]
    %v1609 = vld [vmem:[%s1606 + $0x10] sm:$0xff]
    %v1610 = vrot.slane %v1326, 2
    %v1611 = vrot.slane %v1327, 2
    %v1612 = vsel %vm623, %v1610, %v1611
    %v1613 = vrot.slane %v1328, 2
    %v1614 = vsel %vm623, %v1611, %v1613
    %v1615 = vrot.slane %v1329, 2
    %v1616 = vsel %vm623, %v1613, %v1615
    %v1617 = vrot.slane %v1330, 2
    %v1618 = vsel %vm623, %v1615, %v1617
    %v1619 = vrot.slane %v1331, 2
    %v1620 = vsel %vm623, %v1617, %v1619
    %v1621 = vrot.slane %v1332, 2
    %v1622 = vsel %vm623, %v1619, %v1621
    %v1623 = vrot.slane %v1333, 2
    %v1624 = vsel %vm623, %v1621, %v1623
    %v1625 = vsel %vm827, %v1612, 0
    %v1627 = vsel %vm827, %v1614, 0
    %v1629 = vsel %vm827, %v1616, 0
    %v1631 = vsel %vm827, %v1618, 0
    %v1633 = vsel %vm827, %v1620, 0
    %v1635 = vsel %vm827, %v1622, 0
    %v1637 = vsel %vm827, %v1624, 0
    %v1639 = vsel %vm827, %v1623, 0
    %1641 = vmatprep.subr.mxu0 0.0
    %1642 = vmatpush1.msra.mxu0 %v1607
    %1643 = vmatprep.subr.mxu0 0.0
    %1644 = vmatpush1.msra.mxu0 %v1608
    %1645 = vmatprep.subr.mxu0 0.0
    %1646 = vmatpush1.msra.mxu0 %v1609
    %1647 = vmatprep.subr.mxu0 0.0
    %1648 = vmatpush1.msra.mxu0 0.0
    %1649 = vmatprep.subr.mxu0 0.0
    %1650 = vmatpush1.msra.mxu0 0.0
    %1651 = vmatprep.subr.mxu0 0.0
    %1652 = vmatpush1.msra.mxu0 0.0
    %1653 = vmatprep.subr.mxu0 0.0
    %1654 = vmatpush1.msra.mxu0 0.0
    %1655 = vmatprep.subr.mxu0 0.0
    %1656 = vmatpush1.msra.mxu0 0.0
    %1657 = vmatprep.subr.mxu0 0.0
    %1658 = vmatpush1.msra.mxu0 0.0
    %1659 = vmatprep.subr.mxu0 0.0
    %1660 = vmatpush1.msra.mxu0 0.0
    %1661 = vmatprep.subr.mxu0 0.0
    %1662 = vmatpush1.msra.mxu0 0.0
    %1663 = vmatprep.subr.mxu0 0.0
    %1664 = vmatpush1.msra.mxu0 0.0
    %1665 = vmatprep.subr.mxu0 0.0
    %1666 = vmatpush1.msra.mxu0 0.0
    %1667 = vmatprep.subr.mxu0 0.0
    %1668 = vmatpush1.msra.mxu0 0.0
    %1669 = vmatprep.subr.mxu0 0.0
    %1670 = vmatpush1.msra.mxu0 0.0
    %1671 = vmatprep.subr.mxu0 0.0
    %1672 = vmatpush1.msra.mxu0 0.0
    %1673 = vmatprep.subr.mxu0 0.0
    %1674 = vmatpush1.msra.mxu0 0.0
    %1675 = vmatprep.subr.mxu0 0.0
    %1676 = vmatpush1.msra.mxu0 0.0
    %1677 = vmatprep.subr.mxu0 0.0
    %1678 = vmatpush1.msra.mxu0 0.0
    %1679 = vmatprep.subr.mxu0 0.0
    %1680 = vmatpush1.msra.mxu0 0.0
    %1681 = vmatprep.subr.mxu0 0.0
    %1682 = vmatpush1.msra.mxu0 0.0
    %1683 = vmatprep.subr.mxu0 0.0
    %1684 = vmatpush1.msra.mxu0 0.0
    %1685 = vmatprep.subr.mxu0 0.0
    %1686 = vmatpush1.msra.mxu0 0.0
    %1687 = vmatprep.subr.mxu0 0.0
    %1688 = vmatpush1.msra.mxu0 0.0
    %1689 = vmatprep.subr.mxu0 0.0
    %1690 = vmatpush1.msra.mxu0 0.0
    %1691 = vmatprep.subr.mxu0 0.0
    %1692 = vmatpush1.msra.mxu0 0.0
    %1693 = vmatprep.subr.mxu0 0.0
    %1694 = vmatpush1.msra.mxu0 0.0
    %1695 = vmatprep.subr.mxu0 0.0
    %1696 = vmatpush1.msra.mxu0 0.0
    %1697 = vmatprep.subr.mxu0 0.0
    %1698 = vmatpush1.msra.mxu0 0.0
    %1699 = vmatprep.subr.mxu0 0.0
    %1700 = vmatpush1.msra.mxu0 0.0
    %1701 = vmatprep.subr.mxu0 0.0
    %1702 = vmatpush1.msra.mxu0 0.0
    %1703 = vmatprep.subr.mxu0 0.0
    %1704 = vmatpush1.msra.mxu0 0.0
    %1705 = vmatprep.mubr.f32.mxu0 0.0
    %1706 = vmatmul.mubr.f32.gmra.mrb[0].mxu0 %v1625
    %v1707 = vpop.f32.mrb[0].mxu0
    %v1708 = vadd.f32 0.0, %v1707
    %v1709 = vpop.f32.mrb[0].mxu0
    %1710 = vmatprep.mubr.f32.mxu0 0.0
    %1711 = vmatmul.mubr.f32.gmra.mrb[0].mxu0 %v1627
    %v1712 = vpop.f32.mrb[0].mxu0
    %v1713 = vadd.f32 0.0, %v1712
    %v1714 = vpop.f32.mrb[0].mxu0
    %1715 = vmatprep.mubr.f32.mxu0 0.0
    %1716 = vmatmul.mubr.f32.gmra.mrb[0].mxu0 %v1629
    %v1717 = vpop.f32.mrb[0].mxu0
    %v1718 = vadd.f32 0.0, %v1717
    %v1719 = vpop.f32.mrb[0].mxu0
    %1720 = vmatprep.mubr.f32.mxu0 0.0
    %1721 = vmatmul.mubr.f32.gmra.mrb[0].mxu0 %v1631
    %v1722 = vpop.f32.mrb[0].mxu0
    %v1723 = vadd.f32 0.0, %v1722
    %v1724 = vpop.f32.mrb[0].mxu0
    %1725 = vmatprep.mubr.f32.mxu0 0.0
    %1726 = vmatmul.mubr.f32.gmra.mrb[0].mxu0 %v1633
    %v1727 = vpop.f32.mrb[0].mxu0
    %v1728 = vadd.f32 0.0, %v1727
    %v1729 = vpop.f32.mrb[0].mxu0
    %1730 = vmatprep.mubr.f32.mxu0 0.0
    %1731 = vmatmul.mubr.f32.gmra.mrb[0].mxu0 %v1635
    %v1732 = vpop.f32.mrb[0].mxu0
    %v1733 = vadd.f32 0.0, %v1732
    %v1734 = vpop.f32.mrb[0].mxu0
    %1735 = vmatprep.mubr.f32.mxu0 0.0
    %1736 = vmatmul.mubr.f32.gmra.mrb[0].mxu0 %v1637
    %v1737 = vpop.f32.mrb[0].mxu0
    %v1738 = vadd.f32 0.0, %v1737
    %v1739 = vpop.f32.mrb[0].mxu0
    %1740 = vmatprep.mubr.f32.mxu0 0.0
    %1741 = vmatmul.mubr.f32.gmra.mrb[0].mxu0 %v1639
    %v1742 = vpop.f32.mrb[0].mxu0
    %v1743 = vadd.f32 0.0, %v1742
    %v1744 = vpop.f32.mrb[0].mxu0
    %1745 = vdwg.mxu0
    %v1746 = vadd.f32 %v1568, %v1708
    %v1747 = vadd.f32 %v1573, %v1713
    %v1748 = vadd.f32 %v1578, %v1718
    %v1749 = vadd.f32 %v1583, %v1723
    %v1750 = vadd.f32 %v1588, %v1728
    %v1751 = vadd.f32 %v1593, %v1733
    %v1752 = vadd.f32 %v1598, %v1738
    %v1753 = vadd.f32 %v1603, %v1743
    %v1754 = vld [vmem:[#allocation12] sm:$0x1]
    %v1756 = vlaneseq
    %v1757 = vshrl.u32 %v1756, 7
    %v1758 = vsub.s32 0, %v1757
    %v1759 = vrot.slane %v1754, %v1758
    %v1761 = vadd.f32 %v1746, %v1759
    %v1762 = vadd.f32 %v1747, %v1759
    %v1763 = vadd.f32 %v1748, %v1759
    %v1764 = vadd.f32 %v1749, %v1759
    %v1765 = vadd.f32 %v1750, %v1759
    %v1766 = vadd.f32 %v1751, %v1759
    %v1767 = vadd.f32 %v1752, %v1759
    %v1768 = vadd.f32 %v1753, %v1759
    %v1769 = vmax.f32 %v1761, 0.0
    %v1770 = vmax.f32 %v1762, 0.0
    %v1771 = vmax.f32 %v1763, 0.0
    %v1772 = vmax.f32 %v1764, 0.0
    %v1773 = vmax.f32 %v1765, 0.0
    %v1774 = vmax.f32 %v1766, 0.0
    %v1775 = vmax.f32 %v1767, 0.0
    %v1776 = vmax.f32 %v1768, 0.0
    %v1785 = vrot.slane %v1769, 7
    %v1786 = vrot.slane %v1770, 7
    %v1787 = vsel %vm302, %v1785, %v1786
    %v1788 = vrot.slane %v1771, 7
    %v1789 = vsel %vm302, %v1786, %v1788
    %v1790 = vrot.slane %v1772, 7
    %v1791 = vsel %vm302, %v1788, %v1790
    %v1792 = vrot.slane %v1773, 7
    %v1793 = vsel %vm302, %v1790, %v1792
    %v1794 = vrot.slane %v1774, 7
    %v1795 = vsel %vm302, %v1792, %v1794
    %v1796 = vrot.slane %v1775, 7
    %v1797 = vsel %vm302, %v1794, %v1796
    %v1798 = vrot.slane %v1776, 7
    %v1799 = vsel %vm302, %v1796, %v1798
    %vm1808 = vcmask 392193
    %1809 = vst.msk [vmem:[#allocation2] sm:$0xfe] %vm1808, %v1785
    %vm1810 = vcmask 392192
    %1811 = vst.msk [vmem:[#allocation2 + $0x10] sm:$0xff] %vm1810, %v1787
    %1812 = vst.msk [vmem:[#allocation2 + $0x20] sm:$0xff] %vm1810, %v1789
    %1813 = vst.msk [vmem:[#allocation2 + $0x30] sm:$0xff] %vm1810, %v1791
    %1814 = vst.msk [vmem:[#allocation2 + $0x40] sm:$0xff] %vm1810, %v1793
    %1815 = vst.msk [vmem:[#allocation2 + $0x50] sm:$0xff] %vm1810, %v1795
    %1816 = vst.msk [vmem:[#allocation2 + $0x60] sm:$0xff] %vm1810, %v1797
    %vm1817 = vcmask 389120
    %1818 = vst.msk [vmem:[#allocation2 + $0x70] sm:$0x1f] %vm1817, %v1799
    %v1819 = vld [vmem:[#allocation2] sm:$0xff]
    %v1820 = vld [vmem:[#allocation2 + $0x10] sm:$0xff]
    %v1821 = vld [vmem:[#allocation2 + $0x20] sm:$0xff]
    %v1822 = vld [vmem:[#allocation2 + $0x30] sm:$0xff]
    %v1823 = vld [vmem:[#allocation2 + $0x40] sm:$0xff]
    %v1824 = vld [vmem:[#allocation2 + $0x50] sm:$0xff]
    %v1825 = vld [vmem:[#allocation2 + $0x60] sm:$0xff]
    %v1826 = vld [vmem:[#allocation2 + $0x70] sm:$0x3f]
    %v1827 = vld [vmem:[#allocation14] sm:$0xff]
    %v1828 = vld [vmem:[#allocation14 + $0x8] sm:$0xff]
    %v1829 = vld [vmem:[#allocation14 + $0x10] sm:$0xff]
    %v1830 = vld [vmem:[#allocation14 + $0x18] sm:$0xff]
    %v1831 = vld [vmem:[#allocation14 + $0x20] sm:$0xff]
    %v1832 = vld [vmem:[#allocation14 + $0x28] sm:$0xff]
    %s1833 = scalar_lea.vmem [#allocation14], 48
    %v1834 = vld [vmem:[%s1833] sm:$0xff]
    %v1835 = vld [vmem:[%s1833 + $0x8] sm:$0xff]
    %v1836 = vld [vmem:[%s1833 + $0x10] sm:$0xff]
    %v1837 = vld [vmem:[%s1833 + $0x18] sm:$0xff]
    %v1838 = vld [vmem:[%s1833 + $0x20] sm:$0xff]
    %v1839 = vld [vmem:[%s1833 + $0x28] sm:$0xff]
    %v1848 = vrot.slane %v1819, 1
    %v1849 = vrot.slane %v1820, 1
    %v1850 = vsel %vm356, %v1848, %v1849
    %v1851 = vrot.slane %v1821, 1
    %v1852 = vsel %vm356, %v1849, %v1851
    %v1853 = vrot.slane %v1822, 1
    %v1854 = vsel %vm356, %v1851, %v1853
    %v1855 = vrot.slane %v1823, 1
    %v1856 = vsel %vm356, %v1853, %v1855
    %v1857 = vrot.slane %v1824, 1
    %v1858 = vsel %vm356, %v1855, %v1857
    %v1859 = vrot.slane %v1825, 1
    %v1860 = vsel %vm356, %v1857, %v1859
    %v1861 = vrot.slane %v1826, 1
    %v1862 = vsel %vm356, %v1859, %v1861
    %v1863 = vsel %vm1810, %v1850, 0
    %v1865 = vsel %vm1810, %v1852, 0
    %v1867 = vsel %vm1810, %v1854, 0
    %v1869 = vsel %vm1810, %v1856, 0
    %v1871 = vsel %vm1810, %v1858, 0
    %v1873 = vsel %vm1810, %v1860, 0
    %v1875 = vsel %vm1810, %v1862, 0
    %v1877 = vsel %vm1810, %v1861, 0
    %1879 = vmatprep.subr.mxu0 0.0
    %1880 = vmatpush1.msra.mxu0 %v1834
    %1881 = vmatprep.subr.mxu0 0.0
    %1882 = vmatpush1.msra.mxu0 %v1835
    %1883 = vmatprep.subr.mxu0 0.0
    %1884 = vmatpush1.msra.mxu0 %v1836
    %1885 = vmatprep.subr.mxu0 0.0
    %1886 = vmatpush1.msra.mxu0 %v1837
    %1887 = vmatprep.subr.mxu0 0.0
    %1888 = vmatpush1.msra.mxu0 %v1838
    %1889 = vmatprep.subr.mxu0 0.0
    %1890 = vmatpush1.msra.mxu0 %v1839
    %1891 = vmatprep.subr.mxu0 0.0
    %1892 = vmatpush1.msra.mxu0 0.0
    %1893 = vmatprep.subr.mxu0 0.0
    %1894 = vmatpush1.msra.mxu0 0.0
    %1895 = vmatprep.subr.mxu0 0.0
    %1896 = vmatpush1.msra.mxu0 0.0
    %1897 = vmatprep.subr.mxu0 0.0
    %1898 = vmatpush1.msra.mxu0 0.0
    %1899 = vmatprep.subr.mxu0 0.0
    %1900 = vmatpush1.msra.mxu0 0.0
    %1901 = vmatprep.subr.mxu0 0.0
    %1902 = vmatpush1.msra.mxu0 0.0
    %1903 = vmatprep.subr.mxu0 0.0
    %1904 = vmatpush1.msra.mxu0 0.0
    %1905 = vmatprep.subr.mxu0 0.0
    %1906 = vmatpush1.msra.mxu0 0.0
    %1907 = vmatprep.subr.mxu0 0.0
    %1908 = vmatpush1.msra.mxu0 0.0
    %1909 = vmatprep.subr.mxu0 0.0
    %1910 = vmatpush1.msra.mxu0 0.0
    %1911 = vmatprep.subr.mxu0 0.0
    %1912 = vmatpush1.msra.mxu0 0.0
    %1913 = vmatprep.subr.mxu0 0.0
    %1914 = vmatpush1.msra.mxu0 0.0
    %1915 = vmatprep.subr.mxu0 0.0
    %1916 = vmatpush1.msra.mxu0 0.0
    %1917 = vmatprep.subr.mxu0 0.0
    %1918 = vmatpush1.msra.mxu0 0.0
    %1919 = vmatprep.subr.mxu0 0.0
    %1920 = vmatpush1.msra.mxu0 0.0
    %1921 = vmatprep.subr.mxu0 0.0
    %1922 = vmatpush1.msra.mxu0 0.0
    %1923 = vmatprep.subr.mxu0 0.0
    %1924 = vmatpush1.msra.mxu0 0.0
    %1925 = vmatprep.subr.mxu0 0.0
    %1926 = vmatpush1.msra.mxu0 0.0
    %1927 = vmatprep.subr.mxu0 0.0
    %1928 = vmatpush1.msra.mxu0 0.0
    %1929 = vmatprep.subr.mxu0 0.0
    %1930 = vmatpush1.msra.mxu0 0.0
    %1931 = vmatprep.subr.mxu0 0.0
    %1932 = vmatpush1.msra.mxu0 0.0
    %1933 = vmatprep.subr.mxu0 0.0
    %1934 = vmatpush1.msra.mxu0 0.0
    %1935 = vmatprep.subr.mxu0 0.0
    %1936 = vmatpush1.msra.mxu0 0.0
    %1937 = vmatprep.subr.mxu0 0.0
    %1938 = vmatpush1.msra.mxu0 0.0
    %1939 = vmatprep.subr.mxu0 0.0
    %1940 = vmatpush1.msra.mxu0 0.0
    %1941 = vmatprep.subr.mxu0 0.0
    %1942 = vmatpush1.msra.mxu0 0.0
    %1943 = vmatprep.mubr.f32.mxu0 0.0
    %1944 = vmatmul.mubr.f32.gmra.mrb[0].mxu0 %v1863
    %v1945 = vpop.f32.mrb[0].mxu0
    %v1946 = vadd.f32 0.0, %v1945
    %v1947 = vpop.f32.mrb[0].mxu0
    %1948 = vmatprep.mubr.f32.mxu0 0.0
    %1949 = vmatmul.mubr.f32.gmra.mrb[0].mxu0 %v1865
    %v1950 = vpop.f32.mrb[0].mxu0
    %v1951 = vadd.f32 0.0, %v1950
    %v1952 = vpop.f32.mrb[0].mxu0
    %1953 = vmatprep.mubr.f32.mxu0 0.0
    %1954 = vmatmul.mubr.f32.gmra.mrb[0].mxu0 %v1867
    %v1955 = vpop.f32.mrb[0].mxu0
    %v1956 = vadd.f32 0.0, %v1955
    %v1957 = vpop.f32.mrb[0].mxu0
    %1958 = vmatprep.mubr.f32.mxu0 0.0
    %1959 = vmatmul.mubr.f32.gmra.mrb[0].mxu0 %v1869
    %v1960 = vpop.f32.mrb[0].mxu0
    %v1961 = vadd.f32 0.0, %v1960
    %v1962 = vpop.f32.mrb[0].mxu0
    %1963 = vmatprep.mubr.f32.mxu0 0.0
    %1964 = vmatmul.mubr.f32.gmra.mrb[0].mxu0 %v1871
    %v1965 = vpop.f32.mrb[0].mxu0
    %v1966 = vadd.f32 0.0, %v1965
    %v1967 = vpop.f32.mrb[0].mxu0
    %1968 = vmatprep.mubr.f32.mxu0 0.0
    %1969 = vmatmul.mubr.f32.gmra.mrb[0].mxu0 %v1873
    %v1970 = vpop.f32.mrb[0].mxu0
    %v1971 = vadd.f32 0.0, %v1970
    %v1972 = vpop.f32.mrb[0].mxu0
    %1973 = vmatprep.mubr.f32.mxu0 0.0
    %1974 = vmatmul.mubr.f32.gmra.mrb[0].mxu0 %v1875
    %v1975 = vpop.f32.mrb[0].mxu0
    %v1976 = vadd.f32 0.0, %v1975
    %v1977 = vpop.f32.mrb[0].mxu0
    %1978 = vmatprep.mubr.f32.mxu0 0.0
    %1979 = vmatmul.mubr.f32.gmra.mrb[0].mxu0 %v1877
    %v1980 = vpop.f32.mrb[0].mxu0
    %v1981 = vadd.f32 0.0, %v1980
    %v1982 = vpop.f32.mrb[0].mxu0
    %1983 = vdwg.mxu0
    %v1984 = vsel %vm1810, %v1819, 0
    %v1986 = vsel %vm1810, %v1820, 0
    %v1988 = vsel %vm1810, %v1821, 0
    %v1990 = vsel %vm1810, %v1822, 0
    %v1992 = vsel %vm1810, %v1823, 0
    %v1994 = vsel %vm1810, %v1824, 0
    %v1996 = vsel %vm1810, %v1825, 0
    %v1998 = vsel %vm1810, %v1826, 0
    %2000 = vmatprep.subr.mxu0 0.0
    %2001 = vmatpush1.msra.mxu0 %v1827
    %2002 = vmatprep.subr.mxu0 0.0
    %2003 = vmatpush1.msra.mxu0 %v1828
    %2004 = vmatprep.subr.mxu0 0.0
    %2005 = vmatpush1.msra.mxu0 %v1829
    %2006 = vmatprep.subr.mxu0 0.0
    %2007 = vmatpush1.msra.mxu0 %v1830
    %2008 = vmatprep.subr.mxu0 0.0
    %2009 = vmatpush1.msra.mxu0 %v1831
    %2010 = vmatprep.subr.mxu0 0.0
    %2011 = vmatpush1.msra.mxu0 %v1832
    %2012 = vmatprep.subr.mxu0 0.0
    %2013 = vmatpush1.msra.mxu0 0.0
    %2014 = vmatprep.subr.mxu0 0.0
    %2015 = vmatpush1.msra.mxu0 0.0
    %2016 = vmatprep.subr.mxu0 0.0
    %2017 = vmatpush1.msra.mxu0 0.0
    %2018 = vmatprep.subr.mxu0 0.0
    %2019 = vmatpush1.msra.mxu0 0.0
    %2020 = vmatprep.subr.mxu0 0.0
    %2021 = vmatpush1.msra.mxu0 0.0
    %2022 = vmatprep.subr.mxu0 0.0
    %2023 = vmatpush1.msra.mxu0 0.0
    %2024 = vmatprep.subr.mxu0 0.0
    %2025 = vmatpush1.msra.mxu0 0.0
    %2026 = vmatprep.subr.mxu0 0.0
    %2027 = vmatpush1.msra.mxu0 0.0
    %2028 = vmatprep.subr.mxu0 0.0
    %2029 = vmatpush1.msra.mxu0 0.0
    %2030 = vmatprep.subr.mxu0 0.0
    %2031 = vmatpush1.msra.mxu0 0.0
    %2032 = vmatprep.subr.mxu0 0.0
    %2033 = vmatpush1.msra.mxu0 0.0
    %2034 = vmatprep.subr.mxu0 0.0
    %2035 = vmatpush1.msra.mxu0 0.0
    %2036 = vmatprep.subr.mxu0 0.0
    %2037 = vmatpush1.msra.mxu0 0.0
    %2038 = vmatprep.subr.mxu0 0.0
    %2039 = vmatpush1.msra.mxu0 0.0
    %2040 = vmatprep.subr.mxu0 0.0
    %2041 = vmatpush1.msra.mxu0 0.0
    %2042 = vmatprep.subr.mxu0 0.0
    %2043 = vmatpush1.msra.mxu0 0.0
    %2044 = vmatprep.subr.mxu0 0.0
    %2045 = vmatpush1.msra.mxu0 0.0
    %2046 = vmatprep.subr.mxu0 0.0
    %2047 = vmatpush1.msra.mxu0 0.0
    %2048 = vmatprep.subr.mxu0 0.0
    %2049 = vmatpush1.msra.mxu0 0.0
    %2050 = vmatprep.subr.mxu0 0.0
    %2051 = vmatpush1.msra.mxu0 0.0
    %2052 = vmatprep.subr.mxu0 0.0
    %2053 = vmatpush1.msra.mxu0 0.0
    %2054 = vmatprep.subr.mxu0 0.0
    %2055 = vmatpush1.msra.mxu0 0.0
    %2056 = vmatprep.subr.mxu0 0.0
    %2057 = vmatpush1.msra.mxu0 0.0
    %2058 = vmatprep.subr.mxu0 0.0
    %2059 = vmatpush1.msra.mxu0 0.0
    %2060 = vmatprep.subr.mxu0 0.0
    %2061 = vmatpush1.msra.mxu0 0.0
    %2062 = vmatprep.subr.mxu0 0.0
    %2063 = vmatpush1.msra.mxu0 0.0
    %2064 = vmatprep.mubr.f32.mxu0 0.0
    %2065 = vmatmul.mubr.f32.gmra.mrb[0].mxu0 %v1984
    %v2066 = vpop.f32.mrb[0].mxu0
    %v2067 = vadd.f32 %v1946, %v2066
    %v2068 = vpop.f32.mrb[0].mxu0
    %2069 = vmatprep.mubr.f32.mxu0 0.0
    %2070 = vmatmul.mubr.f32.gmra.mrb[0].mxu0 %v1986
    %v2071 = vpop.f32.mrb[0].mxu0
    %v2072 = vadd.f32 %v1951, %v2071
    %v2073 = vpop.f32.mrb[0].mxu0
    %2074 = vmatprep.mubr.f32.mxu0 0.0
    %2075 = vmatmul.mubr.f32.gmra.mrb[0].mxu0 %v1988
    %v2076 = vpop.f32.mrb[0].mxu0
    %v2077 = vadd.f32 %v1956, %v2076
    %v2078 = vpop.f32.mrb[0].mxu0
    %2079 = vmatprep.mubr.f32.mxu0 0.0
    %2080 = vmatmul.mubr.f32.gmra.mrb[0].mxu0 %v1990
    %v2081 = vpop.f32.mrb[0].mxu0
    %v2082 = vadd.f32 %v1961, %v2081
    %v2083 = vpop.f32.mrb[0].mxu0
    %2084 = vmatprep.mubr.f32.mxu0 0.0
    %2085 = vmatmul.mubr.f32.gmra.mrb[0].mxu0 %v1992
    %v2086 = vpop.f32.mrb[0].mxu0
    %v2087 = vadd.f32 %v1966, %v2086
    %v2088 = vpop.f32.mrb[0].mxu0
    %2089 = vmatprep.mubr.f32.mxu0 0.0
    %2090 = vmatmul.mubr.f32.gmra.mrb[0].mxu0 %v1994
    %v2091 = vpop.f32.mrb[0].mxu0
    %v2092 = vadd.f32 %v1971, %v2091
    %v2093 = vpop.f32.mrb[0].mxu0
    %2094 = vmatprep.mubr.f32.mxu0 0.0
    %2095 = vmatmul.mubr.f32.gmra.mrb[0].mxu0 %v1996
    %v2096 = vpop.f32.mrb[0].mxu0
    %v2097 = vadd.f32 %v1976, %v2096
    %v2098 = vpop.f32.mrb[0].mxu0
    %2099 = vmatprep.mubr.f32.mxu0 0.0
    %2100 = vmatmul.mubr.f32.gmra.mrb[0].mxu0 %v1998
    %v2101 = vpop.f32.mrb[0].mxu0
    %v2102 = vadd.f32 %v1981, %v2101
    %v2103 = vpop.f32.mrb[0].mxu0
    %2104 = vdwg.mxu0
    %s2105 = scalar_lea.vmem [#allocation14], 96
    %v2106 = vld [vmem:[%s2105] sm:$0xff]
    %v2107 = vld [vmem:[%s2105 + $0x8] sm:$0xff]
    %v2108 = vld [vmem:[%s2105 + $0x10] sm:$0xff]
    %v2109 = vld [vmem:[%s2105 + $0x18] sm:$0xff]
    %v2110 = vld [vmem:[%s2105 + $0x20] sm:$0xff]
    %v2111 = vld [vmem:[%s2105 + $0x28] sm:$0xff]
    %v2112 = vrot.slane %v1819, 2
    %v2113 = vrot.slane %v1820, 2
    %v2114 = vsel %vm623, %v2112, %v2113
    %v2115 = vrot.slane %v1821, 2
    %v2116 = vsel %vm623, %v2113, %v2115
    %v2117 = vrot.slane %v1822, 2
    %v2118 = vsel %vm623, %v2115, %v2117
    %v2119 = vrot.slane %v1823, 2
    %v2120 = vsel %vm623, %v2117, %v2119
    %v2121 = vrot.slane %v1824, 2
    %v2122 = vsel %vm623, %v2119, %v2121
    %v2123 = vrot.slane %v1825, 2
    %v2124 = vsel %vm623, %v2121, %v2123
    %v2125 = vrot.slane %v1826, 2
    %v2126 = vsel %vm623, %v2123, %v2125
    %v2127 = vsel %vm1810, %v2114, 0
    %v2129 = vsel %vm1810, %v2116, 0
    %v2131 = vsel %vm1810, %v2118, 0
    %v2133 = vsel %vm1810, %v2120, 0
    %v2135 = vsel %vm1810, %v2122, 0
    %v2137 = vsel %vm1810, %v2124, 0
    %v2139 = vsel %vm1810, %v2126, 0
    %v2141 = vsel %vm1810, %v2125, 0
    %2143 = vmatprep.subr.mxu0 0.0
    %2144 = vmatpush1.msra.mxu0 %v2106
    %2145 = vmatprep.subr.mxu0 0.0
    %2146 = vmatpush1.msra.mxu0 %v2107
    %2147 = vmatprep.subr.mxu0 0.0
    %2148 = vmatpush1.msra.mxu0 %v2108
    %2149 = vmatprep.subr.mxu0 0.0
    %2150 = vmatpush1.msra.mxu0 %v2109
    %2151 = vmatprep.subr.mxu0 0.0
    %2152 = vmatpush1.msra.mxu0 %v2110
    %2153 = vmatprep.subr.mxu0 0.0
    %2154 = vmatpush1.msra.mxu0 %v2111
    %2155 = vmatprep.subr.mxu0 0.0
    %2156 = vmatpush1.msra.mxu0 0.0
    %2157 = vmatprep.subr.mxu0 0.0
    %2158 = vmatpush1.msra.mxu0 0.0
    %2159 = vmatprep.subr.mxu0 0.0
    %2160 = vmatpush1.msra.mxu0 0.0
    %2161 = vmatprep.subr.mxu0 0.0
    %2162 = vmatpush1.msra.mxu0 0.0
    %2163 = vmatprep.subr.mxu0 0.0
    %2164 = vmatpush1.msra.mxu0 0.0
    %2165 = vmatprep.subr.mxu0 0.0
    %2166 = vmatpush1.msra.mxu0 0.0
    %2167 = vmatprep.subr.mxu0 0.0
    %2168 = vmatpush1.msra.mxu0 0.0
    %2169 = vmatprep.subr.mxu0 0.0
    %2170 = vmatpush1.msra.mxu0 0.0
    %2171 = vmatprep.subr.mxu0 0.0
    %2172 = vmatpush1.msra.mxu0 0.0
    %2173 = vmatprep.subr.mxu0 0.0
    %2174 = vmatpush1.msra.mxu0 0.0
    %2175 = vmatprep.subr.mxu0 0.0
    %2176 = vmatpush1.msra.mxu0 0.0
    %2177 = vmatprep.subr.mxu0 0.0
    %2178 = vmatpush1.msra.mxu0 0.0
    %2179 = vmatprep.subr.mxu0 0.0
    %2180 = vmatpush1.msra.mxu0 0.0
    %2181 = vmatprep.subr.mxu0 0.0
    %2182 = vmatpush1.msra.mxu0 0.0
    %2183 = vmatprep.subr.mxu0 0.0
    %2184 = vmatpush1.msra.mxu0 0.0
    %2185 = vmatprep.subr.mxu0 0.0
    %2186 = vmatpush1.msra.mxu0 0.0
    %2187 = vmatprep.subr.mxu0 0.0
    %2188 = vmatpush1.msra.mxu0 0.0
    %2189 = vmatprep.subr.mxu0 0.0
    %2190 = vmatpush1.msra.mxu0 0.0
    %2191 = vmatprep.subr.mxu0 0.0
    %2192 = vmatpush1.msra.mxu0 0.0
    %2193 = vmatprep.subr.mxu0 0.0
    %2194 = vmatpush1.msra.mxu0 0.0
    %2195 = vmatprep.subr.mxu0 0.0
    %2196 = vmatpush1.msra.mxu0 0.0
    %2197 = vmatprep.subr.mxu0 0.0
    %2198 = vmatpush1.msra.mxu0 0.0
    %2199 = vmatprep.subr.mxu0 0.0
    %2200 = vmatpush1.msra.mxu0 0.0
    %2201 = vmatprep.subr.mxu0 0.0
    %2202 = vmatpush1.msra.mxu0 0.0
    %2203 = vmatprep.subr.mxu0 0.0
    %2204 = vmatpush1.msra.mxu0 0.0
    %2205 = vmatprep.subr.mxu0 0.0
    %2206 = vmatpush1.msra.mxu0 0.0
    %2207 = vmatprep.mubr.f32.mxu0 0.0
    %2208 = vmatmul.mubr.f32.gmra.mrb[0].mxu0 %v2127
    %v2209 = vpop.f32.mrb[0].mxu0
    %v2210 = vadd.f32 0.0, %v2209
    %v2211 = vpop.f32.mrb[0].mxu0
    %2212 = vmatprep.mubr.f32.mxu0 0.0
    %2213 = vmatmul.mubr.f32.gmra.mrb[0].mxu0 %v2129
    %v2214 = vpop.f32.mrb[0].mxu0
    %v2215 = vadd.f32 0.0, %v2214
    %v2216 = vpop.f32.mrb[0].mxu0
    %2217 = vmatprep.mubr.f32.mxu0 0.0
    %2218 = vmatmul.mubr.f32.gmra.mrb[0].mxu0 %v2131
    %v2219 = vpop.f32.mrb[0].mxu0
    %v2220 = vadd.f32 0.0, %v2219
    %v2221 = vpop.f32.mrb[0].mxu0
    %2222 = vmatprep.mubr.f32.mxu0 0.0
    %2223 = vmatmul.mubr.f32.gmra.mrb[0].mxu0 %v2133
    %v2224 = vpop.f32.mrb[0].mxu0
    %v2225 = vadd.f32 0.0, %v2224
    %v2226 = vpop.f32.mrb[0].mxu0
    %2227 = vmatprep.mubr.f32.mxu0 0.0
    %2228 = vmatmul.mubr.f32.gmra.mrb[0].mxu0 %v2135
    %v2229 = vpop.f32.mrb[0].mxu0
    %v2230 = vadd.f32 0.0, %v2229
    %v2231 = vpop.f32.mrb[0].mxu0
    %2232 = vmatprep.mubr.f32.mxu0 0.0
    %2233 = vmatmul.mubr.f32.gmra.mrb[0].mxu0 %v2137
    %v2234 = vpop.f32.mrb[0].mxu0
    %v2235 = vadd.f32 0.0, %v2234
    %v2236 = vpop.f32.mrb[0].mxu0
    %2237 = vmatprep.mubr.f32.mxu0 0.0
    %2238 = vmatmul.mubr.f32.gmra.mrb[0].mxu0 %v2139
    %v2239 = vpop.f32.mrb[0].mxu0
    %v2240 = vadd.f32 0.0, %v2239
    %v2241 = vpop.f32.mrb[0].mxu0
    %2242 = vmatprep.mubr.f32.mxu0 0.0
    %2243 = vmatmul.mubr.f32.gmra.mrb[0].mxu0 %v2141
    %v2244 = vpop.f32.mrb[0].mxu0
    %v2245 = vadd.f32 0.0, %v2244
    %v2246 = vpop.f32.mrb[0].mxu0
    %2247 = vdwg.mxu0
    %v2248 = vadd.f32 %v2067, %v2210
    %v2249 = vadd.f32 %v2072, %v2215
    %v2250 = vadd.f32 %v2077, %v2220
    %v2251 = vadd.f32 %v2082, %v2225
    %v2252 = vadd.f32 %v2087, %v2230
    %v2253 = vadd.f32 %v2092, %v2235
    %v2254 = vadd.f32 %v2097, %v2240
    %v2255 = vadd.f32 %v2102, %v2245
    %v2256 = vld [vmem:[#allocation15] sm:$0x1]
    %v2258 = vlaneseq
    %v2259 = vshrl.u32 %v2258, 7
    %v2260 = vsub.s32 0, %v2259
    %v2261 = vrot.slane %v2256, %v2260
    %v2263 = vadd.f32 %v2248, %v2261
    %v2264 = vadd.f32 %v2249, %v2261
    %v2265 = vadd.f32 %v2250, %v2261
    %v2266 = vadd.f32 %v2251, %v2261
    %v2267 = vadd.f32 %v2252, %v2261
    %v2268 = vadd.f32 %v2253, %v2261
    %v2269 = vadd.f32 %v2254, %v2261
    %v2270 = vadd.f32 %v2255, %v2261
    %v2271 = vmax.f32 %v2263, 0.0
    %v2272 = vmax.f32 %v2264, 0.0
    %v2273 = vmax.f32 %v2265, 0.0
    %v2274 = vmax.f32 %v2266, 0.0
    %v2275 = vmax.f32 %v2267, 0.0
    %v2276 = vmax.f32 %v2268, 0.0
    %v2277 = vmax.f32 %v2269, 0.0
    %v2278 = vmax.f32 %v2270, 0.0
    %v2287 = vrot.slane %v2271, 7
    %v2288 = vrot.slane %v2272, 7
    %v2289 = vsel %vm302, %v2287, %v2288
    %v2290 = vrot.slane %v2273, 7
    %v2291 = vsel %vm302, %v2288, %v2290
    %v2292 = vrot.slane %v2274, 7
    %v2293 = vsel %vm302, %v2290, %v2292
    %v2294 = vrot.slane %v2275, 7
    %v2295 = vsel %vm302, %v2292, %v2294
    %v2296 = vrot.slane %v2276, 7
    %v2297 = vsel %vm302, %v2294, %v2296
    %v2298 = vrot.slane %v2277, 7
    %v2299 = vsel %vm302, %v2296, %v2298
    %v2300 = vrot.slane %v2278, 7
    %v2301 = vsel %vm302, %v2298, %v2300
    %2310 = vst.msk [vmem:[#allocation2] sm:$0xfe] %vm1808, %v2287
    %2311 = vst.msk [vmem:[#allocation2 + $0x10] sm:$0xff] %vm1810, %v2289
    %2312 = vst.msk [vmem:[#allocation2 + $0x20] sm:$0xff] %vm1810, %v2291
    %2313 = vst.msk [vmem:[#allocation2 + $0x30] sm:$0xff] %vm1810, %v2293
    %2314 = vst.msk [vmem:[#allocation2 + $0x40] sm:$0xff] %vm1810, %v2295
    %2315 = vst.msk [vmem:[#allocation2 + $0x50] sm:$0xff] %vm1810, %v2297
    %2316 = vst.msk [vmem:[#allocation2 + $0x60] sm:$0xff] %vm1810, %v2299
    %2317 = vst.msk [vmem:[#allocation2 + $0x70] sm:$0x1f] %vm1817, %v2301
    %v2318 = vld [vmem:[#allocation2] sm:$0xff]
    %v2319 = vld [vmem:[#allocation2 + $0x10] sm:$0xff]
    %v2320 = vld [vmem:[#allocation2 + $0x20] sm:$0xff]
    %v2321 = vld [vmem:[#allocation2 + $0x30] sm:$0xff]
    %v2322 = vld [vmem:[#allocation2 + $0x40] sm:$0xff]
    %v2323 = vld [vmem:[#allocation2 + $0x50] sm:$0xff]
    %v2324 = vld [vmem:[#allocation2 + $0x60] sm:$0xff]
    %v2325 = vld [vmem:[#allocation2 + $0x70] sm:$0x3f]
    %v2326 = vld [vmem:[#allocation17] sm:$0xff]
    %v2327 = vld [vmem:[#allocation17 + $0x8] sm:$0xff]
    %v2328 = vld [vmem:[#allocation17 + $0x10] sm:$0xff]
    %v2329 = vld [vmem:[#allocation17 + $0x18] sm:$0xff]
    %v2330 = vld [vmem:[#allocation17 + $0x20] sm:$0xff]
    %v2331 = vld [vmem:[#allocation17 + $0x28] sm:$0xff]
    %s2332 = scalar_lea.vmem [#allocation17], 48
    %v2333 = vld [vmem:[%s2332] sm:$0xff]
    %v2334 = vld [vmem:[%s2332 + $0x8] sm:$0xff]
    %v2335 = vld [vmem:[%s2332 + $0x10] sm:$0xff]
    %v2336 = vld [vmem:[%s2332 + $0x18] sm:$0xff]
    %v2337 = vld [vmem:[%s2332 + $0x20] sm:$0xff]
    %v2338 = vld [vmem:[%s2332 + $0x28] sm:$0xff]
    %v2347 = vrot.slane %v2318, 1
    %v2348 = vrot.slane %v2319, 1
    %v2349 = vsel %vm356, %v2347, %v2348
    %v2350 = vrot.slane %v2320, 1
    %v2351 = vsel %vm356, %v2348, %v2350
    %v2352 = vrot.slane %v2321, 1
    %v2353 = vsel %vm356, %v2350, %v2352
    %v2354 = vrot.slane %v2322, 1
    %v2355 = vsel %vm356, %v2352, %v2354
    %v2356 = vrot.slane %v2323, 1
    %v2357 = vsel %vm356, %v2354, %v2356
    %v2358 = vrot.slane %v2324, 1
    %v2359 = vsel %vm356, %v2356, %v2358
    %v2360 = vrot.slane %v2325, 1
    %v2361 = vsel %vm356, %v2358, %v2360
    %v2362 = vsel %vm1810, %v2349, 0
    %v2364 = vsel %vm1810, %v2351, 0
    %v2366 = vsel %vm1810, %v2353, 0
    %v2368 = vsel %vm1810, %v2355, 0
    %v2370 = vsel %vm1810, %v2357, 0
    %v2372 = vsel %vm1810, %v2359, 0
    %v2374 = vsel %vm1810, %v2361, 0
    %v2376 = vsel %vm1810, %v2360, 0
    %2378 = vmatprep.subr.mxu0 0.0
    %2379 = vmatpush1.msra.mxu0 %v2333
    %2380 = vmatprep.subr.mxu0 0.0
    %2381 = vmatpush1.msra.mxu0 %v2334
    %2382 = vmatprep.subr.mxu0 0.0
    %2383 = vmatpush1.msra.mxu0 %v2335
    %2384 = vmatprep.subr.mxu0 0.0
    %2385 = vmatpush1.msra.mxu0 %v2336
    %2386 = vmatprep.subr.mxu0 0.0
    %2387 = vmatpush1.msra.mxu0 %v2337
    %2388 = vmatprep.subr.mxu0 0.0
    %2389 = vmatpush1.msra.mxu0 %v2338
    %2390 = vmatprep.subr.mxu0 0.0
    %2391 = vmatpush1.msra.mxu0 0.0
    %2392 = vmatprep.subr.mxu0 0.0
    %2393 = vmatpush1.msra.mxu0 0.0
    %2394 = vmatprep.subr.mxu0 0.0
    %2395 = vmatpush1.msra.mxu0 0.0
    %2396 = vmatprep.subr.mxu0 0.0
    %2397 = vmatpush1.msra.mxu0 0.0
    %2398 = vmatprep.subr.mxu0 0.0
    %2399 = vmatpush1.msra.mxu0 0.0
    %2400 = vmatprep.subr.mxu0 0.0
    %2401 = vmatpush1.msra.mxu0 0.0
    %2402 = vmatprep.subr.mxu0 0.0
    %2403 = vmatpush1.msra.mxu0 0.0
    %2404 = vmatprep.subr.mxu0 0.0
    %2405 = vmatpush1.msra.mxu0 0.0
    %2406 = vmatprep.subr.mxu0 0.0
    %2407 = vmatpush1.msra.mxu0 0.0
    %2408 = vmatprep.subr.mxu0 0.0
    %2409 = vmatpush1.msra.mxu0 0.0
    %2410 = vmatprep.subr.mxu0 0.0
    %2411 = vmatpush1.msra.mxu0 0.0
    %2412 = vmatprep.subr.mxu0 0.0
    %2413 = vmatpush1.msra.mxu0 0.0
    %2414 = vmatprep.subr.mxu0 0.0
    %2415 = vmatpush1.msra.mxu0 0.0
    %2416 = vmatprep.subr.mxu0 0.0
    %2417 = vmatpush1.msra.mxu0 0.0
    %2418 = vmatprep.subr.mxu0 0.0
    %2419 = vmatpush1.msra.mxu0 0.0
    %2420 = vmatprep.subr.mxu0 0.0
    %2421 = vmatpush1.msra.mxu0 0.0
    %2422 = vmatprep.subr.mxu0 0.0
    %2423 = vmatpush1.msra.mxu0 0.0
    %2424 = vmatprep.subr.mxu0 0.0
    %2425 = vmatpush1.msra.mxu0 0.0
    %2426 = vmatprep.subr.mxu0 0.0
    %2427 = vmatpush1.msra.mxu0 0.0
    %2428 = vmatprep.subr.mxu0 0.0
    %2429 = vmatpush1.msra.mxu0 0.0
    %2430 = vmatprep.subr.mxu0 0.0
    %2431 = vmatpush1.msra.mxu0 0.0
    %2432 = vmatprep.subr.mxu0 0.0
    %2433 = vmatpush1.msra.mxu0 0.0
    %2434 = vmatprep.subr.mxu0 0.0
    %2435 = vmatpush1.msra.mxu0 0.0
    %2436 = vmatprep.subr.mxu0 0.0
    %2437 = vmatpush1.msra.mxu0 0.0
    %2438 = vmatprep.subr.mxu0 0.0
    %2439 = vmatpush1.msra.mxu0 0.0
    %2440 = vmatprep.subr.mxu0 0.0
    %2441 = vmatpush1.msra.mxu0 0.0
    %2442 = vmatprep.mubr.f32.mxu0 0.0
    %2443 = vmatmul.mubr.f32.gmra.mrb[0].mxu0 %v2362
    %v2444 = vpop.f32.mrb[0].mxu0
    %v2445 = vadd.f32 0.0, %v2444
    %v2446 = vpop.f32.mrb[0].mxu0
    %2447 = vmatprep.mubr.f32.mxu0 0.0
    %2448 = vmatmul.mubr.f32.gmra.mrb[0].mxu0 %v2364
    %v2449 = vpop.f32.mrb[0].mxu0
    %v2450 = vadd.f32 0.0, %v2449
    %v2451 = vpop.f32.mrb[0].mxu0
    %2452 = vmatprep.mubr.f32.mxu0 0.0
    %2453 = vmatmul.mubr.f32.gmra.mrb[0].mxu0 %v2366
    %v2454 = vpop.f32.mrb[0].mxu0
    %v2455 = vadd.f32 0.0, %v2454
    %v2456 = vpop.f32.mrb[0].mxu0
    %2457 = vmatprep.mubr.f32.mxu0 0.0
    %2458 = vmatmul.mubr.f32.gmra.mrb[0].mxu0 %v2368
    %v2459 = vpop.f32.mrb[0].mxu0
    %v2460 = vadd.f32 0.0, %v2459
    %v2461 = vpop.f32.mrb[0].mxu0
    %2462 = vmatprep.mubr.f32.mxu0 0.0
    %2463 = vmatmul.mubr.f32.gmra.mrb[0].mxu0 %v2370
    %v2464 = vpop.f32.mrb[0].mxu0
    %v2465 = vadd.f32 0.0, %v2464
    %v2466 = vpop.f32.mrb[0].mxu0
    %2467 = vmatprep.mubr.f32.mxu0 0.0
    %2468 = vmatmul.mubr.f32.gmra.mrb[0].mxu0 %v2372
    %v2469 = vpop.f32.mrb[0].mxu0
    %v2470 = vadd.f32 0.0, %v2469
    %v2471 = vpop.f32.mrb[0].mxu0
    %2472 = vmatprep.mubr.f32.mxu0 0.0
    %2473 = vmatmul.mubr.f32.gmra.mrb[0].mxu0 %v2374
    %v2474 = vpop.f32.mrb[0].mxu0
    %v2475 = vadd.f32 0.0, %v2474
    %v2476 = vpop.f32.mrb[0].mxu0
    %2477 = vmatprep.mubr.f32.mxu0 0.0
    %2478 = vmatmul.mubr.f32.gmra.mrb[0].mxu0 %v2376
    %v2479 = vpop.f32.mrb[0].mxu0
    %v2480 = vadd.f32 0.0, %v2479
    %v2481 = vpop.f32.mrb[0].mxu0
    %2482 = vdwg.mxu0
    %v2483 = vsel %vm1810, %v2318, 0
    %v2485 = vsel %vm1810, %v2319, 0
    %v2487 = vsel %vm1810, %v2320, 0
    %v2489 = vsel %vm1810, %v2321, 0
    %v2491 = vsel %vm1810, %v2322, 0
    %v2493 = vsel %vm1810, %v2323, 0
    %v2495 = vsel %vm1810, %v2324, 0
    %v2497 = vsel %vm1810, %v2325, 0
    %2499 = vmatprep.subr.mxu0 0.0
    %2500 = vmatpush1.msra.mxu0 %v2326
    %2501 = vmatprep.subr.mxu0 0.0
    %2502 = vmatpush1.msra.mxu0 %v2327
    %2503 = vmatprep.subr.mxu0 0.0
    %2504 = vmatpush1.msra.mxu0 %v2328
    %2505 = vmatprep.subr.mxu0 0.0
    %2506 = vmatpush1.msra.mxu0 %v2329
    %2507 = vmatprep.subr.mxu0 0.0
    %2508 = vmatpush1.msra.mxu0 %v2330
    %2509 = vmatprep.subr.mxu0 0.0
    %2510 = vmatpush1.msra.mxu0 %v2331
    %2511 = vmatprep.subr.mxu0 0.0
    %2512 = vmatpush1.msra.mxu0 0.0
    %2513 = vmatprep.subr.mxu0 0.0
    %2514 = vmatpush1.msra.mxu0 0.0
    %2515 = vmatprep.subr.mxu0 0.0
    %2516 = vmatpush1.msra.mxu0 0.0
    %2517 = vmatprep.subr.mxu0 0.0
    %2518 = vmatpush1.msra.mxu0 0.0
    %2519 = vmatprep.subr.mxu0 0.0
    %2520 = vmatpush1.msra.mxu0 0.0
    %2521 = vmatprep.subr.mxu0 0.0
    %2522 = vmatpush1.msra.mxu0 0.0
    %2523 = vmatprep.subr.mxu0 0.0
    %2524 = vmatpush1.msra.mxu0 0.0
    %2525 = vmatprep.subr.mxu0 0.0
    %2526 = vmatpush1.msra.mxu0 0.0
    %2527 = vmatprep.subr.mxu0 0.0
    %2528 = vmatpush1.msra.mxu0 0.0
    %2529 = vmatprep.subr.mxu0 0.0
    %2530 = vmatpush1.msra.mxu0 0.0
    %2531 = vmatprep.subr.mxu0 0.0
    %2532 = vmatpush1.msra.mxu0 0.0
    %2533 = vmatprep.subr.mxu0 0.0
    %2534 = vmatpush1.msra.mxu0 0.0
    %2535 = vmatprep.subr.mxu0 0.0
    %2536 = vmatpush1.msra.mxu0 0.0
    %2537 = vmatprep.subr.mxu0 0.0
    %2538 = vmatpush1.msra.mxu0 0.0
    %2539 = vmatprep.subr.mxu0 0.0
    %2540 = vmatpush1.msra.mxu0 0.0
    %2541 = vmatprep.subr.mxu0 0.0
    %2542 = vmatpush1.msra.mxu0 0.0
    %2543 = vmatprep.subr.mxu0 0.0
    %2544 = vmatpush1.msra.mxu0 0.0
    %2545 = vmatprep.subr.mxu0 0.0
    %2546 = vmatpush1.msra.mxu0 0.0
    %2547 = vmatprep.subr.mxu0 0.0
    %2548 = vmatpush1.msra.mxu0 0.0
    %2549 = vmatprep.subr.mxu0 0.0
    %2550 = vmatpush1.msra.mxu0 0.0
    %2551 = vmatprep.subr.mxu0 0.0
    %2552 = vmatpush1.msra.mxu0 0.0
    %2553 = vmatprep.subr.mxu0 0.0
    %2554 = vmatpush1.msra.mxu0 0.0
    %2555 = vmatprep.subr.mxu0 0.0
    %2556 = vmatpush1.msra.mxu0 0.0
    %2557 = vmatprep.subr.mxu0 0.0
    %2558 = vmatpush1.msra.mxu0 0.0
    %2559 = vmatprep.subr.mxu0 0.0
    %2560 = vmatpush1.msra.mxu0 0.0
    %2561 = vmatprep.subr.mxu0 0.0
    %2562 = vmatpush1.msra.mxu0 0.0
    %2563 = vmatprep.mubr.f32.mxu0 0.0
    %2564 = vmatmul.mubr.f32.gmra.mrb[0].mxu0 %v2483
    %v2565 = vpop.f32.mrb[0].mxu0
    %v2566 = vadd.f32 %v2445, %v2565
    %v2567 = vpop.f32.mrb[0].mxu0
    %2568 = vmatprep.mubr.f32.mxu0 0.0
    %2569 = vmatmul.mubr.f32.gmra.mrb[0].mxu0 %v2485
    %v2570 = vpop.f32.mrb[0].mxu0
    %v2571 = vadd.f32 %v2450, %v2570
    %v2572 = vpop.f32.mrb[0].mxu0
    %2573 = vmatprep.mubr.f32.mxu0 0.0
    %2574 = vmatmul.mubr.f32.gmra.mrb[0].mxu0 %v2487
    %v2575 = vpop.f32.mrb[0].mxu0
    %v2576 = vadd.f32 %v2455, %v2575
    %v2577 = vpop.f32.mrb[0].mxu0
    %2578 = vmatprep.mubr.f32.mxu0 0.0
    %2579 = vmatmul.mubr.f32.gmra.mrb[0].mxu0 %v2489
    %v2580 = vpop.f32.mrb[0].mxu0
    %v2581 = vadd.f32 %v2460, %v2580
    %v2582 = vpop.f32.mrb[0].mxu0
    %2583 = vmatprep.mubr.f32.mxu0 0.0
    %2584 = vmatmul.mubr.f32.gmra.mrb[0].mxu0 %v2491
    %v2585 = vpop.f32.mrb[0].mxu0
    %v2586 = vadd.f32 %v2465, %v2585
    %v2587 = vpop.f32.mrb[0].mxu0
    %2588 = vmatprep.mubr.f32.mxu0 0.0
    %2589 = vmatmul.mubr.f32.gmra.mrb[0].mxu0 %v2493
    %v2590 = vpop.f32.mrb[0].mxu0
    %v2591 = vadd.f32 %v2470, %v2590
    %v2592 = vpop.f32.mrb[0].mxu0
    %2593 = vmatprep.mubr.f32.mxu0 0.0
    %2594 = vmatmul.mubr.f32.gmra.mrb[0].mxu0 %v2495
    %v2595 = vpop.f32.mrb[0].mxu0
    %v2596 = vadd.f32 %v2475, %v2595
    %v2597 = vpop.f32.mrb[0].mxu0
    %2598 = vmatprep.mubr.f32.mxu0 0.0
    %2599 = vmatmul.mubr.f32.gmra.mrb[0].mxu0 %v2497
    %v2600 = vpop.f32.mrb[0].mxu0
    %v2601 = vadd.f32 %v2480, %v2600
    %v2602 = vpop.f32.mrb[0].mxu0
    %2603 = vdwg.mxu0
    %s2604 = scalar_lea.vmem [#allocation17], 96
    %v2605 = vld [vmem:[%s2604] sm:$0xff]
    %v2606 = vld [vmem:[%s2604 + $0x8] sm:$0xff]
    %v2607 = vld [vmem:[%s2604 + $0x10] sm:$0xff]
    %v2608 = vld [vmem:[%s2604 + $0x18] sm:$0xff]
    %v2609 = vld [vmem:[%s2604 + $0x20] sm:$0xff]
    %v2610 = vld [vmem:[%s2604 + $0x28] sm:$0xff]
    %v2611 = vrot.slane %v2318, 2
    %v2612 = vrot.slane %v2319, 2
    %v2613 = vsel %vm623, %v2611, %v2612
    %v2614 = vrot.slane %v2320, 2
    %v2615 = vsel %vm623, %v2612, %v2614
    %v2616 = vrot.slane %v2321, 2
    %v2617 = vsel %vm623, %v2614, %v2616
    %v2618 = vrot.slane %v2322, 2
    %v2619 = vsel %vm623, %v2616, %v2618
    %v2620 = vrot.slane %v2323, 2
    %v2621 = vsel %vm623, %v2618, %v2620
    %v2622 = vrot.slane %v2324, 2
    %v2623 = vsel %vm623, %v2620, %v2622
    %v2624 = vrot.slane %v2325, 2
    %v2625 = vsel %vm623, %v2622, %v2624
    %v2626 = vsel %vm1810, %v2613, 0
    %v2628 = vsel %vm1810, %v2615, 0
    %v2630 = vsel %vm1810, %v2617, 0
    %v2632 = vsel %vm1810, %v2619, 0
    %v2634 = vsel %vm1810, %v2621, 0
    %v2636 = vsel %vm1810, %v2623, 0
    %v2638 = vsel %vm1810, %v2625, 0
    %v2640 = vsel %vm1810, %v2624, 0
    %2642 = vmatprep.subr.mxu0 0.0
    %2643 = vmatpush1.msra.mxu0 %v2605
    %2644 = vmatprep.subr.mxu0 0.0
    %2645 = vmatpush1.msra.mxu0 %v2606
    %2646 = vmatprep.subr.mxu0 0.0
    %2647 = vmatpush1.msra.mxu0 %v2607
    %2648 = vmatprep.subr.mxu0 0.0
    %2649 = vmatpush1.msra.mxu0 %v2608
    %2650 = vmatprep.subr.mxu0 0.0
    %2651 = vmatpush1.msra.mxu0 %v2609
    %2652 = vmatprep.subr.mxu0 0.0
    %2653 = vmatpush1.msra.mxu0 %v2610
    %2654 = vmatprep.subr.mxu0 0.0
    %2655 = vmatpush1.msra.mxu0 0.0
    %2656 = vmatprep.subr.mxu0 0.0
    %2657 = vmatpush1.msra.mxu0 0.0
    %2658 = vmatprep.subr.mxu0 0.0
    %2659 = vmatpush1.msra.mxu0 0.0
    %2660 = vmatprep.subr.mxu0 0.0
    %2661 = vmatpush1.msra.mxu0 0.0
    %2662 = vmatprep.subr.mxu0 0.0
    %2663 = vmatpush1.msra.mxu0 0.0
    %2664 = vmatprep.subr.mxu0 0.0
    %2665 = vmatpush1.msra.mxu0 0.0
    %2666 = vmatprep.subr.mxu0 0.0
    %2667 = vmatpush1.msra.mxu0 0.0
    %2668 = vmatprep.subr.mxu0 0.0
    %2669 = vmatpush1.msra.mxu0 0.0
    %2670 = vmatprep.subr.mxu0 0.0
    %2671 = vmatpush1.msra.mxu0 0.0
    %2672 = vmatprep.subr.mxu0 0.0
    %2673 = vmatpush1.msra.mxu0 0.0
    %2674 = vmatprep.subr.mxu0 0.0
    %2675 = vmatpush1.msra.mxu0 0.0
    %2676 = vmatprep.subr.mxu0 0.0
    %2677 = vmatpush1.msra.mxu0 0.0
    %2678 = vmatprep.subr.mxu0 0.0
    %2679 = vmatpush1.msra.mxu0 0.0
    %2680 = vmatprep.subr.mxu0 0.0
    %2681 = vmatpush1.msra.mxu0 0.0
    %2682 = vmatprep.subr.mxu0 0.0
    %2683 = vmatpush1.msra.mxu0 0.0
    %2684 = vmatprep.subr.mxu0 0.0
    %2685 = vmatpush1.msra.mxu0 0.0
    %2686 = vmatprep.subr.mxu0 0.0
    %2687 = vmatpush1.msra.mxu0 0.0
    %2688 = vmatprep.subr.mxu0 0.0
    %2689 = vmatpush1.msra.mxu0 0.0
    %2690 = vmatprep.subr.mxu0 0.0
    %2691 = vmatpush1.msra.mxu0 0.0
    %2692 = vmatprep.subr.mxu0 0.0
    %2693 = vmatpush1.msra.mxu0 0.0
    %2694 = vmatprep.subr.mxu0 0.0
    %2695 = vmatpush1.msra.mxu0 0.0
    %2696 = vmatprep.subr.mxu0 0.0
    %2697 = vmatpush1.msra.mxu0 0.0
    %2698 = vmatprep.subr.mxu0 0.0
    %2699 = vmatpush1.msra.mxu0 0.0
    %2700 = vmatprep.subr.mxu0 0.0
    %2701 = vmatpush1.msra.mxu0 0.0
    %2702 = vmatprep.subr.mxu0 0.0
    %2703 = vmatpush1.msra.mxu0 0.0
    %2704 = vmatprep.subr.mxu0 0.0
    %2705 = vmatpush1.msra.mxu0 0.0
    %2706 = vmatprep.mubr.f32.mxu0 0.0
    %2707 = vmatmul.mubr.f32.gmra.mrb[0].mxu0 %v2626
    %v2708 = vpop.f32.mrb[0].mxu0
    %v2709 = vadd.f32 0.0, %v2708
    %v2710 = vpop.f32.mrb[0].mxu0
    %2711 = vmatprep.mubr.f32.mxu0 0.0
    %2712 = vmatmul.mubr.f32.gmra.mrb[0].mxu0 %v2628
    %v2713 = vpop.f32.mrb[0].mxu0
    %v2714 = vadd.f32 0.0, %v2713
    %v2715 = vpop.f32.mrb[0].mxu0
    %2716 = vmatprep.mubr.f32.mxu0 0.0
    %2717 = vmatmul.mubr.f32.gmra.mrb[0].mxu0 %v2630
    %v2718 = vpop.f32.mrb[0].mxu0
    %v2719 = vadd.f32 0.0, %v2718
    %v2720 = vpop.f32.mrb[0].mxu0
    %2721 = vmatprep.mubr.f32.mxu0 0.0
    %2722 = vmatmul.mubr.f32.gmra.mrb[0].mxu0 %v2632
    %v2723 = vpop.f32.mrb[0].mxu0
    %v2724 = vadd.f32 0.0, %v2723
    %v2725 = vpop.f32.mrb[0].mxu0
    %2726 = vmatprep.mubr.f32.mxu0 0.0
    %2727 = vmatmul.mubr.f32.gmra.mrb[0].mxu0 %v2634
    %v2728 = vpop.f32.mrb[0].mxu0
    %v2729 = vadd.f32 0.0, %v2728
    %v2730 = vpop.f32.mrb[0].mxu0
    %2731 = vmatprep.mubr.f32.mxu0 0.0
    %2732 = vmatmul.mubr.f32.gmra.mrb[0].mxu0 %v2636
    %v2733 = vpop.f32.mrb[0].mxu0
    %v2734 = vadd.f32 0.0, %v2733
    %v2735 = vpop.f32.mrb[0].mxu0
    %2736 = vmatprep.mubr.f32.mxu0 0.0
    %2737 = vmatmul.mubr.f32.gmra.mrb[0].mxu0 %v2638
    %v2738 = vpop.f32.mrb[0].mxu0
    %v2739 = vadd.f32 0.0, %v2738
    %v2740 = vpop.f32.mrb[0].mxu0
    %2741 = vmatprep.mubr.f32.mxu0 0.0
    %2742 = vmatmul.mubr.f32.gmra.mrb[0].mxu0 %v2640
    %v2743 = vpop.f32.mrb[0].mxu0
    %v2744 = vadd.f32 0.0, %v2743
    %v2745 = vpop.f32.mrb[0].mxu0
    %2746 = vdwg.mxu0
    %v2747 = vadd.f32 %v2566, %v2709
    %v2748 = vadd.f32 %v2571, %v2714
    %v2749 = vadd.f32 %v2576, %v2719
    %v2750 = vadd.f32 %v2581, %v2724
    %v2751 = vadd.f32 %v2586, %v2729
    %v2752 = vadd.f32 %v2591, %v2734
    %v2753 = vadd.f32 %v2596, %v2739
    %v2754 = vadd.f32 %v2601, %v2744
    %v2755 = vld [vmem:[#allocation18] sm:$0x1]
    %v2757 = vlaneseq
    %v2758 = vshrl.u32 %v2757, 7
    %v2759 = vsub.s32 0, %v2758
    %v2760 = vrot.slane %v2755, %v2759
    %v2762 = vadd.f32 %v2747, %v2760
    %v2763 = vadd.f32 %v2748, %v2760
    %v2764 = vadd.f32 %v2749, %v2760
    %v2765 = vadd.f32 %v2750, %v2760
    %v2766 = vadd.f32 %v2751, %v2760
    %v2767 = vadd.f32 %v2752, %v2760
    %v2768 = vadd.f32 %v2753, %v2760
    %v2769 = vadd.f32 %v2754, %v2760
    %v2770 = vmax.f32 %v2762, 0.0
    %v2771 = vmax.f32 %v2763, 0.0
    %v2772 = vmax.f32 %v2764, 0.0
    %v2773 = vmax.f32 %v2765, 0.0
    %v2774 = vmax.f32 %v2766, 0.0
    %v2775 = vmax.f32 %v2767, 0.0
    %v2776 = vmax.f32 %v2768, 0.0
    %v2777 = vmax.f32 %v2769, 0.0
    %v2786 = vrot.slane %v2770, 7
    %v2787 = vrot.slane %v2771, 7
    %v2788 = vsel %vm302, %v2786, %v2787
    %v2789 = vrot.slane %v2772, 7
    %v2790 = vsel %vm302, %v2787, %v2789
    %v2791 = vrot.slane %v2773, 7
    %v2792 = vsel %vm302, %v2789, %v2791
    %v2793 = vrot.slane %v2774, 7
    %v2794 = vsel %vm302, %v2791, %v2793
    %v2795 = vrot.slane %v2775, 7
    %v2796 = vsel %vm302, %v2793, %v2795
    %v2797 = vrot.slane %v2776, 7
    %v2798 = vsel %vm302, %v2795, %v2797
    %v2799 = vrot.slane %v2777, 7
    %v2800 = vsel %vm302, %v2797, %v2799
    %vm2809 = vcmask 785409
    %2810 = vst.msk [vmem:[#allocation2] sm:$0xfe] %vm2809, %v2786
    %vm2811 = vcmask 785408
    %2812 = vst.msk [vmem:[#allocation2 + $0x10] sm:$0xff] %vm2811, %v2788
    %2813 = vst.msk [vmem:[#allocation2 + $0x20] sm:$0xff] %vm2811, %v2790
    %2814 = vst.msk [vmem:[#allocation2 + $0x30] sm:$0xff] %vm2811, %v2792
    %2815 = vst.msk [vmem:[#allocation2 + $0x40] sm:$0xff] %vm2811, %v2794
    %2816 = vst.msk [vmem:[#allocation2 + $0x50] sm:$0xff] %vm2811, %v2796
    %2817 = vst.msk [vmem:[#allocation2 + $0x60] sm:$0xff] %vm2811, %v2798
    %vm2818 = vcmask 782336
    %2819 = vst.msk [vmem:[#allocation2 + $0x70] sm:$0x1f] %vm2818, %v2800
    %v2820 = vld [vmem:[#allocation2] sm:$0xff]
    %v2821 = vld [vmem:[#allocation2 + $0x10] sm:$0xff]
    %v2822 = vld [vmem:[#allocation2 + $0x20] sm:$0xff]
    %v2823 = vld [vmem:[#allocation2 + $0x30] sm:$0xff]
    %v2824 = vld [vmem:[#allocation2 + $0x40] sm:$0xff]
    %v2825 = vld [vmem:[#allocation2 + $0x50] sm:$0xff]
    %v2826 = vld [vmem:[#allocation2 + $0x60] sm:$0xff]
    %v2827 = vld [vmem:[#allocation2 + $0x70] sm:$0x3f]
    %v2828 = vld [vmem:[#allocation20] sm:$0xff]
    %v2829 = vld [vmem:[#allocation20 + $0x8] sm:$0xff]
    %v2830 = vld [vmem:[#allocation20 + $0x10] sm:$0xff]
    %v2831 = vld [vmem:[#allocation20 + $0x18] sm:$0xff]
    %v2832 = vld [vmem:[#allocation20 + $0x20] sm:$0xff]
    %v2833 = vld [vmem:[#allocation20 + $0x28] sm:$0xff]
    %v2834 = vld [vmem:[#allocation20 + $0x30] sm:$0xff]
    %v2835 = vld [vmem:[#allocation20 + $0x38] sm:$0xff]
    %v2836 = vld [vmem:[#allocation20 + $0x40] sm:$0xff]
    %v2837 = vld [vmem:[#allocation20 + $0x48] sm:$0xff]
    %v2838 = vld [vmem:[#allocation20 + $0x50] sm:$0xff]
    %v2839 = vld [vmem:[#allocation20 + $0x58] sm:$0xff]
    %s2840 = scalar_lea.vmem [#allocation20], 96
    %v2841 = vld [vmem:[%s2840] sm:$0xff]
    %v2842 = vld [vmem:[%s2840 + $0x8] sm:$0xff]
    %v2843 = vld [vmem:[%s2840 + $0x10] sm:$0xff]
    %v2844 = vld [vmem:[%s2840 + $0x18] sm:$0xff]
    %v2845 = vld [vmem:[%s2840 + $0x20] sm:$0xff]
    %v2846 = vld [vmem:[%s2840 + $0x28] sm:$0xff]
    %v2847 = vld [vmem:[%s2840 + $0x30] sm:$0xff]
    %v2848 = vld [vmem:[%s2840 + $0x38] sm:$0xff]
    %v2849 = vld [vmem:[%s2840 + $0x40] sm:$0xff]
    %v2850 = vld [vmem:[%s2840 + $0x48] sm:$0xff]
    %v2851 = vld [vmem:[%s2840 + $0x50] sm:$0xff]
    %v2852 = vld [vmem:[%s2840 + $0x58] sm:$0xff]
    %v2861 = vrot.slane %v2820, 1
    %v2862 = vrot.slane %v2821, 1
    %v2863 = vsel %vm356, %v2861, %v2862
    %v2864 = vrot.slane %v2822, 1
    %v2865 = vsel %vm356, %v2862, %v2864
    %v2866 = vrot.slane %v2823, 1
    %v2867 = vsel %vm356, %v2864, %v2866
    %v2868 = vrot.slane %v2824, 1
    %v2869 = vsel %vm356, %v2866, %v2868
    %v2870 = vrot.slane %v2825, 1
    %v2871 = vsel %vm356, %v2868, %v2870
    %v2872 = vrot.slane %v2826, 1
    %v2873 = vsel %vm356, %v2870, %v2872
    %v2874 = vrot.slane %v2827, 1
    %v2875 = vsel %vm356, %v2872, %v2874
    %v2876 = vsel %vm2811, %v2863, 0
    %v2878 = vsel %vm2811, %v2865, 0
    %v2880 = vsel %vm2811, %v2867, 0
    %v2882 = vsel %vm2811, %v2869, 0
    %v2884 = vsel %vm2811, %v2871, 0
    %v2886 = vsel %vm2811, %v2873, 0
    %v2888 = vsel %vm2811, %v2875, 0
    %v2890 = vsel %vm2811, %v2874, 0
    %2892 = vmatprep.subr.mxu0 0.0
    %2893 = vmatpush1.msra.mxu0 %v2841
    %2894 = vmatprep.subr.mxu0 0.0
    %2895 = vmatpush1.msra.mxu0 %v2842
    %2896 = vmatprep.subr.mxu0 0.0
    %2897 = vmatpush1.msra.mxu0 %v2843
    %2898 = vmatprep.subr.mxu0 0.0
    %2899 = vmatpush1.msra.mxu0 %v2844
    %2900 = vmatprep.subr.mxu0 0.0
    %2901 = vmatpush1.msra.mxu0 %v2845
    %2902 = vmatprep.subr.mxu0 0.0
    %2903 = vmatpush1.msra.mxu0 %v2846
    %2904 = vmatprep.subr.mxu0 0.0
    %2905 = vmatpush1.msra.mxu0 %v2847
    %2906 = vmatprep.subr.mxu0 0.0
    %2907 = vmatpush1.msra.mxu0 %v2848
    %2908 = vmatprep.subr.mxu0 0.0
    %2909 = vmatpush1.msra.mxu0 %v2849
    %2910 = vmatprep.subr.mxu0 0.0
    %2911 = vmatpush1.msra.mxu0 %v2850
    %2912 = vmatprep.subr.mxu0 0.0
    %2913 = vmatpush1.msra.mxu0 %v2851
    %2914 = vmatprep.subr.mxu0 0.0
    %2915 = vmatpush1.msra.mxu0 %v2852
    %2916 = vmatprep.subr.mxu0 0.0
    %2917 = vmatpush1.msra.mxu0 0.0
    %2918 = vmatprep.subr.mxu0 0.0
    %2919 = vmatpush1.msra.mxu0 0.0
    %2920 = vmatprep.subr.mxu0 0.0
    %2921 = vmatpush1.msra.mxu0 0.0
    %2922 = vmatprep.subr.mxu0 0.0
    %2923 = vmatpush1.msra.mxu0 0.0
    %2924 = vmatprep.subr.mxu0 0.0
    %2925 = vmatpush1.msra.mxu0 0.0
    %2926 = vmatprep.subr.mxu0 0.0
    %2927 = vmatpush1.msra.mxu0 0.0
    %2928 = vmatprep.subr.mxu0 0.0
    %2929 = vmatpush1.msra.mxu0 0.0
    %2930 = vmatprep.subr.mxu0 0.0
    %2931 = vmatpush1.msra.mxu0 0.0
    %2932 = vmatprep.subr.mxu0 0.0
    %2933 = vmatpush1.msra.mxu0 0.0
    %2934 = vmatprep.subr.mxu0 0.0
    %2935 = vmatpush1.msra.mxu0 0.0
    %2936 = vmatprep.subr.mxu0 0.0
    %2937 = vmatpush1.msra.mxu0 0.0
    %2938 = vmatprep.subr.mxu0 0.0
    %2939 = vmatpush1.msra.mxu0 0.0
    %2940 = vmatprep.subr.mxu0 0.0
    %2941 = vmatpush1.msra.mxu0 0.0
    %2942 = vmatprep.subr.mxu0 0.0
    %2943 = vmatpush1.msra.mxu0 0.0
    %2944 = vmatprep.subr.mxu0 0.0
    %2945 = vmatpush1.msra.mxu0 0.0
    %2946 = vmatprep.subr.mxu0 0.0
    %2947 = vmatpush1.msra.mxu0 0.0
    %2948 = vmatprep.subr.mxu0 0.0
    %2949 = vmatpush1.msra.mxu0 0.0
    %2950 = vmatprep.subr.mxu0 0.0
    %2951 = vmatpush1.msra.mxu0 0.0
    %2952 = vmatprep.subr.mxu0 0.0
    %2953 = vmatpush1.msra.mxu0 0.0
    %2954 = vmatprep.subr.mxu0 0.0
    %2955 = vmatpush1.msra.mxu0 0.0
    %2956 = vmatprep.mubr.f32.mxu0 0.0
    %2957 = vmatmul.mubr.f32.gmra.mrb[0].mxu0 %v2876
    %v2958 = vpop.f32.mrb[0].mxu0
    %v2959 = vadd.f32 0.0, %v2958
    %v2960 = vpop.f32.mrb[0].mxu0
    %2961 = vmatprep.mubr.f32.mxu0 0.0
    %2962 = vmatmul.mubr.f32.gmra.mrb[0].mxu0 %v2878
    %v2963 = vpop.f32.mrb[0].mxu0
    %v2964 = vadd.f32 0.0, %v2963
    %v2965 = vpop.f32.mrb[0].mxu0
    %2966 = vmatprep.mubr.f32.mxu0 0.0
    %2967 = vmatmul.mubr.f32.gmra.mrb[0].mxu0 %v2880
    %v2968 = vpop.f32.mrb[0].mxu0
    %v2969 = vadd.f32 0.0, %v2968
    %v2970 = vpop.f32.mrb[0].mxu0
    %2971 = vmatprep.mubr.f32.mxu0 0.0
    %2972 = vmatmul.mubr.f32.gmra.mrb[0].mxu0 %v2882
    %v2973 = vpop.f32.mrb[0].mxu0
    %v2974 = vadd.f32 0.0, %v2973
    %v2975 = vpop.f32.mrb[0].mxu0
    %2976 = vmatprep.mubr.f32.mxu0 0.0
    %2977 = vmatmul.mubr.f32.gmra.mrb[0].mxu0 %v2884
    %v2978 = vpop.f32.mrb[0].mxu0
    %v2979 = vadd.f32 0.0, %v2978
    %v2980 = vpop.f32.mrb[0].mxu0
    %2981 = vmatprep.mubr.f32.mxu0 0.0
    %2982 = vmatmul.mubr.f32.gmra.mrb[0].mxu0 %v2886
    %v2983 = vpop.f32.mrb[0].mxu0
    %v2984 = vadd.f32 0.0, %v2983
    %v2985 = vpop.f32.mrb[0].mxu0
    %2986 = vmatprep.mubr.f32.mxu0 0.0
    %2987 = vmatmul.mubr.f32.gmra.mrb[0].mxu0 %v2888
    %v2988 = vpop.f32.mrb[0].mxu0
    %v2989 = vadd.f32 0.0, %v2988
    %v2990 = vpop.f32.mrb[0].mxu0
    %2991 = vmatprep.mubr.f32.mxu0 0.0
    %2992 = vmatmul.mubr.f32.gmra.mrb[0].mxu0 %v2890
    %v2993 = vpop.f32.mrb[0].mxu0
    %v2994 = vadd.f32 0.0, %v2993
    %v2995 = vpop.f32.mrb[0].mxu0
    %2996 = vdwg.mxu0
    %v2997 = vsel %vm2811, %v2820, 0
    %v2999 = vsel %vm2811, %v2821, 0
    %v3001 = vsel %vm2811, %v2822, 0
    %v3003 = vsel %vm2811, %v2823, 0
    %v3005 = vsel %vm2811, %v2824, 0
    %v3007 = vsel %vm2811, %v2825, 0
    %v3009 = vsel %vm2811, %v2826, 0
    %v3011 = vsel %vm2811, %v2827, 0
    %3013 = vmatprep.subr.mxu0 0.0
    %3014 = vmatpush1.msra.mxu0 %v2828
    %3015 = vmatprep.subr.mxu0 0.0
    %3016 = vmatpush1.msra.mxu0 %v2829
    %3017 = vmatprep.subr.mxu0 0.0
    %3018 = vmatpush1.msra.mxu0 %v2830
    %3019 = vmatprep.subr.mxu0 0.0
    %3020 = vmatpush1.msra.mxu0 %v2831
    %3021 = vmatprep.subr.mxu0 0.0
    %3022 = vmatpush1.msra.mxu0 %v2832
    %3023 = vmatprep.subr.mxu0 0.0
    %3024 = vmatpush1.msra.mxu0 %v2833
    %3025 = vmatprep.subr.mxu0 0.0
    %3026 = vmatpush1.msra.mxu0 %v2834
    %3027 = vmatprep.subr.mxu0 0.0
    %3028 = vmatpush1.msra.mxu0 %v2835
    %3029 = vmatprep.subr.mxu0 0.0
    %3030 = vmatpush1.msra.mxu0 %v2836
    %3031 = vmatprep.subr.mxu0 0.0
    %3032 = vmatpush1.msra.mxu0 %v2837
    %3033 = vmatprep.subr.mxu0 0.0
    %3034 = vmatpush1.msra.mxu0 %v2838
    %3035 = vmatprep.subr.mxu0 0.0
    %3036 = vmatpush1.msra.mxu0 %v2839
    %3037 = vmatprep.subr.mxu0 0.0
    %3038 = vmatpush1.msra.mxu0 0.0
    %3039 = vmatprep.subr.mxu0 0.0
    %3040 = vmatpush1.msra.mxu0 0.0
    %3041 = vmatprep.subr.mxu0 0.0
    %3042 = vmatpush1.msra.mxu0 0.0
    %3043 = vmatprep.subr.mxu0 0.0
    %3044 = vmatpush1.msra.mxu0 0.0
    %3045 = vmatprep.subr.mxu0 0.0
    %3046 = vmatpush1.msra.mxu0 0.0
    %3047 = vmatprep.subr.mxu0 0.0
    %3048 = vmatpush1.msra.mxu0 0.0
    %3049 = vmatprep.subr.mxu0 0.0
    %3050 = vmatpush1.msra.mxu0 0.0
    %3051 = vmatprep.subr.mxu0 0.0
    %3052 = vmatpush1.msra.mxu0 0.0
    %3053 = vmatprep.subr.mxu0 0.0
    %3054 = vmatpush1.msra.mxu0 0.0
    %3055 = vmatprep.subr.mxu0 0.0
    %3056 = vmatpush1.msra.mxu0 0.0
    %3057 = vmatprep.subr.mxu0 0.0
    %3058 = vmatpush1.msra.mxu0 0.0
    %3059 = vmatprep.subr.mxu0 0.0
    %3060 = vmatpush1.msra.mxu0 0.0
    %3061 = vmatprep.subr.mxu0 0.0
    %3062 = vmatpush1.msra.mxu0 0.0
    %3063 = vmatprep.subr.mxu0 0.0
    %3064 = vmatpush1.msra.mxu0 0.0
    %3065 = vmatprep.subr.mxu0 0.0
    %3066 = vmatpush1.msra.mxu0 0.0
    %3067 = vmatprep.subr.mxu0 0.0
    %3068 = vmatpush1.msra.mxu0 0.0
    %3069 = vmatprep.subr.mxu0 0.0
    %3070 = vmatpush1.msra.mxu0 0.0
    %3071 = vmatprep.subr.mxu0 0.0
    %3072 = vmatpush1.msra.mxu0 0.0
    %3073 = vmatprep.subr.mxu0 0.0
    %3074 = vmatpush1.msra.mxu0 0.0
    %3075 = vmatprep.subr.mxu0 0.0
    %3076 = vmatpush1.msra.mxu0 0.0
    %3077 = vmatprep.mubr.f32.mxu0 0.0
    %3078 = vmatmul.mubr.f32.gmra.mrb[0].mxu0 %v2997
    %v3079 = vpop.f32.mrb[0].mxu0
    %v3080 = vadd.f32 %v2959, %v3079
    %v3081 = vpop.f32.mrb[0].mxu0
    %3082 = vmatprep.mubr.f32.mxu0 0.0
    %3083 = vmatmul.mubr.f32.gmra.mrb[0].mxu0 %v2999
    %v3084 = vpop.f32.mrb[0].mxu0
    %v3085 = vadd.f32 %v2964, %v3084
    %v3086 = vpop.f32.mrb[0].mxu0
    %3087 = vmatprep.mubr.f32.mxu0 0.0
    %3088 = vmatmul.mubr.f32.gmra.mrb[0].mxu0 %v3001
    %v3089 = vpop.f32.mrb[0].mxu0
    %v3090 = vadd.f32 %v2969, %v3089
    %v3091 = vpop.f32.mrb[0].mxu0
    %3092 = vmatprep.mubr.f32.mxu0 0.0
    %3093 = vmatmul.mubr.f32.gmra.mrb[0].mxu0 %v3003
    %v3094 = vpop.f32.mrb[0].mxu0
    %v3095 = vadd.f32 %v2974, %v3094
    %v3096 = vpop.f32.mrb[0].mxu0
    %3097 = vmatprep.mubr.f32.mxu0 0.0
    %3098 = vmatmul.mubr.f32.gmra.mrb[0].mxu0 %v3005
    %v3099 = vpop.f32.mrb[0].mxu0
    %v3100 = vadd.f32 %v2979, %v3099
    %v3101 = vpop.f32.mrb[0].mxu0
    %3102 = vmatprep.mubr.f32.mxu0 0.0
    %3103 = vmatmul.mubr.f32.gmra.mrb[0].mxu0 %v3007
    %v3104 = vpop.f32.mrb[0].mxu0
    %v3105 = vadd.f32 %v2984, %v3104
    %v3106 = vpop.f32.mrb[0].mxu0
    %3107 = vmatprep.mubr.f32.mxu0 0.0
    %3108 = vmatmul.mubr.f32.gmra.mrb[0].mxu0 %v3009
    %v3109 = vpop.f32.mrb[0].mxu0
    %v3110 = vadd.f32 %v2989, %v3109
    %v3111 = vpop.f32.mrb[0].mxu0
    %3112 = vmatprep.mubr.f32.mxu0 0.0
    %3113 = vmatmul.mubr.f32.gmra.mrb[0].mxu0 %v3011
    %v3114 = vpop.f32.mrb[0].mxu0
    %v3115 = vadd.f32 %v2994, %v3114
    %v3116 = vpop.f32.mrb[0].mxu0
    %3117 = vdwg.mxu0
    %s3118 = scalar_lea.vmem [#allocation20], 192
    %v3119 = vld [vmem:[%s3118] sm:$0xff]
    %v3120 = vld [vmem:[%s3118 + $0x8] sm:$0xff]
    %v3121 = vld [vmem:[%s3118 + $0x10] sm:$0xff]
    %v3122 = vld [vmem:[%s3118 + $0x18] sm:$0xff]
    %v3123 = vld [vmem:[%s3118 + $0x20] sm:$0xff]
    %v3124 = vld [vmem:[%s3118 + $0x28] sm:$0xff]
    %v3125 = vld [vmem:[%s3118 + $0x30] sm:$0xff]
    %v3126 = vld [vmem:[%s3118 + $0x38] sm:$0xff]
    %v3127 = vld [vmem:[%s3118 + $0x40] sm:$0xff]
    %v3128 = vld [vmem:[%s3118 + $0x48] sm:$0xff]
    %v3129 = vld [vmem:[%s3118 + $0x50] sm:$0xff]
    %v3130 = vld [vmem:[%s3118 + $0x58] sm:$0xff]
    %v3131 = vrot.slane %v2820, 2
    %v3132 = vrot.slane %v2821, 2
    %v3133 = vsel %vm623, %v3131, %v3132
    %v3134 = vrot.slane %v2822, 2
    %v3135 = vsel %vm623, %v3132, %v3134
    %v3136 = vrot.slane %v2823, 2
    %v3137 = vsel %vm623, %v3134, %v3136
    %v3138 = vrot.slane %v2824, 2
    %v3139 = vsel %vm623, %v3136, %v3138
    %v3140 = vrot.slane %v2825, 2
    %v3141 = vsel %vm623, %v3138, %v3140
    %v3142 = vrot.slane %v2826, 2
    %v3143 = vsel %vm623, %v3140, %v3142
    %v3144 = vrot.slane %v2827, 2
    %v3145 = vsel %vm623, %v3142, %v3144
    %v3146 = vsel %vm2811, %v3133, 0
    %v3148 = vsel %vm2811, %v3135, 0
    %v3150 = vsel %vm2811, %v3137, 0
    %v3152 = vsel %vm2811, %v3139, 0
    %v3154 = vsel %vm2811, %v3141, 0
    %v3156 = vsel %vm2811, %v3143, 0
    %v3158 = vsel %vm2811, %v3145, 0
    %v3160 = vsel %vm2811, %v3144, 0
    %3162 = vmatprep.subr.mxu0 0.0
    %3163 = vmatpush1.msra.mxu0 %v3119
    %3164 = vmatprep.subr.mxu0 0.0
    %3165 = vmatpush1.msra.mxu0 %v3120
    %3166 = vmatprep.subr.mxu0 0.0
    %3167 = vmatpush1.msra.mxu0 %v3121
    %3168 = vmatprep.subr.mxu0 0.0
    %3169 = vmatpush1.msra.mxu0 %v3122
    %3170 = vmatprep.subr.mxu0 0.0
    %3171 = vmatpush1.msra.mxu0 %v3123
    %3172 = vmatprep.subr.mxu0 0.0
    %3173 = vmatpush1.msra.mxu0 %v3124
    %3174 = vmatprep.subr.mxu0 0.0
    %3175 = vmatpush1.msra.mxu0 %v3125
    %3176 = vmatprep.subr.mxu0 0.0
    %3177 = vmatpush1.msra.mxu0 %v3126
    %3178 = vmatprep.subr.mxu0 0.0
    %3179 = vmatpush1.msra.mxu0 %v3127
    %3180 = vmatprep.subr.mxu0 0.0
    %3181 = vmatpush1.msra.mxu0 %v3128
    %3182 = vmatprep.subr.mxu0 0.0
    %3183 = vmatpush1.msra.mxu0 %v3129
    %3184 = vmatprep.subr.mxu0 0.0
    %3185 = vmatpush1.msra.mxu0 %v3130
    %3186 = vmatprep.subr.mxu0 0.0
    %3187 = vmatpush1.msra.mxu0 0.0
    %3188 = vmatprep.subr.mxu0 0.0
    %3189 = vmatpush1.msra.mxu0 0.0
    %3190 = vmatprep.subr.mxu0 0.0
    %3191 = vmatpush1.msra.mxu0 0.0
    %3192 = vmatprep.subr.mxu0 0.0
    %3193 = vmatpush1.msra.mxu0 0.0
    %3194 = vmatprep.subr.mxu0 0.0
    %3195 = vmatpush1.msra.mxu0 0.0
    %3196 = vmatprep.subr.mxu0 0.0
    %3197 = vmatpush1.msra.mxu0 0.0
    %3198 = vmatprep.subr.mxu0 0.0
    %3199 = vmatpush1.msra.mxu0 0.0
    %3200 = vmatprep.subr.mxu0 0.0
    %3201 = vmatpush1.msra.mxu0 0.0
    %3202 = vmatprep.subr.mxu0 0.0
    %3203 = vmatpush1.msra.mxu0 0.0
    %3204 = vmatprep.subr.mxu0 0.0
    %3205 = vmatpush1.msra.mxu0 0.0
    %3206 = vmatprep.subr.mxu0 0.0
    %3207 = vmatpush1.msra.mxu0 0.0
    %3208 = vmatprep.subr.mxu0 0.0
    %3209 = vmatpush1.msra.mxu0 0.0
    %3210 = vmatprep.subr.mxu0 0.0
    %3211 = vmatpush1.msra.mxu0 0.0
    %3212 = vmatprep.subr.mxu0 0.0
    %3213 = vmatpush1.msra.mxu0 0.0
    %3214 = vmatprep.subr.mxu0 0.0
    %3215 = vmatpush1.msra.mxu0 0.0
    %3216 = vmatprep.subr.mxu0 0.0
    %3217 = vmatpush1.msra.mxu0 0.0
    %3218 = vmatprep.subr.mxu0 0.0
    %3219 = vmatpush1.msra.mxu0 0.0
    %3220 = vmatprep.subr.mxu0 0.0
    %3221 = vmatpush1.msra.mxu0 0.0
    %3222 = vmatprep.subr.mxu0 0.0
    %3223 = vmatpush1.msra.mxu0 0.0
    %3224 = vmatprep.subr.mxu0 0.0
    %3225 = vmatpush1.msra.mxu0 0.0
    %3226 = vmatprep.mubr.f32.mxu0 0.0
    %3227 = vmatmul.mubr.f32.gmra.mrb[0].mxu0 %v3146
    %v3228 = vpop.f32.mrb[0].mxu0
    %v3229 = vadd.f32 0.0, %v3228
    %v3230 = vpop.f32.mrb[0].mxu0
    %3231 = vmatprep.mubr.f32.mxu0 0.0
    %3232 = vmatmul.mubr.f32.gmra.mrb[0].mxu0 %v3148
    %v3233 = vpop.f32.mrb[0].mxu0
    %v3234 = vadd.f32 0.0, %v3233
    %v3235 = vpop.f32.mrb[0].mxu0
    %3236 = vmatprep.mubr.f32.mxu0 0.0
    %3237 = vmatmul.mubr.f32.gmra.mrb[0].mxu0 %v3150
    %v3238 = vpop.f32.mrb[0].mxu0
    %v3239 = vadd.f32 0.0, %v3238
    %v3240 = vpop.f32.mrb[0].mxu0
    %3241 = vmatprep.mubr.f32.mxu0 0.0
    %3242 = vmatmul.mubr.f32.gmra.mrb[0].mxu0 %v3152
    %v3243 = vpop.f32.mrb[0].mxu0
    %v3244 = vadd.f32 0.0, %v3243
    %v3245 = vpop.f32.mrb[0].mxu0
    %3246 = vmatprep.mubr.f32.mxu0 0.0
    %3247 = vmatmul.mubr.f32.gmra.mrb[0].mxu0 %v3154
    %v3248 = vpop.f32.mrb[0].mxu0
    %v3249 = vadd.f32 0.0, %v3248
    %v3250 = vpop.f32.mrb[0].mxu0
    %3251 = vmatprep.mubr.f32.mxu0 0.0
    %3252 = vmatmul.mubr.f32.gmra.mrb[0].mxu0 %v3156
    %v3253 = vpop.f32.mrb[0].mxu0
    %v3254 = vadd.f32 0.0, %v3253
    %v3255 = vpop.f32.mrb[0].mxu0
    %3256 = vmatprep.mubr.f32.mxu0 0.0
    %3257 = vmatmul.mubr.f32.gmra.mrb[0].mxu0 %v3158
    %v3258 = vpop.f32.mrb[0].mxu0
    %v3259 = vadd.f32 0.0, %v3258
    %v3260 = vpop.f32.mrb[0].mxu0
    %3261 = vmatprep.mubr.f32.mxu0 0.0
    %3262 = vmatmul.mubr.f32.gmra.mrb[0].mxu0 %v3160
    %v3263 = vpop.f32.mrb[0].mxu0
    %v3264 = vadd.f32 0.0, %v3263
    %v3265 = vpop.f32.mrb[0].mxu0
    %3266 = vdwg.mxu0
    %v3267 = vadd.f32 %v3080, %v3229
    %v3268 = vadd.f32 %v3085, %v3234
    %v3269 = vadd.f32 %v3090, %v3239
    %v3270 = vadd.f32 %v3095, %v3244
    %v3271 = vadd.f32 %v3100, %v3249
    %v3272 = vadd.f32 %v3105, %v3254
    %v3273 = vadd.f32 %v3110, %v3259
    %v3274 = vadd.f32 %v3115, %v3264
    %v3275 = vld [vmem:[#allocation21] sm:$0x1]
    %v3277 = vlaneseq
    %v3278 = vshrl.u32 %v3277, 7
    %v3279 = vsub.s32 0, %v3278
    %v3280 = vrot.slane %v3275, %v3279
    %v3282 = vadd.f32 %v3267, %v3280
    %v3283 = vadd.f32 %v3268, %v3280
    %v3284 = vadd.f32 %v3269, %v3280
    %v3285 = vadd.f32 %v3270, %v3280
    %v3286 = vadd.f32 %v3271, %v3280
    %v3287 = vadd.f32 %v3272, %v3280
    %v3288 = vadd.f32 %v3273, %v3280
    %v3289 = vadd.f32 %v3274, %v3280
    %v3290 = vmax.f32 %v3282, 0.0
    %v3291 = vmax.f32 %v3283, 0.0
    %v3292 = vmax.f32 %v3284, 0.0
    %v3293 = vmax.f32 %v3285, 0.0
    %v3294 = vmax.f32 %v3286, 0.0
    %v3295 = vmax.f32 %v3287, 0.0
    %v3296 = vmax.f32 %v3288, 0.0
    %v3297 = vmax.f32 %v3289, 0.0
    %v3306 = vrot.slane %v3290, 7
    %v3307 = vrot.slane %v3291, 7
    %v3308 = vsel %vm302, %v3306, %v3307
    %v3309 = vrot.slane %v3292, 7
    %v3310 = vsel %vm302, %v3307, %v3309
    %v3311 = vrot.slane %v3293, 7
    %v3312 = vsel %vm302, %v3309, %v3311
    %v3313 = vrot.slane %v3294, 7
    %v3314 = vsel %vm302, %v3311, %v3313
    %v3315 = vrot.slane %v3295, 7
    %v3316 = vsel %vm302, %v3313, %v3315
    %v3317 = vrot.slane %v3296, 7
    %v3318 = vsel %vm302, %v3315, %v3317
    %v3319 = vrot.slane %v3297, 7
    %v3320 = vsel %vm302, %v3317, %v3319
    %3329 = vst.msk [vmem:[#allocation2] sm:$0xfe] %vm2809, %v3306
    %3330 = vst.msk [vmem:[#allocation2 + $0x10] sm:$0xff] %vm2811, %v3308
    %3331 = vst.msk [vmem:[#allocation2 + $0x20] sm:$0xff] %vm2811, %v3310
    %3332 = vst.msk [vmem:[#allocation2 + $0x30] sm:$0xff] %vm2811, %v3312
    %3333 = vst.msk [vmem:[#allocation2 + $0x40] sm:$0xff] %vm2811, %v3314
    %3334 = vst.msk [vmem:[#allocation2 + $0x50] sm:$0xff] %vm2811, %v3316
    %3335 = vst.msk [vmem:[#allocation2 + $0x60] sm:$0xff] %vm2811, %v3318
    %3336 = vst.msk [vmem:[#allocation2 + $0x70] sm:$0x1f] %vm2818, %v3320
    %v3337 = vld [vmem:[#allocation2] sm:$0xff]
    %v3338 = vld [vmem:[#allocation2 + $0x10] sm:$0xff]
    %v3339 = vld [vmem:[#allocation2 + $0x20] sm:$0xff]
    %v3340 = vld [vmem:[#allocation2 + $0x30] sm:$0xff]
    %v3341 = vld [vmem:[#allocation2 + $0x40] sm:$0xff]
    %v3342 = vld [vmem:[#allocation2 + $0x50] sm:$0xff]
    %v3343 = vld [vmem:[#allocation2 + $0x60] sm:$0xff]
    %v3344 = vld [vmem:[#allocation2 + $0x70] sm:$0x3f]
    %v3345 = vld [vmem:[%s13] sm:$0xff]
    %v3346 = vld [vmem:[%s13 + $0x8] sm:$0xff]
    %v3347 = vld [vmem:[%s13 + $0x10] sm:$0xff]
    %v3348 = vld [vmem:[%s13 + $0x18] sm:$0xff]
    %v3349 = vld [vmem:[%s13 + $0x20] sm:$0xff]
    %v3350 = vld [vmem:[%s13 + $0x28] sm:$0xff]
    %v3351 = vld [vmem:[%s13 + $0x30] sm:$0xff]
    %v3352 = vld [vmem:[%s13 + $0x38] sm:$0xff]
    %v3353 = vld [vmem:[%s13 + $0x40] sm:$0xff]
    %v3354 = vld [vmem:[%s13 + $0x48] sm:$0xff]
    %v3355 = vld [vmem:[%s13 + $0x50] sm:$0xff]
    %v3356 = vld [vmem:[%s13 + $0x58] sm:$0xff]
    %v3357 = vld [vmem:[%s13 + $0x60] sm:$0xff]
    %v3358 = vld [vmem:[%s13 + $0x68] sm:$0xff]
    %v3359 = vld [vmem:[%s13 + $0x70] sm:$0xff]
    %v3360 = vld [vmem:[%s13 + $0x78] sm:$0xff]
    %v3361 = vld [vmem:[%s13 + $0x80] sm:$0xff]
    %v3362 = vld [vmem:[%s13 + $0x88] sm:$0xff]
    %v3363 = vld [vmem:[%s13 + $0x90] sm:$0xff]
    %v3364 = vld [vmem:[%s13 + $0x98] sm:$0xff]
    %v3365 = vld [vmem:[%s13 + $0xa0] sm:$0xff]
    %v3366 = vld [vmem:[%s13 + $0xa8] sm:$0xff]
    %v3367 = vld [vmem:[%s13 + $0xb0] sm:$0xff]
    %v3368 = vld [vmem:[%s13 + $0xb8] sm:$0xff]
    %s3369 = scalar_lea.vmem %s13, 192
    %v3370 = vld [vmem:[%s3369] sm:$0xff]
    %v3371 = vld [vmem:[%s3369 + $0x8] sm:$0xff]
    %v3372 = vld [vmem:[%s3369 + $0x10] sm:$0xff]
    %v3373 = vld [vmem:[%s3369 + $0x18] sm:$0xff]
    %v3374 = vld [vmem:[%s3369 + $0x20] sm:$0xff]
    %v3375 = vld [vmem:[%s3369 + $0x28] sm:$0xff]
    %v3376 = vld [vmem:[%s3369 + $0x30] sm:$0xff]
    %v3377 = vld [vmem:[%s3369 + $0x38] sm:$0xff]
    %v3378 = vld [vmem:[%s3369 + $0x40] sm:$0xff]
    %v3379 = vld [vmem:[%s3369 + $0x48] sm:$0xff]
    %v3380 = vld [vmem:[%s3369 + $0x50] sm:$0xff]
    %v3381 = vld [vmem:[%s3369 + $0x58] sm:$0xff]
    %v3382 = vld [vmem:[%s3369 + $0x60] sm:$0xff]
    %v3383 = vld [vmem:[%s3369 + $0x68] sm:$0xff]
    %v3384 = vld [vmem:[%s3369 + $0x70] sm:$0xff]
    %v3385 = vld [vmem:[%s3369 + $0x78] sm:$0xff]
    %v3386 = vld [vmem:[%s3369 + $0x80] sm:$0xff]
    %v3387 = vld [vmem:[%s3369 + $0x88] sm:$0xff]
    %v3388 = vld [vmem:[%s3369 + $0x90] sm:$0xff]
    %v3389 = vld [vmem:[%s3369 + $0x98] sm:$0xff]
    %v3390 = vld [vmem:[%s3369 + $0xa0] sm:$0xff]
    %v3391 = vld [vmem:[%s3369 + $0xa8] sm:$0xff]
    %v3392 = vld [vmem:[%s3369 + $0xb0] sm:$0xff]
    %v3393 = vld [vmem:[%s3369 + $0xb8] sm:$0xff]
    %v3402 = vrot.slane %v3337, 1
    %v3403 = vrot.slane %v3338, 1
    %v3404 = vsel %vm356, %v3402, %v3403
    %v3405 = vrot.slane %v3339, 1
    %v3406 = vsel %vm356, %v3403, %v3405
    %v3407 = vrot.slane %v3340, 1
    %v3408 = vsel %vm356, %v3405, %v3407
    %v3409 = vrot.slane %v3341, 1
    %v3410 = vsel %vm356, %v3407, %v3409
    %v3411 = vrot.slane %v3342, 1
    %v3412 = vsel %vm356, %v3409, %v3411
    %v3413 = vrot.slane %v3343, 1
    %v3414 = vsel %vm356, %v3411, %v3413
    %v3415 = vrot.slane %v3344, 1
    %v3416 = vsel %vm356, %v3413, %v3415
    %v3417 = vsel %vm2811, %v3404, 0
    %v3419 = vsel %vm2811, %v3406, 0
    %v3421 = vsel %vm2811, %v3408, 0
    %v3423 = vsel %vm2811, %v3410, 0
    %v3425 = vsel %vm2811, %v3412, 0
    %v3427 = vsel %vm2811, %v3414, 0
    %v3429 = vsel %vm2811, %v3416, 0
    %v3431 = vsel %vm2811, %v3415, 0
    %3433 = vmatprep.subr.mxu0 %v3371
    %3434 = vmatpush1.msra.mxu0 %v3370
    %3435 = vmatprep.subr.mxu0 %v3373
    %3436 = vmatpush1.msra.mxu0 %v3372
    %3437 = vmatprep.subr.mxu0 %v3375
    %3438 = vmatpush1.msra.mxu0 %v3374
    %3439 = vmatprep.subr.mxu0 %v3377
    %3440 = vmatpush1.msra.mxu0 %v3376
    %3441 = vmatprep.subr.mxu0 %v3379
    %3442 = vmatpush1.msra.mxu0 %v3378
    %3443 = vmatprep.subr.mxu0 %v3381
    %3444 = vmatpush1.msra.mxu0 %v3380
    %3445 = vmatprep.subr.mxu0 %v3383
    %3446 = vmatpush1.msra.mxu0 %v3382
    %3447 = vmatprep.subr.mxu0 %v3385
    %3448 = vmatpush1.msra.mxu0 %v3384
    %3449 = vmatprep.subr.mxu0 %v3387
    %3450 = vmatpush1.msra.mxu0 %v3386
    %3451 = vmatprep.subr.mxu0 %v3389
    %3452 = vmatpush1.msra.mxu0 %v3388
    %3453 = vmatprep.subr.mxu0 %v3391
    %3454 = vmatpush1.msra.mxu0 %v3390
    %3455 = vmatprep.subr.mxu0 %v3393
    %3456 = vmatpush1.msra.mxu0 %v3392
    %3457 = vmatprep.subr.mxu0 0.0
    %3458 = vmatpush1.msra.mxu0 0.0
    %3459 = vmatprep.subr.mxu0 0.0
    %3460 = vmatpush1.msra.mxu0 0.0
    %3461 = vmatprep.subr.mxu0 0.0
    %3462 = vmatpush1.msra.mxu0 0.0
    %3463 = vmatprep.subr.mxu0 0.0
    %3464 = vmatpush1.msra.mxu0 0.0
    %3465 = vmatprep.subr.mxu0 0.0
    %3466 = vmatpush1.msra.mxu0 0.0
    %3467 = vmatprep.subr.mxu0 0.0
    %3468 = vmatpush1.msra.mxu0 0.0
    %3469 = vmatprep.subr.mxu0 0.0
    %3470 = vmatpush1.msra.mxu0 0.0
    %3471 = vmatprep.subr.mxu0 0.0
    %3472 = vmatpush1.msra.mxu0 0.0
    %3473 = vmatprep.subr.mxu0 0.0
    %3474 = vmatpush1.msra.mxu0 0.0
    %3475 = vmatprep.subr.mxu0 0.0
    %3476 = vmatpush1.msra.mxu0 0.0
    %3477 = vmatprep.subr.mxu0 0.0
    %3478 = vmatpush1.msra.mxu0 0.0
    %3479 = vmatprep.subr.mxu0 0.0
    %3480 = vmatpush1.msra.mxu0 0.0
    %3481 = vmatprep.subr.mxu0 0.0
    %3482 = vmatpush1.msra.mxu0 0.0
    %3483 = vmatprep.subr.mxu0 0.0
    %3484 = vmatpush1.msra.mxu0 0.0
    %3485 = vmatprep.subr.mxu0 0.0
    %3486 = vmatpush1.msra.mxu0 0.0
    %3487 = vmatprep.subr.mxu0 0.0
    %3488 = vmatpush1.msra.mxu0 0.0
    %3489 = vmatprep.subr.mxu0 0.0
    %3490 = vmatpush1.msra.mxu0 0.0
    %3491 = vmatprep.subr.mxu0 0.0
    %3492 = vmatpush1.msra.mxu0 0.0
    %3493 = vmatprep.subr.mxu0 0.0
    %3494 = vmatpush1.msra.mxu0 0.0
    %3495 = vmatprep.subr.mxu0 0.0
    %3496 = vmatpush1.msra.mxu0 0.0
    %3497 = vmatprep.mubr.f32.mxu0 0.0
    %3498 = vmatmul.mubr.f32.gmra.mrb[0].mxu0 %v3417
    %v3499 = vpop.f32.mrb[0].mxu0
    %v3500 = vadd.f32 0.0, %v3499
    %v3501 = vpop.f32.mrb[0].mxu0
    %v3502 = vadd.f32 0.0, %v3501
    %3503 = vmatprep.mubr.f32.mxu0 0.0
    %3504 = vmatmul.mubr.f32.gmra.mrb[0].mxu0 %v3419
    %v3505 = vpop.f32.mrb[0].mxu0
    %v3506 = vadd.f32 0.0, %v3505
    %v3507 = vpop.f32.mrb[0].mxu0
    %v3508 = vadd.f32 0.0, %v3507
    %3509 = vmatprep.mubr.f32.mxu0 0.0
    %3510 = vmatmul.mubr.f32.gmra.mrb[0].mxu0 %v3421
    %v3511 = vpop.f32.mrb[0].mxu0
    %v3512 = vadd.f32 0.0, %v3511
    %v3513 = vpop.f32.mrb[0].mxu0
    %v3514 = vadd.f32 0.0, %v3513
    %3515 = vmatprep.mubr.f32.mxu0 0.0
    %3516 = vmatmul.mubr.f32.gmra.mrb[0].mxu0 %v3423
    %v3517 = vpop.f32.mrb[0].mxu0
    %v3518 = vadd.f32 0.0, %v3517
    %v3519 = vpop.f32.mrb[0].mxu0
    %v3520 = vadd.f32 0.0, %v3519
    %3521 = vmatprep.mubr.f32.mxu0 0.0
    %3522 = vmatmul.mubr.f32.gmra.mrb[0].mxu0 %v3425
    %v3523 = vpop.f32.mrb[0].mxu0
    %v3524 = vadd.f32 0.0, %v3523
    %v3525 = vpop.f32.mrb[0].mxu0
    %v3526 = vadd.f32 0.0, %v3525
    %3527 = vmatprep.mubr.f32.mxu0 0.0
    %3528 = vmatmul.mubr.f32.gmra.mrb[0].mxu0 %v3427
    %v3529 = vpop.f32.mrb[0].mxu0
    %v3530 = vadd.f32 0.0, %v3529
    %v3531 = vpop.f32.mrb[0].mxu0
    %v3532 = vadd.f32 0.0, %v3531
    %3533 = vmatprep.mubr.f32.mxu0 0.0
    %3534 = vmatmul.mubr.f32.gmra.mrb[0].mxu0 %v3429
    %v3535 = vpop.f32.mrb[0].mxu0
    %v3536 = vadd.f32 0.0, %v3535
    %v3537 = vpop.f32.mrb[0].mxu0
    %v3538 = vadd.f32 0.0, %v3537
    %3539 = vmatprep.mubr.f32.mxu0 0.0
    %3540 = vmatmul.mubr.f32.gmra.mrb[0].mxu0 %v3431
    %v3541 = vpop.f32.mrb[0].mxu0
    %v3542 = vadd.f32 0.0, %v3541
    %v3543 = vpop.f32.mrb[0].mxu0
    %v3544 = vadd.f32 0.0, %v3543
    %3545 = vdwg.mxu0
    %v3546 = vsel %vm2811, %v3337, 0
    %v3548 = vsel %vm2811, %v3338, 0
    %v3550 = vsel %vm2811, %v3339, 0
    %v3552 = vsel %vm2811, %v3340, 0
    %v3554 = vsel %vm2811, %v3341, 0
    %v3556 = vsel %vm2811, %v3342, 0
    %v3558 = vsel %vm2811, %v3343, 0
    %v3560 = vsel %vm2811, %v3344, 0
    %3562 = vmatprep.subr.mxu0 %v3346
    %3563 = vmatpush1.msra.mxu0 %v3345
    %3564 = vmatprep.subr.mxu0 %v3348
    %3565 = vmatpush1.msra.mxu0 %v3347
    %3566 = vmatprep.subr.mxu0 %v3350
    %3567 = vmatpush1.msra.mxu0 %v3349
    %3568 = vmatprep.subr.mxu0 %v3352
    %3569 = vmatpush1.msra.mxu0 %v3351
    %3570 = vmatprep.subr.mxu0 %v3354
    %3571 = vmatpush1.msra.mxu0 %v3353
    %3572 = vmatprep.subr.mxu0 %v3356
    %3573 = vmatpush1.msra.mxu0 %v3355
    %3574 = vmatprep.subr.mxu0 %v3358
    %3575 = vmatpush1.msra.mxu0 %v3357
    %3576 = vmatprep.subr.mxu0 %v3360
    %3577 = vmatpush1.msra.mxu0 %v3359
    %3578 = vmatprep.subr.mxu0 %v3362
    %3579 = vmatpush1.msra.mxu0 %v3361
    %3580 = vmatprep.subr.mxu0 %v3364
    %3581 = vmatpush1.msra.mxu0 %v3363
    %3582 = vmatprep.subr.mxu0 %v3366
    %3583 = vmatpush1.msra.mxu0 %v3365
    %3584 = vmatprep.subr.mxu0 %v3368
    %3585 = vmatpush1.msra.mxu0 %v3367
    %3586 = vmatprep.subr.mxu0 0.0
    %3587 = vmatpush1.msra.mxu0 0.0
    %3588 = vmatprep.subr.mxu0 0.0
    %3589 = vmatpush1.msra.mxu0 0.0
    %3590 = vmatprep.subr.mxu0 0.0
    %3591 = vmatpush1.msra.mxu0 0.0
    %3592 = vmatprep.subr.mxu0 0.0
    %3593 = vmatpush1.msra.mxu0 0.0
    %3594 = vmatprep.subr.mxu0 0.0
    %3595 = vmatpush1.msra.mxu0 0.0
    %3596 = vmatprep.subr.mxu0 0.0
    %3597 = vmatpush1.msra.mxu0 0.0
    %3598 = vmatprep.subr.mxu0 0.0
    %3599 = vmatpush1.msra.mxu0 0.0
    %3600 = vmatprep.subr.mxu0 0.0
    %3601 = vmatpush1.msra.mxu0 0.0
    %3602 = vmatprep.subr.mxu0 0.0
    %3603 = vmatpush1.msra.mxu0 0.0
    %3604 = vmatprep.subr.mxu0 0.0
    %3605 = vmatpush1.msra.mxu0 0.0
    %3606 = vmatprep.subr.mxu0 0.0
    %3607 = vmatpush1.msra.mxu0 0.0
    %3608 = vmatprep.subr.mxu0 0.0
    %3609 = vmatpush1.msra.mxu0 0.0
    %3610 = vmatprep.subr.mxu0 0.0
    %3611 = vmatpush1.msra.mxu0 0.0
    %3612 = vmatprep.subr.mxu0 0.0
    %3613 = vmatpush1.msra.mxu0 0.0
    %3614 = vmatprep.subr.mxu0 0.0
    %3615 = vmatpush1.msra.mxu0 0.0
    %3616 = vmatprep.subr.mxu0 0.0
    %3617 = vmatpush1.msra.mxu0 0.0
    %3618 = vmatprep.subr.mxu0 0.0
    %3619 = vmatpush1.msra.mxu0 0.0
    %3620 = vmatprep.subr.mxu0 0.0
    %3621 = vmatpush1.msra.mxu0 0.0
    %3622 = vmatprep.subr.mxu0 0.0
    %3623 = vmatpush1.msra.mxu0 0.0
    %3624 = vmatprep.subr.mxu0 0.0
    %3625 = vmatpush1.msra.mxu0 0.0
    %3626 = vmatprep.mubr.f32.mxu0 0.0
    %3627 = vmatmul.mubr.f32.gmra.mrb[0].mxu0 %v3546
    %v3628 = vpop.f32.mrb[0].mxu0
    %v3629 = vadd.f32 %v3500, %v3628
    %v3630 = vpop.f32.mrb[0].mxu0
    %v3631 = vadd.f32 %v3502, %v3630
    %3632 = vmatprep.mubr.f32.mxu0 0.0
    %3633 = vmatmul.mubr.f32.gmra.mrb[0].mxu0 %v3548
    %v3634 = vpop.f32.mrb[0].mxu0
    %v3635 = vadd.f32 %v3506, %v3634
    %v3636 = vpop.f32.mrb[0].mxu0
    %v3637 = vadd.f32 %v3508, %v3636
    %3638 = vmatprep.mubr.f32.mxu0 0.0
    %3639 = vmatmul.mubr.f32.gmra.mrb[0].mxu0 %v3550
    %v3640 = vpop.f32.mrb[0].mxu0
    %v3641 = vadd.f32 %v3512, %v3640
    %v3642 = vpop.f32.mrb[0].mxu0
    %v3643 = vadd.f32 %v3514, %v3642
    %3644 = vmatprep.mubr.f32.mxu0 0.0
    %3645 = vmatmul.mubr.f32.gmra.mrb[0].mxu0 %v3552
    %v3646 = vpop.f32.mrb[0].mxu0
    %v3647 = vadd.f32 %v3518, %v3646
    %v3648 = vpop.f32.mrb[0].mxu0
    %v3649 = vadd.f32 %v3520, %v3648
    %3650 = vmatprep.mubr.f32.mxu0 0.0
    %3651 = vmatmul.mubr.f32.gmra.mrb[0].mxu0 %v3554
    %v3652 = vpop.f32.mrb[0].mxu0
    %v3653 = vadd.f32 %v3524, %v3652
    %v3654 = vpop.f32.mrb[0].mxu0
    %v3655 = vadd.f32 %v3526, %v3654
    %3656 = vmatprep.mubr.f32.mxu0 0.0
    %3657 = vmatmul.mubr.f32.gmra.mrb[0].mxu0 %v3556
    %v3658 = vpop.f32.mrb[0].mxu0
    %v3659 = vadd.f32 %v3530, %v3658
    %v3660 = vpop.f32.mrb[0].mxu0
    %v3661 = vadd.f32 %v3532, %v3660
    %3662 = vmatprep.mubr.f32.mxu0 0.0
    %3663 = vmatmul.mubr.f32.gmra.mrb[0].mxu0 %v3558
    %v3664 = vpop.f32.mrb[0].mxu0
    %v3665 = vadd.f32 %v3536, %v3664
    %v3666 = vpop.f32.mrb[0].mxu0
    %v3667 = vadd.f32 %v3538, %v3666
    %3668 = vmatprep.mubr.f32.mxu0 0.0
    %3669 = vmatmul.mubr.f32.gmra.mrb[0].mxu0 %v3560
    %v3670 = vpop.f32.mrb[0].mxu0
    %v3671 = vadd.f32 %v3542, %v3670
    %v3672 = vpop.f32.mrb[0].mxu0
    %v3673 = vadd.f32 %v3544, %v3672
    %3674 = vdwg.mxu0
    %s3675 = scalar_lea.vmem %s13, 384
    %v3676 = vld [vmem:[%s3675] sm:$0xff]
    %v3677 = vld [vmem:[%s3675 + $0x8] sm:$0xff]
    %v3678 = vld [vmem:[%s3675 + $0x10] sm:$0xff]
    %v3679 = vld [vmem:[%s3675 + $0x18] sm:$0xff]
    %v3680 = vld [vmem:[%s3675 + $0x20] sm:$0xff]
    %v3681 = vld [vmem:[%s3675 + $0x28] sm:$0xff]
    %v3682 = vld [vmem:[%s3675 + $0x30] sm:$0xff]
    %v3683 = vld [vmem:[%s3675 + $0x38] sm:$0xff]
    %v3684 = vld [vmem:[%s3675 + $0x40] sm:$0xff]
    %v3685 = vld [vmem:[%s3675 + $0x48] sm:$0xff]
    %v3686 = vld [vmem:[%s3675 + $0x50] sm:$0xff]
    %v3687 = vld [vmem:[%s3675 + $0x58] sm:$0xff]
    %v3688 = vld [vmem:[%s3675 + $0x60] sm:$0xff]
    %v3689 = vld [vmem:[%s3675 + $0x68] sm:$0xff]
    %v3690 = vld [vmem:[%s3675 + $0x70] sm:$0xff]
    %v3691 = vld [vmem:[%s3675 + $0x78] sm:$0xff]
    %v3692 = vld [vmem:[%s3675 + $0x80] sm:$0xff]
    %v3693 = vld [vmem:[%s3675 + $0x88] sm:$0xff]
    %v3694 = vld [vmem:[%s3675 + $0x90] sm:$0xff]
    %v3695 = vld [vmem:[%s3675 + $0x98] sm:$0xff]
    %v3696 = vld [vmem:[%s3675 + $0xa0] sm:$0xff]
    %v3697 = vld [vmem:[%s3675 + $0xa8] sm:$0xff]
    %v3698 = vld [vmem:[%s3675 + $0xb0] sm:$0xff]
    %v3699 = vld [vmem:[%s3675 + $0xb8] sm:$0xff]
    %v3700 = vrot.slane %v3337, 2
    %v3701 = vrot.slane %v3338, 2
    %v3702 = vsel %vm623, %v3700, %v3701
    %v3703 = vrot.slane %v3339, 2
    %v3704 = vsel %vm623, %v3701, %v3703
    %v3705 = vrot.slane %v3340, 2
    %v3706 = vsel %vm623, %v3703, %v3705
    %v3707 = vrot.slane %v3341, 2
    %v3708 = vsel %vm623, %v3705, %v3707
    %v3709 = vrot.slane %v3342, 2
    %v3710 = vsel %vm623, %v3707, %v3709
    %v3711 = vrot.slane %v3343, 2
    %v3712 = vsel %vm623, %v3709, %v3711
    %v3713 = vrot.slane %v3344, 2
    %v3714 = vsel %vm623, %v3711, %v3713
    %v3715 = vsel %vm2811, %v3702, 0
    %v3717 = vsel %vm2811, %v3704, 0
    %v3719 = vsel %vm2811, %v3706, 0
    %v3721 = vsel %vm2811, %v3708, 0
    %v3723 = vsel %vm2811, %v3710, 0
    %v3725 = vsel %vm2811, %v3712, 0
    %v3727 = vsel %vm2811, %v3714, 0
    %v3729 = vsel %vm2811, %v3713, 0
    %3731 = vmatprep.subr.mxu0 %v3677
    %3732 = vmatpush1.msra.mxu0 %v3676
    %3733 = vmatprep.subr.mxu0 %v3679
    %3734 = vmatpush1.msra.mxu0 %v3678
    %3735 = vmatprep.subr.mxu0 %v3681
    %3736 = vmatpush1.msra.mxu0 %v3680
    %3737 = vmatprep.subr.mxu0 %v3683
    %3738 = vmatpush1.msra.mxu0 %v3682
    %3739 = vmatprep.subr.mxu0 %v3685
    %3740 = vmatpush1.msra.mxu0 %v3684
    %3741 = vmatprep.subr.mxu0 %v3687
    %3742 = vmatpush1.msra.mxu0 %v3686
    %3743 = vmatprep.subr.mxu0 %v3689
    %3744 = vmatpush1.msra.mxu0 %v3688
    %3745 = vmatprep.subr.mxu0 %v3691
    %3746 = vmatpush1.msra.mxu0 %v3690
    %3747 = vmatprep.subr.mxu0 %v3693
    %3748 = vmatpush1.msra.mxu0 %v3692
    %3749 = vmatprep.subr.mxu0 %v3695
    %3750 = vmatpush1.msra.mxu0 %v3694
    %3751 = vmatprep.subr.mxu0 %v3697
    %3752 = vmatpush1.msra.mxu0 %v3696
    %3753 = vmatprep.subr.mxu0 %v3699
    %3754 = vmatpush1.msra.mxu0 %v3698
    %3755 = vmatprep.subr.mxu0 0.0
    %3756 = vmatpush1.msra.mxu0 0.0
    %3757 = vmatprep.subr.mxu0 0.0
    %3758 = vmatpush1.msra.mxu0 0.0
    %3759 = vmatprep.subr.mxu0 0.0
    %3760 = vmatpush1.msra.mxu0 0.0
    %3761 = vmatprep.subr.mxu0 0.0
    %3762 = vmatpush1.msra.mxu0 0.0
    %3763 = vmatprep.subr.mxu0 0.0
    %3764 = vmatpush1.msra.mxu0 0.0
    %3765 = vmatprep.subr.mxu0 0.0
    %3766 = vmatpush1.msra.mxu0 0.0
    %3767 = vmatprep.subr.mxu0 0.0
    %3768 = vmatpush1.msra.mxu0 0.0
    %3769 = vmatprep.subr.mxu0 0.0
    %3770 = vmatpush1.msra.mxu0 0.0
    %3771 = vmatprep.subr.mxu0 0.0
    %3772 = vmatpush1.msra.mxu0 0.0
    %3773 = vmatprep.subr.mxu0 0.0
    %3774 = vmatpush1.msra.mxu0 0.0
    %3775 = vmatprep.subr.mxu0 0.0
    %3776 = vmatpush1.msra.mxu0 0.0
    %3777 = vmatprep.subr.mxu0 0.0
    %3778 = vmatpush1.msra.mxu0 0.0
    %3779 = vmatprep.subr.mxu0 0.0
    %3780 = vmatpush1.msra.mxu0 0.0
    %3781 = vmatprep.subr.mxu0 0.0
    %3782 = vmatpush1.msra.mxu0 0.0
    %3783 = vmatprep.subr.mxu0 0.0
    %3784 = vmatpush1.msra.mxu0 0.0
    %3785 = vmatprep.subr.mxu0 0.0
    %3786 = vmatpush1.msra.mxu0 0.0
    %3787 = vmatprep.subr.mxu0 0.0
    %3788 = vmatpush1.msra.mxu0 0.0
    %3789 = vmatprep.subr.mxu0 0.0
    %3790 = vmatpush1.msra.mxu0 0.0
    %3791 = vmatprep.subr.mxu0 0.0
    %3792 = vmatpush1.msra.mxu0 0.0
    %3793 = vmatprep.subr.mxu0 0.0
    %3794 = vmatpush1.msra.mxu0 0.0
    %3795 = vmatprep.mubr.f32.mxu0 0.0
    %3796 = vmatmul.mubr.f32.gmra.mrb[0].mxu0 %v3715
    %v3797 = vpop.f32.mrb[0].mxu0
    %v3798 = vadd.f32 0.0, %v3797
    %v3799 = vpop.f32.mrb[0].mxu0
    %v3800 = vadd.f32 0.0, %v3799
    %3801 = vmatprep.mubr.f32.mxu0 0.0
    %3802 = vmatmul.mubr.f32.gmra.mrb[0].mxu0 %v3717
    %v3803 = vpop.f32.mrb[0].mxu0
    %v3804 = vadd.f32 0.0, %v3803
    %v3805 = vpop.f32.mrb[0].mxu0
    %v3806 = vadd.f32 0.0, %v3805
    %3807 = vmatprep.mubr.f32.mxu0 0.0
    %3808 = vmatmul.mubr.f32.gmra.mrb[0].mxu0 %v3719
    %v3809 = vpop.f32.mrb[0].mxu0
    %v3810 = vadd.f32 0.0, %v3809
    %v3811 = vpop.f32.mrb[0].mxu0
    %v3812 = vadd.f32 0.0, %v3811
    %3813 = vmatprep.mubr.f32.mxu0 0.0
    %3814 = vmatmul.mubr.f32.gmra.mrb[0].mxu0 %v3721
    %v3815 = vpop.f32.mrb[0].mxu0
    %v3816 = vadd.f32 0.0, %v3815
    %v3817 = vpop.f32.mrb[0].mxu0
    %v3818 = vadd.f32 0.0, %v3817
    %3819 = vmatprep.mubr.f32.mxu0 0.0
    %3820 = vmatmul.mubr.f32.gmra.mrb[0].mxu0 %v3723
    %v3821 = vpop.f32.mrb[0].mxu0
    %v3822 = vadd.f32 0.0, %v3821
    %v3823 = vpop.f32.mrb[0].mxu0
    %v3824 = vadd.f32 0.0, %v3823
    %3825 = vmatprep.mubr.f32.mxu0 0.0
    %3826 = vmatmul.mubr.f32.gmra.mrb[0].mxu0 %v3725
    %v3827 = vpop.f32.mrb[0].mxu0
    %v3828 = vadd.f32 0.0, %v3827
    %v3829 = vpop.f32.mrb[0].mxu0
    %v3830 = vadd.f32 0.0, %v3829
    %3831 = vmatprep.mubr.f32.mxu0 0.0
    %3832 = vmatmul.mubr.f32.gmra.mrb[0].mxu0 %v3727
    %v3833 = vpop.f32.mrb[0].mxu0
    %v3834 = vadd.f32 0.0, %v3833
    %v3835 = vpop.f32.mrb[0].mxu0
    %v3836 = vadd.f32 0.0, %v3835
    %3837 = vmatprep.mubr.f32.mxu0 0.0
    %3838 = vmatmul.mubr.f32.gmra.mrb[0].mxu0 %v3729
    %v3839 = vpop.f32.mrb[0].mxu0
    %v3840 = vadd.f32 0.0, %v3839
    %v3841 = vpop.f32.mrb[0].mxu0
    %v3842 = vadd.f32 0.0, %v3841
    %3843 = vdwg.mxu0
    %v3844 = vadd.f32 %v3629, %v3798
    %v3845 = vadd.f32 %v3631, %v3800
    %v3846 = vadd.f32 %v3635, %v3804
    %v3847 = vadd.f32 %v3637, %v3806
    %v3848 = vadd.f32 %v3641, %v3810
    %v3849 = vadd.f32 %v3643, %v3812
    %v3850 = vadd.f32 %v3647, %v3816
    %v3851 = vadd.f32 %v3649, %v3818
    %v3852 = vadd.f32 %v3653, %v3822
    %v3853 = vadd.f32 %v3655, %v3824
    %v3854 = vadd.f32 %v3659, %v3828
    %v3855 = vadd.f32 %v3661, %v3830
    %v3856 = vadd.f32 %v3665, %v3834
    %v3857 = vadd.f32 %v3667, %v3836
    %v3858 = vadd.f32 %v3671, %v3840
    %v3859 = vadd.f32 %v3673, %v3842
    %v3860 = vld [vmem:[#allocation23] sm:$0x3]
    %v3862 = vlaneseq
    %v3863 = vshrl.u32 %v3862, 7
    %v3864 = vsub.s32 0, %v3863
    %v3865 = vrot.slane %v3860, %v3864
    %v3866 = vlaneseq
    %v3867 = vshrl.u32 %v3866, 7
    %v3868 = vsub.s32 1, %v3867
    %v3869 = vrot.slane %v3860, %v3868
    %v3872 = vadd.f32 %v3844, %v3865
    %v3873 = vadd.f32 %v3845, %v3869
    %v3874 = vadd.f32 %v3846, %v3865
    %v3875 = vadd.f32 %v3847, %v3869
    %v3876 = vadd.f32 %v3848, %v3865
    %v3877 = vadd.f32 %v3849, %v3869
    %v3878 = vadd.f32 %v3850, %v3865
    %v3879 = vadd.f32 %v3851, %v3869
    %v3880 = vadd.f32 %v3852, %v3865
    %v3881 = vadd.f32 %v3853, %v3869
    %v3882 = vadd.f32 %v3854, %v3865
    %v3883 = vadd.f32 %v3855, %v3869
    %v3884 = vadd.f32 %v3856, %v3865
    %v3885 = vadd.f32 %v3857, %v3869
    %v3886 = vadd.f32 %v3858, %v3865
    %v3887 = vadd.f32 %v3859, %v3869
    %v3888 = vmax.f32 %v3872, 0.0
    %v3889 = vmax.f32 %v3873, 0.0
    %v3890 = vmax.f32 %v3874, 0.0
    %v3891 = vmax.f32 %v3875, 0.0
    %v3892 = vmax.f32 %v3876, 0.0
    %v3893 = vmax.f32 %v3877, 0.0
    %v3894 = vmax.f32 %v3878, 0.0
    %v3895 = vmax.f32 %v3879, 0.0
    %v3896 = vmax.f32 %v3880, 0.0
    %v3897 = vmax.f32 %v3881, 0.0
    %v3898 = vmax.f32 %v3882, 0.0
    %v3899 = vmax.f32 %v3883, 0.0
    %v3900 = vmax.f32 %v3884, 0.0
    %v3901 = vmax.f32 %v3885, 0.0
    %v3902 = vmax.f32 %v3886, 0.0
    %v3903 = vmax.f32 %v3887, 0.0
    %v3920 = vrot.slane %v3888, 7
    %v3921 = vrot.slane %v3889, 7
    %v3922 = vrot.slane %v3890, 7
    %v3923 = vsel %vm302, %v3920, %v3922
    %v3924 = vrot.slane %v3891, 7
    %v3925 = vsel %vm302, %v3921, %v3924
    %v3926 = vrot.slane %v3892, 7
    %v3927 = vsel %vm302, %v3922, %v3926
    %v3928 = vrot.slane %v3893, 7
    %v3929 = vsel %vm302, %v3924, %v3928
    %v3930 = vrot.slane %v3894, 7
    %v3931 = vsel %vm302, %v3926, %v3930
    %v3932 = vrot.slane %v3895, 7
    %v3933 = vsel %vm302, %v3928, %v3932
    %v3934 = vrot.slane %v3896, 7
    %v3935 = vsel %vm302, %v3930, %v3934
    %v3936 = vrot.slane %v3897, 7
    %v3937 = vsel %vm302, %v3932, %v3936
    %v3938 = vrot.slane %v3898, 7
    %v3939 = vsel %vm302, %v3934, %v3938
    %v3940 = vrot.slane %v3899, 7
    %v3941 = vsel %vm302, %v3936, %v3940
    %v3942 = vrot.slane %v3900, 7
    %v3943 = vsel %vm302, %v3938, %v3942
    %v3944 = vrot.slane %v3901, 7
    %v3945 = vsel %vm302, %v3940, %v3944
    %v3946 = vrot.slane %v3902, 7
    %v3947 = vsel %vm302, %v3942, %v3946
    %v3948 = vrot.slane %v3903, 7
    %v3949 = vsel %vm302, %v3944, %v3948
    %3966 = vst [vmem:[#allocation2] sm:$0xfe] %v3920
    %vm3967 = vcmask 523265
    %3968 = vst.msk [vmem:[#allocation2 + $0x8] sm:$0xfe] %vm3967, %v3921
    %3969 = vst [vmem:[#allocation2 + $0x10] sm:$0xff] %v3923
    %vm3970 = vcmask 523264
    %3971 = vst.msk [vmem:[#allocation2 + $0x18] sm:$0xff] %vm3970, %v3925
    %3972 = vst [vmem:[#allocation2 + $0x20] sm:$0xff] %v3927
    %3973 = vst.msk [vmem:[#allocation2 + $0x28] sm:$0xff] %vm3970, %v3929
    %3974 = vst [vmem:[#allocation2 + $0x30] sm:$0xff] %v3931
    %3975 = vst.msk [vmem:[#allocation2 + $0x38] sm:$0xff] %vm3970, %v3933
    %3976 = vst [vmem:[#allocation2 + $0x40] sm:$0xff] %v3935
    %3977 = vst.msk [vmem:[#allocation2 + $0x48] sm:$0xff] %vm3970, %v3937
    %3978 = vst [vmem:[#allocation2 + $0x50] sm:$0xff] %v3939
    %3979 = vst.msk [vmem:[#allocation2 + $0x58] sm:$0xff] %vm3970, %v3941
    %3980 = vst [vmem:[#allocation2 + $0x60] sm:$0xff] %v3943
    %3981 = vst.msk [vmem:[#allocation2 + $0x68] sm:$0xff] %vm3970, %v3945
    %3982 = vst [vmem:[#allocation2 + $0x70] sm:$0x1f] %v3947
    %vm3983 = vcmask 520192
    %3984 = vst.msk [vmem:[#allocation2 + $0x78] sm:$0x1f] %vm3983, %v3949
    %v3985 = vld [vmem:[#allocation2] sm:$0xff]
    %v3986 = vld [vmem:[#allocation2 + $0x8] sm:$0xff]
    %v3987 = vld [vmem:[#allocation2 + $0x10] sm:$0xff]
    %v3988 = vld [vmem:[#allocation2 + $0x18] sm:$0xff]
    %v3989 = vld [vmem:[#allocation2 + $0x20] sm:$0xff]
    %v3990 = vld [vmem:[#allocation2 + $0x28] sm:$0xff]
    %v3991 = vld [vmem:[#allocation2 + $0x30] sm:$0xff]
    %v3992 = vld [vmem:[#allocation2 + $0x38] sm:$0xff]
    %v3993 = vld [vmem:[#allocation2 + $0x40] sm:$0xff]
    %v3994 = vld [vmem:[#allocation2 + $0x48] sm:$0xff]
    %v3995 = vld [vmem:[#allocation2 + $0x50] sm:$0xff]
    %v3996 = vld [vmem:[#allocation2 + $0x58] sm:$0xff]
    %v3997 = vld [vmem:[#allocation2 + $0x60] sm:$0xff]
    %v3998 = vld [vmem:[#allocation2 + $0x68] sm:$0xff]
    %v3999 = vld [vmem:[#allocation2 + $0x70] sm:$0x3f]
    %v4000 = vld [vmem:[#allocation2 + $0x78] sm:$0x3f]
    %v4001 = vld [vmem:[#allocation24] sm:$0xff]
    %v4002 = vld [vmem:[#allocation24 + $0x8] sm:$0xff]
    %v4003 = vld [vmem:[#allocation24 + $0x10] sm:$0xff]
    %v4004 = vld [vmem:[#allocation24 + $0x18] sm:$0xff]
    %v4005 = vld [vmem:[#allocation24 + $0x20] sm:$0xff]
    %v4006 = vld [vmem:[#allocation24 + $0x28] sm:$0xff]
    %v4007 = vld [vmem:[#allocation24 + $0x30] sm:$0xff]
    %v4008 = vld [vmem:[#allocation24 + $0x38] sm:$0xff]
    %v4009 = vld [vmem:[#allocation24 + $0x40] sm:$0xff]
    %v4010 = vld [vmem:[#allocation24 + $0x48] sm:$0xff]
    %v4011 = vld [vmem:[#allocation24 + $0x50] sm:$0xff]
    %v4012 = vld [vmem:[#allocation24 + $0x58] sm:$0xff]
    %v4013 = vld [vmem:[#allocation24 + $0x60] sm:$0xff]
    %v4014 = vld [vmem:[#allocation24 + $0x68] sm:$0xff]
    %v4015 = vld [vmem:[#allocation24 + $0x70] sm:$0xff]
    %v4016 = vld [vmem:[#allocation24 + $0x78] sm:$0xff]
    %v4017 = vld [vmem:[#allocation24 + $0x80] sm:$0xff]
    %v4018 = vld [vmem:[#allocation24 + $0x88] sm:$0xff]
    %v4019 = vld [vmem:[#allocation24 + $0x90] sm:$0xff]
    %v4020 = vld [vmem:[#allocation24 + $0x98] sm:$0xff]
    %v4021 = vld [vmem:[#allocation24 + $0xa0] sm:$0xff]
    %v4022 = vld [vmem:[#allocation24 + $0xa8] sm:$0xff]
    %v4023 = vld [vmem:[#allocation24 + $0xb0] sm:$0xff]
    %v4024 = vld [vmem:[#allocation24 + $0xb8] sm:$0xff]
    %v4025 = vld [vmem:[#allocation24 + $0xc0] sm:$0xff]
    %v4026 = vld [vmem:[#allocation24 + $0xc8] sm:$0xff]
    %v4027 = vld [vmem:[#allocation24 + $0xd0] sm:$0xff]
    %v4028 = vld [vmem:[#allocation24 + $0xd8] sm:$0xff]
    %v4029 = vld [vmem:[#allocation24 + $0xe0] sm:$0xff]
    %v4030 = vld [vmem:[#allocation24 + $0xe8] sm:$0xff]
    %v4031 = vld [vmem:[#allocation24 + $0xf0] sm:$0xff]
    %v4032 = vld [vmem:[#allocation24 + $0xf8] sm:$0xff]
    %v4033 = vld [vmem:[#allocation24 + $0x100] sm:$0xff]
    %v4034 = vld [vmem:[#allocation24 + $0x108] sm:$0xff]
    %v4035 = vld [vmem:[#allocation24 + $0x110] sm:$0xff]
    %v4036 = vld [vmem:[#allocation24 + $0x118] sm:$0xff]
    %v4037 = vld [vmem:[#allocation24 + $0x120] sm:$0xff]
    %v4038 = vld [vmem:[#allocation24 + $0x128] sm:$0xff]
    %v4039 = vld [vmem:[#allocation24 + $0x130] sm:$0xff]
    %v4040 = vld [vmem:[#allocation24 + $0x138] sm:$0xff]
    %v4041 = vld [vmem:[#allocation24 + $0x140] sm:$0xff]
    %v4042 = vld [vmem:[#allocation24 + $0x148] sm:$0xff]
    %v4043 = vld [vmem:[#allocation24 + $0x150] sm:$0xff]
    %v4044 = vld [vmem:[#allocation24 + $0x158] sm:$0xff]
    %v4045 = vld [vmem:[#allocation24 + $0x160] sm:$0xff]
    %v4046 = vld [vmem:[#allocation24 + $0x168] sm:$0xff]
    %v4047 = vld [vmem:[#allocation24 + $0x170] sm:$0xff]
    %v4048 = vld [vmem:[#allocation24 + $0x178] sm:$0xff]
    %s4049 = scalar_lea.vmem [#allocation24], 384
    %v4050 = vld [vmem:[%s4049] sm:$0xff]
    %v4051 = vld [vmem:[%s4049 + $0x8] sm:$0xff]
    %v4052 = vld [vmem:[%s4049 + $0x10] sm:$0xff]
    %v4053 = vld [vmem:[%s4049 + $0x18] sm:$0xff]
    %v4054 = vld [vmem:[%s4049 + $0x20] sm:$0xff]
    %v4055 = vld [vmem:[%s4049 + $0x28] sm:$0xff]
    %v4056 = vld [vmem:[%s4049 + $0x30] sm:$0xff]
    %v4057 = vld [vmem:[%s4049 + $0x38] sm:$0xff]
    %v4058 = vld [vmem:[%s4049 + $0x40] sm:$0xff]
    %v4059 = vld [vmem:[%s4049 + $0x48] sm:$0xff]
    %v4060 = vld [vmem:[%s4049 + $0x50] sm:$0xff]
    %v4061 = vld [vmem:[%s4049 + $0x58] sm:$0xff]
    %v4062 = vld [vmem:[%s4049 + $0x60] sm:$0xff]
    %v4063 = vld [vmem:[%s4049 + $0x68] sm:$0xff]
    %v4064 = vld [vmem:[%s4049 + $0x70] sm:$0xff]
    %v4065 = vld [vmem:[%s4049 + $0x78] sm:$0xff]
    %v4066 = vld [vmem:[%s4049 + $0x80] sm:$0xff]
    %v4067 = vld [vmem:[%s4049 + $0x88] sm:$0xff]
    %v4068 = vld [vmem:[%s4049 + $0x90] sm:$0xff]
    %v4069 = vld [vmem:[%s4049 + $0x98] sm:$0xff]
    %v4070 = vld [vmem:[%s4049 + $0xa0] sm:$0xff]
    %v4071 = vld [vmem:[%s4049 + $0xa8] sm:$0xff]
    %v4072 = vld [vmem:[%s4049 + $0xb0] sm:$0xff]
    %v4073 = vld [vmem:[%s4049 + $0xb8] sm:$0xff]
    %v4074 = vld [vmem:[%s4049 + $0xc0] sm:$0xff]
    %v4075 = vld [vmem:[%s4049 + $0xc8] sm:$0xff]
    %v4076 = vld [vmem:[%s4049 + $0xd0] sm:$0xff]
    %v4077 = vld [vmem:[%s4049 + $0xd8] sm:$0xff]
    %v4078 = vld [vmem:[%s4049 + $0xe0] sm:$0xff]
    %v4079 = vld [vmem:[%s4049 + $0xe8] sm:$0xff]
    %v4080 = vld [vmem:[%s4049 + $0xf0] sm:$0xff]
    %v4081 = vld [vmem:[%s4049 + $0xf8] sm:$0xff]
    %v4082 = vld [vmem:[%s4049 + $0x100] sm:$0xff]
    %v4083 = vld [vmem:[%s4049 + $0x108] sm:$0xff]
    %v4084 = vld [vmem:[%s4049 + $0x110] sm:$0xff]
    %v4085 = vld [vmem:[%s4049 + $0x118] sm:$0xff]
    %v4086 = vld [vmem:[%s4049 + $0x120] sm:$0xff]
    %v4087 = vld [vmem:[%s4049 + $0x128] sm:$0xff]
    %v4088 = vld [vmem:[%s4049 + $0x130] sm:$0xff]
    %v4089 = vld [vmem:[%s4049 + $0x138] sm:$0xff]
    %v4090 = vld [vmem:[%s4049 + $0x140] sm:$0xff]
    %v4091 = vld [vmem:[%s4049 + $0x148] sm:$0xff]
    %v4092 = vld [vmem:[%s4049 + $0x150] sm:$0xff]
    %v4093 = vld [vmem:[%s4049 + $0x158] sm:$0xff]
    %v4094 = vld [vmem:[%s4049 + $0x160] sm:$0xff]
    %v4095 = vld [vmem:[%s4049 + $0x168] sm:$0xff]
    %v4096 = vld [vmem:[%s4049 + $0x170] sm:$0xff]
    %v4097 = vld [vmem:[%s4049 + $0x178] sm:$0xff]
    %v4114 = vrot.slane %v3985, 1
    %v4115 = vrot.slane %v3987, 1
    %v4116 = vsel %vm356, %v4114, %v4115
    %v4117 = vrot.slane %v3986, 1
    %v4118 = vrot.slane %v3988, 1
    %v4119 = vsel %vm356, %v4117, %v4118
    %v4120 = vrot.slane %v3989, 1
    %v4121 = vsel %vm356, %v4115, %v4120
    %v4122 = vrot.slane %v3990, 1
    %v4123 = vsel %vm356, %v4118, %v4122
    %v4124 = vrot.slane %v3991, 1
    %v4125 = vsel %vm356, %v4120, %v4124
    %v4126 = vrot.slane %v3992, 1
    %v4127 = vsel %vm356, %v4122, %v4126
    %v4128 = vrot.slane %v3993, 1
    %v4129 = vsel %vm356, %v4124, %v4128
    %v4130 = vrot.slane %v3994, 1
    %v4131 = vsel %vm356, %v4126, %v4130
    %v4132 = vrot.slane %v3995, 1
    %v4133 = vsel %vm356, %v4128, %v4132
    %v4134 = vrot.slane %v3996, 1
    %v4135 = vsel %vm356, %v4130, %v4134
    %v4136 = vrot.slane %v3997, 1
    %v4137 = vsel %vm356, %v4132, %v4136
    %v4138 = vrot.slane %v3998, 1
    %v4139 = vsel %vm356, %v4134, %v4138
    %v4140 = vrot.slane %v3999, 1
    %v4141 = vsel %vm356, %v4136, %v4140
    %v4142 = vrot.slane %v4000, 1
    %v4143 = vsel %vm356, %v4138, %v4142
    %v4152 = vsel %vm3970, %v4119, 0
    %v4154 = vsel %vm3970, %v4123, 0
    %v4156 = vsel %vm3970, %v4127, 0
    %v4158 = vsel %vm3970, %v4131, 0
    %v4160 = vsel %vm3970, %v4135, 0
    %v4162 = vsel %vm3970, %v4139, 0
    %v4164 = vsel %vm3970, %v4143, 0
    %v4166 = vsel %vm3970, %v4142, 0
    %4168 = vmatprep.subr.mxu0 %v4051
    %4169 = vmatpush1.msra.mxu0 %v4050
    %4170 = vmatprep.subr.mxu0 %v4053
    %4171 = vmatpush1.msra.mxu0 %v4052
    %4172 = vmatprep.subr.mxu0 %v4055
    %4173 = vmatpush1.msra.mxu0 %v4054
    %4174 = vmatprep.subr.mxu0 %v4057
    %4175 = vmatpush1.msra.mxu0 %v4056
    %4176 = vmatprep.subr.mxu0 %v4059
    %4177 = vmatpush1.msra.mxu0 %v4058
    %4178 = vmatprep.subr.mxu0 %v4061
    %4179 = vmatpush1.msra.mxu0 %v4060
    %4180 = vmatprep.subr.mxu0 %v4063
    %4181 = vmatpush1.msra.mxu0 %v4062
    %4182 = vmatprep.subr.mxu0 %v4065
    %4183 = vmatpush1.msra.mxu0 %v4064
    %4184 = vmatprep.subr.mxu0 %v4067
    %4185 = vmatpush1.msra.mxu0 %v4066
    %4186 = vmatprep.subr.mxu0 %v4069
    %4187 = vmatpush1.msra.mxu0 %v4068
    %4188 = vmatprep.subr.mxu0 %v4071
    %4189 = vmatpush1.msra.mxu0 %v4070
    %4190 = vmatprep.subr.mxu0 %v4073
    %4191 = vmatpush1.msra.mxu0 %v4072
    %4192 = vmatprep.subr.mxu0 %v4075
    %4193 = vmatpush1.msra.mxu0 %v4074
    %4194 = vmatprep.subr.mxu0 %v4077
    %4195 = vmatpush1.msra.mxu0 %v4076
    %4196 = vmatprep.subr.mxu0 %v4079
    %4197 = vmatpush1.msra.mxu0 %v4078
    %4198 = vmatprep.subr.mxu0 %v4081
    %4199 = vmatpush1.msra.mxu0 %v4080
    %4200 = vmatprep.subr.mxu0 %v4083
    %4201 = vmatpush1.msra.mxu0 %v4082
    %4202 = vmatprep.subr.mxu0 %v4085
    %4203 = vmatpush1.msra.mxu0 %v4084
    %4204 = vmatprep.subr.mxu0 %v4087
    %4205 = vmatpush1.msra.mxu0 %v4086
    %4206 = vmatprep.subr.mxu0 %v4089
    %4207 = vmatpush1.msra.mxu0 %v4088
    %4208 = vmatprep.subr.mxu0 %v4091
    %4209 = vmatpush1.msra.mxu0 %v4090
    %4210 = vmatprep.subr.mxu0 %v4093
    %4211 = vmatpush1.msra.mxu0 %v4092
    %4212 = vmatprep.subr.mxu0 %v4095
    %4213 = vmatpush1.msra.mxu0 %v4094
    %4214 = vmatprep.subr.mxu0 %v4097
    %4215 = vmatpush1.msra.mxu0 %v4096
    %4216 = vmatprep.subr.mxu0 0.0
    %4217 = vmatpush1.msra.mxu0 0.0
    %4218 = vmatprep.subr.mxu0 0.0
    %4219 = vmatpush1.msra.mxu0 0.0
    %4220 = vmatprep.subr.mxu0 0.0
    %4221 = vmatpush1.msra.mxu0 0.0
    %4222 = vmatprep.subr.mxu0 0.0
    %4223 = vmatpush1.msra.mxu0 0.0
    %4224 = vmatprep.subr.mxu0 0.0
    %4225 = vmatpush1.msra.mxu0 0.0
    %4226 = vmatprep.subr.mxu0 0.0
    %4227 = vmatpush1.msra.mxu0 0.0
    %4228 = vmatprep.subr.mxu0 0.0
    %4229 = vmatpush1.msra.mxu0 0.0
    %4230 = vmatprep.subr.mxu0 0.0
    %4231 = vmatpush1.msra.mxu0 0.0
    %4232 = vmatprep.mubr.f32.mxu0 %v4152
    %4233 = vmatmul.mubr.f32.gmra.mrb[0].mxu0 %v4116
    %v4234 = vpop.f32.mrb[0].mxu0
    %v4235 = vadd.f32 0.0, %v4234
    %v4236 = vpop.f32.mrb[0].mxu0
    %v4237 = vadd.f32 0.0, %v4236
    %4238 = vmatprep.mubr.f32.mxu0 %v4154
    %4239 = vmatmul.mubr.f32.gmra.mrb[0].mxu0 %v4121
    %v4240 = vpop.f32.mrb[0].mxu0
    %v4241 = vadd.f32 0.0, %v4240
    %v4242 = vpop.f32.mrb[0].mxu0
    %v4243 = vadd.f32 0.0, %v4242
    %4244 = vmatprep.mubr.f32.mxu0 %v4156
    %4245 = vmatmul.mubr.f32.gmra.mrb[0].mxu0 %v4125
    %v4246 = vpop.f32.mrb[0].mxu0
    %v4247 = vadd.f32 0.0, %v4246
    %v4248 = vpop.f32.mrb[0].mxu0
    %v4249 = vadd.f32 0.0, %v4248
    %4250 = vmatprep.mubr.f32.mxu0 %v4158
    %4251 = vmatmul.mubr.f32.gmra.mrb[0].mxu0 %v4129
    %v4252 = vpop.f32.mrb[0].mxu0
    %v4253 = vadd.f32 0.0, %v4252
    %v4254 = vpop.f32.mrb[0].mxu0
    %v4255 = vadd.f32 0.0, %v4254
    %4256 = vmatprep.mubr.f32.mxu0 %v4160
    %4257 = vmatmul.mubr.f32.gmra.mrb[0].mxu0 %v4133
    %v4258 = vpop.f32.mrb[0].mxu0
    %v4259 = vadd.f32 0.0, %v4258
    %v4260 = vpop.f32.mrb[0].mxu0
    %v4261 = vadd.f32 0.0, %v4260
    %4262 = vmatprep.mubr.f32.mxu0 %v4162
    %4263 = vmatmul.mubr.f32.gmra.mrb[0].mxu0 %v4137
    %v4264 = vpop.f32.mrb[0].mxu0
    %v4265 = vadd.f32 0.0, %v4264
    %v4266 = vpop.f32.mrb[0].mxu0
    %v4267 = vadd.f32 0.0, %v4266
    %4268 = vmatprep.mubr.f32.mxu0 %v4164
    %4269 = vmatmul.mubr.f32.gmra.mrb[0].mxu0 %v4141
    %v4270 = vpop.f32.mrb[0].mxu0
    %v4271 = vadd.f32 0.0, %v4270
    %v4272 = vpop.f32.mrb[0].mxu0
    %v4273 = vadd.f32 0.0, %v4272
    %4274 = vmatprep.mubr.f32.mxu0 %v4166
    %4275 = vmatmul.mubr.f32.gmra.mrb[0].mxu0 %v4140
    %v4276 = vpop.f32.mrb[0].mxu0
    %v4277 = vadd.f32 0.0, %v4276
    %v4278 = vpop.f32.mrb[0].mxu0
    %v4279 = vadd.f32 0.0, %v4278
    %4280 = vdwg.mxu0
    %v4281 = vsel %vm3970, %v3986, 0
    %v4283 = vsel %vm3970, %v3988, 0
    %v4285 = vsel %vm3970, %v3990, 0
    %v4287 = vsel %vm3970, %v3992, 0
    %v4289 = vsel %vm3970, %v3994, 0
    %v4291 = vsel %vm3970, %v3996, 0
    %v4293 = vsel %vm3970, %v3998, 0
    %v4295 = vsel %vm3970, %v4000, 0
    %4297 = vmatprep.subr.mxu0 %v4002
    %4298 = vmatpush1.msra.mxu0 %v4001
    %4299 = vmatprep.subr.mxu0 %v4004
    %4300 = vmatpush1.msra.mxu0 %v4003
    %4301 = vmatprep.subr.mxu0 %v4006
    %4302 = vmatpush1.msra.mxu0 %v4005
    %4303 = vmatprep.subr.mxu0 %v4008
    %4304 = vmatpush1.msra.mxu0 %v4007
    %4305 = vmatprep.subr.mxu0 %v4010
    %4306 = vmatpush1.msra.mxu0 %v4009
    %4307 = vmatprep.subr.mxu0 %v4012
    %4308 = vmatpush1.msra.mxu0 %v4011
    %4309 = vmatprep.subr.mxu0 %v4014
    %4310 = vmatpush1.msra.mxu0 %v4013
    %4311 = vmatprep.subr.mxu0 %v4016
    %4312 = vmatpush1.msra.mxu0 %v4015
    %4313 = vmatprep.subr.mxu0 %v4018
    %4314 = vmatpush1.msra.mxu0 %v4017
    %4315 = vmatprep.subr.mxu0 %v4020
    %4316 = vmatpush1.msra.mxu0 %v4019
    %4317 = vmatprep.subr.mxu0 %v4022
    %4318 = vmatpush1.msra.mxu0 %v4021
    %4319 = vmatprep.subr.mxu0 %v4024
    %4320 = vmatpush1.msra.mxu0 %v4023
    %4321 = vmatprep.subr.mxu0 %v4026
    %4322 = vmatpush1.msra.mxu0 %v4025
    %4323 = vmatprep.subr.mxu0 %v4028
    %4324 = vmatpush1.msra.mxu0 %v4027
    %4325 = vmatprep.subr.mxu0 %v4030
    %4326 = vmatpush1.msra.mxu0 %v4029
    %4327 = vmatprep.subr.mxu0 %v4032
    %4328 = vmatpush1.msra.mxu0 %v4031
    %4329 = vmatprep.subr.mxu0 %v4034
    %4330 = vmatpush1.msra.mxu0 %v4033
    %4331 = vmatprep.subr.mxu0 %v4036
    %4332 = vmatpush1.msra.mxu0 %v4035
    %4333 = vmatprep.subr.mxu0 %v4038
    %4334 = vmatpush1.msra.mxu0 %v4037
    %4335 = vmatprep.subr.mxu0 %v4040
    %4336 = vmatpush1.msra.mxu0 %v4039
    %4337 = vmatprep.subr.mxu0 %v4042
    %4338 = vmatpush1.msra.mxu0 %v4041
    %4339 = vmatprep.subr.mxu0 %v4044
    %4340 = vmatpush1.msra.mxu0 %v4043
    %4341 = vmatprep.subr.mxu0 %v4046
    %4342 = vmatpush1.msra.mxu0 %v4045
    %4343 = vmatprep.subr.mxu0 %v4048
    %4344 = vmatpush1.msra.mxu0 %v4047
    %4345 = vmatprep.subr.mxu0 0.0
    %4346 = vmatpush1.msra.mxu0 0.0
    %4347 = vmatprep.subr.mxu0 0.0
    %4348 = vmatpush1.msra.mxu0 0.0
    %4349 = vmatprep.subr.mxu0 0.0
    %4350 = vmatpush1.msra.mxu0 0.0
    %4351 = vmatprep.subr.mxu0 0.0
    %4352 = vmatpush1.msra.mxu0 0.0
    %4353 = vmatprep.subr.mxu0 0.0
    %4354 = vmatpush1.msra.mxu0 0.0
    %4355 = vmatprep.subr.mxu0 0.0
    %4356 = vmatpush1.msra.mxu0 0.0
    %4357 = vmatprep.subr.mxu0 0.0
    %4358 = vmatpush1.msra.mxu0 0.0
    %4359 = vmatprep.subr.mxu0 0.0
    %4360 = vmatpush1.msra.mxu0 0.0
    %4361 = vmatprep.mubr.f32.mxu0 %v4281
    %4362 = vmatmul.mubr.f32.gmra.mrb[0].mxu0 %v3985
    %v4363 = vpop.f32.mrb[0].mxu0
    %v4364 = vadd.f32 %v4235, %v4363
    %v4365 = vpop.f32.mrb[0].mxu0
    %v4366 = vadd.f32 %v4237, %v4365
    %4367 = vmatprep.mubr.f32.mxu0 %v4283
    %4368 = vmatmul.mubr.f32.gmra.mrb[0].mxu0 %v3987
    %v4369 = vpop.f32.mrb[0].mxu0
    %v4370 = vadd.f32 %v4241, %v4369
    %v4371 = vpop.f32.mrb[0].mxu0
    %v4372 = vadd.f32 %v4243, %v4371
    %4373 = vmatprep.mubr.f32.mxu0 %v4285
    %4374 = vmatmul.mubr.f32.gmra.mrb[0].mxu0 %v3989
    %v4375 = vpop.f32.mrb[0].mxu0
    %v4376 = vadd.f32 %v4247, %v4375
    %v4377 = vpop.f32.mrb[0].mxu0
    %v4378 = vadd.f32 %v4249, %v4377
    %4379 = vmatprep.mubr.f32.mxu0 %v4287
    %4380 = vmatmul.mubr.f32.gmra.mrb[0].mxu0 %v3991
    %v4381 = vpop.f32.mrb[0].mxu0
    %v4382 = vadd.f32 %v4253, %v4381
    %v4383 = vpop.f32.mrb[0].mxu0
    %v4384 = vadd.f32 %v4255, %v4383
    %4385 = vmatprep.mubr.f32.mxu0 %v4289
    %4386 = vmatmul.mubr.f32.gmra.mrb[0].mxu0 %v3993
    %v4387 = vpop.f32.mrb[0].mxu0
    %v4388 = vadd.f32 %v4259, %v4387
    %v4389 = vpop.f32.mrb[0].mxu0
    %v4390 = vadd.f32 %v4261, %v4389
    %4391 = vmatprep.mubr.f32.mxu0 %v4291
    %4392 = vmatmul.mubr.f32.gmra.mrb[0].mxu0 %v3995
    %v4393 = vpop.f32.mrb[0].mxu0
    %v4394 = vadd.f32 %v4265, %v4393
    %v4395 = vpop.f32.mrb[0].mxu0
    %v4396 = vadd.f32 %v4267, %v4395
    %4397 = vmatprep.mubr.f32.mxu0 %v4293
    %4398 = vmatmul.mubr.f32.gmra.mrb[0].mxu0 %v3997
    %v4399 = vpop.f32.mrb[0].mxu0
    %v4400 = vadd.f32 %v4271, %v4399
    %v4401 = vpop.f32.mrb[0].mxu0
    %v4402 = vadd.f32 %v4273, %v4401
    %4403 = vmatprep.mubr.f32.mxu0 %v4295
    %4404 = vmatmul.mubr.f32.gmra.mrb[0].mxu0 %v3999
    %v4405 = vpop.f32.mrb[0].mxu0
    %v4406 = vadd.f32 %v4277, %v4405
    %v4407 = vpop.f32.mrb[0].mxu0
    %v4408 = vadd.f32 %v4279, %v4407
    %4409 = vdwg.mxu0
    %s4410 = scalar_lea.vmem [#allocation24], 768
    %v4411 = vld [vmem:[%s4410] sm:$0xff]
    %v4412 = vld [vmem:[%s4410 + $0x8] sm:$0xff]
    %v4413 = vld [vmem:[%s4410 + $0x10] sm:$0xff]
    %v4414 = vld [vmem:[%s4410 + $0x18] sm:$0xff]
    %v4415 = vld [vmem:[%s4410 + $0x20] sm:$0xff]
    %v4416 = vld [vmem:[%s4410 + $0x28] sm:$0xff]
    %v4417 = vld [vmem:[%s4410 + $0x30] sm:$0xff]
    %v4418 = vld [vmem:[%s4410 + $0x38] sm:$0xff]
    %v4419 = vld [vmem:[%s4410 + $0x40] sm:$0xff]
    %v4420 = vld [vmem:[%s4410 + $0x48] sm:$0xff]
    %v4421 = vld [vmem:[%s4410 + $0x50] sm:$0xff]
    %v4422 = vld [vmem:[%s4410 + $0x58] sm:$0xff]
    %v4423 = vld [vmem:[%s4410 + $0x60] sm:$0xff]
    %v4424 = vld [vmem:[%s4410 + $0x68] sm:$0xff]
    %v4425 = vld [vmem:[%s4410 + $0x70] sm:$0xff]
    %v4426 = vld [vmem:[%s4410 + $0x78] sm:$0xff]
    %v4427 = vld [vmem:[%s4410 + $0x80] sm:$0xff]
    %v4428 = vld [vmem:[%s4410 + $0x88] sm:$0xff]
    %v4429 = vld [vmem:[%s4410 + $0x90] sm:$0xff]
    %v4430 = vld [vmem:[%s4410 + $0x98] sm:$0xff]
    %v4431 = vld [vmem:[%s4410 + $0xa0] sm:$0xff]
    %v4432 = vld [vmem:[%s4410 + $0xa8] sm:$0xff]
    %v4433 = vld [vmem:[%s4410 + $0xb0] sm:$0xff]
    %v4434 = vld [vmem:[%s4410 + $0xb8] sm:$0xff]
    %v4435 = vld [vmem:[%s4410 + $0xc0] sm:$0xff]
    %v4436 = vld [vmem:[%s4410 + $0xc8] sm:$0xff]
    %v4437 = vld [vmem:[%s4410 + $0xd0] sm:$0xff]
    %v4438 = vld [vmem:[%s4410 + $0xd8] sm:$0xff]
    %v4439 = vld [vmem:[%s4410 + $0xe0] sm:$0xff]
    %v4440 = vld [vmem:[%s4410 + $0xe8] sm:$0xff]
    %v4441 = vld [vmem:[%s4410 + $0xf0] sm:$0xff]
    %v4442 = vld [vmem:[%s4410 + $0xf8] sm:$0xff]
    %v4443 = vld [vmem:[%s4410 + $0x100] sm:$0xff]
    %v4444 = vld [vmem:[%s4410 + $0x108] sm:$0xff]
    %v4445 = vld [vmem:[%s4410 + $0x110] sm:$0xff]
    %v4446 = vld [vmem:[%s4410 + $0x118] sm:$0xff]
    %v4447 = vld [vmem:[%s4410 + $0x120] sm:$0xff]
    %v4448 = vld [vmem:[%s4410 + $0x128] sm:$0xff]
    %v4449 = vld [vmem:[%s4410 + $0x130] sm:$0xff]
    %v4450 = vld [vmem:[%s4410 + $0x138] sm:$0xff]
    %v4451 = vld [vmem:[%s4410 + $0x140] sm:$0xff]
    %v4452 = vld [vmem:[%s4410 + $0x148] sm:$0xff]
    %v4453 = vld [vmem:[%s4410 + $0x150] sm:$0xff]
    %v4454 = vld [vmem:[%s4410 + $0x158] sm:$0xff]
    %v4455 = vld [vmem:[%s4410 + $0x160] sm:$0xff]
    %v4456 = vld [vmem:[%s4410 + $0x168] sm:$0xff]
    %v4457 = vld [vmem:[%s4410 + $0x170] sm:$0xff]
    %v4458 = vld [vmem:[%s4410 + $0x178] sm:$0xff]
    %v4459 = vrot.slane %v3985, 2
    %v4460 = vrot.slane %v3987, 2
    %v4461 = vsel %vm623, %v4459, %v4460
    %v4462 = vrot.slane %v3986, 2
    %v4463 = vrot.slane %v3988, 2
    %v4464 = vsel %vm623, %v4462, %v4463
    %v4465 = vrot.slane %v3989, 2
    %v4466 = vsel %vm623, %v4460, %v4465
    %v4467 = vrot.slane %v3990, 2
    %v4468 = vsel %vm623, %v4463, %v4467
    %v4469 = vrot.slane %v3991, 2
    %v4470 = vsel %vm623, %v4465, %v4469
    %v4471 = vrot.slane %v3992, 2
    %v4472 = vsel %vm623, %v4467, %v4471
    %v4473 = vrot.slane %v3993, 2
    %v4474 = vsel %vm623, %v4469, %v4473
    %v4475 = vrot.slane %v3994, 2
    %v4476 = vsel %vm623, %v4471, %v4475
    %v4477 = vrot.slane %v3995, 2
    %v4478 = vsel %vm623, %v4473, %v4477
    %v4479 = vrot.slane %v3996, 2
    %v4480 = vsel %vm623, %v4475, %v4479
    %v4481 = vrot.slane %v3997, 2
    %v4482 = vsel %vm623, %v4477, %v4481
    %v4483 = vrot.slane %v3998, 2
    %v4484 = vsel %vm623, %v4479, %v4483
    %v4485 = vrot.slane %v3999, 2
    %v4486 = vsel %vm623, %v4481, %v4485
    %v4487 = vrot.slane %v4000, 2
    %v4488 = vsel %vm623, %v4483, %v4487
    %v4497 = vsel %vm3970, %v4464, 0
    %v4499 = vsel %vm3970, %v4468, 0
    %v4501 = vsel %vm3970, %v4472, 0
    %v4503 = vsel %vm3970, %v4476, 0
    %v4505 = vsel %vm3970, %v4480, 0
    %v4507 = vsel %vm3970, %v4484, 0
    %v4509 = vsel %vm3970, %v4488, 0
    %v4511 = vsel %vm3970, %v4487, 0
    %4513 = vmatprep.subr.mxu0 %v4412
    %4514 = vmatpush1.msra.mxu0 %v4411
    %4515 = vmatprep.subr.mxu0 %v4414
    %4516 = vmatpush1.msra.mxu0 %v4413
    %4517 = vmatprep.subr.mxu0 %v4416
    %4518 = vmatpush1.msra.mxu0 %v4415
    %4519 = vmatprep.subr.mxu0 %v4418
    %4520 = vmatpush1.msra.mxu0 %v4417
    %4521 = vmatprep.subr.mxu0 %v4420
    %4522 = vmatpush1.msra.mxu0 %v4419
    %4523 = vmatprep.subr.mxu0 %v4422
    %4524 = vmatpush1.msra.mxu0 %v4421
    %4525 = vmatprep.subr.mxu0 %v4424
    %4526 = vmatpush1.msra.mxu0 %v4423
    %4527 = vmatprep.subr.mxu0 %v4426
    %4528 = vmatpush1.msra.mxu0 %v4425
    %4529 = vmatprep.subr.mxu0 %v4428
    %4530 = vmatpush1.msra.mxu0 %v4427
    %4531 = vmatprep.subr.mxu0 %v4430
    %4532 = vmatpush1.msra.mxu0 %v4429
    %4533 = vmatprep.subr.mxu0 %v4432
    %4534 = vmatpush1.msra.mxu0 %v4431
    %4535 = vmatprep.subr.mxu0 %v4434
    %4536 = vmatpush1.msra.mxu0 %v4433
    %4537 = vmatprep.subr.mxu0 %v4436
    %4538 = vmatpush1.msra.mxu0 %v4435
    %4539 = vmatprep.subr.mxu0 %v4438
    %4540 = vmatpush1.msra.mxu0 %v4437
    %4541 = vmatprep.subr.mxu0 %v4440
    %4542 = vmatpush1.msra.mxu0 %v4439
    %4543 = vmatprep.subr.mxu0 %v4442
    %4544 = vmatpush1.msra.mxu0 %v4441
    %4545 = vmatprep.subr.mxu0 %v4444
    %4546 = vmatpush1.msra.mxu0 %v4443
    %4547 = vmatprep.subr.mxu0 %v4446
    %4548 = vmatpush1.msra.mxu0 %v4445
    %4549 = vmatprep.subr.mxu0 %v4448
    %4550 = vmatpush1.msra.mxu0 %v4447
    %4551 = vmatprep.subr.mxu0 %v4450
    %4552 = vmatpush1.msra.mxu0 %v4449
    %4553 = vmatprep.subr.mxu0 %v4452
    %4554 = vmatpush1.msra.mxu0 %v4451
    %4555 = vmatprep.subr.mxu0 %v4454
    %4556 = vmatpush1.msra.mxu0 %v4453
    %4557 = vmatprep.subr.mxu0 %v4456
    %4558 = vmatpush1.msra.mxu0 %v4455
    %4559 = vmatprep.subr.mxu0 %v4458
    %4560 = vmatpush1.msra.mxu0 %v4457
    %4561 = vmatprep.subr.mxu0 0.0
    %4562 = vmatpush1.msra.mxu0 0.0
    %4563 = vmatprep.subr.mxu0 0.0
    %4564 = vmatpush1.msra.mxu0 0.0
    %4565 = vmatprep.subr.mxu0 0.0
    %4566 = vmatpush1.msra.mxu0 0.0
    %4567 = vmatprep.subr.mxu0 0.0
    %4568 = vmatpush1.msra.mxu0 0.0
    %4569 = vmatprep.subr.mxu0 0.0
    %4570 = vmatpush1.msra.mxu0 0.0
    %4571 = vmatprep.subr.mxu0 0.0
    %4572 = vmatpush1.msra.mxu0 0.0
    %4573 = vmatprep.subr.mxu0 0.0
    %4574 = vmatpush1.msra.mxu0 0.0
    %4575 = vmatprep.subr.mxu0 0.0
    %4576 = vmatpush1.msra.mxu0 0.0
    %4577 = vmatprep.mubr.f32.mxu0 %v4497
    %4578 = vmatmul.mubr.f32.gmra.mrb[0].mxu0 %v4461
    %v4579 = vpop.f32.mrb[0].mxu0
    %v4580 = vadd.f32 0.0, %v4579
    %v4581 = vpop.f32.mrb[0].mxu0
    %v4582 = vadd.f32 0.0, %v4581
    %4583 = vmatprep.mubr.f32.mxu0 %v4499
    %4584 = vmatmul.mubr.f32.gmra.mrb[0].mxu0 %v4466
    %v4585 = vpop.f32.mrb[0].mxu0
    %v4586 = vadd.f32 0.0, %v4585
    %v4587 = vpop.f32.mrb[0].mxu0
    %v4588 = vadd.f32 0.0, %v4587
    %4589 = vmatprep.mubr.f32.mxu0 %v4501
    %4590 = vmatmul.mubr.f32.gmra.mrb[0].mxu0 %v4470
    %v4591 = vpop.f32.mrb[0].mxu0
    %v4592 = vadd.f32 0.0, %v4591
    %v4593 = vpop.f32.mrb[0].mxu0
    %v4594 = vadd.f32 0.0, %v4593
    %4595 = vmatprep.mubr.f32.mxu0 %v4503
    %4596 = vmatmul.mubr.f32.gmra.mrb[0].mxu0 %v4474
    %v4597 = vpop.f32.mrb[0].mxu0
    %v4598 = vadd.f32 0.0, %v4597
    %v4599 = vpop.f32.mrb[0].mxu0
    %v4600 = vadd.f32 0.0, %v4599
    %4601 = vmatprep.mubr.f32.mxu0 %v4505
    %4602 = vmatmul.mubr.f32.gmra.mrb[0].mxu0 %v4478
    %v4603 = vpop.f32.mrb[0].mxu0
    %v4604 = vadd.f32 0.0, %v4603
    %v4605 = vpop.f32.mrb[0].mxu0
    %v4606 = vadd.f32 0.0, %v4605
    %4607 = vmatprep.mubr.f32.mxu0 %v4507
    %4608 = vmatmul.mubr.f32.gmra.mrb[0].mxu0 %v4482
    %v4609 = vpop.f32.mrb[0].mxu0
    %v4610 = vadd.f32 0.0, %v4609
    %v4611 = vpop.f32.mrb[0].mxu0
    %v4612 = vadd.f32 0.0, %v4611
    %4613 = vmatprep.mubr.f32.mxu0 %v4509
    %4614 = vmatmul.mubr.f32.gmra.mrb[0].mxu0 %v4486
    %v4615 = vpop.f32.mrb[0].mxu0
    %v4616 = vadd.f32 0.0, %v4615
    %v4617 = vpop.f32.mrb[0].mxu0
    %v4618 = vadd.f32 0.0, %v4617
    %4619 = vmatprep.mubr.f32.mxu0 %v4511
    %4620 = vmatmul.mubr.f32.gmra.mrb[0].mxu0 %v4485
    %v4621 = vpop.f32.mrb[0].mxu0
    %v4622 = vadd.f32 0.0, %v4621
    %v4623 = vpop.f32.mrb[0].mxu0
    %v4624 = vadd.f32 0.0, %v4623
    %4625 = vdwg.mxu0
    %v4626 = vadd.f32 %v4364, %v4580
    %v4627 = vadd.f32 %v4366, %v4582
    %v4628 = vadd.f32 %v4370, %v4586
    %v4629 = vadd.f32 %v4372, %v4588
    %v4630 = vadd.f32 %v4376, %v4592
    %v4631 = vadd.f32 %v4378, %v4594
    %v4632 = vadd.f32 %v4382, %v4598
    %v4633 = vadd.f32 %v4384, %v4600
    %v4634 = vadd.f32 %v4388, %v4604
    %v4635 = vadd.f32 %v4390, %v4606
    %v4636 = vadd.f32 %v4394, %v4610
    %v4637 = vadd.f32 %v4396, %v4612
    %v4638 = vadd.f32 %v4400, %v4616
    %v4639 = vadd.f32 %v4402, %v4618
    %v4640 = vadd.f32 %v4406, %v4622
    %v4641 = vadd.f32 %v4408, %v4624
    %v4642 = vld [vmem:[#allocation26] sm:$0x3]
    %v4644 = vlaneseq
    %v4645 = vshrl.u32 %v4644, 7
    %v4646 = vsub.s32 0, %v4645
    %v4647 = vrot.slane %v4642, %v4646
    %v4648 = vlaneseq
    %v4649 = vshrl.u32 %v4648, 7
    %v4650 = vsub.s32 1, %v4649
    %v4651 = vrot.slane %v4642, %v4650
    %v4654 = vadd.f32 %v4626, %v4647
    %v4655 = vadd.f32 %v4627, %v4651
    %v4656 = vadd.f32 %v4628, %v4647
    %v4657 = vadd.f32 %v4629, %v4651
    %v4658 = vadd.f32 %v4630, %v4647
    %v4659 = vadd.f32 %v4631, %v4651
    %v4660 = vadd.f32 %v4632, %v4647
    %v4661 = vadd.f32 %v4633, %v4651
    %v4662 = vadd.f32 %v4634, %v4647
    %v4663 = vadd.f32 %v4635, %v4651
    %v4664 = vadd.f32 %v4636, %v4647
    %v4665 = vadd.f32 %v4637, %v4651
    %v4666 = vadd.f32 %v4638, %v4647
    %v4667 = vadd.f32 %v4639, %v4651
    %v4668 = vadd.f32 %v4640, %v4647
    %v4669 = vadd.f32 %v4641, %v4651
    %v4670 = vmax.f32 %v4654, 0.0
    %v4671 = vmax.f32 %v4655, 0.0
    %v4672 = vmax.f32 %v4656, 0.0
    %v4673 = vmax.f32 %v4657, 0.0
    %v4674 = vmax.f32 %v4658, 0.0
    %v4675 = vmax.f32 %v4659, 0.0
    %v4676 = vmax.f32 %v4660, 0.0
    %v4677 = vmax.f32 %v4661, 0.0
    %v4678 = vmax.f32 %v4662, 0.0
    %v4679 = vmax.f32 %v4663, 0.0
    %v4680 = vmax.f32 %v4664, 0.0
    %v4681 = vmax.f32 %v4665, 0.0
    %v4682 = vmax.f32 %v4666, 0.0
    %v4683 = vmax.f32 %v4667, 0.0
    %v4684 = vmax.f32 %v4668, 0.0
    %v4685 = vmax.f32 %v4669, 0.0
    %v4686 = vadd.f32 %v4670, %v4672
    %v4687 = vadd.f32 %v4686, %v4674
    %v4688 = vadd.f32 %v4687, %v4676
    %v4689 = vadd.f32 %v4688, %v4678
    %v4690 = vadd.f32 %v4689, %v4680
    %v4691 = vadd.f32 %v4690, %v4682
    %vm4692 = vcmask 1043456
    %v4693 = vsel %vm4692, %v4684, 0.0
    %v4694 = vadd.f32 %v4691, %v4693
    %v4695 = vrot.slane %v4694, 4
    %v4696 = vadd.f32 %v4694, %v4695
    %v4697 = vrot.slane %v4696, 2
    %v4698 = vadd.f32 %v4696, %v4697
    %v4699 = vrot.slane %v4698, 1
    %v4700 = vadd.f32 %v4698, %v4699
    %v4701 = vsel %vm3970, %v4671, 0.0
    %v4702 = vsel %vm3970, %v4673, 0.0
    %v4703 = vadd.f32 %v4701, %v4702
    %v4704 = vsel %vm3970, %v4675, 0.0
    %v4705 = vadd.f32 %v4703, %v4704
    %v4706 = vsel %vm3970, %v4677, 0.0
    %v4707 = vadd.f32 %v4705, %v4706
    %v4708 = vsel %vm3970, %v4679, 0.0
    %v4709 = vadd.f32 %v4707, %v4708
    %v4710 = vsel %vm3970, %v4681, 0.0
    %v4711 = vadd.f32 %v4709, %v4710
    %v4712 = vsel %vm3970, %v4683, 0.0
    %v4713 = vadd.f32 %v4711, %v4712
    %vm4714 = vcmask 519168
    %v4715 = vsel %vm4714, %v4685, 0.0
    %v4716 = vadd.f32 %v4713, %v4715
    %v4717 = vrot.slane %v4716, 4
    %v4718 = vadd.f32 %v4716, %v4717
    %v4719 = vrot.slane %v4718, 2
    %v4720 = vadd.f32 %v4718, %v4719
    %v4721 = vrot.slane %v4720, 1
    %v4722 = vadd.f32 %v4720, %v4721
    %v4723 = vrcp.pop 60.0
    %v4724 = vmul.f32 %v4700, %v4723
    %v4725 = vmul.f32 %v4722, %v4723
    %s4726 = scalar_lea.vmem %s0, 64
    %v4727 = vld [vmem:[%s4726] sm:$0xff]
    %v4728 = vld [vmem:[%s4726 + $0x8] sm:$0xff]
    %v4729 = vld [vmem:[%s4726 + $0x10] sm:$0xff]
    %v4730 = vld [vmem:[%s4726 + $0x18] sm:$0xff]
    %v4731 = vld [vmem:[%s4726 + $0x20] sm:$0xff]
    %v4732 = vld [vmem:[%s4726 + $0x28] sm:$0xff]
    %v4733 = vld [vmem:[%s4726 + $0x30] sm:$0xff]
    %v4734 = vld [vmem:[%s4726 + $0x38] sm:$0xf]
    %v4743 = vrot.slane %v4727, 7
    %v4744 = vrot.slane %v4728, 7
    %v4745 = vsel %vm302, %v4743, %v4744
    %v4746 = vrot.slane %v4729, 7
    %v4747 = vsel %vm302, %v4744, %v4746
    %v4748 = vrot.slane %v4730, 7
    %v4749 = vsel %vm302, %v4746, %v4748
    %v4750 = vrot.slane %v4731, 7
    %v4751 = vsel %vm302, %v4748, %v4750
    %v4752 = vrot.slane %v4732, 7
    %v4753 = vsel %vm302, %v4750, %v4752
    %v4754 = vrot.slane %v4733, 7
    %v4755 = vsel %vm302, %v4752, %v4754
    %v4756 = vrot.slane %v4734, 7
    %v4757 = vsel %vm302, %v4754, %v4756
    %4766 = vst.msk [vmem:[#allocation2] sm:$0xfe] %vm326, %v4743
    %4767 = vst.msk [vmem:[#allocation2 + $0x10] sm:$0xff] %vm328, %v4745
    %4768 = vst.msk [vmem:[#allocation2 + $0x20] sm:$0xff] %vm328, %v4747
    %4769 = vst.msk [vmem:[#allocation2 + $0x30] sm:$0xff] %vm328, %v4749
    %4770 = vst.msk [vmem:[#allocation2 + $0x40] sm:$0xff] %vm328, %v4751
    %4771 = vst.msk [vmem:[#allocation2 + $0x50] sm:$0xff] %vm328, %v4753
    %4772 = vst.msk [vmem:[#allocation2 + $0x60] sm:$0xff] %vm328, %v4755
    %4773 = vst.msk [vmem:[#allocation2 + $0x70] sm:$0x1f] %vm335, %v4757
    %v4774 = vld [vmem:[#allocation2] sm:$0xff]
    %v4775 = vld [vmem:[#allocation2 + $0x10] sm:$0xff]
    %v4776 = vld [vmem:[#allocation2 + $0x20] sm:$0xff]
    %v4777 = vld [vmem:[#allocation2 + $0x30] sm:$0xff]
    %v4778 = vld [vmem:[#allocation2 + $0x40] sm:$0xff]
    %v4779 = vld [vmem:[#allocation2 + $0x50] sm:$0xff]
    %v4780 = vld [vmem:[#allocation2 + $0x60] sm:$0xff]
    %v4781 = vld [vmem:[#allocation2 + $0x70] sm:$0x3f]
    %v4782 = vld [vmem:[#allocation4] sm:$0x3]
    %v4783 = vld [vmem:[%s346] sm:$0x3]
    %v4792 = vrot.slane %v4774, 1
    %v4793 = vrot.slane %v4775, 1
    %v4794 = vsel %vm356, %v4792, %v4793
    %v4795 = vrot.slane %v4776, 1
    %v4796 = vsel %vm356, %v4793, %v4795
    %v4797 = vrot.slane %v4777, 1
    %v4798 = vsel %vm356, %v4795, %v4797
    %v4799 = vrot.slane %v4778, 1
    %v4800 = vsel %vm356, %v4797, %v4799
    %v4801 = vrot.slane %v4779, 1
    %v4802 = vsel %vm356, %v4799, %v4801
    %v4803 = vrot.slane %v4780, 1
    %v4804 = vsel %vm356, %v4801, %v4803
    %v4805 = vrot.slane %v4781, 1
    %v4806 = vsel %vm356, %v4803, %v4805
    %v4807 = vsel %vm328, %v4794, 0
    %v4809 = vsel %vm328, %v4796, 0
    %v4811 = vsel %vm328, %v4798, 0
    %v4813 = vsel %vm328, %v4800, 0
    %v4815 = vsel %vm328, %v4802, 0
    %v4817 = vsel %vm328, %v4804, 0
    %v4819 = vsel %vm328, %v4806, 0
    %v4821 = vsel %vm328, %v4805, 0
    %v4824 = vsel %vm388, %v4783, 0
    %4826 = vmatprep.subr.mxu0 0.0
    %4827 = vmatpush1.msra.mxu0 %v4824
    %4828 = vmatprep.subr.mxu0 0.0
    %4829 = vmatpush1.msra.mxu0 0.0
    %4830 = vmatprep.subr.mxu0 0.0
    %4831 = vmatpush1.msra.mxu0 0.0
    %4832 = vmatprep.subr.mxu0 0.0
    %4833 = vmatpush1.msra.mxu0 0.0
    %4834 = vmatprep.subr.mxu0 0.0
    %4835 = vmatpush1.msra.mxu0 0.0
    %4836 = vmatprep.subr.mxu0 0.0
    %4837 = vmatpush1.msra.mxu0 0.0
    %4838 = vmatprep.subr.mxu0 0.0
    %4839 = vmatpush1.msra.mxu0 0.0
    %4840 = vmatprep.subr.mxu0 0.0
    %4841 = vmatpush1.msra.mxu0 0.0
    %4842 = vmatprep.subr.mxu0 0.0
    %4843 = vmatpush1.msra.mxu0 0.0
    %4844 = vmatprep.subr.mxu0 0.0
    %4845 = vmatpush1.msra.mxu0 0.0
    %4846 = vmatprep.subr.mxu0 0.0
    %4847 = vmatpush1.msra.mxu0 0.0
    %4848 = vmatprep.subr.mxu0 0.0
    %4849 = vmatpush1.msra.mxu0 0.0
    %4850 = vmatprep.subr.mxu0 0.0
    %4851 = vmatpush1.msra.mxu0 0.0
    %4852 = vmatprep.subr.mxu0 0.0
    %4853 = vmatpush1.msra.mxu0 0.0
    %4854 = vmatprep.subr.mxu0 0.0
    %4855 = vmatpush1.msra.mxu0 0.0
    %4856 = vmatprep.subr.mxu0 0.0
    %4857 = vmatpush1.msra.mxu0 0.0
    %4858 = vmatprep.subr.mxu0 0.0
    %4859 = vmatpush1.msra.mxu0 0.0
    %4860 = vmatprep.subr.mxu0 0.0
    %4861 = vmatpush1.msra.mxu0 0.0
    %4862 = vmatprep.subr.mxu0 0.0
    %4863 = vmatpush1.msra.mxu0 0.0
    %4864 = vmatprep.subr.mxu0 0.0
    %4865 = vmatpush1.msra.mxu0 0.0
    %4866 = vmatprep.subr.mxu0 0.0
    %4867 = vmatpush1.msra.mxu0 0.0
    %4868 = vmatprep.subr.mxu0 0.0
    %4869 = vmatpush1.msra.mxu0 0.0
    %4870 = vmatprep.subr.mxu0 0.0
    %4871 = vmatpush1.msra.mxu0 0.0
    %4872 = vmatprep.subr.mxu0 0.0
    %4873 = vmatpush1.msra.mxu0 0.0
    %4874 = vmatprep.subr.mxu0 0.0
    %4875 = vmatpush1.msra.mxu0 0.0
    %4876 = vmatprep.subr.mxu0 0.0
    %4877 = vmatpush1.msra.mxu0 0.0
    %4878 = vmatprep.subr.mxu0 0.0
    %4879 = vmatpush1.msra.mxu0 0.0
    %4880 = vmatprep.subr.mxu0 0.0
    %4881 = vmatpush1.msra.mxu0 0.0
    %4882 = vmatprep.subr.mxu0 0.0
    %4883 = vmatpush1.msra.mxu0 0.0
    %4884 = vmatprep.subr.mxu0 0.0
    %4885 = vmatpush1.msra.mxu0 0.0
    %4886 = vmatprep.subr.mxu0 0.0
    %4887 = vmatpush1.msra.mxu0 0.0
    %4888 = vmatprep.subr.mxu0 0.0
    %4889 = vmatpush1.msra.mxu0 0.0
    %4890 = vmatprep.mubr.f32.mxu0 0.0
    %4891 = vmatmul.mubr.f32.gmra.mrb[0].mxu0 %v4807
    %v4892 = vpop.f32.mrb[0].mxu0
    %v4893 = vadd.f32 0.0, %v4892
    %v4894 = vpop.f32.mrb[0].mxu0
    %4895 = vmatprep.mubr.f32.mxu0 0.0
    %4896 = vmatmul.mubr.f32.gmra.mrb[0].mxu0 %v4809
    %v4897 = vpop.f32.mrb[0].mxu0
    %v4898 = vadd.f32 0.0, %v4897
    %v4899 = vpop.f32.mrb[0].mxu0
    %4900 = vmatprep.mubr.f32.mxu0 0.0
    %4901 = vmatmul.mubr.f32.gmra.mrb[0].mxu0 %v4811
    %v4902 = vpop.f32.mrb[0].mxu0
    %v4903 = vadd.f32 0.0, %v4902
    %v4904 = vpop.f32.mrb[0].mxu0
    %4905 = vmatprep.mubr.f32.mxu0 0.0
    %4906 = vmatmul.mubr.f32.gmra.mrb[0].mxu0 %v4813
    %v4907 = vpop.f32.mrb[0].mxu0
    %v4908 = vadd.f32 0.0, %v4907
    %v4909 = vpop.f32.mrb[0].mxu0
    %4910 = vmatprep.mubr.f32.mxu0 0.0
    %4911 = vmatmul.mubr.f32.gmra.mrb[0].mxu0 %v4815
    %v4912 = vpop.f32.mrb[0].mxu0
    %v4913 = vadd.f32 0.0, %v4912
    %v4914 = vpop.f32.mrb[0].mxu0
    %4915 = vmatprep.mubr.f32.mxu0 0.0
    %4916 = vmatmul.mubr.f32.gmra.mrb[0].mxu0 %v4817
    %v4917 = vpop.f32.mrb[0].mxu0
    %v4918 = vadd.f32 0.0, %v4917
    %v4919 = vpop.f32.mrb[0].mxu0
    %4920 = vmatprep.mubr.f32.mxu0 0.0
    %4921 = vmatmul.mubr.f32.gmra.mrb[0].mxu0 %v4819
    %v4922 = vpop.f32.mrb[0].mxu0
    %v4923 = vadd.f32 0.0, %v4922
    %v4924 = vpop.f32.mrb[0].mxu0
    %4925 = vmatprep.mubr.f32.mxu0 0.0
    %4926 = vmatmul.mubr.f32.gmra.mrb[0].mxu0 %v4821
    %v4927 = vpop.f32.mrb[0].mxu0
    %v4928 = vadd.f32 0.0, %v4927
    %v4929 = vpop.f32.mrb[0].mxu0
    %4930 = vdwg.mxu0
    %v4931 = vsel %vm328, %v4774, 0
    %v4933 = vsel %vm328, %v4775, 0
    %v4935 = vsel %vm328, %v4776, 0
    %v4937 = vsel %vm328, %v4777, 0
    %v4939 = vsel %vm328, %v4778, 0
    %v4941 = vsel %vm328, %v4779, 0
    %v4943 = vsel %vm328, %v4780, 0
    %v4945 = vsel %vm328, %v4781, 0
    %v4948 = vsel %vm388, %v4782, 0
    %4950 = vmatprep.subr.mxu0 0.0
    %4951 = vmatpush1.msra.mxu0 %v4948
    %4952 = vmatprep.subr.mxu0 0.0
    %4953 = vmatpush1.msra.mxu0 0.0
    %4954 = vmatprep.subr.mxu0 0.0
    %4955 = vmatpush1.msra.mxu0 0.0
    %4956 = vmatprep.subr.mxu0 0.0
    %4957 = vmatpush1.msra.mxu0 0.0
    %4958 = vmatprep.subr.mxu0 0.0
    %4959 = vmatpush1.msra.mxu0 0.0
    %4960 = vmatprep.subr.mxu0 0.0
    %4961 = vmatpush1.msra.mxu0 0.0
    %4962 = vmatprep.subr.mxu0 0.0
    %4963 = vmatpush1.msra.mxu0 0.0
    %4964 = vmatprep.subr.mxu0 0.0
    %4965 = vmatpush1.msra.mxu0 0.0
    %4966 = vmatprep.subr.mxu0 0.0
    %4967 = vmatpush1.msra.mxu0 0.0
    %4968 = vmatprep.subr.mxu0 0.0
    %4969 = vmatpush1.msra.mxu0 0.0
    %4970 = vmatprep.subr.mxu0 0.0
    %4971 = vmatpush1.msra.mxu0 0.0
    %4972 = vmatprep.subr.mxu0 0.0
    %4973 = vmatpush1.msra.mxu0 0.0
    %4974 = vmatprep.subr.mxu0 0.0
    %4975 = vmatpush1.msra.mxu0 0.0
    %4976 = vmatprep.subr.mxu0 0.0
    %4977 = vmatpush1.msra.mxu0 0.0
    %4978 = vmatprep.subr.mxu0 0.0
    %4979 = vmatpush1.msra.mxu0 0.0
    %4980 = vmatprep.subr.mxu0 0.0
    %4981 = vmatpush1.msra.mxu0 0.0
    %4982 = vmatprep.subr.mxu0 0.0
    %4983 = vmatpush1.msra.mxu0 0.0
    %4984 = vmatprep.subr.mxu0 0.0
    %4985 = vmatpush1.msra.mxu0 0.0
    %4986 = vmatprep.subr.mxu0 0.0
    %4987 = vmatpush1.msra.mxu0 0.0
    %4988 = vmatprep.subr.mxu0 0.0
    %4989 = vmatpush1.msra.mxu0 0.0
    %4990 = vmatprep.subr.mxu0 0.0
    %4991 = vmatpush1.msra.mxu0 0.0
    %4992 = vmatprep.subr.mxu0 0.0
    %4993 = vmatpush1.msra.mxu0 0.0
    %4994 = vmatprep.subr.mxu0 0.0
    %4995 = vmatpush1.msra.mxu0 0.0
    %4996 = vmatprep.subr.mxu0 0.0
    %4997 = vmatpush1.msra.mxu0 0.0
    %4998 = vmatprep.subr.mxu0 0.0
    %4999 = vmatpush1.msra.mxu0 0.0
    %5000 = vmatprep.subr.mxu0 0.0
    %5001 = vmatpush1.msra.mxu0 0.0
    %5002 = vmatprep.subr.mxu0 0.0
    %5003 = vmatpush1.msra.mxu0 0.0
    %5004 = vmatprep.subr.mxu0 0.0
    %5005 = vmatpush1.msra.mxu0 0.0
    %5006 = vmatprep.subr.mxu0 0.0
    %5007 = vmatpush1.msra.mxu0 0.0
    %5008 = vmatprep.subr.mxu0 0.0
    %5009 = vmatpush1.msra.mxu0 0.0
    %5010 = vmatprep.subr.mxu0 0.0
    %5011 = vmatpush1.msra.mxu0 0.0
    %5012 = vmatprep.subr.mxu0 0.0
    %5013 = vmatpush1.msra.mxu0 0.0
    %5014 = vmatprep.mubr.f32.mxu0 0.0
    %5015 = vmatmul.mubr.f32.gmra.mrb[0].mxu0 %v4931
    %v5016 = vpop.f32.mrb[0].mxu0
    %v5017 = vadd.f32 %v4893, %v5016
    %v5018 = vpop.f32.mrb[0].mxu0
    %5019 = vmatprep.mubr.f32.mxu0 0.0
    %5020 = vmatmul.mubr.f32.gmra.mrb[0].mxu0 %v4933
    %v5021 = vpop.f32.mrb[0].mxu0
    %v5022 = vadd.f32 %v4898, %v5021
    %v5023 = vpop.f32.mrb[0].mxu0
    %5024 = vmatprep.mubr.f32.mxu0 0.0
    %5025 = vmatmul.mubr.f32.gmra.mrb[0].mxu0 %v4935
    %v5026 = vpop.f32.mrb[0].mxu0
    %v5027 = vadd.f32 %v4903, %v5026
    %v5028 = vpop.f32.mrb[0].mxu0
    %5029 = vmatprep.mubr.f32.mxu0 0.0
    %5030 = vmatmul.mubr.f32.gmra.mrb[0].mxu0 %v4937
    %v5031 = vpop.f32.mrb[0].mxu0
    %v5032 = vadd.f32 %v4908, %v5031
    %v5033 = vpop.f32.mrb[0].mxu0
    %5034 = vmatprep.mubr.f32.mxu0 0.0
    %5035 = vmatmul.mubr.f32.gmra.mrb[0].mxu0 %v4939
    %v5036 = vpop.f32.mrb[0].mxu0
    %v5037 = vadd.f32 %v4913, %v5036
    %v5038 = vpop.f32.mrb[0].mxu0
    %5039 = vmatprep.mubr.f32.mxu0 0.0
    %5040 = vmatmul.mubr.f32.gmra.mrb[0].mxu0 %v4941
    %v5041 = vpop.f32.mrb[0].mxu0
    %v5042 = vadd.f32 %v4918, %v5041
    %v5043 = vpop.f32.mrb[0].mxu0
    %5044 = vmatprep.mubr.f32.mxu0 0.0
    %5045 = vmatmul.mubr.f32.gmra.mrb[0].mxu0 %v4943
    %v5046 = vpop.f32.mrb[0].mxu0
    %v5047 = vadd.f32 %v4923, %v5046
    %v5048 = vpop.f32.mrb[0].mxu0
    %5049 = vmatprep.mubr.f32.mxu0 0.0
    %5050 = vmatmul.mubr.f32.gmra.mrb[0].mxu0 %v4945
    %v5051 = vpop.f32.mrb[0].mxu0
    %v5052 = vadd.f32 %v4928, %v5051
    %v5053 = vpop.f32.mrb[0].mxu0
    %5054 = vdwg.mxu0
    %v5055 = vld [vmem:[%s621] sm:$0x3]
    %v5056 = vrot.slane %v4774, 2
    %v5057 = vrot.slane %v4775, 2
    %v5058 = vsel %vm623, %v5056, %v5057
    %v5059 = vrot.slane %v4776, 2
    %v5060 = vsel %vm623, %v5057, %v5059
    %v5061 = vrot.slane %v4777, 2
    %v5062 = vsel %vm623, %v5059, %v5061
    %v5063 = vrot.slane %v4778, 2
    %v5064 = vsel %vm623, %v5061, %v5063
    %v5065 = vrot.slane %v4779, 2
    %v5066 = vsel %vm623, %v5063, %v5065
    %v5067 = vrot.slane %v4780, 2
    %v5068 = vsel %vm623, %v5065, %v5067
    %v5069 = vrot.slane %v4781, 2
    %v5070 = vsel %vm623, %v5067, %v5069
    %v5071 = vsel %vm328, %v5058, 0
    %v5073 = vsel %vm328, %v5060, 0
    %v5075 = vsel %vm328, %v5062, 0
    %v5077 = vsel %vm328, %v5064, 0
    %v5079 = vsel %vm328, %v5066, 0
    %v5081 = vsel %vm328, %v5068, 0
    %v5083 = vsel %vm328, %v5070, 0
    %v5085 = vsel %vm328, %v5069, 0
    %v5088 = vsel %vm388, %v5055, 0
    %5090 = vmatprep.subr.mxu0 0.0
    %5091 = vmatpush1.msra.mxu0 %v5088
    %5092 = vmatprep.subr.mxu0 0.0
    %5093 = vmatpush1.msra.mxu0 0.0
    %5094 = vmatprep.subr.mxu0 0.0
    %5095 = vmatpush1.msra.mxu0 0.0
    %5096 = vmatprep.subr.mxu0 0.0
    %5097 = vmatpush1.msra.mxu0 0.0
    %5098 = vmatprep.subr.mxu0 0.0
    %5099 = vmatpush1.msra.mxu0 0.0
    %5100 = vmatprep.subr.mxu0 0.0
    %5101 = vmatpush1.msra.mxu0 0.0
    %5102 = vmatprep.subr.mxu0 0.0
    %5103 = vmatpush1.msra.mxu0 0.0
    %5104 = vmatprep.subr.mxu0 0.0
    %5105 = vmatpush1.msra.mxu0 0.0
    %5106 = vmatprep.subr.mxu0 0.0
    %5107 = vmatpush1.msra.mxu0 0.0
    %5108 = vmatprep.subr.mxu0 0.0
    %5109 = vmatpush1.msra.mxu0 0.0
    %5110 = vmatprep.subr.mxu0 0.0
    %5111 = vmatpush1.msra.mxu0 0.0
    %5112 = vmatprep.subr.mxu0 0.0
    %5113 = vmatpush1.msra.mxu0 0.0
    %5114 = vmatprep.subr.mxu0 0.0
    %5115 = vmatpush1.msra.mxu0 0.0
    %5116 = vmatprep.subr.mxu0 0.0
    %5117 = vmatpush1.msra.mxu0 0.0
    %5118 = vmatprep.subr.mxu0 0.0
    %5119 = vmatpush1.msra.mxu0 0.0
    %5120 = vmatprep.subr.mxu0 0.0
    %5121 = vmatpush1.msra.mxu0 0.0
    %5122 = vmatprep.subr.mxu0 0.0
    %5123 = vmatpush1.msra.mxu0 0.0
    %5124 = vmatprep.subr.mxu0 0.0
    %5125 = vmatpush1.msra.mxu0 0.0
    %5126 = vmatprep.subr.mxu0 0.0
    %5127 = vmatpush1.msra.mxu0 0.0
    %5128 = vmatprep.subr.mxu0 0.0
    %5129 = vmatpush1.msra.mxu0 0.0
    %5130 = vmatprep.subr.mxu0 0.0
    %5131 = vmatpush1.msra.mxu0 0.0
    %5132 = vmatprep.subr.mxu0 0.0
    %5133 = vmatpush1.msra.mxu0 0.0
    %5134 = vmatprep.subr.mxu0 0.0
    %5135 = vmatpush1.msra.mxu0 0.0
    %5136 = vmatprep.subr.mxu0 0.0
    %5137 = vmatpush1.msra.mxu0 0.0
    %5138 = vmatprep.subr.mxu0 0.0
    %5139 = vmatpush1.msra.mxu0 0.0
    %5140 = vmatprep.subr.mxu0 0.0
    %5141 = vmatpush1.msra.mxu0 0.0
    %5142 = vmatprep.subr.mxu0 0.0
    %5143 = vmatpush1.msra.mxu0 0.0
    %5144 = vmatprep.subr.mxu0 0.0
    %5145 = vmatpush1.msra.mxu0 0.0
    %5146 = vmatprep.subr.mxu0 0.0
    %5147 = vmatpush1.msra.mxu0 0.0
    %5148 = vmatprep.subr.mxu0 0.0
    %5149 = vmatpush1.msra.mxu0 0.0
    %5150 = vmatprep.subr.mxu0 0.0
    %5151 = vmatpush1.msra.mxu0 0.0
    %5152 = vmatprep.subr.mxu0 0.0
    %5153 = vmatpush1.msra.mxu0 0.0
    %5154 = vmatprep.mubr.f32.mxu0 0.0
    %5155 = vmatmul.mubr.f32.gmra.mrb[0].mxu0 %v5071
    %v5156 = vpop.f32.mrb[0].mxu0
    %v5157 = vadd.f32 0.0, %v5156
    %v5158 = vpop.f32.mrb[0].mxu0
    %5159 = vmatprep.mubr.f32.mxu0 0.0
    %5160 = vmatmul.mubr.f32.gmra.mrb[0].mxu0 %v5073
    %v5161 = vpop.f32.mrb[0].mxu0
    %v5162 = vadd.f32 0.0, %v5161
    %v5163 = vpop.f32.mrb[0].mxu0
    %5164 = vmatprep.mubr.f32.mxu0 0.0
    %5165 = vmatmul.mubr.f32.gmra.mrb[0].mxu0 %v5075
    %v5166 = vpop.f32.mrb[0].mxu0
    %v5167 = vadd.f32 0.0, %v5166
    %v5168 = vpop.f32.mrb[0].mxu0
    %5169 = vmatprep.mubr.f32.mxu0 0.0
    %5170 = vmatmul.mubr.f32.gmra.mrb[0].mxu0 %v5077
    %v5171 = vpop.f32.mrb[0].mxu0
    %v5172 = vadd.f32 0.0, %v5171
    %v5173 = vpop.f32.mrb[0].mxu0
    %5174 = vmatprep.mubr.f32.mxu0 0.0
    %5175 = vmatmul.mubr.f32.gmra.mrb[0].mxu0 %v5079
    %v5176 = vpop.f32.mrb[0].mxu0
    %v5177 = vadd.f32 0.0, %v5176
    %v5178 = vpop.f32.mrb[0].mxu0
    %5179 = vmatprep.mubr.f32.mxu0 0.0
    %5180 = vmatmul.mubr.f32.gmra.mrb[0].mxu0 %v5081
    %v5181 = vpop.f32.mrb[0].mxu0
    %v5182 = vadd.f32 0.0, %v5181
    %v5183 = vpop.f32.mrb[0].mxu0
    %5184 = vmatprep.mubr.f32.mxu0 0.0
    %5185 = vmatmul.mubr.f32.gmra.mrb[0].mxu0 %v5083
    %v5186 = vpop.f32.mrb[0].mxu0
    %v5187 = vadd.f32 0.0, %v5186
    %v5188 = vpop.f32.mrb[0].mxu0
    %5189 = vmatprep.mubr.f32.mxu0 0.0
    %5190 = vmatmul.mubr.f32.gmra.mrb[0].mxu0 %v5085
    %v5191 = vpop.f32.mrb[0].mxu0
    %v5192 = vadd.f32 0.0, %v5191
    %v5193 = vpop.f32.mrb[0].mxu0
    %5194 = vdwg.mxu0
    %v5195 = vadd.f32 %v5017, %v5157
    %v5196 = vadd.f32 %v5022, %v5162
    %v5197 = vadd.f32 %v5027, %v5167
    %v5198 = vadd.f32 %v5032, %v5172
    %v5199 = vadd.f32 %v5037, %v5177
    %v5200 = vadd.f32 %v5042, %v5182
    %v5201 = vadd.f32 %v5047, %v5187
    %v5202 = vadd.f32 %v5052, %v5192
    %v5203 = vld [vmem:[#allocation6] sm:$0x1]
    %v5205 = vlaneseq
    %v5206 = vshrl.u32 %v5205, 7
    %v5207 = vsub.s32 0, %v5206
    %v5208 = vrot.slane %v5203, %v5207
    %v5210 = vadd.f32 %v5195, %v5208
    %v5211 = vadd.f32 %v5196, %v5208
    %v5212 = vadd.f32 %v5197, %v5208
    %v5213 = vadd.f32 %v5198, %v5208
    %v5214 = vadd.f32 %v5199, %v5208
    %v5215 = vadd.f32 %v5200, %v5208
    %v5216 = vadd.f32 %v5201, %v5208
    %v5217 = vadd.f32 %v5202, %v5208
    %v5218 = vmax.f32 %v5210, 0.0
    %v5219 = vmax.f32 %v5211, 0.0
    %v5220 = vmax.f32 %v5212, 0.0
    %v5221 = vmax.f32 %v5213, 0.0
    %v5222 = vmax.f32 %v5214, 0.0
    %v5223 = vmax.f32 %v5215, 0.0
    %v5224 = vmax.f32 %v5216, 0.0
    %v5225 = vmax.f32 %v5217, 0.0
    %v5234 = vrot.slane %v5218, 7
    %v5235 = vrot.slane %v5219, 7
    %v5236 = vsel %vm302, %v5234, %v5235
    %v5237 = vrot.slane %v5220, 7
    %v5238 = vsel %vm302, %v5235, %v5237
    %v5239 = vrot.slane %v5221, 7
    %v5240 = vsel %vm302, %v5237, %v5239
    %v5241 = vrot.slane %v5222, 7
    %v5242 = vsel %vm302, %v5239, %v5241
    %v5243 = vrot.slane %v5223, 7
    %v5244 = vsel %vm302, %v5241, %v5243
    %v5245 = vrot.slane %v5224, 7
    %v5246 = vsel %vm302, %v5243, %v5245
    %v5247 = vrot.slane %v5225, 7
    %v5248 = vsel %vm302, %v5245, %v5247
    %5257 = vst.msk [vmem:[#allocation2] sm:$0xfe] %vm825, %v5234
    %5258 = vst.msk [vmem:[#allocation2 + $0x10] sm:$0xff] %vm827, %v5236
    %5259 = vst.msk [vmem:[#allocation2 + $0x20] sm:$0xff] %vm827, %v5238
    %5260 = vst.msk [vmem:[#allocation2 + $0x30] sm:$0xff] %vm827, %v5240
    %5261 = vst.msk [vmem:[#allocation2 + $0x40] sm:$0xff] %vm827, %v5242
    %5262 = vst.msk [vmem:[#allocation2 + $0x50] sm:$0xff] %vm827, %v5244
    %5263 = vst.msk [vmem:[#allocation2 + $0x60] sm:$0xff] %vm827, %v5246
    %5264 = vst.msk [vmem:[#allocation2 + $0x70] sm:$0x1f] %vm834, %v5248
    %v5265 = vld [vmem:[#allocation2] sm:$0xff]
    %v5266 = vld [vmem:[#allocation2 + $0x10] sm:$0xff]
    %v5267 = vld [vmem:[#allocation2 + $0x20] sm:$0xff]
    %v5268 = vld [vmem:[#allocation2 + $0x30] sm:$0xff]
    %v5269 = vld [vmem:[#allocation2 + $0x40] sm:$0xff]
    %v5270 = vld [vmem:[#allocation2 + $0x50] sm:$0xff]
    %v5271 = vld [vmem:[#allocation2 + $0x60] sm:$0xff]
    %v5272 = vld [vmem:[#allocation2 + $0x70] sm:$0x3f]
    %v5273 = vld [vmem:[#allocation8] sm:$0xff]
    %v5274 = vld [vmem:[#allocation8 + $0x8] sm:$0xff]
    %v5275 = vld [vmem:[#allocation8 + $0x10] sm:$0xff]
    %v5276 = vld [vmem:[%s847] sm:$0xff]
    %v5277 = vld [vmem:[%s847 + $0x8] sm:$0xff]
    %v5278 = vld [vmem:[%s847 + $0x10] sm:$0xff]
    %v5287 = vrot.slane %v5265, 1
    %v5288 = vrot.slane %v5266, 1
    %v5289 = vsel %vm356, %v5287, %v5288
    %v5290 = vrot.slane %v5267, 1
    %v5291 = vsel %vm356, %v5288, %v5290
    %v5292 = vrot.slane %v5268, 1
    %v5293 = vsel %vm356, %v5290, %v5292
    %v5294 = vrot.slane %v5269, 1
    %v5295 = vsel %vm356, %v5292, %v5294
    %v5296 = vrot.slane %v5270, 1
    %v5297 = vsel %vm356, %v5294, %v5296
    %v5298 = vrot.slane %v5271, 1
    %v5299 = vsel %vm356, %v5296, %v5298
    %v5300 = vrot.slane %v5272, 1
    %v5301 = vsel %vm356, %v5298, %v5300
    %v5302 = vsel %vm827, %v5289, 0
    %v5304 = vsel %vm827, %v5291, 0
    %v5306 = vsel %vm827, %v5293, 0
    %v5308 = vsel %vm827, %v5295, 0
    %v5310 = vsel %vm827, %v5297, 0
    %v5312 = vsel %vm827, %v5299, 0
    %v5314 = vsel %vm827, %v5301, 0
    %v5316 = vsel %vm827, %v5300, 0
    %5318 = vmatprep.subr.mxu0 0.0
    %5319 = vmatpush1.msra.mxu0 %v5276
    %5320 = vmatprep.subr.mxu0 0.0
    %5321 = vmatpush1.msra.mxu0 %v5277
    %5322 = vmatprep.subr.mxu0 0.0
    %5323 = vmatpush1.msra.mxu0 %v5278
    %5324 = vmatprep.subr.mxu0 0.0
    %5325 = vmatpush1.msra.mxu0 0.0
    %5326 = vmatprep.subr.mxu0 0.0
    %5327 = vmatpush1.msra.mxu0 0.0
    %5328 = vmatprep.subr.mxu0 0.0
    %5329 = vmatpush1.msra.mxu0 0.0
    %5330 = vmatprep.subr.mxu0 0.0
    %5331 = vmatpush1.msra.mxu0 0.0
    %5332 = vmatprep.subr.mxu0 0.0
    %5333 = vmatpush1.msra.mxu0 0.0
    %5334 = vmatprep.subr.mxu0 0.0
    %5335 = vmatpush1.msra.mxu0 0.0
    %5336 = vmatprep.subr.mxu0 0.0
    %5337 = vmatpush1.msra.mxu0 0.0
    %5338 = vmatprep.subr.mxu0 0.0
    %5339 = vmatpush1.msra.mxu0 0.0
    %5340 = vmatprep.subr.mxu0 0.0
    %5341 = vmatpush1.msra.mxu0 0.0
    %5342 = vmatprep.subr.mxu0 0.0
    %5343 = vmatpush1.msra.mxu0 0.0
    %5344 = vmatprep.subr.mxu0 0.0
    %5345 = vmatpush1.msra.mxu0 0.0
    %5346 = vmatprep.subr.mxu0 0.0
    %5347 = vmatpush1.msra.mxu0 0.0
    %5348 = vmatprep.subr.mxu0 0.0
    %5349 = vmatpush1.msra.mxu0 0.0
    %5350 = vmatprep.subr.mxu0 0.0
    %5351 = vmatpush1.msra.mxu0 0.0
    %5352 = vmatprep.subr.mxu0 0.0
    %5353 = vmatpush1.msra.mxu0 0.0
    %5354 = vmatprep.subr.mxu0 0.0
    %5355 = vmatpush1.msra.mxu0 0.0
    %5356 = vmatprep.subr.mxu0 0.0
    %5357 = vmatpush1.msra.mxu0 0.0
    %5358 = vmatprep.subr.mxu0 0.0
    %5359 = vmatpush1.msra.mxu0 0.0
    %5360 = vmatprep.subr.mxu0 0.0
    %5361 = vmatpush1.msra.mxu0 0.0
    %5362 = vmatprep.subr.mxu0 0.0
    %5363 = vmatpush1.msra.mxu0 0.0
    %5364 = vmatprep.subr.mxu0 0.0
    %5365 = vmatpush1.msra.mxu0 0.0
    %5366 = vmatprep.subr.mxu0 0.0
    %5367 = vmatpush1.msra.mxu0 0.0
    %5368 = vmatprep.subr.mxu0 0.0
    %5369 = vmatpush1.msra.mxu0 0.0
    %5370 = vmatprep.subr.mxu0 0.0
    %5371 = vmatpush1.msra.mxu0 0.0
    %5372 = vmatprep.subr.mxu0 0.0
    %5373 = vmatpush1.msra.mxu0 0.0
    %5374 = vmatprep.subr.mxu0 0.0
    %5375 = vmatpush1.msra.mxu0 0.0
    %5376 = vmatprep.subr.mxu0 0.0
    %5377 = vmatpush1.msra.mxu0 0.0
    %5378 = vmatprep.subr.mxu0 0.0
    %5379 = vmatpush1.msra.mxu0 0.0
    %5380 = vmatprep.subr.mxu0 0.0
    %5381 = vmatpush1.msra.mxu0 0.0
    %5382 = vmatprep.mubr.f32.mxu0 0.0
    %5383 = vmatmul.mubr.f32.gmra.mrb[0].mxu0 %v5302
    %v5384 = vpop.f32.mrb[0].mxu0
    %v5385 = vadd.f32 0.0, %v5384
    %v5386 = vpop.f32.mrb[0].mxu0
    %5387 = vmatprep.mubr.f32.mxu0 0.0
    %5388 = vmatmul.mubr.f32.gmra.mrb[0].mxu0 %v5304
    %v5389 = vpop.f32.mrb[0].mxu0
    %v5390 = vadd.f32 0.0, %v5389
    %v5391 = vpop.f32.mrb[0].mxu0
    %5392 = vmatprep.mubr.f32.mxu0 0.0
    %5393 = vmatmul.mubr.f32.gmra.mrb[0].mxu0 %v5306
    %v5394 = vpop.f32.mrb[0].mxu0
    %v5395 = vadd.f32 0.0, %v5394
    %v5396 = vpop.f32.mrb[0].mxu0
    %5397 = vmatprep.mubr.f32.mxu0 0.0
    %5398 = vmatmul.mubr.f32.gmra.mrb[0].mxu0 %v5308
    %v5399 = vpop.f32.mrb[0].mxu0
    %v5400 = vadd.f32 0.0, %v5399
    %v5401 = vpop.f32.mrb[0].mxu0
    %5402 = vmatprep.mubr.f32.mxu0 0.0
    %5403 = vmatmul.mubr.f32.gmra.mrb[0].mxu0 %v5310
    %v5404 = vpop.f32.mrb[0].mxu0
    %v5405 = vadd.f32 0.0, %v5404
    %v5406 = vpop.f32.mrb[0].mxu0
    %5407 = vmatprep.mubr.f32.mxu0 0.0
    %5408 = vmatmul.mubr.f32.gmra.mrb[0].mxu0 %v5312
    %v5409 = vpop.f32.mrb[0].mxu0
    %v5410 = vadd.f32 0.0, %v5409
    %v5411 = vpop.f32.mrb[0].mxu0
    %5412 = vmatprep.mubr.f32.mxu0 0.0
    %5413 = vmatmul.mubr.f32.gmra.mrb[0].mxu0 %v5314
    %v5414 = vpop.f32.mrb[0].mxu0
    %v5415 = vadd.f32 0.0, %v5414
    %v5416 = vpop.f32.mrb[0].mxu0
    %5417 = vmatprep.mubr.f32.mxu0 0.0
    %5418 = vmatmul.mubr.f32.gmra.mrb[0].mxu0 %v5316
    %v5419 = vpop.f32.mrb[0].mxu0
    %v5420 = vadd.f32 0.0, %v5419
    %v5421 = vpop.f32.mrb[0].mxu0
    %5422 = vdwg.mxu0
    %v5423 = vsel %vm827, %v5265, 0
    %v5425 = vsel %vm827, %v5266, 0
    %v5427 = vsel %vm827, %v5267, 0
    %v5429 = vsel %vm827, %v5268, 0
    %v5431 = vsel %vm827, %v5269, 0
    %v5433 = vsel %vm827, %v5270, 0
    %v5435 = vsel %vm827, %v5271, 0
    %v5437 = vsel %vm827, %v5272, 0
    %5439 = vmatprep.subr.mxu0 0.0
    %5440 = vmatpush1.msra.mxu0 %v5273
    %5441 = vmatprep.subr.mxu0 0.0
    %5442 = vmatpush1.msra.mxu0 %v5274
    %5443 = vmatprep.subr.mxu0 0.0
    %5444 = vmatpush1.msra.mxu0 %v5275
    %5445 = vmatprep.subr.mxu0 0.0
    %5446 = vmatpush1.msra.mxu0 0.0
    %5447 = vmatprep.subr.mxu0 0.0
    %5448 = vmatpush1.msra.mxu0 0.0
    %5449 = vmatprep.subr.mxu0 0.0
    %5450 = vmatpush1.msra.mxu0 0.0
    %5451 = vmatprep.subr.mxu0 0.0
    %5452 = vmatpush1.msra.mxu0 0.0
    %5453 = vmatprep.subr.mxu0 0.0
    %5454 = vmatpush1.msra.mxu0 0.0
    %5455 = vmatprep.subr.mxu0 0.0
    %5456 = vmatpush1.msra.mxu0 0.0
    %5457 = vmatprep.subr.mxu0 0.0
    %5458 = vmatpush1.msra.mxu0 0.0
    %5459 = vmatprep.subr.mxu0 0.0
    %5460 = vmatpush1.msra.mxu0 0.0
    %5461 = vmatprep.subr.mxu0 0.0
    %5462 = vmatpush1.msra.mxu0 0.0
    %5463 = vmatprep.subr.mxu0 0.0
    %5464 = vmatpush1.msra.mxu0 0.0
    %5465 = vmatprep.subr.mxu0 0.0
    %5466 = vmatpush1.msra.mxu0 0.0
    %5467 = vmatprep.subr.mxu0 0.0
    %5468 = vmatpush1.msra.mxu0 0.0
    %5469 = vmatprep.subr.mxu0 0.0
    %5470 = vmatpush1.msra.mxu0 0.0
    %5471 = vmatprep.subr.mxu0 0.0
    %5472 = vmatpush1.msra.mxu0 0.0
    %5473 = vmatprep.subr.mxu0 0.0
    %5474 = vmatpush1.msra.mxu0 0.0
    %5475 = vmatprep.subr.mxu0 0.0
    %5476 = vmatpush1.msra.mxu0 0.0
    %5477 = vmatprep.subr.mxu0 0.0
    %5478 = vmatpush1.msra.mxu0 0.0
    %5479 = vmatprep.subr.mxu0 0.0
    %5480 = vmatpush1.msra.mxu0 0.0
    %5481 = vmatprep.subr.mxu0 0.0
    %5482 = vmatpush1.msra.mxu0 0.0
    %5483 = vmatprep.subr.mxu0 0.0
    %5484 = vmatpush1.msra.mxu0 0.0
    %5485 = vmatprep.subr.mxu0 0.0
    %5486 = vmatpush1.msra.mxu0 0.0
    %5487 = vmatprep.subr.mxu0 0.0
    %5488 = vmatpush1.msra.mxu0 0.0
    %5489 = vmatprep.subr.mxu0 0.0
    %5490 = vmatpush1.msra.mxu0 0.0
    %5491 = vmatprep.subr.mxu0 0.0
    %5492 = vmatpush1.msra.mxu0 0.0
    %5493 = vmatprep.subr.mxu0 0.0
    %5494 = vmatpush1.msra.mxu0 0.0
    %5495 = vmatprep.subr.mxu0 0.0
    %5496 = vmatpush1.msra.mxu0 0.0
    %5497 = vmatprep.subr.mxu0 0.0
    %5498 = vmatpush1.msra.mxu0 0.0
    %5499 = vmatprep.subr.mxu0 0.0
    %5500 = vmatpush1.msra.mxu0 0.0
    %5501 = vmatprep.subr.mxu0 0.0
    %5502 = vmatpush1.msra.mxu0 0.0
    %5503 = vmatprep.mubr.f32.mxu0 0.0
    %5504 = vmatmul.mubr.f32.gmra.mrb[0].mxu0 %v5423
    %v5505 = vpop.f32.mrb[0].mxu0
    %v5506 = vadd.f32 %v5385, %v5505
    %v5507 = vpop.f32.mrb[0].mxu0
    %5508 = vmatprep.mubr.f32.mxu0 0.0
    %5509 = vmatmul.mubr.f32.gmra.mrb[0].mxu0 %v5425
    %v5510 = vpop.f32.mrb[0].mxu0
    %v5511 = vadd.f32 %v5390, %v5510
    %v5512 = vpop.f32.mrb[0].mxu0
    %5513 = vmatprep.mubr.f32.mxu0 0.0
    %5514 = vmatmul.mubr.f32.gmra.mrb[0].mxu0 %v5427
    %v5515 = vpop.f32.mrb[0].mxu0
    %v5516 = vadd.f32 %v5395, %v5515
    %v5517 = vpop.f32.mrb[0].mxu0
    %5518 = vmatprep.mubr.f32.mxu0 0.0
    %5519 = vmatmul.mubr.f32.gmra.mrb[0].mxu0 %v5429
    %v5520 = vpop.f32.mrb[0].mxu0
    %v5521 = vadd.f32 %v5400, %v5520
    %v5522 = vpop.f32.mrb[0].mxu0
    %5523 = vmatprep.mubr.f32.mxu0 0.0
    %5524 = vmatmul.mubr.f32.gmra.mrb[0].mxu0 %v5431
    %v5525 = vpop.f32.mrb[0].mxu0
    %v5526 = vadd.f32 %v5405, %v5525
    %v5527 = vpop.f32.mrb[0].mxu0
    %5528 = vmatprep.mubr.f32.mxu0 0.0
    %5529 = vmatmul.mubr.f32.gmra.mrb[0].mxu0 %v5433
    %v5530 = vpop.f32.mrb[0].mxu0
    %v5531 = vadd.f32 %v5410, %v5530
    %v5532 = vpop.f32.mrb[0].mxu0
    %5533 = vmatprep.mubr.f32.mxu0 0.0
    %5534 = vmatmul.mubr.f32.gmra.mrb[0].mxu0 %v5435
    %v5535 = vpop.f32.mrb[0].mxu0
    %v5536 = vadd.f32 %v5415, %v5535
    %v5537 = vpop.f32.mrb[0].mxu0
    %5538 = vmatprep.mubr.f32.mxu0 0.0
    %5539 = vmatmul.mubr.f32.gmra.mrb[0].mxu0 %v5437
    %v5540 = vpop.f32.mrb[0].mxu0
    %v5541 = vadd.f32 %v5420, %v5540
    %v5542 = vpop.f32.mrb[0].mxu0
    %5543 = vdwg.mxu0
    %v5544 = vld [vmem:[%s1116] sm:$0xff]
    %v5545 = vld [vmem:[%s1116 + $0x8] sm:$0xff]
    %v5546 = vld [vmem:[%s1116 + $0x10] sm:$0xff]
    %v5547 = vrot.slane %v5265, 2
    %v5548 = vrot.slane %v5266, 2
    %v5549 = vsel %vm623, %v5547, %v5548
    %v5550 = vrot.slane %v5267, 2
    %v5551 = vsel %vm623, %v5548, %v5550
    %v5552 = vrot.slane %v5268, 2
    %v5553 = vsel %vm623, %v5550, %v5552
    %v5554 = vrot.slane %v5269, 2
    %v5555 = vsel %vm623, %v5552, %v5554
    %v5556 = vrot.slane %v5270, 2
    %v5557 = vsel %vm623, %v5554, %v5556
    %v5558 = vrot.slane %v5271, 2
    %v5559 = vsel %vm623, %v5556, %v5558
    %v5560 = vrot.slane %v5272, 2
    %v5561 = vsel %vm623, %v5558, %v5560
    %v5562 = vsel %vm827, %v5549, 0
    %v5564 = vsel %vm827, %v5551, 0
    %v5566 = vsel %vm827, %v5553, 0
    %v5568 = vsel %vm827, %v5555, 0
    %v5570 = vsel %vm827, %v5557, 0
    %v5572 = vsel %vm827, %v5559, 0
    %v5574 = vsel %vm827, %v5561, 0
    %v5576 = vsel %vm827, %v5560, 0
    %5578 = vmatprep.subr.mxu0 0.0
    %5579 = vmatpush1.msra.mxu0 %v5544
    %5580 = vmatprep.subr.mxu0 0.0
    %5581 = vmatpush1.msra.mxu0 %v5545
    %5582 = vmatprep.subr.mxu0 0.0
    %5583 = vmatpush1.msra.mxu0 %v5546
    %5584 = vmatprep.subr.mxu0 0.0
    %5585 = vmatpush1.msra.mxu0 0.0
    %5586 = vmatprep.subr.mxu0 0.0
    %5587 = vmatpush1.msra.mxu0 0.0
    %5588 = vmatprep.subr.mxu0 0.0
    %5589 = vmatpush1.msra.mxu0 0.0
    %5590 = vmatprep.subr.mxu0 0.0
    %5591 = vmatpush1.msra.mxu0 0.0
    %5592 = vmatprep.subr.mxu0 0.0
    %5593 = vmatpush1.msra.mxu0 0.0
    %5594 = vmatprep.subr.mxu0 0.0
    %5595 = vmatpush1.msra.mxu0 0.0
    %5596 = vmatprep.subr.mxu0 0.0
    %5597 = vmatpush1.msra.mxu0 0.0
    %5598 = vmatprep.subr.mxu0 0.0
    %5599 = vmatpush1.msra.mxu0 0.0
    %5600 = vmatprep.subr.mxu0 0.0
    %5601 = vmatpush1.msra.mxu0 0.0
    %5602 = vmatprep.subr.mxu0 0.0
    %5603 = vmatpush1.msra.mxu0 0.0
    %5604 = vmatprep.subr.mxu0 0.0
    %5605 = vmatpush1.msra.mxu0 0.0
    %5606 = vmatprep.subr.mxu0 0.0
    %5607 = vmatpush1.msra.mxu0 0.0
    %5608 = vmatprep.subr.mxu0 0.0
    %5609 = vmatpush1.msra.mxu0 0.0
    %5610 = vmatprep.subr.mxu0 0.0
    %5611 = vmatpush1.msra.mxu0 0.0
    %5612 = vmatprep.subr.mxu0 0.0
    %5613 = vmatpush1.msra.mxu0 0.0
    %5614 = vmatprep.subr.mxu0 0.0
    %5615 = vmatpush1.msra.mxu0 0.0
    %5616 = vmatprep.subr.mxu0 0.0
    %5617 = vmatpush1.msra.mxu0 0.0
    %5618 = vmatprep.subr.mxu0 0.0
    %5619 = vmatpush1.msra.mxu0 0.0
    %5620 = vmatprep.subr.mxu0 0.0
    %5621 = vmatpush1.msra.mxu0 0.0
    %5622 = vmatprep.subr.mxu0 0.0
    %5623 = vmatpush1.msra.mxu0 0.0
    %5624 = vmatprep.subr.mxu0 0.0
    %5625 = vmatpush1.msra.mxu0 0.0
    %5626 = vmatprep.subr.mxu0 0.0
    %5627 = vmatpush1.msra.mxu0 0.0
    %5628 = vmatprep.subr.mxu0 0.0
    %5629 = vmatpush1.msra.mxu0 0.0
    %5630 = vmatprep.subr.mxu0 0.0
    %5631 = vmatpush1.msra.mxu0 0.0
    %5632 = vmatprep.subr.mxu0 0.0
    %5633 = vmatpush1.msra.mxu0 0.0
    %5634 = vmatprep.subr.mxu0 0.0
    %5635 = vmatpush1.msra.mxu0 0.0
    %5636 = vmatprep.subr.mxu0 0.0
    %5637 = vmatpush1.msra.mxu0 0.0
    %5638 = vmatprep.subr.mxu0 0.0
    %5639 = vmatpush1.msra.mxu0 0.0
    %5640 = vmatprep.subr.mxu0 0.0
    %5641 = vmatpush1.msra.mxu0 0.0
    %5642 = vmatprep.mubr.f32.mxu0 0.0
    %5643 = vmatmul.mubr.f32.gmra.mrb[0].mxu0 %v5562
    %v5644 = vpop.f32.mrb[0].mxu0
    %v5645 = vadd.f32 0.0, %v5644
    %v5646 = vpop.f32.mrb[0].mxu0
    %5647 = vmatprep.mubr.f32.mxu0 0.0
    %5648 = vmatmul.mubr.f32.gmra.mrb[0].mxu0 %v5564
    %v5649 = vpop.f32.mrb[0].mxu0
    %v5650 = vadd.f32 0.0, %v5649
    %v5651 = vpop.f32.mrb[0].mxu0
    %5652 = vmatprep.mubr.f32.mxu0 0.0
    %5653 = vmatmul.mubr.f32.gmra.mrb[0].mxu0 %v5566
    %v5654 = vpop.f32.mrb[0].mxu0
    %v5655 = vadd.f32 0.0, %v5654
    %v5656 = vpop.f32.mrb[0].mxu0
    %5657 = vmatprep.mubr.f32.mxu0 0.0
    %5658 = vmatmul.mubr.f32.gmra.mrb[0].mxu0 %v5568
    %v5659 = vpop.f32.mrb[0].mxu0
    %v5660 = vadd.f32 0.0, %v5659
    %v5661 = vpop.f32.mrb[0].mxu0
    %5662 = vmatprep.mubr.f32.mxu0 0.0
    %5663 = vmatmul.mubr.f32.gmra.mrb[0].mxu0 %v5570
    %v5664 = vpop.f32.mrb[0].mxu0
    %v5665 = vadd.f32 0.0, %v5664
    %v5666 = vpop.f32.mrb[0].mxu0
    %5667 = vmatprep.mubr.f32.mxu0 0.0
    %5668 = vmatmul.mubr.f32.gmra.mrb[0].mxu0 %v5572
    %v5669 = vpop.f32.mrb[0].mxu0
    %v5670 = vadd.f32 0.0, %v5669
    %v5671 = vpop.f32.mrb[0].mxu0
    %5672 = vmatprep.mubr.f32.mxu0 0.0
    %5673 = vmatmul.mubr.f32.gmra.mrb[0].mxu0 %v5574
    %v5674 = vpop.f32.mrb[0].mxu0
    %v5675 = vadd.f32 0.0, %v5674
    %v5676 = vpop.f32.mrb[0].mxu0
    %5677 = vmatprep.mubr.f32.mxu0 0.0
    %5678 = vmatmul.mubr.f32.gmra.mrb[0].mxu0 %v5576
    %v5679 = vpop.f32.mrb[0].mxu0
    %v5680 = vadd.f32 0.0, %v5679
    %v5681 = vpop.f32.mrb[0].mxu0
    %5682 = vdwg.mxu0
    %v5683 = vadd.f32 %v5506, %v5645
    %v5684 = vadd.f32 %v5511, %v5650
    %v5685 = vadd.f32 %v5516, %v5655
    %v5686 = vadd.f32 %v5521, %v5660
    %v5687 = vadd.f32 %v5526, %v5665
    %v5688 = vadd.f32 %v5531, %v5670
    %v5689 = vadd.f32 %v5536, %v5675
    %v5690 = vadd.f32 %v5541, %v5680
    %v5691 = vld [vmem:[#allocation9] sm:$0x1]
    %v5693 = vlaneseq
    %v5694 = vshrl.u32 %v5693, 7
    %v5695 = vsub.s32 0, %v5694
    %v5696 = vrot.slane %v5691, %v5695
    %v5698 = vadd.f32 %v5683, %v5696
    %v5699 = vadd.f32 %v5684, %v5696
    %v5700 = vadd.f32 %v5685, %v5696
    %v5701 = vadd.f32 %v5686, %v5696
    %v5702 = vadd.f32 %v5687, %v5696
    %v5703 = vadd.f32 %v5688, %v5696
    %v5704 = vadd.f32 %v5689, %v5696
    %v5705 = vadd.f32 %v5690, %v5696
    %v5706 = vmax.f32 %v5698, 0.0
    %v5707 = vmax.f32 %v5699, 0.0
    %v5708 = vmax.f32 %v5700, 0.0
    %v5709 = vmax.f32 %v5701, 0.0
    %v5710 = vmax.f32 %v5702, 0.0
    %v5711 = vmax.f32 %v5703, 0.0
    %v5712 = vmax.f32 %v5704, 0.0
    %v5713 = vmax.f32 %v5705, 0.0
    %v5722 = vrot.slane %v5706, 7
    %v5723 = vrot.slane %v5707, 7
    %v5724 = vsel %vm302, %v5722, %v5723
    %v5725 = vrot.slane %v5708, 7
    %v5726 = vsel %vm302, %v5723, %v5725
    %v5727 = vrot.slane %v5709, 7
    %v5728 = vsel %vm302, %v5725, %v5727
    %v5729 = vrot.slane %v5710, 7
    %v5730 = vsel %vm302, %v5727, %v5729
    %v5731 = vrot.slane %v5711, 7
    %v5732 = vsel %vm302, %v5729, %v5731
    %v5733 = vrot.slane %v5712, 7
    %v5734 = vsel %vm302, %v5731, %v5733
    %v5735 = vrot.slane %v5713, 7
    %v5736 = vsel %vm302, %v5733, %v5735
    %5745 = vst.msk [vmem:[#allocation2] sm:$0xfe] %vm825, %v5722
    %5746 = vst.msk [vmem:[#allocation2 + $0x10] sm:$0xff] %vm827, %v5724
    %5747 = vst.msk [vmem:[#allocation2 + $0x20] sm:$0xff] %vm827, %v5726
    %5748 = vst.msk [vmem:[#allocation2 + $0x30] sm:$0xff] %vm827, %v5728
    %5749 = vst.msk [vmem:[#allocation2 + $0x40] sm:$0xff] %vm827, %v5730
    %5750 = vst.msk [vmem:[#allocation2 + $0x50] sm:$0xff] %vm827, %v5732
    %5751 = vst.msk [vmem:[#allocation2 + $0x60] sm:$0xff] %vm827, %v5734
    %5752 = vst.msk [vmem:[#allocation2 + $0x70] sm:$0x1f] %vm834, %v5736
    %v5753 = vld [vmem:[#allocation2] sm:$0xff]
    %v5754 = vld [vmem:[#allocation2 + $0x10] sm:$0xff]
    %v5755 = vld [vmem:[#allocation2 + $0x20] sm:$0xff]
    %v5756 = vld [vmem:[#allocation2 + $0x30] sm:$0xff]
    %v5757 = vld [vmem:[#allocation2 + $0x40] sm:$0xff]
    %v5758 = vld [vmem:[#allocation2 + $0x50] sm:$0xff]
    %v5759 = vld [vmem:[#allocation2 + $0x60] sm:$0xff]
    %v5760 = vld [vmem:[#allocation2 + $0x70] sm:$0x3f]
    %v5761 = vld [vmem:[#allocation11] sm:$0xff]
    %v5762 = vld [vmem:[#allocation11 + $0x8] sm:$0xff]
    %v5763 = vld [vmem:[#allocation11 + $0x10] sm:$0xff]
    %v5764 = vld [vmem:[%s1337] sm:$0xff]
    %v5765 = vld [vmem:[%s1337 + $0x8] sm:$0xff]
    %v5766 = vld [vmem:[%s1337 + $0x10] sm:$0xff]
    %v5775 = vrot.slane %v5753, 1
    %v5776 = vrot.slane %v5754, 1
    %v5777 = vsel %vm356, %v5775, %v5776
    %v5778 = vrot.slane %v5755, 1
    %v5779 = vsel %vm356, %v5776, %v5778
    %v5780 = vrot.slane %v5756, 1
    %v5781 = vsel %vm356, %v5778, %v5780
    %v5782 = vrot.slane %v5757, 1
    %v5783 = vsel %vm356, %v5780, %v5782
    %v5784 = vrot.slane %v5758, 1
    %v5785 = vsel %vm356, %v5782, %v5784
    %v5786 = vrot.slane %v5759, 1
    %v5787 = vsel %vm356, %v5784, %v5786
    %v5788 = vrot.slane %v5760, 1
    %v5789 = vsel %vm356, %v5786, %v5788
    %v5790 = vsel %vm827, %v5777, 0
    %v5792 = vsel %vm827, %v5779, 0
    %v5794 = vsel %vm827, %v5781, 0
    %v5796 = vsel %vm827, %v5783, 0
    %v5798 = vsel %vm827, %v5785, 0
    %v5800 = vsel %vm827, %v5787, 0
    %v5802 = vsel %vm827, %v5789, 0
    %v5804 = vsel %vm827, %v5788, 0
    %5806 = vmatprep.subr.mxu0 0.0
    %5807 = vmatpush1.msra.mxu0 %v5764
    %5808 = vmatprep.subr.mxu0 0.0
    %5809 = vmatpush1.msra.mxu0 %v5765
    %5810 = vmatprep.subr.mxu0 0.0
    %5811 = vmatpush1.msra.mxu0 %v5766
    %5812 = vmatprep.subr.mxu0 0.0
    %5813 = vmatpush1.msra.mxu0 0.0
    %5814 = vmatprep.subr.mxu0 0.0
    %5815 = vmatpush1.msra.mxu0 0.0
    %5816 = vmatprep.subr.mxu0 0.0
    %5817 = vmatpush1.msra.mxu0 0.0
    %5818 = vmatprep.subr.mxu0 0.0
    %5819 = vmatpush1.msra.mxu0 0.0
    %5820 = vmatprep.subr.mxu0 0.0
    %5821 = vmatpush1.msra.mxu0 0.0
    %5822 = vmatprep.subr.mxu0 0.0
    %5823 = vmatpush1.msra.mxu0 0.0
    %5824 = vmatprep.subr.mxu0 0.0
    %5825 = vmatpush1.msra.mxu0 0.0
    %5826 = vmatprep.subr.mxu0 0.0
    %5827 = vmatpush1.msra.mxu0 0.0
    %5828 = vmatprep.subr.mxu0 0.0
    %5829 = vmatpush1.msra.mxu0 0.0
    %5830 = vmatprep.subr.mxu0 0.0
    %5831 = vmatpush1.msra.mxu0 0.0
    %5832 = vmatprep.subr.mxu0 0.0
    %5833 = vmatpush1.msra.mxu0 0.0
    %5834 = vmatprep.subr.mxu0 0.0
    %5835 = vmatpush1.msra.mxu0 0.0
    %5836 = vmatprep.subr.mxu0 0.0
    %5837 = vmatpush1.msra.mxu0 0.0
    %5838 = vmatprep.subr.mxu0 0.0
    %5839 = vmatpush1.msra.mxu0 0.0
    %5840 = vmatprep.subr.mxu0 0.0
    %5841 = vmatpush1.msra.mxu0 0.0
    %5842 = vmatprep.subr.mxu0 0.0
    %5843 = vmatpush1.msra.mxu0 0.0
    %5844 = vmatprep.subr.mxu0 0.0
    %5845 = vmatpush1.msra.mxu0 0.0
    %5846 = vmatprep.subr.mxu0 0.0
    %5847 = vmatpush1.msra.mxu0 0.0
    %5848 = vmatprep.subr.mxu0 0.0
    %5849 = vmatpush1.msra.mxu0 0.0
    %5850 = vmatprep.subr.mxu0 0.0
    %5851 = vmatpush1.msra.mxu0 0.0
    %5852 = vmatprep.subr.mxu0 0.0
    %5853 = vmatpush1.msra.mxu0 0.0
    %5854 = vmatprep.subr.mxu0 0.0
    %5855 = vmatpush1.msra.mxu0 0.0
    %5856 = vmatprep.subr.mxu0 0.0
    %5857 = vmatpush1.msra.mxu0 0.0
    %5858 = vmatprep.subr.mxu0 0.0
    %5859 = vmatpush1.msra.mxu0 0.0
    %5860 = vmatprep.subr.mxu0 0.0
    %5861 = vmatpush1.msra.mxu0 0.0
    %5862 = vmatprep.subr.mxu0 0.0
    %5863 = vmatpush1.msra.mxu0 0.0
    %5864 = vmatprep.subr.mxu0 0.0
    %5865 = vmatpush1.msra.mxu0 0.0
    %5866 = vmatprep.subr.mxu0 0.0
    %5867 = vmatpush1.msra.mxu0 0.0
    %5868 = vmatprep.subr.mxu0 0.0
    %5869 = vmatpush1.msra.mxu0 0.0
    %5870 = vmatprep.mubr.f32.mxu0 0.0
    %5871 = vmatmul.mubr.f32.gmra.mrb[0].mxu0 %v5790
    %v5872 = vpop.f32.mrb[0].mxu0
    %v5873 = vadd.f32 0.0, %v5872
    %v5874 = vpop.f32.mrb[0].mxu0
    %5875 = vmatprep.mubr.f32.mxu0 0.0
    %5876 = vmatmul.mubr.f32.gmra.mrb[0].mxu0 %v5792
    %v5877 = vpop.f32.mrb[0].mxu0
    %v5878 = vadd.f32 0.0, %v5877
    %v5879 = vpop.f32.mrb[0].mxu0
    %5880 = vmatprep.mubr.f32.mxu0 0.0
    %5881 = vmatmul.mubr.f32.gmra.mrb[0].mxu0 %v5794
    %v5882 = vpop.f32.mrb[0].mxu0
    %v5883 = vadd.f32 0.0, %v5882
    %v5884 = vpop.f32.mrb[0].mxu0
    %5885 = vmatprep.mubr.f32.mxu0 0.0
    %5886 = vmatmul.mubr.f32.gmra.mrb[0].mxu0 %v5796
    %v5887 = vpop.f32.mrb[0].mxu0
    %v5888 = vadd.f32 0.0, %v5887
    %v5889 = vpop.f32.mrb[0].mxu0
    %5890 = vmatprep.mubr.f32.mxu0 0.0
    %5891 = vmatmul.mubr.f32.gmra.mrb[0].mxu0 %v5798
    %v5892 = vpop.f32.mrb[0].mxu0
    %v5893 = vadd.f32 0.0, %v5892
    %v5894 = vpop.f32.mrb[0].mxu0
    %5895 = vmatprep.mubr.f32.mxu0 0.0
    %5896 = vmatmul.mubr.f32.gmra.mrb[0].mxu0 %v5800
    %v5897 = vpop.f32.mrb[0].mxu0
    %v5898 = vadd.f32 0.0, %v5897
    %v5899 = vpop.f32.mrb[0].mxu0
    %5900 = vmatprep.mubr.f32.mxu0 0.0
    %5901 = vmatmul.mubr.f32.gmra.mrb[0].mxu0 %v5802
    %v5902 = vpop.f32.mrb[0].mxu0
    %v5903 = vadd.f32 0.0, %v5902
    %v5904 = vpop.f32.mrb[0].mxu0
    %5905 = vmatprep.mubr.f32.mxu0 0.0
    %5906 = vmatmul.mubr.f32.gmra.mrb[0].mxu0 %v5804
    %v5907 = vpop.f32.mrb[0].mxu0
    %v5908 = vadd.f32 0.0, %v5907
    %v5909 = vpop.f32.mrb[0].mxu0
    %5910 = vdwg.mxu0
    %v5911 = vsel %vm827, %v5753, 0
    %v5913 = vsel %vm827, %v5754, 0
    %v5915 = vsel %vm827, %v5755, 0
    %v5917 = vsel %vm827, %v5756, 0
    %v5919 = vsel %vm827, %v5757, 0
    %v5921 = vsel %vm827, %v5758, 0
    %v5923 = vsel %vm827, %v5759, 0
    %v5925 = vsel %vm827, %v5760, 0
    %5927 = vmatprep.subr.mxu0 0.0
    %5928 = vmatpush1.msra.mxu0 %v5761
    %5929 = vmatprep.subr.mxu0 0.0
    %5930 = vmatpush1.msra.mxu0 %v5762
    %5931 = vmatprep.subr.mxu0 0.0
    %5932 = vmatpush1.msra.mxu0 %v5763
    %5933 = vmatprep.subr.mxu0 0.0
    %5934 = vmatpush1.msra.mxu0 0.0
    %5935 = vmatprep.subr.mxu0 0.0
    %5936 = vmatpush1.msra.mxu0 0.0
    %5937 = vmatprep.subr.mxu0 0.0
    %5938 = vmatpush1.msra.mxu0 0.0
    %5939 = vmatprep.subr.mxu0 0.0
    %5940 = vmatpush1.msra.mxu0 0.0
    %5941 = vmatprep.subr.mxu0 0.0
    %5942 = vmatpush1.msra.mxu0 0.0
    %5943 = vmatprep.subr.mxu0 0.0
    %5944 = vmatpush1.msra.mxu0 0.0
    %5945 = vmatprep.subr.mxu0 0.0
    %5946 = vmatpush1.msra.mxu0 0.0
    %5947 = vmatprep.subr.mxu0 0.0
    %5948 = vmatpush1.msra.mxu0 0.0
    %5949 = vmatprep.subr.mxu0 0.0
    %5950 = vmatpush1.msra.mxu0 0.0
    %5951 = vmatprep.subr.mxu0 0.0
    %5952 = vmatpush1.msra.mxu0 0.0
    %5953 = vmatprep.subr.mxu0 0.0
    %5954 = vmatpush1.msra.mxu0 0.0
    %5955 = vmatprep.subr.mxu0 0.0
    %5956 = vmatpush1.msra.mxu0 0.0
    %5957 = vmatprep.subr.mxu0 0.0
    %5958 = vmatpush1.msra.mxu0 0.0
    %5959 = vmatprep.subr.mxu0 0.0
    %5960 = vmatpush1.msra.mxu0 0.0
    %5961 = vmatprep.subr.mxu0 0.0
    %5962 = vmatpush1.msra.mxu0 0.0
    %5963 = vmatprep.subr.mxu0 0.0
    %5964 = vmatpush1.msra.mxu0 0.0
    %5965 = vmatprep.subr.mxu0 0.0
    %5966 = vmatpush1.msra.mxu0 0.0
    %5967 = vmatprep.subr.mxu0 0.0
    %5968 = vmatpush1.msra.mxu0 0.0
    %5969 = vmatprep.subr.mxu0 0.0
    %5970 = vmatpush1.msra.mxu0 0.0
    %5971 = vmatprep.subr.mxu0 0.0
    %5972 = vmatpush1.msra.mxu0 0.0
    %5973 = vmatprep.subr.mxu0 0.0
    %5974 = vmatpush1.msra.mxu0 0.0
    %5975 = vmatprep.subr.mxu0 0.0
    %5976 = vmatpush1.msra.mxu0 0.0
    %5977 = vmatprep.subr.mxu0 0.0
    %5978 = vmatpush1.msra.mxu0 0.0
    %5979 = vmatprep.subr.mxu0 0.0
    %5980 = vmatpush1.msra.mxu0 0.0
    %5981 = vmatprep.subr.mxu0 0.0
    %5982 = vmatpush1.msra.mxu0 0.0
    %5983 = vmatprep.subr.mxu0 0.0
    %5984 = vmatpush1.msra.mxu0 0.0
    %5985 = vmatprep.subr.mxu0 0.0
    %5986 = vmatpush1.msra.mxu0 0.0
    %5987 = vmatprep.subr.mxu0 0.0
    %5988 = vmatpush1.msra.mxu0 0.0
    %5989 = vmatprep.subr.mxu0 0.0
    %5990 = vmatpush1.msra.mxu0 0.0
    %5991 = vmatprep.mubr.f32.mxu0 0.0
    %5992 = vmatmul.mubr.f32.gmra.mrb[0].mxu0 %v5911
    %v5993 = vpop.f32.mrb[0].mxu0
    %v5994 = vadd.f32 %v5873, %v5993
    %v5995 = vpop.f32.mrb[0].mxu0
    %5996 = vmatprep.mubr.f32.mxu0 0.0
    %5997 = vmatmul.mubr.f32.gmra.mrb[0].mxu0 %v5913
    %v5998 = vpop.f32.mrb[0].mxu0
    %v5999 = vadd.f32 %v5878, %v5998
    %v6000 = vpop.f32.mrb[0].mxu0
    %6001 = vmatprep.mubr.f32.mxu0 0.0
    %6002 = vmatmul.mubr.f32.gmra.mrb[0].mxu0 %v5915
    %v6003 = vpop.f32.mrb[0].mxu0
    %v6004 = vadd.f32 %v5883, %v6003
    %v6005 = vpop.f32.mrb[0].mxu0
    %6006 = vmatprep.mubr.f32.mxu0 0.0
    %6007 = vmatmul.mubr.f32.gmra.mrb[0].mxu0 %v5917
    %v6008 = vpop.f32.mrb[0].mxu0
    %v6009 = vadd.f32 %v5888, %v6008
    %v6010 = vpop.f32.mrb[0].mxu0
    %6011 = vmatprep.mubr.f32.mxu0 0.0
    %6012 = vmatmul.mubr.f32.gmra.mrb[0].mxu0 %v5919
    %v6013 = vpop.f32.mrb[0].mxu0
    %v6014 = vadd.f32 %v5893, %v6013
    %v6015 = vpop.f32.mrb[0].mxu0
    %6016 = vmatprep.mubr.f32.mxu0 0.0
    %6017 = vmatmul.mubr.f32.gmra.mrb[0].mxu0 %v5921
    %v6018 = vpop.f32.mrb[0].mxu0
    %v6019 = vadd.f32 %v5898, %v6018
    %v6020 = vpop.f32.mrb[0].mxu0
    %6021 = vmatprep.mubr.f32.mxu0 0.0
    %6022 = vmatmul.mubr.f32.gmra.mrb[0].mxu0 %v5923
    %v6023 = vpop.f32.mrb[0].mxu0
    %v6024 = vadd.f32 %v5903, %v6023
    %v6025 = vpop.f32.mrb[0].mxu0
    %6026 = vmatprep.mubr.f32.mxu0 0.0
    %6027 = vmatmul.mubr.f32.gmra.mrb[0].mxu0 %v5925
    %v6028 = vpop.f32.mrb[0].mxu0
    %v6029 = vadd.f32 %v5908, %v6028
    %v6030 = vpop.f32.mrb[0].mxu0
    %6031 = vdwg.mxu0
    %v6032 = vld [vmem:[%s1606] sm:$0xff]
    %v6033 = vld [vmem:[%s1606 + $0x8] sm:$0xff]
    %v6034 = vld [vmem:[%s1606 + $0x10] sm:$0xff]
    %v6035 = vrot.slane %v5753, 2
    %v6036 = vrot.slane %v5754, 2
    %v6037 = vsel %vm623, %v6035, %v6036
    %v6038 = vrot.slane %v5755, 2
    %v6039 = vsel %vm623, %v6036, %v6038
    %v6040 = vrot.slane %v5756, 2
    %v6041 = vsel %vm623, %v6038, %v6040
    %v6042 = vrot.slane %v5757, 2
    %v6043 = vsel %vm623, %v6040, %v6042
    %v6044 = vrot.slane %v5758, 2
    %v6045 = vsel %vm623, %v6042, %v6044
    %v6046 = vrot.slane %v5759, 2
    %v6047 = vsel %vm623, %v6044, %v6046
    %v6048 = vrot.slane %v5760, 2
    %v6049 = vsel %vm623, %v6046, %v6048
    %v6050 = vsel %vm827, %v6037, 0
    %v6052 = vsel %vm827, %v6039, 0
    %v6054 = vsel %vm827, %v6041, 0
    %v6056 = vsel %vm827, %v6043, 0
    %v6058 = vsel %vm827, %v6045, 0
    %v6060 = vsel %vm827, %v6047, 0
    %v6062 = vsel %vm827, %v6049, 0
    %v6064 = vsel %vm827, %v6048, 0
    %6066 = vmatprep.subr.mxu0 0.0
    %6067 = vmatpush1.msra.mxu0 %v6032
    %6068 = vmatprep.subr.mxu0 0.0
    %6069 = vmatpush1.msra.mxu0 %v6033
    %6070 = vmatprep.subr.mxu0 0.0
    %6071 = vmatpush1.msra.mxu0 %v6034
    %6072 = vmatprep.subr.mxu0 0.0
    %6073 = vmatpush1.msra.mxu0 0.0
    %6074 = vmatprep.subr.mxu0 0.0
    %6075 = vmatpush1.msra.mxu0 0.0
    %6076 = vmatprep.subr.mxu0 0.0
    %6077 = vmatpush1.msra.mxu0 0.0
    %6078 = vmatprep.subr.mxu0 0.0
    %6079 = vmatpush1.msra.mxu0 0.0
    %6080 = vmatprep.subr.mxu0 0.0
    %6081 = vmatpush1.msra.mxu0 0.0
    %6082 = vmatprep.subr.mxu0 0.0
    %6083 = vmatpush1.msra.mxu0 0.0
    %6084 = vmatprep.subr.mxu0 0.0
    %6085 = vmatpush1.msra.mxu0 0.0
    %6086 = vmatprep.subr.mxu0 0.0
    %6087 = vmatpush1.msra.mxu0 0.0
    %6088 = vmatprep.subr.mxu0 0.0
    %6089 = vmatpush1.msra.mxu0 0.0
    %6090 = vmatprep.subr.mxu0 0.0
    %6091 = vmatpush1.msra.mxu0 0.0
    %6092 = vmatprep.subr.mxu0 0.0
    %6093 = vmatpush1.msra.mxu0 0.0
    %6094 = vmatprep.subr.mxu0 0.0
    %6095 = vmatpush1.msra.mxu0 0.0
    %6096 = vmatprep.subr.mxu0 0.0
    %6097 = vmatpush1.msra.mxu0 0.0
    %6098 = vmatprep.subr.mxu0 0.0
    %6099 = vmatpush1.msra.mxu0 0.0
    %6100 = vmatprep.subr.mxu0 0.0
    %6101 = vmatpush1.msra.mxu0 0.0
    %6102 = vmatprep.subr.mxu0 0.0
    %6103 = vmatpush1.msra.mxu0 0.0
    %6104 = vmatprep.subr.mxu0 0.0
    %6105 = vmatpush1.msra.mxu0 0.0
    %6106 = vmatprep.subr.mxu0 0.0
    %6107 = vmatpush1.msra.mxu0 0.0
    %6108 = vmatprep.subr.mxu0 0.0
    %6109 = vmatpush1.msra.mxu0 0.0
    %6110 = vmatprep.subr.mxu0 0.0
    %6111 = vmatpush1.msra.mxu0 0.0
    %6112 = vmatprep.subr.mxu0 0.0
    %6113 = vmatpush1.msra.mxu0 0.0
    %6114 = vmatprep.subr.mxu0 0.0
    %6115 = vmatpush1.msra.mxu0 0.0
    %6116 = vmatprep.subr.mxu0 0.0
    %6117 = vmatpush1.msra.mxu0 0.0
    %6118 = vmatprep.subr.mxu0 0.0
    %6119 = vmatpush1.msra.mxu0 0.0
    %6120 = vmatprep.subr.mxu0 0.0
    %6121 = vmatpush1.msra.mxu0 0.0
    %6122 = vmatprep.subr.mxu0 0.0
    %6123 = vmatpush1.msra.mxu0 0.0
    %6124 = vmatprep.subr.mxu0 0.0
    %6125 = vmatpush1.msra.mxu0 0.0
    %6126 = vmatprep.subr.mxu0 0.0
    %6127 = vmatpush1.msra.mxu0 0.0
    %6128 = vmatprep.subr.mxu0 0.0
    %6129 = vmatpush1.msra.mxu0 0.0
    %6130 = vmatprep.mubr.f32.mxu0 0.0
    %6131 = vmatmul.mubr.f32.gmra.mrb[0].mxu0 %v6050
    %v6132 = vpop.f32.mrb[0].mxu0
    %v6133 = vadd.f32 0.0, %v6132
    %v6134 = vpop.f32.mrb[0].mxu0
    %6135 = vmatprep.mubr.f32.mxu0 0.0
    %6136 = vmatmul.mubr.f32.gmra.mrb[0].mxu0 %v6052
    %v6137 = vpop.f32.mrb[0].mxu0
    %v6138 = vadd.f32 0.0, %v6137
    %v6139 = vpop.f32.mrb[0].mxu0
    %6140 = vmatprep.mubr.f32.mxu0 0.0
    %6141 = vmatmul.mubr.f32.gmra.mrb[0].mxu0 %v6054
    %v6142 = vpop.f32.mrb[0].mxu0
    %v6143 = vadd.f32 0.0, %v6142
    %v6144 = vpop.f32.mrb[0].mxu0
    %6145 = vmatprep.mubr.f32.mxu0 0.0
    %6146 = vmatmul.mubr.f32.gmra.mrb[0].mxu0 %v6056
    %v6147 = vpop.f32.mrb[0].mxu0
    %v6148 = vadd.f32 0.0, %v6147
    %v6149 = vpop.f32.mrb[0].mxu0
    %6150 = vmatprep.mubr.f32.mxu0 0.0
    %6151 = vmatmul.mubr.f32.gmra.mrb[0].mxu0 %v6058
    %v6152 = vpop.f32.mrb[0].mxu0
    %v6153 = vadd.f32 0.0, %v6152
    %v6154 = vpop.f32.mrb[0].mxu0
    %6155 = vmatprep.mubr.f32.mxu0 0.0
    %6156 = vmatmul.mubr.f32.gmra.mrb[0].mxu0 %v6060
    %v6157 = vpop.f32.mrb[0].mxu0
    %v6158 = vadd.f32 0.0, %v6157
    %v6159 = vpop.f32.mrb[0].mxu0
    %6160 = vmatprep.mubr.f32.mxu0 0.0
    %6161 = vmatmul.mubr.f32.gmra.mrb[0].mxu0 %v6062
    %v6162 = vpop.f32.mrb[0].mxu0
    %v6163 = vadd.f32 0.0, %v6162
    %v6164 = vpop.f32.mrb[0].mxu0
    %6165 = vmatprep.mubr.f32.mxu0 0.0
    %6166 = vmatmul.mubr.f32.gmra.mrb[0].mxu0 %v6064
    %v6167 = vpop.f32.mrb[0].mxu0
    %v6168 = vadd.f32 0.0, %v6167
    %v6169 = vpop.f32.mrb[0].mxu0
    %6170 = vdwg.mxu0
    %v6171 = vadd.f32 %v5994, %v6133
    %v6172 = vadd.f32 %v5999, %v6138
    %v6173 = vadd.f32 %v6004, %v6143
    %v6174 = vadd.f32 %v6009, %v6148
    %v6175 = vadd.f32 %v6014, %v6153
    %v6176 = vadd.f32 %v6019, %v6158
    %v6177 = vadd.f32 %v6024, %v6163
    %v6178 = vadd.f32 %v6029, %v6168
    %v6179 = vld [vmem:[#allocation12] sm:$0x1]
    %v6181 = vlaneseq
    %v6182 = vshrl.u32 %v6181, 7
    %v6183 = vsub.s32 0, %v6182
    %v6184 = vrot.slane %v6179, %v6183
    %v6186 = vadd.f32 %v6171, %v6184
    %v6187 = vadd.f32 %v6172, %v6184
    %v6188 = vadd.f32 %v6173, %v6184
    %v6189 = vadd.f32 %v6174, %v6184
    %v6190 = vadd.f32 %v6175, %v6184
    %v6191 = vadd.f32 %v6176, %v6184
    %v6192 = vadd.f32 %v6177, %v6184
    %v6193 = vadd.f32 %v6178, %v6184
    %v6194 = vmax.f32 %v6186, 0.0
    %v6195 = vmax.f32 %v6187, 0.0
    %v6196 = vmax.f32 %v6188, 0.0
    %v6197 = vmax.f32 %v6189, 0.0
    %v6198 = vmax.f32 %v6190, 0.0
    %v6199 = vmax.f32 %v6191, 0.0
    %v6200 = vmax.f32 %v6192, 0.0
    %v6201 = vmax.f32 %v6193, 0.0
    %v6210 = vrot.slane %v6194, 7
    %v6211 = vrot.slane %v6195, 7
    %v6212 = vsel %vm302, %v6210, %v6211
    %v6213 = vrot.slane %v6196, 7
    %v6214 = vsel %vm302, %v6211, %v6213
    %v6215 = vrot.slane %v6197, 7
    %v6216 = vsel %vm302, %v6213, %v6215
    %v6217 = vrot.slane %v6198, 7
    %v6218 = vsel %vm302, %v6215, %v6217
    %v6219 = vrot.slane %v6199, 7
    %v6220 = vsel %vm302, %v6217, %v6219
    %v6221 = vrot.slane %v6200, 7
    %v6222 = vsel %vm302, %v6219, %v6221
    %v6223 = vrot.slane %v6201, 7
    %v6224 = vsel %vm302, %v6221, %v6223
    %6233 = vst.msk [vmem:[#allocation2] sm:$0xfe] %vm1808, %v6210
    %6234 = vst.msk [vmem:[#allocation2 + $0x10] sm:$0xff] %vm1810, %v6212
    %6235 = vst.msk [vmem:[#allocation2 + $0x20] sm:$0xff] %vm1810, %v6214
    %6236 = vst.msk [vmem:[#allocation2 + $0x30] sm:$0xff] %vm1810, %v6216
    %6237 = vst.msk [vmem:[#allocation2 + $0x40] sm:$0xff] %vm1810, %v6218
    %6238 = vst.msk [vmem:[#allocation2 + $0x50] sm:$0xff] %vm1810, %v6220
    %6239 = vst.msk [vmem:[#allocation2 + $0x60] sm:$0xff] %vm1810, %v6222
    %6240 = vst.msk [vmem:[#allocation2 + $0x70] sm:$0x1f] %vm1817, %v6224
    %v6241 = vld [vmem:[#allocation2] sm:$0xff]
    %v6242 = vld [vmem:[#allocation2 + $0x10] sm:$0xff]
    %v6243 = vld [vmem:[#allocation2 + $0x20] sm:$0xff]
    %v6244 = vld [vmem:[#allocation2 + $0x30] sm:$0xff]
    %v6245 = vld [vmem:[#allocation2 + $0x40] sm:$0xff]
    %v6246 = vld [vmem:[#allocation2 + $0x50] sm:$0xff]
    %v6247 = vld [vmem:[#allocation2 + $0x60] sm:$0xff]
    %v6248 = vld [vmem:[#allocation2 + $0x70] sm:$0x3f]
    %v6249 = vld [vmem:[#allocation14] sm:$0xff]
    %v6250 = vld [vmem:[#allocation14 + $0x8] sm:$0xff]
    %v6251 = vld [vmem:[#allocation14 + $0x10] sm:$0xff]
    %v6252 = vld [vmem:[#allocation14 + $0x18] sm:$0xff]
    %v6253 = vld [vmem:[#allocation14 + $0x20] sm:$0xff]
    %v6254 = vld [vmem:[#allocation14 + $0x28] sm:$0xff]
    %v6255 = vld [vmem:[%s1833] sm:$0xff]
    %v6256 = vld [vmem:[%s1833 + $0x8] sm:$0xff]
    %v6257 = vld [vmem:[%s1833 + $0x10] sm:$0xff]
    %v6258 = vld [vmem:[%s1833 + $0x18] sm:$0xff]
    %v6259 = vld [vmem:[%s1833 + $0x20] sm:$0xff]
    %v6260 = vld [vmem:[%s1833 + $0x28] sm:$0xff]
    %v6269 = vrot.slane %v6241, 1
    %v6270 = vrot.slane %v6242, 1
    %v6271 = vsel %vm356, %v6269, %v6270
    %v6272 = vrot.slane %v6243, 1
    %v6273 = vsel %vm356, %v6270, %v6272
    %v6274 = vrot.slane %v6244, 1
    %v6275 = vsel %vm356, %v6272, %v6274
    %v6276 = vrot.slane %v6245, 1
    %v6277 = vsel %vm356, %v6274, %v6276
    %v6278 = vrot.slane %v6246, 1
    %v6279 = vsel %vm356, %v6276, %v6278
    %v6280 = vrot.slane %v6247, 1
    %v6281 = vsel %vm356, %v6278, %v6280
    %v6282 = vrot.slane %v6248, 1
    %v6283 = vsel %vm356, %v6280, %v6282
    %v6284 = vsel %vm1810, %v6271, 0
    %v6286 = vsel %vm1810, %v6273, 0
    %v6288 = vsel %vm1810, %v6275, 0
    %v6290 = vsel %vm1810, %v6277, 0
    %v6292 = vsel %vm1810, %v6279, 0
    %v6294 = vsel %vm1810, %v6281, 0
    %v6296 = vsel %vm1810, %v6283, 0
    %v6298 = vsel %vm1810, %v6282, 0
    %6300 = vmatprep.subr.mxu0 0.0
    %6301 = vmatpush1.msra.mxu0 %v6255
    %6302 = vmatprep.subr.mxu0 0.0
    %6303 = vmatpush1.msra.mxu0 %v6256
    %6304 = vmatprep.subr.mxu0 0.0
    %6305 = vmatpush1.msra.mxu0 %v6257
    %6306 = vmatprep.subr.mxu0 0.0
    %6307 = vmatpush1.msra.mxu0 %v6258
    %6308 = vmatprep.subr.mxu0 0.0
    %6309 = vmatpush1.msra.mxu0 %v6259
    %6310 = vmatprep.subr.mxu0 0.0
    %6311 = vmatpush1.msra.mxu0 %v6260
    %6312 = vmatprep.subr.mxu0 0.0
    %6313 = vmatpush1.msra.mxu0 0.0
    %6314 = vmatprep.subr.mxu0 0.0
    %6315 = vmatpush1.msra.mxu0 0.0
    %6316 = vmatprep.subr.mxu0 0.0
    %6317 = vmatpush1.msra.mxu0 0.0
    %6318 = vmatprep.subr.mxu0 0.0
    %6319 = vmatpush1.msra.mxu0 0.0
    %6320 = vmatprep.subr.mxu0 0.0
    %6321 = vmatpush1.msra.mxu0 0.0
    %6322 = vmatprep.subr.mxu0 0.0
    %6323 = vmatpush1.msra.mxu0 0.0
    %6324 = vmatprep.subr.mxu0 0.0
    %6325 = vmatpush1.msra.mxu0 0.0
    %6326 = vmatprep.subr.mxu0 0.0
    %6327 = vmatpush1.msra.mxu0 0.0
    %6328 = vmatprep.subr.mxu0 0.0
    %6329 = vmatpush1.msra.mxu0 0.0
    %6330 = vmatprep.subr.mxu0 0.0
    %6331 = vmatpush1.msra.mxu0 0.0
    %6332 = vmatprep.subr.mxu0 0.0
    %6333 = vmatpush1.msra.mxu0 0.0
    %6334 = vmatprep.subr.mxu0 0.0
    %6335 = vmatpush1.msra.mxu0 0.0
    %6336 = vmatprep.subr.mxu0 0.0
    %6337 = vmatpush1.msra.mxu0 0.0
    %6338 = vmatprep.subr.mxu0 0.0
    %6339 = vmatpush1.msra.mxu0 0.0
    %6340 = vmatprep.subr.mxu0 0.0
    %6341 = vmatpush1.msra.mxu0 0.0
    %6342 = vmatprep.subr.mxu0 0.0
    %6343 = vmatpush1.msra.mxu0 0.0
    %6344 = vmatprep.subr.mxu0 0.0
    %6345 = vmatpush1.msra.mxu0 0.0
    %6346 = vmatprep.subr.mxu0 0.0
    %6347 = vmatpush1.msra.mxu0 0.0
    %6348 = vmatprep.subr.mxu0 0.0
    %6349 = vmatpush1.msra.mxu0 0.0
    %6350 = vmatprep.subr.mxu0 0.0
    %6351 = vmatpush1.msra.mxu0 0.0
    %6352 = vmatprep.subr.mxu0 0.0
    %6353 = vmatpush1.msra.mxu0 0.0
    %6354 = vmatprep.subr.mxu0 0.0
    %6355 = vmatpush1.msra.mxu0 0.0
    %6356 = vmatprep.subr.mxu0 0.0
    %6357 = vmatpush1.msra.mxu0 0.0
    %6358 = vmatprep.subr.mxu0 0.0
    %6359 = vmatpush1.msra.mxu0 0.0
    %6360 = vmatprep.subr.mxu0 0.0
    %6361 = vmatpush1.msra.mxu0 0.0
    %6362 = vmatprep.subr.mxu0 0.0
    %6363 = vmatpush1.msra.mxu0 0.0
    %6364 = vmatprep.mubr.f32.mxu0 0.0
    %6365 = vmatmul.mubr.f32.gmra.mrb[0].mxu0 %v6284
    %v6366 = vpop.f32.mrb[0].mxu0
    %v6367 = vadd.f32 0.0, %v6366
    %v6368 = vpop.f32.mrb[0].mxu0
    %6369 = vmatprep.mubr.f32.mxu0 0.0
    %6370 = vmatmul.mubr.f32.gmra.mrb[0].mxu0 %v6286
    %v6371 = vpop.f32.mrb[0].mxu0
    %v6372 = vadd.f32 0.0, %v6371
    %v6373 = vpop.f32.mrb[0].mxu0
    %6374 = vmatprep.mubr.f32.mxu0 0.0
    %6375 = vmatmul.mubr.f32.gmra.mrb[0].mxu0 %v6288
    %v6376 = vpop.f32.mrb[0].mxu0
    %v6377 = vadd.f32 0.0, %v6376
    %v6378 = vpop.f32.mrb[0].mxu0
    %6379 = vmatprep.mubr.f32.mxu0 0.0
    %6380 = vmatmul.mubr.f32.gmra.mrb[0].mxu0 %v6290
    %v6381 = vpop.f32.mrb[0].mxu0
    %v6382 = vadd.f32 0.0, %v6381
    %v6383 = vpop.f32.mrb[0].mxu0
    %6384 = vmatprep.mubr.f32.mxu0 0.0
    %6385 = vmatmul.mubr.f32.gmra.mrb[0].mxu0 %v6292
    %v6386 = vpop.f32.mrb[0].mxu0
    %v6387 = vadd.f32 0.0, %v6386
    %v6388 = vpop.f32.mrb[0].mxu0
    %6389 = vmatprep.mubr.f32.mxu0 0.0
    %6390 = vmatmul.mubr.f32.gmra.mrb[0].mxu0 %v6294
    %v6391 = vpop.f32.mrb[0].mxu0
    %v6392 = vadd.f32 0.0, %v6391
    %v6393 = vpop.f32.mrb[0].mxu0
    %6394 = vmatprep.mubr.f32.mxu0 0.0
    %6395 = vmatmul.mubr.f32.gmra.mrb[0].mxu0 %v6296
    %v6396 = vpop.f32.mrb[0].mxu0
    %v6397 = vadd.f32 0.0, %v6396
    %v6398 = vpop.f32.mrb[0].mxu0
    %6399 = vmatprep.mubr.f32.mxu0 0.0
    %6400 = vmatmul.mubr.f32.gmra.mrb[0].mxu0 %v6298
    %v6401 = vpop.f32.mrb[0].mxu0
    %v6402 = vadd.f32 0.0, %v6401
    %v6403 = vpop.f32.mrb[0].mxu0
    %6404 = vdwg.mxu0
    %v6405 = vsel %vm1810, %v6241, 0
    %v6407 = vsel %vm1810, %v6242, 0
    %v6409 = vsel %vm1810, %v6243, 0
    %v6411 = vsel %vm1810, %v6244, 0
    %v6413 = vsel %vm1810, %v6245, 0
    %v6415 = vsel %vm1810, %v6246, 0
    %v6417 = vsel %vm1810, %v6247, 0
    %v6419 = vsel %vm1810, %v6248, 0
    %6421 = vmatprep.subr.mxu0 0.0
    %6422 = vmatpush1.msra.mxu0 %v6249
    %6423 = vmatprep.subr.mxu0 0.0
    %6424 = vmatpush1.msra.mxu0 %v6250
    %6425 = vmatprep.subr.mxu0 0.0
    %6426 = vmatpush1.msra.mxu0 %v6251
    %6427 = vmatprep.subr.mxu0 0.0
    %6428 = vmatpush1.msra.mxu0 %v6252
    %6429 = vmatprep.subr.mxu0 0.0
    %6430 = vmatpush1.msra.mxu0 %v6253
    %6431 = vmatprep.subr.mxu0 0.0
    %6432 = vmatpush1.msra.mxu0 %v6254
    %6433 = vmatprep.subr.mxu0 0.0
    %6434 = vmatpush1.msra.mxu0 0.0
    %6435 = vmatprep.subr.mxu0 0.0
    %6436 = vmatpush1.msra.mxu0 0.0
    %6437 = vmatprep.subr.mxu0 0.0
    %6438 = vmatpush1.msra.mxu0 0.0
    %6439 = vmatprep.subr.mxu0 0.0
    %6440 = vmatpush1.msra.mxu0 0.0
    %6441 = vmatprep.subr.mxu0 0.0
    %6442 = vmatpush1.msra.mxu0 0.0
    %6443 = vmatprep.subr.mxu0 0.0
    %6444 = vmatpush1.msra.mxu0 0.0
    %6445 = vmatprep.subr.mxu0 0.0
    %6446 = vmatpush1.msra.mxu0 0.0
    %6447 = vmatprep.subr.mxu0 0.0
    %6448 = vmatpush1.msra.mxu0 0.0
    %6449 = vmatprep.subr.mxu0 0.0
    %6450 = vmatpush1.msra.mxu0 0.0
    %6451 = vmatprep.subr.mxu0 0.0
    %6452 = vmatpush1.msra.mxu0 0.0
    %6453 = vmatprep.subr.mxu0 0.0
    %6454 = vmatpush1.msra.mxu0 0.0
    %6455 = vmatprep.subr.mxu0 0.0
    %6456 = vmatpush1.msra.mxu0 0.0
    %6457 = vmatprep.subr.mxu0 0.0
    %6458 = vmatpush1.msra.mxu0 0.0
    %6459 = vmatprep.subr.mxu0 0.0
    %6460 = vmatpush1.msra.mxu0 0.0
    %6461 = vmatprep.subr.mxu0 0.0
    %6462 = vmatpush1.msra.mxu0 0.0
    %6463 = vmatprep.subr.mxu0 0.0
    %6464 = vmatpush1.msra.mxu0 0.0
    %6465 = vmatprep.subr.mxu0 0.0
    %6466 = vmatpush1.msra.mxu0 0.0
    %6467 = vmatprep.subr.mxu0 0.0
    %6468 = vmatpush1.msra.mxu0 0.0
    %6469 = vmatprep.subr.mxu0 0.0
    %6470 = vmatpush1.msra.mxu0 0.0
    %6471 = vmatprep.subr.mxu0 0.0
    %6472 = vmatpush1.msra.mxu0 0.0
    %6473 = vmatprep.subr.mxu0 0.0
    %6474 = vmatpush1.msra.mxu0 0.0
    %6475 = vmatprep.subr.mxu0 0.0
    %6476 = vmatpush1.msra.mxu0 0.0
    %6477 = vmatprep.subr.mxu0 0.0
    %6478 = vmatpush1.msra.mxu0 0.0
    %6479 = vmatprep.subr.mxu0 0.0
    %6480 = vmatpush1.msra.mxu0 0.0
    %6481 = vmatprep.subr.mxu0 0.0
    %6482 = vmatpush1.msra.mxu0 0.0
    %6483 = vmatprep.subr.mxu0 0.0
    %6484 = vmatpush1.msra.mxu0 0.0
    %6485 = vmatprep.mubr.f32.mxu0 0.0
    %6486 = vmatmul.mubr.f32.gmra.mrb[0].mxu0 %v6405
    %v6487 = vpop.f32.mrb[0].mxu0
    %v6488 = vadd.f32 %v6367, %v6487
    %v6489 = vpop.f32.mrb[0].mxu0
    %6490 = vmatprep.mubr.f32.mxu0 0.0
    %6491 = vmatmul.mubr.f32.gmra.mrb[0].mxu0 %v6407
    %v6492 = vpop.f32.mrb[0].mxu0
    %v6493 = vadd.f32 %v6372, %v6492
    %v6494 = vpop.f32.mrb[0].mxu0
    %6495 = vmatprep.mubr.f32.mxu0 0.0
    %6496 = vmatmul.mubr.f32.gmra.mrb[0].mxu0 %v6409
    %v6497 = vpop.f32.mrb[0].mxu0
    %v6498 = vadd.f32 %v6377, %v6497
    %v6499 = vpop.f32.mrb[0].mxu0
    %6500 = vmatprep.mubr.f32.mxu0 0.0
    %6501 = vmatmul.mubr.f32.gmra.mrb[0].mxu0 %v6411
    %v6502 = vpop.f32.mrb[0].mxu0
    %v6503 = vadd.f32 %v6382, %v6502
    %v6504 = vpop.f32.mrb[0].mxu0
    %6505 = vmatprep.mubr.f32.mxu0 0.0
    %6506 = vmatmul.mubr.f32.gmra.mrb[0].mxu0 %v6413
    %v6507 = vpop.f32.mrb[0].mxu0
    %v6508 = vadd.f32 %v6387, %v6507
    %v6509 = vpop.f32.mrb[0].mxu0
    %6510 = vmatprep.mubr.f32.mxu0 0.0
    %6511 = vmatmul.mubr.f32.gmra.mrb[0].mxu0 %v6415
    %v6512 = vpop.f32.mrb[0].mxu0
    %v6513 = vadd.f32 %v6392, %v6512
    %v6514 = vpop.f32.mrb[0].mxu0
    %6515 = vmatprep.mubr.f32.mxu0 0.0
    %6516 = vmatmul.mubr.f32.gmra.mrb[0].mxu0 %v6417
    %v6517 = vpop.f32.mrb[0].mxu0
    %v6518 = vadd.f32 %v6397, %v6517
    %v6519 = vpop.f32.mrb[0].mxu0
    %6520 = vmatprep.mubr.f32.mxu0 0.0
    %6521 = vmatmul.mubr.f32.gmra.mrb[0].mxu0 %v6419
    %v6522 = vpop.f32.mrb[0].mxu0
    %v6523 = vadd.f32 %v6402, %v6522
    %v6524 = vpop.f32.mrb[0].mxu0
    %6525 = vdwg.mxu0
    %v6526 = vld [vmem:[%s2105] sm:$0xff]
    %v6527 = vld [vmem:[%s2105 + $0x8] sm:$0xff]
    %v6528 = vld [vmem:[%s2105 + $0x10] sm:$0xff]
    %v6529 = vld [vmem:[%s2105 + $0x18] sm:$0xff]
    %v6530 = vld [vmem:[%s2105 + $0x20] sm:$0xff]
    %v6531 = vld [vmem:[%s2105 + $0x28] sm:$0xff]
    %v6532 = vrot.slane %v6241, 2
    %v6533 = vrot.slane %v6242, 2
    %v6534 = vsel %vm623, %v6532, %v6533
    %v6535 = vrot.slane %v6243, 2
    %v6536 = vsel %vm623, %v6533, %v6535
    %v6537 = vrot.slane %v6244, 2
    %v6538 = vsel %vm623, %v6535, %v6537
    %v6539 = vrot.slane %v6245, 2
    %v6540 = vsel %vm623, %v6537, %v6539
    %v6541 = vrot.slane %v6246, 2
    %v6542 = vsel %vm623, %v6539, %v6541
    %v6543 = vrot.slane %v6247, 2
    %v6544 = vsel %vm623, %v6541, %v6543
    %v6545 = vrot.slane %v6248, 2
    %v6546 = vsel %vm623, %v6543, %v6545
    %v6547 = vsel %vm1810, %v6534, 0
    %v6549 = vsel %vm1810, %v6536, 0
    %v6551 = vsel %vm1810, %v6538, 0
    %v6553 = vsel %vm1810, %v6540, 0
    %v6555 = vsel %vm1810, %v6542, 0
    %v6557 = vsel %vm1810, %v6544, 0
    %v6559 = vsel %vm1810, %v6546, 0
    %v6561 = vsel %vm1810, %v6545, 0
    %6563 = vmatprep.subr.mxu0 0.0
    %6564 = vmatpush1.msra.mxu0 %v6526
    %6565 = vmatprep.subr.mxu0 0.0
    %6566 = vmatpush1.msra.mxu0 %v6527
    %6567 = vmatprep.subr.mxu0 0.0
    %6568 = vmatpush1.msra.mxu0 %v6528
    %6569 = vmatprep.subr.mxu0 0.0
    %6570 = vmatpush1.msra.mxu0 %v6529
    %6571 = vmatprep.subr.mxu0 0.0
    %6572 = vmatpush1.msra.mxu0 %v6530
    %6573 = vmatprep.subr.mxu0 0.0
    %6574 = vmatpush1.msra.mxu0 %v6531
    %6575 = vmatprep.subr.mxu0 0.0
    %6576 = vmatpush1.msra.mxu0 0.0
    %6577 = vmatprep.subr.mxu0 0.0
    %6578 = vmatpush1.msra.mxu0 0.0
    %6579 = vmatprep.subr.mxu0 0.0
    %6580 = vmatpush1.msra.mxu0 0.0
    %6581 = vmatprep.subr.mxu0 0.0
    %6582 = vmatpush1.msra.mxu0 0.0
    %6583 = vmatprep.subr.mxu0 0.0
    %6584 = vmatpush1.msra.mxu0 0.0
    %6585 = vmatprep.subr.mxu0 0.0
    %6586 = vmatpush1.msra.mxu0 0.0
    %6587 = vmatprep.subr.mxu0 0.0
    %6588 = vmatpush1.msra.mxu0 0.0
    %6589 = vmatprep.subr.mxu0 0.0
    %6590 = vmatpush1.msra.mxu0 0.0
    %6591 = vmatprep.subr.mxu0 0.0
    %6592 = vmatpush1.msra.mxu0 0.0
    %6593 = vmatprep.subr.mxu0 0.0
    %6594 = vmatpush1.msra.mxu0 0.0
    %6595 = vmatprep.subr.mxu0 0.0
    %6596 = vmatpush1.msra.mxu0 0.0
    %6597 = vmatprep.subr.mxu0 0.0
    %6598 = vmatpush1.msra.mxu0 0.0
    %6599 = vmatprep.subr.mxu0 0.0
    %6600 = vmatpush1.msra.mxu0 0.0
    %6601 = vmatprep.subr.mxu0 0.0
    %6602 = vmatpush1.msra.mxu0 0.0
    %6603 = vmatprep.subr.mxu0 0.0
    %6604 = vmatpush1.msra.mxu0 0.0
    %6605 = vmatprep.subr.mxu0 0.0
    %6606 = vmatpush1.msra.mxu0 0.0
    %6607 = vmatprep.subr.mxu0 0.0
    %6608 = vmatpush1.msra.mxu0 0.0
    %6609 = vmatprep.subr.mxu0 0.0
    %6610 = vmatpush1.msra.mxu0 0.0
    %6611 = vmatprep.subr.mxu0 0.0
    %6612 = vmatpush1.msra.mxu0 0.0
    %6613 = vmatprep.subr.mxu0 0.0
    %6614 = vmatpush1.msra.mxu0 0.0
    %6615 = vmatprep.subr.mxu0 0.0
    %6616 = vmatpush1.msra.mxu0 0.0
    %6617 = vmatprep.subr.mxu0 0.0
    %6618 = vmatpush1.msra.mxu0 0.0
    %6619 = vmatprep.subr.mxu0 0.0
    %6620 = vmatpush1.msra.mxu0 0.0
    %6621 = vmatprep.subr.mxu0 0.0
    %6622 = vmatpush1.msra.mxu0 0.0
    %6623 = vmatprep.subr.mxu0 0.0
    %6624 = vmatpush1.msra.mxu0 0.0
    %6625 = vmatprep.subr.mxu0 0.0
    %6626 = vmatpush1.msra.mxu0 0.0
    %6627 = vmatprep.mubr.f32.mxu0 0.0
    %6628 = vmatmul.mubr.f32.gmra.mrb[0].mxu0 %v6547
    %v6629 = vpop.f32.mrb[0].mxu0
    %v6630 = vadd.f32 0.0, %v6629
    %v6631 = vpop.f32.mrb[0].mxu0
    %6632 = vmatprep.mubr.f32.mxu0 0.0
    %6633 = vmatmul.mubr.f32.gmra.mrb[0].mxu0 %v6549
    %v6634 = vpop.f32.mrb[0].mxu0
    %v6635 = vadd.f32 0.0, %v6634
    %v6636 = vpop.f32.mrb[0].mxu0
    %6637 = vmatprep.mubr.f32.mxu0 0.0
    %6638 = vmatmul.mubr.f32.gmra.mrb[0].mxu0 %v6551
    %v6639 = vpop.f32.mrb[0].mxu0
    %v6640 = vadd.f32 0.0, %v6639
    %v6641 = vpop.f32.mrb[0].mxu0
    %6642 = vmatprep.mubr.f32.mxu0 0.0
    %6643 = vmatmul.mubr.f32.gmra.mrb[0].mxu0 %v6553
    %v6644 = vpop.f32.mrb[0].mxu0
    %v6645 = vadd.f32 0.0, %v6644
    %v6646 = vpop.f32.mrb[0].mxu0
    %6647 = vmatprep.mubr.f32.mxu0 0.0
    %6648 = vmatmul.mubr.f32.gmra.mrb[0].mxu0 %v6555
    %v6649 = vpop.f32.mrb[0].mxu0
    %v6650 = vadd.f32 0.0, %v6649
    %v6651 = vpop.f32.mrb[0].mxu0
    %6652 = vmatprep.mubr.f32.mxu0 0.0
    %6653 = vmatmul.mubr.f32.gmra.mrb[0].mxu0 %v6557
    %v6654 = vpop.f32.mrb[0].mxu0
    %v6655 = vadd.f32 0.0, %v6654
    %v6656 = vpop.f32.mrb[0].mxu0
    %6657 = vmatprep.mubr.f32.mxu0 0.0
    %6658 = vmatmul.mubr.f32.gmra.mrb[0].mxu0 %v6559
    %v6659 = vpop.f32.mrb[0].mxu0
    %v6660 = vadd.f32 0.0, %v6659
    %v6661 = vpop.f32.mrb[0].mxu0
    %6662 = vmatprep.mubr.f32.mxu0 0.0
    %6663 = vmatmul.mubr.f32.gmra.mrb[0].mxu0 %v6561
    %v6664 = vpop.f32.mrb[0].mxu0
    %v6665 = vadd.f32 0.0, %v6664
    %v6666 = vpop.f32.mrb[0].mxu0
    %6667 = vdwg.mxu0
    %v6668 = vadd.f32 %v6488, %v6630
    %v6669 = vadd.f32 %v6493, %v6635
    %v6670 = vadd.f32 %v6498, %v6640
    %v6671 = vadd.f32 %v6503, %v6645
    %v6672 = vadd.f32 %v6508, %v6650
    %v6673 = vadd.f32 %v6513, %v6655
    %v6674 = vadd.f32 %v6518, %v6660
    %v6675 = vadd.f32 %v6523, %v6665
    %v6676 = vld [vmem:[#allocation15] sm:$0x1]
    %v6678 = vlaneseq
    %v6679 = vshrl.u32 %v6678, 7
    %v6680 = vsub.s32 0, %v6679
    %v6681 = vrot.slane %v6676, %v6680
    %v6683 = vadd.f32 %v6668, %v6681
    %v6684 = vadd.f32 %v6669, %v6681
    %v6685 = vadd.f32 %v6670, %v6681
    %v6686 = vadd.f32 %v6671, %v6681
    %v6687 = vadd.f32 %v6672, %v6681
    %v6688 = vadd.f32 %v6673, %v6681
    %v6689 = vadd.f32 %v6674, %v6681
    %v6690 = vadd.f32 %v6675, %v6681
    %v6691 = vmax.f32 %v6683, 0.0
    %v6692 = vmax.f32 %v6684, 0.0
    %v6693 = vmax.f32 %v6685, 0.0
    %v6694 = vmax.f32 %v6686, 0.0
    %v6695 = vmax.f32 %v6687, 0.0
    %v6696 = vmax.f32 %v6688, 0.0
    %v6697 = vmax.f32 %v6689, 0.0
    %v6698 = vmax.f32 %v6690, 0.0
    %v6707 = vrot.slane %v6691, 7
    %v6708 = vrot.slane %v6692, 7
    %v6709 = vsel %vm302, %v6707, %v6708
    %v6710 = vrot.slane %v6693, 7
    %v6711 = vsel %vm302, %v6708, %v6710
    %v6712 = vrot.slane %v6694, 7
    %v6713 = vsel %vm302, %v6710, %v6712
    %v6714 = vrot.slane %v6695, 7
    %v6715 = vsel %vm302, %v6712, %v6714
    %v6716 = vrot.slane %v6696, 7
    %v6717 = vsel %vm302, %v6714, %v6716
    %v6718 = vrot.slane %v6697, 7
    %v6719 = vsel %vm302, %v6716, %v6718
    %v6720 = vrot.slane %v6698, 7
    %v6721 = vsel %vm302, %v6718, %v6720
    %6730 = vst.msk [vmem:[#allocation2] sm:$0xfe] %vm1808, %v6707
    %6731 = vst.msk [vmem:[#allocation2 + $0x10] sm:$0xff] %vm1810, %v6709
    %6732 = vst.msk [vmem:[#allocation2 + $0x20] sm:$0xff] %vm1810, %v6711
    %6733 = vst.msk [vmem:[#allocation2 + $0x30] sm:$0xff] %vm1810, %v6713
    %6734 = vst.msk [vmem:[#allocation2 + $0x40] sm:$0xff] %vm1810, %v6715
    %6735 = vst.msk [vmem:[#allocation2 + $0x50] sm:$0xff] %vm1810, %v6717
    %6736 = vst.msk [vmem:[#allocation2 + $0x60] sm:$0xff] %vm1810, %v6719
    %6737 = vst.msk [vmem:[#allocation2 + $0x70] sm:$0x1f] %vm1817, %v6721
    %v6738 = vld [vmem:[#allocation2] sm:$0xff]
    %v6739 = vld [vmem:[#allocation2 + $0x10] sm:$0xff]
    %v6740 = vld [vmem:[#allocation2 + $0x20] sm:$0xff]
    %v6741 = vld [vmem:[#allocation2 + $0x30] sm:$0xff]
    %v6742 = vld [vmem:[#allocation2 + $0x40] sm:$0xff]
    %v6743 = vld [vmem:[#allocation2 + $0x50] sm:$0xff]
    %v6744 = vld [vmem:[#allocation2 + $0x60] sm:$0xff]
    %v6745 = vld [vmem:[#allocation2 + $0x70] sm:$0x3f]
    %v6746 = vld [vmem:[#allocation17] sm:$0xff]
    %v6747 = vld [vmem:[#allocation17 + $0x8] sm:$0xff]
    %v6748 = vld [vmem:[#allocation17 + $0x10] sm:$0xff]
    %v6749 = vld [vmem:[#allocation17 + $0x18] sm:$0xff]
    %v6750 = vld [vmem:[#allocation17 + $0x20] sm:$0xff]
    %v6751 = vld [vmem:[#allocation17 + $0x28] sm:$0xff]
    %v6752 = vld [vmem:[%s2332] sm:$0xff]
    %v6753 = vld [vmem:[%s2332 + $0x8] sm:$0xff]
    %v6754 = vld [vmem:[%s2332 + $0x10] sm:$0xff]
    %v6755 = vld [vmem:[%s2332 + $0x18] sm:$0xff]
    %v6756 = vld [vmem:[%s2332 + $0x20] sm:$0xff]
    %v6757 = vld [vmem:[%s2332 + $0x28] sm:$0xff]
    %v6766 = vrot.slane %v6738, 1
    %v6767 = vrot.slane %v6739, 1
    %v6768 = vsel %vm356, %v6766, %v6767
    %v6769 = vrot.slane %v6740, 1
    %v6770 = vsel %vm356, %v6767, %v6769
    %v6771 = vrot.slane %v6741, 1
    %v6772 = vsel %vm356, %v6769, %v6771
    %v6773 = vrot.slane %v6742, 1
    %v6774 = vsel %vm356, %v6771, %v6773
    %v6775 = vrot.slane %v6743, 1
    %v6776 = vsel %vm356, %v6773, %v6775
    %v6777 = vrot.slane %v6744, 1
    %v6778 = vsel %vm356, %v6775, %v6777
    %v6779 = vrot.slane %v6745, 1
    %v6780 = vsel %vm356, %v6777, %v6779
    %v6781 = vsel %vm1810, %v6768, 0
    %v6783 = vsel %vm1810, %v6770, 0
    %v6785 = vsel %vm1810, %v6772, 0
    %v6787 = vsel %vm1810, %v6774, 0
    %v6789 = vsel %vm1810, %v6776, 0
    %v6791 = vsel %vm1810, %v6778, 0
    %v6793 = vsel %vm1810, %v6780, 0
    %v6795 = vsel %vm1810, %v6779, 0
    %6797 = vmatprep.subr.mxu0 0.0
    %6798 = vmatpush1.msra.mxu0 %v6752
    %6799 = vmatprep.subr.mxu0 0.0
    %6800 = vmatpush1.msra.mxu0 %v6753
    %6801 = vmatprep.subr.mxu0 0.0
    %6802 = vmatpush1.msra.mxu0 %v6754
    %6803 = vmatprep.subr.mxu0 0.0
    %6804 = vmatpush1.msra.mxu0 %v6755
    %6805 = vmatprep.subr.mxu0 0.0
    %6806 = vmatpush1.msra.mxu0 %v6756
    %6807 = vmatprep.subr.mxu0 0.0
    %6808 = vmatpush1.msra.mxu0 %v6757
    %6809 = vmatprep.subr.mxu0 0.0
    %6810 = vmatpush1.msra.mxu0 0.0
    %6811 = vmatprep.subr.mxu0 0.0
    %6812 = vmatpush1.msra.mxu0 0.0
    %6813 = vmatprep.subr.mxu0 0.0
    %6814 = vmatpush1.msra.mxu0 0.0
    %6815 = vmatprep.subr.mxu0 0.0
    %6816 = vmatpush1.msra.mxu0 0.0
    %6817 = vmatprep.subr.mxu0 0.0
    %6818 = vmatpush1.msra.mxu0 0.0
    %6819 = vmatprep.subr.mxu0 0.0
    %6820 = vmatpush1.msra.mxu0 0.0
    %6821 = vmatprep.subr.mxu0 0.0
    %6822 = vmatpush1.msra.mxu0 0.0
    %6823 = vmatprep.subr.mxu0 0.0
    %6824 = vmatpush1.msra.mxu0 0.0
    %6825 = vmatprep.subr.mxu0 0.0
    %6826 = vmatpush1.msra.mxu0 0.0
    %6827 = vmatprep.subr.mxu0 0.0
    %6828 = vmatpush1.msra.mxu0 0.0
    %6829 = vmatprep.subr.mxu0 0.0
    %6830 = vmatpush1.msra.mxu0 0.0
    %6831 = vmatprep.subr.mxu0 0.0
    %6832 = vmatpush1.msra.mxu0 0.0
    %6833 = vmatprep.subr.mxu0 0.0
    %6834 = vmatpush1.msra.mxu0 0.0
    %6835 = vmatprep.subr.mxu0 0.0
    %6836 = vmatpush1.msra.mxu0 0.0
    %6837 = vmatprep.subr.mxu0 0.0
    %6838 = vmatpush1.msra.mxu0 0.0
    %6839 = vmatprep.subr.mxu0 0.0
    %6840 = vmatpush1.msra.mxu0 0.0
    %6841 = vmatprep.subr.mxu0 0.0
    %6842 = vmatpush1.msra.mxu0 0.0
    %6843 = vmatprep.subr.mxu0 0.0
    %6844 = vmatpush1.msra.mxu0 0.0
    %6845 = vmatprep.subr.mxu0 0.0
    %6846 = vmatpush1.msra.mxu0 0.0
    %6847 = vmatprep.subr.mxu0 0.0
    %6848 = vmatpush1.msra.mxu0 0.0
    %6849 = vmatprep.subr.mxu0 0.0
    %6850 = vmatpush1.msra.mxu0 0.0
    %6851 = vmatprep.subr.mxu0 0.0
    %6852 = vmatpush1.msra.mxu0 0.0
    %6853 = vmatprep.subr.mxu0 0.0
    %6854 = vmatpush1.msra.mxu0 0.0
    %6855 = vmatprep.subr.mxu0 0.0
    %6856 = vmatpush1.msra.mxu0 0.0
    %6857 = vmatprep.subr.mxu0 0.0
    %6858 = vmatpush1.msra.mxu0 0.0
    %6859 = vmatprep.subr.mxu0 0.0
    %6860 = vmatpush1.msra.mxu0 0.0
    %6861 = vmatprep.mubr.f32.mxu0 0.0
    %6862 = vmatmul.mubr.f32.gmra.mrb[0].mxu0 %v6781
    %v6863 = vpop.f32.mrb[0].mxu0
    %v6864 = vadd.f32 0.0, %v6863
    %v6865 = vpop.f32.mrb[0].mxu0
    %6866 = vmatprep.mubr.f32.mxu0 0.0
    %6867 = vmatmul.mubr.f32.gmra.mrb[0].mxu0 %v6783
    %v6868 = vpop.f32.mrb[0].mxu0
    %v6869 = vadd.f32 0.0, %v6868
    %v6870 = vpop.f32.mrb[0].mxu0
    %6871 = vmatprep.mubr.f32.mxu0 0.0
    %6872 = vmatmul.mubr.f32.gmra.mrb[0].mxu0 %v6785
    %v6873 = vpop.f32.mrb[0].mxu0
    %v6874 = vadd.f32 0.0, %v6873
    %v6875 = vpop.f32.mrb[0].mxu0
    %6876 = vmatprep.mubr.f32.mxu0 0.0
    %6877 = vmatmul.mubr.f32.gmra.mrb[0].mxu0 %v6787
    %v6878 = vpop.f32.mrb[0].mxu0
    %v6879 = vadd.f32 0.0, %v6878
    %v6880 = vpop.f32.mrb[0].mxu0
    %6881 = vmatprep.mubr.f32.mxu0 0.0
    %6882 = vmatmul.mubr.f32.gmra.mrb[0].mxu0 %v6789
    %v6883 = vpop.f32.mrb[0].mxu0
    %v6884 = vadd.f32 0.0, %v6883
    %v6885 = vpop.f32.mrb[0].mxu0
    %6886 = vmatprep.mubr.f32.mxu0 0.0
    %6887 = vmatmul.mubr.f32.gmra.mrb[0].mxu0 %v6791
    %v6888 = vpop.f32.mrb[0].mxu0
    %v6889 = vadd.f32 0.0, %v6888
    %v6890 = vpop.f32.mrb[0].mxu0
    %6891 = vmatprep.mubr.f32.mxu0 0.0
    %6892 = vmatmul.mubr.f32.gmra.mrb[0].mxu0 %v6793
    %v6893 = vpop.f32.mrb[0].mxu0
    %v6894 = vadd.f32 0.0, %v6893
    %v6895 = vpop.f32.mrb[0].mxu0
    %6896 = vmatprep.mubr.f32.mxu0 0.0
    %6897 = vmatmul.mubr.f32.gmra.mrb[0].mxu0 %v6795
    %v6898 = vpop.f32.mrb[0].mxu0
    %v6899 = vadd.f32 0.0, %v6898
    %v6900 = vpop.f32.mrb[0].mxu0
    %6901 = vdwg.mxu0
    %v6902 = vsel %vm1810, %v6738, 0
    %v6904 = vsel %vm1810, %v6739, 0
    %v6906 = vsel %vm1810, %v6740, 0
    %v6908 = vsel %vm1810, %v6741, 0
    %v6910 = vsel %vm1810, %v6742, 0
    %v6912 = vsel %vm1810, %v6743, 0
    %v6914 = vsel %vm1810, %v6744, 0
    %v6916 = vsel %vm1810, %v6745, 0
    %6918 = vmatprep.subr.mxu0 0.0
    %6919 = vmatpush1.msra.mxu0 %v6746
    %6920 = vmatprep.subr.mxu0 0.0
    %6921 = vmatpush1.msra.mxu0 %v6747
    %6922 = vmatprep.subr.mxu0 0.0
    %6923 = vmatpush1.msra.mxu0 %v6748
    %6924 = vmatprep.subr.mxu0 0.0
    %6925 = vmatpush1.msra.mxu0 %v6749
    %6926 = vmatprep.subr.mxu0 0.0
    %6927 = vmatpush1.msra.mxu0 %v6750
    %6928 = vmatprep.subr.mxu0 0.0
    %6929 = vmatpush1.msra.mxu0 %v6751
    %6930 = vmatprep.subr.mxu0 0.0
    %6931 = vmatpush1.msra.mxu0 0.0
    %6932 = vmatprep.subr.mxu0 0.0
    %6933 = vmatpush1.msra.mxu0 0.0
    %6934 = vmatprep.subr.mxu0 0.0
    %6935 = vmatpush1.msra.mxu0 0.0
    %6936 = vmatprep.subr.mxu0 0.0
    %6937 = vmatpush1.msra.mxu0 0.0
    %6938 = vmatprep.subr.mxu0 0.0
    %6939 = vmatpush1.msra.mxu0 0.0
    %6940 = vmatprep.subr.mxu0 0.0
    %6941 = vmatpush1.msra.mxu0 0.0
    %6942 = vmatprep.subr.mxu0 0.0
    %6943 = vmatpush1.msra.mxu0 0.0
    %6944 = vmatprep.subr.mxu0 0.0
    %6945 = vmatpush1.msra.mxu0 0.0
    %6946 = vmatprep.subr.mxu0 0.0
    %6947 = vmatpush1.msra.mxu0 0.0
    %6948 = vmatprep.subr.mxu0 0.0
    %6949 = vmatpush1.msra.mxu0 0.0
    %6950 = vmatprep.subr.mxu0 0.0
    %6951 = vmatpush1.msra.mxu0 0.0
    %6952 = vmatprep.subr.mxu0 0.0
    %6953 = vmatpush1.msra.mxu0 0.0
    %6954 = vmatprep.subr.mxu0 0.0
    %6955 = vmatpush1.msra.mxu0 0.0
    %6956 = vmatprep.subr.mxu0 0.0
    %6957 = vmatpush1.msra.mxu0 0.0
    %6958 = vmatprep.subr.mxu0 0.0
    %6959 = vmatpush1.msra.mxu0 0.0
    %6960 = vmatprep.subr.mxu0 0.0
    %6961 = vmatpush1.msra.mxu0 0.0
    %6962 = vmatprep.subr.mxu0 0.0
    %6963 = vmatpush1.msra.mxu0 0.0
    %6964 = vmatprep.subr.mxu0 0.0
    %6965 = vmatpush1.msra.mxu0 0.0
    %6966 = vmatprep.subr.mxu0 0.0
    %6967 = vmatpush1.msra.mxu0 0.0
    %6968 = vmatprep.subr.mxu0 0.0
    %6969 = vmatpush1.msra.mxu0 0.0
    %6970 = vmatprep.subr.mxu0 0.0
    %6971 = vmatpush1.msra.mxu0 0.0
    %6972 = vmatprep.subr.mxu0 0.0
    %6973 = vmatpush1.msra.mxu0 0.0
    %6974 = vmatprep.subr.mxu0 0.0
    %6975 = vmatpush1.msra.mxu0 0.0
    %6976 = vmatprep.subr.mxu0 0.0
    %6977 = vmatpush1.msra.mxu0 0.0
    %6978 = vmatprep.subr.mxu0 0.0
    %6979 = vmatpush1.msra.mxu0 0.0
    %6980 = vmatprep.subr.mxu0 0.0
    %6981 = vmatpush1.msra.mxu0 0.0
    %6982 = vmatprep.mubr.f32.mxu0 0.0
    %6983 = vmatmul.mubr.f32.gmra.mrb[0].mxu0 %v6902
    %v6984 = vpop.f32.mrb[0].mxu0
    %v6985 = vadd.f32 %v6864, %v6984
    %v6986 = vpop.f32.mrb[0].mxu0
    %6987 = vmatprep.mubr.f32.mxu0 0.0
    %6988 = vmatmul.mubr.f32.gmra.mrb[0].mxu0 %v6904
    %v6989 = vpop.f32.mrb[0].mxu0
    %v6990 = vadd.f32 %v6869, %v6989
    %v6991 = vpop.f32.mrb[0].mxu0
    %6992 = vmatprep.mubr.f32.mxu0 0.0
    %6993 = vmatmul.mubr.f32.gmra.mrb[0].mxu0 %v6906
    %v6994 = vpop.f32.mrb[0].mxu0
    %v6995 = vadd.f32 %v6874, %v6994
    %v6996 = vpop.f32.mrb[0].mxu0
    %6997 = vmatprep.mubr.f32.mxu0 0.0
    %6998 = vmatmul.mubr.f32.gmra.mrb[0].mxu0 %v6908
    %v6999 = vpop.f32.mrb[0].mxu0
    %v7000 = vadd.f32 %v6879, %v6999
    %v7001 = vpop.f32.mrb[0].mxu0
    %7002 = vmatprep.mubr.f32.mxu0 0.0
    %7003 = vmatmul.mubr.f32.gmra.mrb[0].mxu0 %v6910
    %v7004 = vpop.f32.mrb[0].mxu0
    %v7005 = vadd.f32 %v6884, %v7004
    %v7006 = vpop.f32.mrb[0].mxu0
    %7007 = vmatprep.mubr.f32.mxu0 0.0
    %7008 = vmatmul.mubr.f32.gmra.mrb[0].mxu0 %v6912
    %v7009 = vpop.f32.mrb[0].mxu0
    %v7010 = vadd.f32 %v6889, %v7009
    %v7011 = vpop.f32.mrb[0].mxu0
    %7012 = vmatprep.mubr.f32.mxu0 0.0
    %7013 = vmatmul.mubr.f32.gmra.mrb[0].mxu0 %v6914
    %v7014 = vpop.f32.mrb[0].mxu0
    %v7015 = vadd.f32 %v6894, %v7014
    %v7016 = vpop.f32.mrb[0].mxu0
    %7017 = vmatprep.mubr.f32.mxu0 0.0
    %7018 = vmatmul.mubr.f32.gmra.mrb[0].mxu0 %v6916
    %v7019 = vpop.f32.mrb[0].mxu0
    %v7020 = vadd.f32 %v6899, %v7019
    %v7021 = vpop.f32.mrb[0].mxu0
    %7022 = vdwg.mxu0
    %v7023 = vld [vmem:[%s2604] sm:$0xff]
    %v7024 = vld [vmem:[%s2604 + $0x8] sm:$0xff]
    %v7025 = vld [vmem:[%s2604 + $0x10] sm:$0xff]
    %v7026 = vld [vmem:[%s2604 + $0x18] sm:$0xff]
    %v7027 = vld [vmem:[%s2604 + $0x20] sm:$0xff]
    %v7028 = vld [vmem:[%s2604 + $0x28] sm:$0xff]
    %v7029 = vrot.slane %v6738, 2
    %v7030 = vrot.slane %v6739, 2
    %v7031 = vsel %vm623, %v7029, %v7030
    %v7032 = vrot.slane %v6740, 2
    %v7033 = vsel %vm623, %v7030, %v7032
    %v7034 = vrot.slane %v6741, 2
    %v7035 = vsel %vm623, %v7032, %v7034
    %v7036 = vrot.slane %v6742, 2
    %v7037 = vsel %vm623, %v7034, %v7036
    %v7038 = vrot.slane %v6743, 2
    %v7039 = vsel %vm623, %v7036, %v7038
    %v7040 = vrot.slane %v6744, 2
    %v7041 = vsel %vm623, %v7038, %v7040
    %v7042 = vrot.slane %v6745, 2
    %v7043 = vsel %vm623, %v7040, %v7042
    %v7044 = vsel %vm1810, %v7031, 0
    %v7046 = vsel %vm1810, %v7033, 0
    %v7048 = vsel %vm1810, %v7035, 0
    %v7050 = vsel %vm1810, %v7037, 0
    %v7052 = vsel %vm1810, %v7039, 0
    %v7054 = vsel %vm1810, %v7041, 0
    %v7056 = vsel %vm1810, %v7043, 0
    %v7058 = vsel %vm1810, %v7042, 0
    %7060 = vmatprep.subr.mxu0 0.0
    %7061 = vmatpush1.msra.mxu0 %v7023
    %7062 = vmatprep.subr.mxu0 0.0
    %7063 = vmatpush1.msra.mxu0 %v7024
    %7064 = vmatprep.subr.mxu0 0.0
    %7065 = vmatpush1.msra.mxu0 %v7025
    %7066 = vmatprep.subr.mxu0 0.0
    %7067 = vmatpush1.msra.mxu0 %v7026
    %7068 = vmatprep.subr.mxu0 0.0
    %7069 = vmatpush1.msra.mxu0 %v7027
    %7070 = vmatprep.subr.mxu0 0.0
    %7071 = vmatpush1.msra.mxu0 %v7028
    %7072 = vmatprep.subr.mxu0 0.0
    %7073 = vmatpush1.msra.mxu0 0.0
    %7074 = vmatprep.subr.mxu0 0.0
    %7075 = vmatpush1.msra.mxu0 0.0
    %7076 = vmatprep.subr.mxu0 0.0
    %7077 = vmatpush1.msra.mxu0 0.0
    %7078 = vmatprep.subr.mxu0 0.0
    %7079 = vmatpush1.msra.mxu0 0.0
    %7080 = vmatprep.subr.mxu0 0.0
    %7081 = vmatpush1.msra.mxu0 0.0
    %7082 = vmatprep.subr.mxu0 0.0
    %7083 = vmatpush1.msra.mxu0 0.0
    %7084 = vmatprep.subr.mxu0 0.0
    %7085 = vmatpush1.msra.mxu0 0.0
    %7086 = vmatprep.subr.mxu0 0.0
    %7087 = vmatpush1.msra.mxu0 0.0
    %7088 = vmatprep.subr.mxu0 0.0
    %7089 = vmatpush1.msra.mxu0 0.0
    %7090 = vmatprep.subr.mxu0 0.0
    %7091 = vmatpush1.msra.mxu0 0.0
    %7092 = vmatprep.subr.mxu0 0.0
    %7093 = vmatpush1.msra.mxu0 0.0
    %7094 = vmatprep.subr.mxu0 0.0
    %7095 = vmatpush1.msra.mxu0 0.0
    %7096 = vmatprep.subr.mxu0 0.0
    %7097 = vmatpush1.msra.mxu0 0.0
    %7098 = vmatprep.subr.mxu0 0.0
    %7099 = vmatpush1.msra.mxu0 0.0
    %7100 = vmatprep.subr.mxu0 0.0
    %7101 = vmatpush1.msra.mxu0 0.0
    %7102 = vmatprep.subr.mxu0 0.0
    %7103 = vmatpush1.msra.mxu0 0.0
    %7104 = vmatprep.subr.mxu0 0.0
    %7105 = vmatpush1.msra.mxu0 0.0
    %7106 = vmatprep.subr.mxu0 0.0
    %7107 = vmatpush1.msra.mxu0 0.0
    %7108 = vmatprep.subr.mxu0 0.0
    %7109 = vmatpush1.msra.mxu0 0.0
    %7110 = vmatprep.subr.mxu0 0.0
    %7111 = vmatpush1.msra.mxu0 0.0
    %7112 = vmatprep.subr.mxu0 0.0
    %7113 = vmatpush1.msra.mxu0 0.0
    %7114 = vmatprep.subr.mxu0 0.0
    %7115 = vmatpush1.msra.mxu0 0.0
    %7116 = vmatprep.subr.mxu0 0.0
    %7117 = vmatpush1.msra.mxu0 0.0
    %7118 = vmatprep.subr.mxu0 0.0
    %7119 = vmatpush1.msra.mxu0 0.0
    %7120 = vmatprep.subr.mxu0 0.0
    %7121 = vmatpush1.msra.mxu0 0.0
    %7122 = vmatprep.subr.mxu0 0.0
    %7123 = vmatpush1.msra.mxu0 0.0
    %7124 = vmatprep.mubr.f32.mxu0 0.0
    %7125 = vmatmul.mubr.f32.gmra.mrb[0].mxu0 %v7044
    %v7126 = vpop.f32.mrb[0].mxu0
    %v7127 = vadd.f32 0.0, %v7126
    %v7128 = vpop.f32.mrb[0].mxu0
    %7129 = vmatprep.mubr.f32.mxu0 0.0
    %7130 = vmatmul.mubr.f32.gmra.mrb[0].mxu0 %v7046
    %v7131 = vpop.f32.mrb[0].mxu0
    %v7132 = vadd.f32 0.0, %v7131
    %v7133 = vpop.f32.mrb[0].mxu0
    %7134 = vmatprep.mubr.f32.mxu0 0.0
    %7135 = vmatmul.mubr.f32.gmra.mrb[0].mxu0 %v7048
    %v7136 = vpop.f32.mrb[0].mxu0
    %v7137 = vadd.f32 0.0, %v7136
    %v7138 = vpop.f32.mrb[0].mxu0
    %7139 = vmatprep.mubr.f32.mxu0 0.0
    %7140 = vmatmul.mubr.f32.gmra.mrb[0].mxu0 %v7050
    %v7141 = vpop.f32.mrb[0].mxu0
    %v7142 = vadd.f32 0.0, %v7141
    %v7143 = vpop.f32.mrb[0].mxu0
    %7144 = vmatprep.mubr.f32.mxu0 0.0
    %7145 = vmatmul.mubr.f32.gmra.mrb[0].mxu0 %v7052
    %v7146 = vpop.f32.mrb[0].mxu0
    %v7147 = vadd.f32 0.0, %v7146
    %v7148 = vpop.f32.mrb[0].mxu0
    %7149 = vmatprep.mubr.f32.mxu0 0.0
    %7150 = vmatmul.mubr.f32.gmra.mrb[0].mxu0 %v7054
    %v7151 = vpop.f32.mrb[0].mxu0
    %v7152 = vadd.f32 0.0, %v7151
    %v7153 = vpop.f32.mrb[0].mxu0
    %7154 = vmatprep.mubr.f32.mxu0 0.0
    %7155 = vmatmul.mubr.f32.gmra.mrb[0].mxu0 %v7056
    %v7156 = vpop.f32.mrb[0].mxu0
    %v7157 = vadd.f32 0.0, %v7156
    %v7158 = vpop.f32.mrb[0].mxu0
    %7159 = vmatprep.mubr.f32.mxu0 0.0
    %7160 = vmatmul.mubr.f32.gmra.mrb[0].mxu0 %v7058
    %v7161 = vpop.f32.mrb[0].mxu0
    %v7162 = vadd.f32 0.0, %v7161
    %v7163 = vpop.f32.mrb[0].mxu0
    %7164 = vdwg.mxu0
    %v7165 = vadd.f32 %v6985, %v7127
    %v7166 = vadd.f32 %v6990, %v7132
    %v7167 = vadd.f32 %v6995, %v7137
    %v7168 = vadd.f32 %v7000, %v7142
    %v7169 = vadd.f32 %v7005, %v7147
    %v7170 = vadd.f32 %v7010, %v7152
    %v7171 = vadd.f32 %v7015, %v7157
    %v7172 = vadd.f32 %v7020, %v7162
    %v7173 = vld [vmem:[#allocation18] sm:$0x1]
    %v7175 = vlaneseq
    %v7176 = vshrl.u32 %v7175, 7
    %v7177 = vsub.s32 0, %v7176
    %v7178 = vrot.slane %v7173, %v7177
    %v7180 = vadd.f32 %v7165, %v7178
    %v7181 = vadd.f32 %v7166, %v7178
    %v7182 = vadd.f32 %v7167, %v7178
    %v7183 = vadd.f32 %v7168, %v7178
    %v7184 = vadd.f32 %v7169, %v7178
    %v7185 = vadd.f32 %v7170, %v7178
    %v7186 = vadd.f32 %v7171, %v7178
    %v7187 = vadd.f32 %v7172, %v7178
    %v7188 = vmax.f32 %v7180, 0.0
    %v7189 = vmax.f32 %v7181, 0.0
    %v7190 = vmax.f32 %v7182, 0.0
    %v7191 = vmax.f32 %v7183, 0.0
    %v7192 = vmax.f32 %v7184, 0.0
    %v7193 = vmax.f32 %v7185, 0.0
    %v7194 = vmax.f32 %v7186, 0.0
    %v7195 = vmax.f32 %v7187, 0.0
    %v7204 = vrot.slane %v7188, 7
    %v7205 = vrot.slane %v7189, 7
    %v7206 = vsel %vm302, %v7204, %v7205
    %v7207 = vrot.slane %v7190, 7
    %v7208 = vsel %vm302, %v7205, %v7207
    %v7209 = vrot.slane %v7191, 7
    %v7210 = vsel %vm302, %v7207, %v7209
    %v7211 = vrot.slane %v7192, 7
    %v7212 = vsel %vm302, %v7209, %v7211
    %v7213 = vrot.slane %v7193, 7
    %v7214 = vsel %vm302, %v7211, %v7213
    %v7215 = vrot.slane %v7194, 7
    %v7216 = vsel %vm302, %v7213, %v7215
    %v7217 = vrot.slane %v7195, 7
    %v7218 = vsel %vm302, %v7215, %v7217
    %7227 = vst.msk [vmem:[#allocation2] sm:$0xfe] %vm2809, %v7204
    %7228 = vst.msk [vmem:[#allocation2 + $0x10] sm:$0xff] %vm2811, %v7206
    %7229 = vst.msk [vmem:[#allocation2 + $0x20] sm:$0xff] %vm2811, %v7208
    %7230 = vst.msk [vmem:[#allocation2 + $0x30] sm:$0xff] %vm2811, %v7210
    %7231 = vst.msk [vmem:[#allocation2 + $0x40] sm:$0xff] %vm2811, %v7212
    %7232 = vst.msk [vmem:[#allocation2 + $0x50] sm:$0xff] %vm2811, %v7214
    %7233 = vst.msk [vmem:[#allocation2 + $0x60] sm:$0xff] %vm2811, %v7216
    %7234 = vst.msk [vmem:[#allocation2 + $0x70] sm:$0x1f] %vm2818, %v7218
    %v7235 = vld [vmem:[#allocation2] sm:$0xff]
    %v7236 = vld [vmem:[#allocation2 + $0x10] sm:$0xff]
    %v7237 = vld [vmem:[#allocation2 + $0x20] sm:$0xff]
    %v7238 = vld [vmem:[#allocation2 + $0x30] sm:$0xff]
    %v7239 = vld [vmem:[#allocation2 + $0x40] sm:$0xff]
    %v7240 = vld [vmem:[#allocation2 + $0x50] sm:$0xff]
    %v7241 = vld [vmem:[#allocation2 + $0x60] sm:$0xff]
    %v7242 = vld [vmem:[#allocation2 + $0x70] sm:$0x3f]
    %v7243 = vld [vmem:[#allocation20] sm:$0xff]
    %v7244 = vld [vmem:[#allocation20 + $0x8] sm:$0xff]
    %v7245 = vld [vmem:[#allocation20 + $0x10] sm:$0xff]
    %v7246 = vld [vmem:[#allocation20 + $0x18] sm:$0xff]
    %v7247 = vld [vmem:[#allocation20 + $0x20] sm:$0xff]
    %v7248 = vld [vmem:[#allocation20 + $0x28] sm:$0xff]
    %v7249 = vld [vmem:[#allocation20 + $0x30] sm:$0xff]
    %v7250 = vld [vmem:[#allocation20 + $0x38] sm:$0xff]
    %v7251 = vld [vmem:[#allocation20 + $0x40] sm:$0xff]
    %v7252 = vld [vmem:[#allocation20 + $0x48] sm:$0xff]
    %v7253 = vld [vmem:[#allocation20 + $0x50] sm:$0xff]
    %v7254 = vld [vmem:[#allocation20 + $0x58] sm:$0xff]
    %v7255 = vld [vmem:[%s2840] sm:$0xff]
    %v7256 = vld [vmem:[%s2840 + $0x8] sm:$0xff]
    %v7257 = vld [vmem:[%s2840 + $0x10] sm:$0xff]
    %v7258 = vld [vmem:[%s2840 + $0x18] sm:$0xff]
    %v7259 = vld [vmem:[%s2840 + $0x20] sm:$0xff]
    %v7260 = vld [vmem:[%s2840 + $0x28] sm:$0xff]
    %v7261 = vld [vmem:[%s2840 + $0x30] sm:$0xff]
    %v7262 = vld [vmem:[%s2840 + $0x38] sm:$0xff]
    %v7263 = vld [vmem:[%s2840 + $0x40] sm:$0xff]
    %v7264 = vld [vmem:[%s2840 + $0x48] sm:$0xff]
    %v7265 = vld [vmem:[%s2840 + $0x50] sm:$0xff]
    %v7266 = vld [vmem:[%s2840 + $0x58] sm:$0xff]
    %v7275 = vrot.slane %v7235, 1
    %v7276 = vrot.slane %v7236, 1
    %v7277 = vsel %vm356, %v7275, %v7276
    %v7278 = vrot.slane %v7237, 1
    %v7279 = vsel %vm356, %v7276, %v7278
    %v7280 = vrot.slane %v7238, 1
    %v7281 = vsel %vm356, %v7278, %v7280
    %v7282 = vrot.slane %v7239, 1
    %v7283 = vsel %vm356, %v7280, %v7282
    %v7284 = vrot.slane %v7240, 1
    %v7285 = vsel %vm356, %v7282, %v7284
    %v7286 = vrot.slane %v7241, 1
    %v7287 = vsel %vm356, %v7284, %v7286
    %v7288 = vrot.slane %v7242, 1
    %v7289 = vsel %vm356, %v7286, %v7288
    %v7290 = vsel %vm2811, %v7277, 0
    %v7292 = vsel %vm2811, %v7279, 0
    %v7294 = vsel %vm2811, %v7281, 0
    %v7296 = vsel %vm2811, %v7283, 0
    %v7298 = vsel %vm2811, %v7285, 0
    %v7300 = vsel %vm2811, %v7287, 0
    %v7302 = vsel %vm2811, %v7289, 0
    %v7304 = vsel %vm2811, %v7288, 0
    %7306 = vmatprep.subr.mxu0 0.0
    %7307 = vmatpush1.msra.mxu0 %v7255
    %7308 = vmatprep.subr.mxu0 0.0
    %7309 = vmatpush1.msra.mxu0 %v7256
    %7310 = vmatprep.subr.mxu0 0.0
    %7311 = vmatpush1.msra.mxu0 %v7257
    %7312 = vmatprep.subr.mxu0 0.0
    %7313 = vmatpush1.msra.mxu0 %v7258
    %7314 = vmatprep.subr.mxu0 0.0
    %7315 = vmatpush1.msra.mxu0 %v7259
    %7316 = vmatprep.subr.mxu0 0.0
    %7317 = vmatpush1.msra.mxu0 %v7260
    %7318 = vmatprep.subr.mxu0 0.0
    %7319 = vmatpush1.msra.mxu0 %v7261
    %7320 = vmatprep.subr.mxu0 0.0
    %7321 = vmatpush1.msra.mxu0 %v7262
    %7322 = vmatprep.subr.mxu0 0.0
    %7323 = vmatpush1.msra.mxu0 %v7263
    %7324 = vmatprep.subr.mxu0 0.0
    %7325 = vmatpush1.msra.mxu0 %v7264
    %7326 = vmatprep.subr.mxu0 0.0
    %7327 = vmatpush1.msra.mxu0 %v7265
    %7328 = vmatprep.subr.mxu0 0.0
    %7329 = vmatpush1.msra.mxu0 %v7266
    %7330 = vmatprep.subr.mxu0 0.0
    %7331 = vmatpush1.msra.mxu0 0.0
    %7332 = vmatprep.subr.mxu0 0.0
    %7333 = vmatpush1.msra.mxu0 0.0
    %7334 = vmatprep.subr.mxu0 0.0
    %7335 = vmatpush1.msra.mxu0 0.0
    %7336 = vmatprep.subr.mxu0 0.0
    %7337 = vmatpush1.msra.mxu0 0.0
    %7338 = vmatprep.subr.mxu0 0.0
    %7339 = vmatpush1.msra.mxu0 0.0
    %7340 = vmatprep.subr.mxu0 0.0
    %7341 = vmatpush1.msra.mxu0 0.0
    %7342 = vmatprep.subr.mxu0 0.0
    %7343 = vmatpush1.msra.mxu0 0.0
    %7344 = vmatprep.subr.mxu0 0.0
    %7345 = vmatpush1.msra.mxu0 0.0
    %7346 = vmatprep.subr.mxu0 0.0
    %7347 = vmatpush1.msra.mxu0 0.0
    %7348 = vmatprep.subr.mxu0 0.0
    %7349 = vmatpush1.msra.mxu0 0.0
    %7350 = vmatprep.subr.mxu0 0.0
    %7351 = vmatpush1.msra.mxu0 0.0
    %7352 = vmatprep.subr.mxu0 0.0
    %7353 = vmatpush1.msra.mxu0 0.0
    %7354 = vmatprep.subr.mxu0 0.0
    %7355 = vmatpush1.msra.mxu0 0.0
    %7356 = vmatprep.subr.mxu0 0.0
    %7357 = vmatpush1.msra.mxu0 0.0
    %7358 = vmatprep.subr.mxu0 0.0
    %7359 = vmatpush1.msra.mxu0 0.0
    %7360 = vmatprep.subr.mxu0 0.0
    %7361 = vmatpush1.msra.mxu0 0.0
    %7362 = vmatprep.subr.mxu0 0.0
    %7363 = vmatpush1.msra.mxu0 0.0
    %7364 = vmatprep.subr.mxu0 0.0
    %7365 = vmatpush1.msra.mxu0 0.0
    %7366 = vmatprep.subr.mxu0 0.0
    %7367 = vmatpush1.msra.mxu0 0.0
    %7368 = vmatprep.subr.mxu0 0.0
    %7369 = vmatpush1.msra.mxu0 0.0
    %7370 = vmatprep.mubr.f32.mxu0 0.0
    %7371 = vmatmul.mubr.f32.gmra.mrb[0].mxu0 %v7290
    %v7372 = vpop.f32.mrb[0].mxu0
    %v7373 = vadd.f32 0.0, %v7372
    %v7374 = vpop.f32.mrb[0].mxu0
    %7375 = vmatprep.mubr.f32.mxu0 0.0
    %7376 = vmatmul.mubr.f32.gmra.mrb[0].mxu0 %v7292
    %v7377 = vpop.f32.mrb[0].mxu0
    %v7378 = vadd.f32 0.0, %v7377
    %v7379 = vpop.f32.mrb[0].mxu0
    %7380 = vmatprep.mubr.f32.mxu0 0.0
    %7381 = vmatmul.mubr.f32.gmra.mrb[0].mxu0 %v7294
    %v7382 = vpop.f32.mrb[0].mxu0
    %v7383 = vadd.f32 0.0, %v7382
    %v7384 = vpop.f32.mrb[0].mxu0
    %7385 = vmatprep.mubr.f32.mxu0 0.0
    %7386 = vmatmul.mubr.f32.gmra.mrb[0].mxu0 %v7296
    %v7387 = vpop.f32.mrb[0].mxu0
    %v7388 = vadd.f32 0.0, %v7387
    %v7389 = vpop.f32.mrb[0].mxu0
    %7390 = vmatprep.mubr.f32.mxu0 0.0
    %7391 = vmatmul.mubr.f32.gmra.mrb[0].mxu0 %v7298
    %v7392 = vpop.f32.mrb[0].mxu0
    %v7393 = vadd.f32 0.0, %v7392
    %v7394 = vpop.f32.mrb[0].mxu0
    %7395 = vmatprep.mubr.f32.mxu0 0.0
    %7396 = vmatmul.mubr.f32.gmra.mrb[0].mxu0 %v7300
    %v7397 = vpop.f32.mrb[0].mxu0
    %v7398 = vadd.f32 0.0, %v7397
    %v7399 = vpop.f32.mrb[0].mxu0
    %7400 = vmatprep.mubr.f32.mxu0 0.0
    %7401 = vmatmul.mubr.f32.gmra.mrb[0].mxu0 %v7302
    %v7402 = vpop.f32.mrb[0].mxu0
    %v7403 = vadd.f32 0.0, %v7402
    %v7404 = vpop.f32.mrb[0].mxu0
    %7405 = vmatprep.mubr.f32.mxu0 0.0
    %7406 = vmatmul.mubr.f32.gmra.mrb[0].mxu0 %v7304
    %v7407 = vpop.f32.mrb[0].mxu0
    %v7408 = vadd.f32 0.0, %v7407
    %v7409 = vpop.f32.mrb[0].mxu0
    %7410 = vdwg.mxu0
    %v7411 = vsel %vm2811, %v7235, 0
    %v7413 = vsel %vm2811, %v7236, 0
    %v7415 = vsel %vm2811, %v7237, 0
    %v7417 = vsel %vm2811, %v7238, 0
    %v7419 = vsel %vm2811, %v7239, 0
    %v7421 = vsel %vm2811, %v7240, 0
    %v7423 = vsel %vm2811, %v7241, 0
    %v7425 = vsel %vm2811, %v7242, 0
    %7427 = vmatprep.subr.mxu0 0.0
    %7428 = vmatpush1.msra.mxu0 %v7243
    %7429 = vmatprep.subr.mxu0 0.0
    %7430 = vmatpush1.msra.mxu0 %v7244
    %7431 = vmatprep.subr.mxu0 0.0
    %7432 = vmatpush1.msra.mxu0 %v7245
    %7433 = vmatprep.subr.mxu0 0.0
    %7434 = vmatpush1.msra.mxu0 %v7246
    %7435 = vmatprep.subr.mxu0 0.0
    %7436 = vmatpush1.msra.mxu0 %v7247
    %7437 = vmatprep.subr.mxu0 0.0
    %7438 = vmatpush1.msra.mxu0 %v7248
    %7439 = vmatprep.subr.mxu0 0.0
    %7440 = vmatpush1.msra.mxu0 %v7249
    %7441 = vmatprep.subr.mxu0 0.0
    %7442 = vmatpush1.msra.mxu0 %v7250
    %7443 = vmatprep.subr.mxu0 0.0
    %7444 = vmatpush1.msra.mxu0 %v7251
    %7445 = vmatprep.subr.mxu0 0.0
    %7446 = vmatpush1.msra.mxu0 %v7252
    %7447 = vmatprep.subr.mxu0 0.0
    %7448 = vmatpush1.msra.mxu0 %v7253
    %7449 = vmatprep.subr.mxu0 0.0
    %7450 = vmatpush1.msra.mxu0 %v7254
    %7451 = vmatprep.subr.mxu0 0.0
    %7452 = vmatpush1.msra.mxu0 0.0
    %7453 = vmatprep.subr.mxu0 0.0
    %7454 = vmatpush1.msra.mxu0 0.0
    %7455 = vmatprep.subr.mxu0 0.0
    %7456 = vmatpush1.msra.mxu0 0.0
    %7457 = vmatprep.subr.mxu0 0.0
    %7458 = vmatpush1.msra.mxu0 0.0
    %7459 = vmatprep.subr.mxu0 0.0
    %7460 = vmatpush1.msra.mxu0 0.0
    %7461 = vmatprep.subr.mxu0 0.0
    %7462 = vmatpush1.msra.mxu0 0.0
    %7463 = vmatprep.subr.mxu0 0.0
    %7464 = vmatpush1.msra.mxu0 0.0
    %7465 = vmatprep.subr.mxu0 0.0
    %7466 = vmatpush1.msra.mxu0 0.0
    %7467 = vmatprep.subr.mxu0 0.0
    %7468 = vmatpush1.msra.mxu0 0.0
    %7469 = vmatprep.subr.mxu0 0.0
    %7470 = vmatpush1.msra.mxu0 0.0
    %7471 = vmatprep.subr.mxu0 0.0
    %7472 = vmatpush1.msra.mxu0 0.0
    %7473 = vmatprep.subr.mxu0 0.0
    %7474 = vmatpush1.msra.mxu0 0.0
    %7475 = vmatprep.subr.mxu0 0.0
    %7476 = vmatpush1.msra.mxu0 0.0
    %7477 = vmatprep.subr.mxu0 0.0
    %7478 = vmatpush1.msra.mxu0 0.0
    %7479 = vmatprep.subr.mxu0 0.0
    %7480 = vmatpush1.msra.mxu0 0.0
    %7481 = vmatprep.subr.mxu0 0.0
    %7482 = vmatpush1.msra.mxu0 0.0
    %7483 = vmatprep.subr.mxu0 0.0
    %7484 = vmatpush1.msra.mxu0 0.0
    %7485 = vmatprep.subr.mxu0 0.0
    %7486 = vmatpush1.msra.mxu0 0.0
    %7487 = vmatprep.subr.mxu0 0.0
    %7488 = vmatpush1.msra.mxu0 0.0
    %7489 = vmatprep.subr.mxu0 0.0
    %7490 = vmatpush1.msra.mxu0 0.0
    %7491 = vmatprep.mubr.f32.mxu0 0.0
    %7492 = vmatmul.mubr.f32.gmra.mrb[0].mxu0 %v7411
    %v7493 = vpop.f32.mrb[0].mxu0
    %v7494 = vadd.f32 %v7373, %v7493
    %v7495 = vpop.f32.mrb[0].mxu0
    %7496 = vmatprep.mubr.f32.mxu0 0.0
    %7497 = vmatmul.mubr.f32.gmra.mrb[0].mxu0 %v7413
    %v7498 = vpop.f32.mrb[0].mxu0
    %v7499 = vadd.f32 %v7378, %v7498
    %v7500 = vpop.f32.mrb[0].mxu0
    %7501 = vmatprep.mubr.f32.mxu0 0.0
    %7502 = vmatmul.mubr.f32.gmra.mrb[0].mxu0 %v7415
    %v7503 = vpop.f32.mrb[0].mxu0
    %v7504 = vadd.f32 %v7383, %v7503
    %v7505 = vpop.f32.mrb[0].mxu0
    %7506 = vmatprep.mubr.f32.mxu0 0.0
    %7507 = vmatmul.mubr.f32.gmra.mrb[0].mxu0 %v7417
    %v7508 = vpop.f32.mrb[0].mxu0
    %v7509 = vadd.f32 %v7388, %v7508
    %v7510 = vpop.f32.mrb[0].mxu0
    %7511 = vmatprep.mubr.f32.mxu0 0.0
    %7512 = vmatmul.mubr.f32.gmra.mrb[0].mxu0 %v7419
    %v7513 = vpop.f32.mrb[0].mxu0
    %v7514 = vadd.f32 %v7393, %v7513
    %v7515 = vpop.f32.mrb[0].mxu0
    %7516 = vmatprep.mubr.f32.mxu0 0.0
    %7517 = vmatmul.mubr.f32.gmra.mrb[0].mxu0 %v7421
    %v7518 = vpop.f32.mrb[0].mxu0
    %v7519 = vadd.f32 %v7398, %v7518
    %v7520 = vpop.f32.mrb[0].mxu0
    %7521 = vmatprep.mubr.f32.mxu0 0.0
    %7522 = vmatmul.mubr.f32.gmra.mrb[0].mxu0 %v7423
    %v7523 = vpop.f32.mrb[0].mxu0
    %v7524 = vadd.f32 %v7403, %v7523
    %v7525 = vpop.f32.mrb[0].mxu0
    %7526 = vmatprep.mubr.f32.mxu0 0.0
    %7527 = vmatmul.mubr.f32.gmra.mrb[0].mxu0 %v7425
    %v7528 = vpop.f32.mrb[0].mxu0
    %v7529 = vadd.f32 %v7408, %v7528
    %v7530 = vpop.f32.mrb[0].mxu0
    %7531 = vdwg.mxu0
    %v7532 = vld [vmem:[%s3118] sm:$0xff]
    %v7533 = vld [vmem:[%s3118 + $0x8] sm:$0xff]
    %v7534 = vld [vmem:[%s3118 + $0x10] sm:$0xff]
    %v7535 = vld [vmem:[%s3118 + $0x18] sm:$0xff]
    %v7536 = vld [vmem:[%s3118 + $0x20] sm:$0xff]
    %v7537 = vld [vmem:[%s3118 + $0x28] sm:$0xff]
    %v7538 = vld [vmem:[%s3118 + $0x30] sm:$0xff]
    %v7539 = vld [vmem:[%s3118 + $0x38] sm:$0xff]
    %v7540 = vld [vmem:[%s3118 + $0x40] sm:$0xff]
    %v7541 = vld [vmem:[%s3118 + $0x48] sm:$0xff]
    %v7542 = vld [vmem:[%s3118 + $0x50] sm:$0xff]
    %v7543 = vld [vmem:[%s3118 + $0x58] sm:$0xff]
    %v7544 = vrot.slane %v7235, 2
    %v7545 = vrot.slane %v7236, 2
    %v7546 = vsel %vm623, %v7544, %v7545
    %v7547 = vrot.slane %v7237, 2
    %v7548 = vsel %vm623, %v7545, %v7547
    %v7549 = vrot.slane %v7238, 2
    %v7550 = vsel %vm623, %v7547, %v7549
    %v7551 = vrot.slane %v7239, 2
    %v7552 = vsel %vm623, %v7549, %v7551
    %v7553 = vrot.slane %v7240, 2
    %v7554 = vsel %vm623, %v7551, %v7553
    %v7555 = vrot.slane %v7241, 2
    %v7556 = vsel %vm623, %v7553, %v7555
    %v7557 = vrot.slane %v7242, 2
    %v7558 = vsel %vm623, %v7555, %v7557
    %v7559 = vsel %vm2811, %v7546, 0
    %v7561 = vsel %vm2811, %v7548, 0
    %v7563 = vsel %vm2811, %v7550, 0
    %v7565 = vsel %vm2811, %v7552, 0
    %v7567 = vsel %vm2811, %v7554, 0
    %v7569 = vsel %vm2811, %v7556, 0
    %v7571 = vsel %vm2811, %v7558, 0
    %v7573 = vsel %vm2811, %v7557, 0
    %7575 = vmatprep.subr.mxu0 0.0
    %7576 = vmatpush1.msra.mxu0 %v7532
    %7577 = vmatprep.subr.mxu0 0.0
    %7578 = vmatpush1.msra.mxu0 %v7533
    %7579 = vmatprep.subr.mxu0 0.0
    %7580 = vmatpush1.msra.mxu0 %v7534
    %7581 = vmatprep.subr.mxu0 0.0
    %7582 = vmatpush1.msra.mxu0 %v7535
    %7583 = vmatprep.subr.mxu0 0.0
    %7584 = vmatpush1.msra.mxu0 %v7536
    %7585 = vmatprep.subr.mxu0 0.0
    %7586 = vmatpush1.msra.mxu0 %v7537
    %7587 = vmatprep.subr.mxu0 0.0
    %7588 = vmatpush1.msra.mxu0 %v7538
    %7589 = vmatprep.subr.mxu0 0.0
    %7590 = vmatpush1.msra.mxu0 %v7539
    %7591 = vmatprep.subr.mxu0 0.0
    %7592 = vmatpush1.msra.mxu0 %v7540
    %7593 = vmatprep.subr.mxu0 0.0
    %7594 = vmatpush1.msra.mxu0 %v7541
    %7595 = vmatprep.subr.mxu0 0.0
    %7596 = vmatpush1.msra.mxu0 %v7542
    %7597 = vmatprep.subr.mxu0 0.0
    %7598 = vmatpush1.msra.mxu0 %v7543
    %7599 = vmatprep.subr.mxu0 0.0
    %7600 = vmatpush1.msra.mxu0 0.0
    %7601 = vmatprep.subr.mxu0 0.0
    %7602 = vmatpush1.msra.mxu0 0.0
    %7603 = vmatprep.subr.mxu0 0.0
    %7604 = vmatpush1.msra.mxu0 0.0
    %7605 = vmatprep.subr.mxu0 0.0
    %7606 = vmatpush1.msra.mxu0 0.0
    %7607 = vmatprep.subr.mxu0 0.0
    %7608 = vmatpush1.msra.mxu0 0.0
    %7609 = vmatprep.subr.mxu0 0.0
    %7610 = vmatpush1.msra.mxu0 0.0
    %7611 = vmatprep.subr.mxu0 0.0
    %7612 = vmatpush1.msra.mxu0 0.0
    %7613 = vmatprep.subr.mxu0 0.0
    %7614 = vmatpush1.msra.mxu0 0.0
    %7615 = vmatprep.subr.mxu0 0.0
    %7616 = vmatpush1.msra.mxu0 0.0
    %7617 = vmatprep.subr.mxu0 0.0
    %7618 = vmatpush1.msra.mxu0 0.0
    %7619 = vmatprep.subr.mxu0 0.0
    %7620 = vmatpush1.msra.mxu0 0.0
    %7621 = vmatprep.subr.mxu0 0.0
    %7622 = vmatpush1.msra.mxu0 0.0
    %7623 = vmatprep.subr.mxu0 0.0
    %7624 = vmatpush1.msra.mxu0 0.0
    %7625 = vmatprep.subr.mxu0 0.0
    %7626 = vmatpush1.msra.mxu0 0.0
    %7627 = vmatprep.subr.mxu0 0.0
    %7628 = vmatpush1.msra.mxu0 0.0
    %7629 = vmatprep.subr.mxu0 0.0
    %7630 = vmatpush1.msra.mxu0 0.0
    %7631 = vmatprep.subr.mxu0 0.0
    %7632 = vmatpush1.msra.mxu0 0.0
    %7633 = vmatprep.subr.mxu0 0.0
    %7634 = vmatpush1.msra.mxu0 0.0
    %7635 = vmatprep.subr.mxu0 0.0
    %7636 = vmatpush1.msra.mxu0 0.0
    %7637 = vmatprep.subr.mxu0 0.0
    %7638 = vmatpush1.msra.mxu0 0.0
    %7639 = vmatprep.mubr.f32.mxu0 0.0
    %7640 = vmatmul.mubr.f32.gmra.mrb[0].mxu0 %v7559
    %v7641 = vpop.f32.mrb[0].mxu0
    %v7642 = vadd.f32 0.0, %v7641
    %v7643 = vpop.f32.mrb[0].mxu0
    %7644 = vmatprep.mubr.f32.mxu0 0.0
    %7645 = vmatmul.mubr.f32.gmra.mrb[0].mxu0 %v7561
    %v7646 = vpop.f32.mrb[0].mxu0
    %v7647 = vadd.f32 0.0, %v7646
    %v7648 = vpop.f32.mrb[0].mxu0
    %7649 = vmatprep.mubr.f32.mxu0 0.0
    %7650 = vmatmul.mubr.f32.gmra.mrb[0].mxu0 %v7563
    %v7651 = vpop.f32.mrb[0].mxu0
    %v7652 = vadd.f32 0.0, %v7651
    %v7653 = vpop.f32.mrb[0].mxu0
    %7654 = vmatprep.mubr.f32.mxu0 0.0
    %7655 = vmatmul.mubr.f32.gmra.mrb[0].mxu0 %v7565
    %v7656 = vpop.f32.mrb[0].mxu0
    %v7657 = vadd.f32 0.0, %v7656
    %v7658 = vpop.f32.mrb[0].mxu0
    %7659 = vmatprep.mubr.f32.mxu0 0.0
    %7660 = vmatmul.mubr.f32.gmra.mrb[0].mxu0 %v7567
    %v7661 = vpop.f32.mrb[0].mxu0
    %v7662 = vadd.f32 0.0, %v7661
    %v7663 = vpop.f32.mrb[0].mxu0
    %7664 = vmatprep.mubr.f32.mxu0 0.0
    %7665 = vmatmul.mubr.f32.gmra.mrb[0].mxu0 %v7569
    %v7666 = vpop.f32.mrb[0].mxu0
    %v7667 = vadd.f32 0.0, %v7666
    %v7668 = vpop.f32.mrb[0].mxu0
    %7669 = vmatprep.mubr.f32.mxu0 0.0
    %7670 = vmatmul.mubr.f32.gmra.mrb[0].mxu0 %v7571
    %v7671 = vpop.f32.mrb[0].mxu0
    %v7672 = vadd.f32 0.0, %v7671
    %v7673 = vpop.f32.mrb[0].mxu0
    %7674 = vmatprep.mubr.f32.mxu0 0.0
    %7675 = vmatmul.mubr.f32.gmra.mrb[0].mxu0 %v7573
    %v7676 = vpop.f32.mrb[0].mxu0
    %v7677 = vadd.f32 0.0, %v7676
    %v7678 = vpop.f32.mrb[0].mxu0
    %7679 = vdwg.mxu0
    %v7680 = vadd.f32 %v7494, %v7642
    %v7681 = vadd.f32 %v7499, %v7647
    %v7682 = vadd.f32 %v7504, %v7652
    %v7683 = vadd.f32 %v7509, %v7657
    %v7684 = vadd.f32 %v7514, %v7662
    %v7685 = vadd.f32 %v7519, %v7667
    %v7686 = vadd.f32 %v7524, %v7672
    %v7687 = vadd.f32 %v7529, %v7677
    %v7688 = vld [vmem:[#allocation21] sm:$0x1]
    %v7690 = vlaneseq
    %v7691 = vshrl.u32 %v7690, 7
    %v7692 = vsub.s32 0, %v7691
    %v7693 = vrot.slane %v7688, %v7692
    %v7695 = vadd.f32 %v7680, %v7693
    %v7696 = vadd.f32 %v7681, %v7693
    %v7697 = vadd.f32 %v7682, %v7693
    %v7698 = vadd.f32 %v7683, %v7693
    %v7699 = vadd.f32 %v7684, %v7693
    %v7700 = vadd.f32 %v7685, %v7693
    %v7701 = vadd.f32 %v7686, %v7693
    %v7702 = vadd.f32 %v7687, %v7693
    %v7703 = vmax.f32 %v7695, 0.0
    %v7704 = vmax.f32 %v7696, 0.0
    %v7705 = vmax.f32 %v7697, 0.0
    %v7706 = vmax.f32 %v7698, 0.0
    %v7707 = vmax.f32 %v7699, 0.0
    %v7708 = vmax.f32 %v7700, 0.0
    %v7709 = vmax.f32 %v7701, 0.0
    %v7710 = vmax.f32 %v7702, 0.0
    %v7719 = vrot.slane %v7703, 7
    %v7720 = vrot.slane %v7704, 7
    %v7721 = vsel %vm302, %v7719, %v7720
    %v7722 = vrot.slane %v7705, 7
    %v7723 = vsel %vm302, %v7720, %v7722
    %v7724 = vrot.slane %v7706, 7
    %v7725 = vsel %vm302, %v7722, %v7724
    %v7726 = vrot.slane %v7707, 7
    %v7727 = vsel %vm302, %v7724, %v7726
    %v7728 = vrot.slane %v7708, 7
    %v7729 = vsel %vm302, %v7726, %v7728
    %v7730 = vrot.slane %v7709, 7
    %v7731 = vsel %vm302, %v7728, %v7730
    %v7732 = vrot.slane %v7710, 7
    %v7733 = vsel %vm302, %v7730, %v7732
    %7742 = vst.msk [vmem:[#allocation2] sm:$0xfe] %vm2809, %v7719
    %7743 = vst.msk [vmem:[#allocation2 + $0x10] sm:$0xff] %vm2811, %v7721
    %7744 = vst.msk [vmem:[#allocation2 + $0x20] sm:$0xff] %vm2811, %v7723
    %7745 = vst.msk [vmem:[#allocation2 + $0x30] sm:$0xff] %vm2811, %v7725
    %7746 = vst.msk [vmem:[#allocation2 + $0x40] sm:$0xff] %vm2811, %v7727
    %7747 = vst.msk [vmem:[#allocation2 + $0x50] sm:$0xff] %vm2811, %v7729
    %7748 = vst.msk [vmem:[#allocation2 + $0x60] sm:$0xff] %vm2811, %v7731
    %7749 = vst.msk [vmem:[#allocation2 + $0x70] sm:$0x1f] %vm2818, %v7733
    %v7750 = vld [vmem:[#allocation2] sm:$0xff]
    %v7751 = vld [vmem:[#allocation2 + $0x10] sm:$0xff]
    %v7752 = vld [vmem:[#allocation2 + $0x20] sm:$0xff]
    %v7753 = vld [vmem:[#allocation2 + $0x30] sm:$0xff]
    %v7754 = vld [vmem:[#allocation2 + $0x40] sm:$0xff]
    %v7755 = vld [vmem:[#allocation2 + $0x50] sm:$0xff]
    %v7756 = vld [vmem:[#allocation2 + $0x60] sm:$0xff]
    %v7757 = vld [vmem:[#allocation2 + $0x70] sm:$0x3f]
    %v7758 = vld [vmem:[%s13] sm:$0xff]
    %v7759 = vld [vmem:[%s13 + $0x8] sm:$0xff]
    %v7760 = vld [vmem:[%s13 + $0x10] sm:$0xff]
    %v7761 = vld [vmem:[%s13 + $0x18] sm:$0xff]
    %v7762 = vld [vmem:[%s13 + $0x20] sm:$0xff]
    %v7763 = vld [vmem:[%s13 + $0x28] sm:$0xff]
    %v7764 = vld [vmem:[%s13 + $0x30] sm:$0xff]
    %v7765 = vld [vmem:[%s13 + $0x38] sm:$0xff]
    %v7766 = vld [vmem:[%s13 + $0x40] sm:$0xff]
    %v7767 = vld [vmem:[%s13 + $0x48] sm:$0xff]
    %v7768 = vld [vmem:[%s13 + $0x50] sm:$0xff]
    %v7769 = vld [vmem:[%s13 + $0x58] sm:$0xff]
    %v7770 = vld [vmem:[%s13 + $0x60] sm:$0xff]
    %v7771 = vld [vmem:[%s13 + $0x68] sm:$0xff]
    %v7772 = vld [vmem:[%s13 + $0x70] sm:$0xff]
    %v7773 = vld [vmem:[%s13 + $0x78] sm:$0xff]
    %v7774 = vld [vmem:[%s13 + $0x80] sm:$0xff]
    %v7775 = vld [vmem:[%s13 + $0x88] sm:$0xff]
    %v7776 = vld [vmem:[%s13 + $0x90] sm:$0xff]
    %v7777 = vld [vmem:[%s13 + $0x98] sm:$0xff]
    %v7778 = vld [vmem:[%s13 + $0xa0] sm:$0xff]
    %v7779 = vld [vmem:[%s13 + $0xa8] sm:$0xff]
    %v7780 = vld [vmem:[%s13 + $0xb0] sm:$0xff]
    %v7781 = vld [vmem:[%s13 + $0xb8] sm:$0xff]
    %v7782 = vld [vmem:[%s3369] sm:$0xff]
    %v7783 = vld [vmem:[%s3369 + $0x8] sm:$0xff]
    %v7784 = vld [vmem:[%s3369 + $0x10] sm:$0xff]
    %v7785 = vld [vmem:[%s3369 + $0x18] sm:$0xff]
    %v7786 = vld [vmem:[%s3369 + $0x20] sm:$0xff]
    %v7787 = vld [vmem:[%s3369 + $0x28] sm:$0xff]
    %v7788 = vld [vmem:[%s3369 + $0x30] sm:$0xff]
    %v7789 = vld [vmem:[%s3369 + $0x38] sm:$0xff]
    %v7790 = vld [vmem:[%s3369 + $0x40] sm:$0xff]
    %v7791 = vld [vmem:[%s3369 + $0x48] sm:$0xff]
    %v7792 = vld [vmem:[%s3369 + $0x50] sm:$0xff]
    %v7793 = vld [vmem:[%s3369 + $0x58] sm:$0xff]
    %v7794 = vld [vmem:[%s3369 + $0x60] sm:$0xff]
    %v7795 = vld [vmem:[%s3369 + $0x68] sm:$0xff]
    %v7796 = vld [vmem:[%s3369 + $0x70] sm:$0xff]
    %v7797 = vld [vmem:[%s3369 + $0x78] sm:$0xff]
    %v7798 = vld [vmem:[%s3369 + $0x80] sm:$0xff]
    %v7799 = vld [vmem:[%s3369 + $0x88] sm:$0xff]
    %v7800 = vld [vmem:[%s3369 + $0x90] sm:$0xff]
    %v7801 = vld [vmem:[%s3369 + $0x98] sm:$0xff]
    %v7802 = vld [vmem:[%s3369 + $0xa0] sm:$0xff]
    %v7803 = vld [vmem:[%s3369 + $0xa8] sm:$0xff]
    %v7804 = vld [vmem:[%s3369 + $0xb0] sm:$0xff]
    %v7805 = vld [vmem:[%s3369 + $0xb8] sm:$0xff]
    %v7814 = vrot.slane %v7750, 1
    %v7815 = vrot.slane %v7751, 1
    %v7816 = vsel %vm356, %v7814, %v7815
    %v7817 = vrot.slane %v7752, 1
    %v7818 = vsel %vm356, %v7815, %v7817
    %v7819 = vrot.slane %v7753, 1
    %v7820 = vsel %vm356, %v7817, %v7819
    %v7821 = vrot.slane %v7754, 1
    %v7822 = vsel %vm356, %v7819, %v7821
    %v7823 = vrot.slane %v7755, 1
    %v7824 = vsel %vm356, %v7821, %v7823
    %v7825 = vrot.slane %v7756, 1
    %v7826 = vsel %vm356, %v7823, %v7825
    %v7827 = vrot.slane %v7757, 1
    %v7828 = vsel %vm356, %v7825, %v7827
    %v7829 = vsel %vm2811, %v7816, 0
    %v7831 = vsel %vm2811, %v7818, 0
    %v7833 = vsel %vm2811, %v7820, 0
    %v7835 = vsel %vm2811, %v7822, 0
    %v7837 = vsel %vm2811, %v7824, 0
    %v7839 = vsel %vm2811, %v7826, 0
    %v7841 = vsel %vm2811, %v7828, 0
    %v7843 = vsel %vm2811, %v7827, 0
    %7845 = vmatprep.subr.mxu0 %v7783
    %7846 = vmatpush1.msra.mxu0 %v7782
    %7847 = vmatprep.subr.mxu0 %v7785
    %7848 = vmatpush1.msra.mxu0 %v7784
    %7849 = vmatprep.subr.mxu0 %v7787
    %7850 = vmatpush1.msra.mxu0 %v7786
    %7851 = vmatprep.subr.mxu0 %v7789
    %7852 = vmatpush1.msra.mxu0 %v7788
    %7853 = vmatprep.subr.mxu0 %v7791
    %7854 = vmatpush1.msra.mxu0 %v7790
    %7855 = vmatprep.subr.mxu0 %v7793
    %7856 = vmatpush1.msra.mxu0 %v7792
    %7857 = vmatprep.subr.mxu0 %v7795
    %7858 = vmatpush1.msra.mxu0 %v7794
    %7859 = vmatprep.subr.mxu0 %v7797
    %7860 = vmatpush1.msra.mxu0 %v7796
    %7861 = vmatprep.subr.mxu0 %v7799
    %7862 = vmatpush1.msra.mxu0 %v7798
    %7863 = vmatprep.subr.mxu0 %v7801
    %7864 = vmatpush1.msra.mxu0 %v7800
    %7865 = vmatprep.subr.mxu0 %v7803
    %7866 = vmatpush1.msra.mxu0 %v7802
    %7867 = vmatprep.subr.mxu0 %v7805
    %7868 = vmatpush1.msra.mxu0 %v7804
    %7869 = vmatprep.subr.mxu0 0.0
    %7870 = vmatpush1.msra.mxu0 0.0
    %7871 = vmatprep.subr.mxu0 0.0
    %7872 = vmatpush1.msra.mxu0 0.0
    %7873 = vmatprep.subr.mxu0 0.0
    %7874 = vmatpush1.msra.mxu0 0.0
    %7875 = vmatprep.subr.mxu0 0.0
    %7876 = vmatpush1.msra.mxu0 0.0
    %7877 = vmatprep.subr.mxu0 0.0
    %7878 = vmatpush1.msra.mxu0 0.0
    %7879 = vmatprep.subr.mxu0 0.0
    %7880 = vmatpush1.msra.mxu0 0.0
    %7881 = vmatprep.subr.mxu0 0.0
    %7882 = vmatpush1.msra.mxu0 0.0
    %7883 = vmatprep.subr.mxu0 0.0
    %7884 = vmatpush1.msra.mxu0 0.0
    %7885 = vmatprep.subr.mxu0 0.0
    %7886 = vmatpush1.msra.mxu0 0.0
    %7887 = vmatprep.subr.mxu0 0.0
    %7888 = vmatpush1.msra.mxu0 0.0
    %7889 = vmatprep.subr.mxu0 0.0
    %7890 = vmatpush1.msra.mxu0 0.0
    %7891 = vmatprep.subr.mxu0 0.0
    %7892 = vmatpush1.msra.mxu0 0.0
    %7893 = vmatprep.subr.mxu0 0.0
    %7894 = vmatpush1.msra.mxu0 0.0
    %7895 = vmatprep.subr.mxu0 0.0
    %7896 = vmatpush1.msra.mxu0 0.0
    %7897 = vmatprep.subr.mxu0 0.0
    %7898 = vmatpush1.msra.mxu0 0.0
    %7899 = vmatprep.subr.mxu0 0.0
    %7900 = vmatpush1.msra.mxu0 0.0
    %7901 = vmatprep.subr.mxu0 0.0
    %7902 = vmatpush1.msra.mxu0 0.0
    %7903 = vmatprep.subr.mxu0 0.0
    %7904 = vmatpush1.msra.mxu0 0.0
    %7905 = vmatprep.subr.mxu0 0.0
    %7906 = vmatpush1.msra.mxu0 0.0
    %7907 = vmatprep.subr.mxu0 0.0
    %7908 = vmatpush1.msra.mxu0 0.0
    %7909 = vmatprep.mubr.f32.mxu0 0.0
    %7910 = vmatmul.mubr.f32.gmra.mrb[0].mxu0 %v7829
    %v7911 = vpop.f32.mrb[0].mxu0
    %v7912 = vadd.f32 0.0, %v7911
    %v7913 = vpop.f32.mrb[0].mxu0
    %v7914 = vadd.f32 0.0, %v7913
    %7915 = vmatprep.mubr.f32.mxu0 0.0
    %7916 = vmatmul.mubr.f32.gmra.mrb[0].mxu0 %v7831
    %v7917 = vpop.f32.mrb[0].mxu0
    %v7918 = vadd.f32 0.0, %v7917
    %v7919 = vpop.f32.mrb[0].mxu0
    %v7920 = vadd.f32 0.0, %v7919
    %7921 = vmatprep.mubr.f32.mxu0 0.0
    %7922 = vmatmul.mubr.f32.gmra.mrb[0].mxu0 %v7833
    %v7923 = vpop.f32.mrb[0].mxu0
    %v7924 = vadd.f32 0.0, %v7923
    %v7925 = vpop.f32.mrb[0].mxu0
    %v7926 = vadd.f32 0.0, %v7925
    %7927 = vmatprep.mubr.f32.mxu0 0.0
    %7928 = vmatmul.mubr.f32.gmra.mrb[0].mxu0 %v7835
    %v7929 = vpop.f32.mrb[0].mxu0
    %v7930 = vadd.f32 0.0, %v7929
    %v7931 = vpop.f32.mrb[0].mxu0
    %v7932 = vadd.f32 0.0, %v7931
    %7933 = vmatprep.mubr.f32.mxu0 0.0
    %7934 = vmatmul.mubr.f32.gmra.mrb[0].mxu0 %v7837
    %v7935 = vpop.f32.mrb[0].mxu0
    %v7936 = vadd.f32 0.0, %v7935
    %v7937 = vpop.f32.mrb[0].mxu0
    %v7938 = vadd.f32 0.0, %v7937
    %7939 = vmatprep.mubr.f32.mxu0 0.0
    %7940 = vmatmul.mubr.f32.gmra.mrb[0].mxu0 %v7839
    %v7941 = vpop.f32.mrb[0].mxu0
    %v7942 = vadd.f32 0.0, %v7941
    %v7943 = vpop.f32.mrb[0].mxu0
    %v7944 = vadd.f32 0.0, %v7943
    %7945 = vmatprep.mubr.f32.mxu0 0.0
    %7946 = vmatmul.mubr.f32.gmra.mrb[0].mxu0 %v7841
    %v7947 = vpop.f32.mrb[0].mxu0
    %v7948 = vadd.f32 0.0, %v7947
    %v7949 = vpop.f32.mrb[0].mxu0
    %v7950 = vadd.f32 0.0, %v7949
    %7951 = vmatprep.mubr.f32.mxu0 0.0
    %7952 = vmatmul.mubr.f32.gmra.mrb[0].mxu0 %v7843
    %v7953 = vpop.f32.mrb[0].mxu0
    %v7954 = vadd.f32 0.0, %v7953
    %v7955 = vpop.f32.mrb[0].mxu0
    %v7956 = vadd.f32 0.0, %v7955
    %7957 = vdwg.mxu0
    %v7958 = vsel %vm2811, %v7750, 0
    %v7960 = vsel %vm2811, %v7751, 0
    %v7962 = vsel %vm2811, %v7752, 0
    %v7964 = vsel %vm2811, %v7753, 0
    %v7966 = vsel %vm2811, %v7754, 0
    %v7968 = vsel %vm2811, %v7755, 0
    %v7970 = vsel %vm2811, %v7756, 0
    %v7972 = vsel %vm2811, %v7757, 0
    %7974 = vmatprep.subr.mxu0 %v7759
    %7975 = vmatpush1.msra.mxu0 %v7758
    %7976 = vmatprep.subr.mxu0 %v7761
    %7977 = vmatpush1.msra.mxu0 %v7760
    %7978 = vmatprep.subr.mxu0 %v7763
    %7979 = vmatpush1.msra.mxu0 %v7762
    %7980 = vmatprep.subr.mxu0 %v7765
    %7981 = vmatpush1.msra.mxu0 %v7764
    %7982 = vmatprep.subr.mxu0 %v7767
    %7983 = vmatpush1.msra.mxu0 %v7766
    %7984 = vmatprep.subr.mxu0 %v7769
    %7985 = vmatpush1.msra.mxu0 %v7768
    %7986 = vmatprep.subr.mxu0 %v7771
    %7987 = vmatpush1.msra.mxu0 %v7770
    %7988 = vmatprep.subr.mxu0 %v7773
    %7989 = vmatpush1.msra.mxu0 %v7772
    %7990 = vmatprep.subr.mxu0 %v7775
    %7991 = vmatpush1.msra.mxu0 %v7774
    %7992 = vmatprep.subr.mxu0 %v7777
    %7993 = vmatpush1.msra.mxu0 %v7776
    %7994 = vmatprep.subr.mxu0 %v7779
    %7995 = vmatpush1.msra.mxu0 %v7778
    %7996 = vmatprep.subr.mxu0 %v7781
    %7997 = vmatpush1.msra.mxu0 %v7780
    %7998 = vmatprep.subr.mxu0 0.0
    %7999 = vmatpush1.msra.mxu0 0.0
    %8000 = vmatprep.subr.mxu0 0.0
    %8001 = vmatpush1.msra.mxu0 0.0
    %8002 = vmatprep.subr.mxu0 0.0
    %8003 = vmatpush1.msra.mxu0 0.0
    %8004 = vmatprep.subr.mxu0 0.0
    %8005 = vmatpush1.msra.mxu0 0.0
    %8006 = vmatprep.subr.mxu0 0.0
    %8007 = vmatpush1.msra.mxu0 0.0
    %8008 = vmatprep.subr.mxu0 0.0
    %8009 = vmatpush1.msra.mxu0 0.0
    %8010 = vmatprep.subr.mxu0 0.0
    %8011 = vmatpush1.msra.mxu0 0.0
    %8012 = vmatprep.subr.mxu0 0.0
    %8013 = vmatpush1.msra.mxu0 0.0
    %8014 = vmatprep.subr.mxu0 0.0
    %8015 = vmatpush1.msra.mxu0 0.0
    %8016 = vmatprep.subr.mxu0 0.0
    %8017 = vmatpush1.msra.mxu0 0.0
    %8018 = vmatprep.subr.mxu0 0.0
    %8019 = vmatpush1.msra.mxu0 0.0
    %8020 = vmatprep.subr.mxu0 0.0
    %8021 = vmatpush1.msra.mxu0 0.0
    %8022 = vmatprep.subr.mxu0 0.0
    %8023 = vmatpush1.msra.mxu0 0.0
    %8024 = vmatprep.subr.mxu0 0.0
    %8025 = vmatpush1.msra.mxu0 0.0
    %8026 = vmatprep.subr.mxu0 0.0
    %8027 = vmatpush1.msra.mxu0 0.0
    %8028 = vmatprep.subr.mxu0 0.0
    %8029 = vmatpush1.msra.mxu0 0.0
    %8030 = vmatprep.subr.mxu0 0.0
    %8031 = vmatpush1.msra.mxu0 0.0
    %8032 = vmatprep.subr.mxu0 0.0
    %8033 = vmatpush1.msra.mxu0 0.0
    %8034 = vmatprep.subr.mxu0 0.0
    %8035 = vmatpush1.msra.mxu0 0.0
    %8036 = vmatprep.subr.mxu0 0.0
    %8037 = vmatpush1.msra.mxu0 0.0
    %8038 = vmatprep.mubr.f32.mxu0 0.0
    %8039 = vmatmul.mubr.f32.gmra.mrb[0].mxu0 %v7958
    %v8040 = vpop.f32.mrb[0].mxu0
    %v8041 = vadd.f32 %v7912, %v8040
    %v8042 = vpop.f32.mrb[0].mxu0
    %v8043 = vadd.f32 %v7914, %v8042
    %8044 = vmatprep.mubr.f32.mxu0 0.0
    %8045 = vmatmul.mubr.f32.gmra.mrb[0].mxu0 %v7960
    %v8046 = vpop.f32.mrb[0].mxu0
    %v8047 = vadd.f32 %v7918, %v8046
    %v8048 = vpop.f32.mrb[0].mxu0
    %v8049 = vadd.f32 %v7920, %v8048
    %8050 = vmatprep.mubr.f32.mxu0 0.0
    %8051 = vmatmul.mubr.f32.gmra.mrb[0].mxu0 %v7962
    %v8052 = vpop.f32.mrb[0].mxu0
    %v8053 = vadd.f32 %v7924, %v8052
    %v8054 = vpop.f32.mrb[0].mxu0
    %v8055 = vadd.f32 %v7926, %v8054
    %8056 = vmatprep.mubr.f32.mxu0 0.0
    %8057 = vmatmul.mubr.f32.gmra.mrb[0].mxu0 %v7964
    %v8058 = vpop.f32.mrb[0].mxu0
    %v8059 = vadd.f32 %v7930, %v8058
    %v8060 = vpop.f32.mrb[0].mxu0
    %v8061 = vadd.f32 %v7932, %v8060
    %8062 = vmatprep.mubr.f32.mxu0 0.0
    %8063 = vmatmul.mubr.f32.gmra.mrb[0].mxu0 %v7966
    %v8064 = vpop.f32.mrb[0].mxu0
    %v8065 = vadd.f32 %v7936, %v8064
    %v8066 = vpop.f32.mrb[0].mxu0
    %v8067 = vadd.f32 %v7938, %v8066
    %8068 = vmatprep.mubr.f32.mxu0 0.0
    %8069 = vmatmul.mubr.f32.gmra.mrb[0].mxu0 %v7968
    %v8070 = vpop.f32.mrb[0].mxu0
    %v8071 = vadd.f32 %v7942, %v8070
    %v8072 = vpop.f32.mrb[0].mxu0
    %v8073 = vadd.f32 %v7944, %v8072
    %8074 = vmatprep.mubr.f32.mxu0 0.0
    %8075 = vmatmul.mubr.f32.gmra.mrb[0].mxu0 %v7970
    %v8076 = vpop.f32.mrb[0].mxu0
    %v8077 = vadd.f32 %v7948, %v8076
    %v8078 = vpop.f32.mrb[0].mxu0
    %v8079 = vadd.f32 %v7950, %v8078
    %8080 = vmatprep.mubr.f32.mxu0 0.0
    %8081 = vmatmul.mubr.f32.gmra.mrb[0].mxu0 %v7972
    %v8082 = vpop.f32.mrb[0].mxu0
    %v8083 = vadd.f32 %v7954, %v8082
    %v8084 = vpop.f32.mrb[0].mxu0
    %v8085 = vadd.f32 %v7956, %v8084
    %8086 = vdwg.mxu0
    %v8087 = vld [vmem:[%s3675] sm:$0xff]
    %v8088 = vld [vmem:[%s3675 + $0x8] sm:$0xff]
    %v8089 = vld [vmem:[%s3675 + $0x10] sm:$0xff]
    %v8090 = vld [vmem:[%s3675 + $0x18] sm:$0xff]
    %v8091 = vld [vmem:[%s3675 + $0x20] sm:$0xff]
    %v8092 = vld [vmem:[%s3675 + $0x28] sm:$0xff]
    %v8093 = vld [vmem:[%s3675 + $0x30] sm:$0xff]
    %v8094 = vld [vmem:[%s3675 + $0x38] sm:$0xff]
    %v8095 = vld [vmem:[%s3675 + $0x40] sm:$0xff]
    %v8096 = vld [vmem:[%s3675 + $0x48] sm:$0xff]
    %v8097 = vld [vmem:[%s3675 + $0x50] sm:$0xff]
    %v8098 = vld [vmem:[%s3675 + $0x58] sm:$0xff]
    %v8099 = vld [vmem:[%s3675 + $0x60] sm:$0xff]
    %v8100 = vld [vmem:[%s3675 + $0x68] sm:$0xff]
    %v8101 = vld [vmem:[%s3675 + $0x70] sm:$0xff]
    %v8102 = vld [vmem:[%s3675 + $0x78] sm:$0xff]
    %v8103 = vld [vmem:[%s3675 + $0x80] sm:$0xff]
    %v8104 = vld [vmem:[%s3675 + $0x88] sm:$0xff]
    %v8105 = vld [vmem:[%s3675 + $0x90] sm:$0xff]
    %v8106 = vld [vmem:[%s3675 + $0x98] sm:$0xff]
    %v8107 = vld [vmem:[%s3675 + $0xa0] sm:$0xff]
    %v8108 = vld [vmem:[%s3675 + $0xa8] sm:$0xff]
    %v8109 = vld [vmem:[%s3675 + $0xb0] sm:$0xff]
    %v8110 = vld [vmem:[%s3675 + $0xb8] sm:$0xff]
    %v8111 = vrot.slane %v7750, 2
    %v8112 = vrot.slane %v7751, 2
    %v8113 = vsel %vm623, %v8111, %v8112
    %v8114 = vrot.slane %v7752, 2
    %v8115 = vsel %vm623, %v8112, %v8114
    %v8116 = vrot.slane %v7753, 2
    %v8117 = vsel %vm623, %v8114, %v8116
    %v8118 = vrot.slane %v7754, 2
    %v8119 = vsel %vm623, %v8116, %v8118
    %v8120 = vrot.slane %v7755, 2
    %v8121 = vsel %vm623, %v8118, %v8120
    %v8122 = vrot.slane %v7756, 2
    %v8123 = vsel %vm623, %v8120, %v8122
    %v8124 = vrot.slane %v7757, 2
    %v8125 = vsel %vm623, %v8122, %v8124
    %v8126 = vsel %vm2811, %v8113, 0
    %v8128 = vsel %vm2811, %v8115, 0
    %v8130 = vsel %vm2811, %v8117, 0
    %v8132 = vsel %vm2811, %v8119, 0
    %v8134 = vsel %vm2811, %v8121, 0
    %v8136 = vsel %vm2811, %v8123, 0
    %v8138 = vsel %vm2811, %v8125, 0
    %v8140 = vsel %vm2811, %v8124, 0
    %8142 = vmatprep.subr.mxu0 %v8088
    %8143 = vmatpush1.msra.mxu0 %v8087
    %8144 = vmatprep.subr.mxu0 %v8090
    %8145 = vmatpush1.msra.mxu0 %v8089
    %8146 = vmatprep.subr.mxu0 %v8092
    %8147 = vmatpush1.msra.mxu0 %v8091
    %8148 = vmatprep.subr.mxu0 %v8094
    %8149 = vmatpush1.msra.mxu0 %v8093
    %8150 = vmatprep.subr.mxu0 %v8096
    %8151 = vmatpush1.msra.mxu0 %v8095
    %8152 = vmatprep.subr.mxu0 %v8098
    %8153 = vmatpush1.msra.mxu0 %v8097
    %8154 = vmatprep.subr.mxu0 %v8100
    %8155 = vmatpush1.msra.mxu0 %v8099
    %8156 = vmatprep.subr.mxu0 %v8102
    %8157 = vmatpush1.msra.mxu0 %v8101
    %8158 = vmatprep.subr.mxu0 %v8104
    %8159 = vmatpush1.msra.mxu0 %v8103
    %8160 = vmatprep.subr.mxu0 %v8106
    %8161 = vmatpush1.msra.mxu0 %v8105
    %8162 = vmatprep.subr.mxu0 %v8108
    %8163 = vmatpush1.msra.mxu0 %v8107
    %8164 = vmatprep.subr.mxu0 %v8110
    %8165 = vmatpush1.msra.mxu0 %v8109
    %8166 = vmatprep.subr.mxu0 0.0
    %8167 = vmatpush1.msra.mxu0 0.0
    %8168 = vmatprep.subr.mxu0 0.0
    %8169 = vmatpush1.msra.mxu0 0.0
    %8170 = vmatprep.subr.mxu0 0.0
    %8171 = vmatpush1.msra.mxu0 0.0
    %8172 = vmatprep.subr.mxu0 0.0
    %8173 = vmatpush1.msra.mxu0 0.0
    %8174 = vmatprep.subr.mxu0 0.0
    %8175 = vmatpush1.msra.mxu0 0.0
    %8176 = vmatprep.subr.mxu0 0.0
    %8177 = vmatpush1.msra.mxu0 0.0
    %8178 = vmatprep.subr.mxu0 0.0
    %8179 = vmatpush1.msra.mxu0 0.0
    %8180 = vmatprep.subr.mxu0 0.0
    %8181 = vmatpush1.msra.mxu0 0.0
    %8182 = vmatprep.subr.mxu0 0.0
    %8183 = vmatpush1.msra.mxu0 0.0
    %8184 = vmatprep.subr.mxu0 0.0
    %8185 = vmatpush1.msra.mxu0 0.0
    %8186 = vmatprep.subr.mxu0 0.0
    %8187 = vmatpush1.msra.mxu0 0.0
    %8188 = vmatprep.subr.mxu0 0.0
    %8189 = vmatpush1.msra.mxu0 0.0
    %8190 = vmatprep.subr.mxu0 0.0
    %8191 = vmatpush1.msra.mxu0 0.0
    %8192 = vmatprep.subr.mxu0 0.0
    %8193 = vmatpush1.msra.mxu0 0.0
    %8194 = vmatprep.subr.mxu0 0.0
    %8195 = vmatpush1.msra.mxu0 0.0
    %8196 = vmatprep.subr.mxu0 0.0
    %8197 = vmatpush1.msra.mxu0 0.0
    %8198 = vmatprep.subr.mxu0 0.0
    %8199 = vmatpush1.msra.mxu0 0.0
    %8200 = vmatprep.subr.mxu0 0.0
    %8201 = vmatpush1.msra.mxu0 0.0
    %8202 = vmatprep.subr.mxu0 0.0
    %8203 = vmatpush1.msra.mxu0 0.0
    %8204 = vmatprep.subr.mxu0 0.0
    %8205 = vmatpush1.msra.mxu0 0.0
    %8206 = vmatprep.mubr.f32.mxu0 0.0
    %8207 = vmatmul.mubr.f32.gmra.mrb[0].mxu0 %v8126
    %v8208 = vpop.f32.mrb[0].mxu0
    %v8209 = vadd.f32 0.0, %v8208
    %v8210 = vpop.f32.mrb[0].mxu0
    %v8211 = vadd.f32 0.0, %v8210
    %8212 = vmatprep.mubr.f32.mxu0 0.0
    %8213 = vmatmul.mubr.f32.gmra.mrb[0].mxu0 %v8128
    %v8214 = vpop.f32.mrb[0].mxu0
    %v8215 = vadd.f32 0.0, %v8214
    %v8216 = vpop.f32.mrb[0].mxu0
    %v8217 = vadd.f32 0.0, %v8216
    %8218 = vmatprep.mubr.f32.mxu0 0.0
    %8219 = vmatmul.mubr.f32.gmra.mrb[0].mxu0 %v8130
    %v8220 = vpop.f32.mrb[0].mxu0
    %v8221 = vadd.f32 0.0, %v8220
    %v8222 = vpop.f32.mrb[0].mxu0
    %v8223 = vadd.f32 0.0, %v8222
    %8224 = vmatprep.mubr.f32.mxu0 0.0
    %8225 = vmatmul.mubr.f32.gmra.mrb[0].mxu0 %v8132
    %v8226 = vpop.f32.mrb[0].mxu0
    %v8227 = vadd.f32 0.0, %v8226
    %v8228 = vpop.f32.mrb[0].mxu0
    %v8229 = vadd.f32 0.0, %v8228
    %8230 = vmatprep.mubr.f32.mxu0 0.0
    %8231 = vmatmul.mubr.f32.gmra.mrb[0].mxu0 %v8134
    %v8232 = vpop.f32.mrb[0].mxu0
    %v8233 = vadd.f32 0.0, %v8232
    %v8234 = vpop.f32.mrb[0].mxu0
    %v8235 = vadd.f32 0.0, %v8234
    %8236 = vmatprep.mubr.f32.mxu0 0.0
    %8237 = vmatmul.mubr.f32.gmra.mrb[0].mxu0 %v8136
    %v8238 = vpop.f32.mrb[0].mxu0
    %v8239 = vadd.f32 0.0, %v8238
    %v8240 = vpop.f32.mrb[0].mxu0
    %v8241 = vadd.f32 0.0, %v8240
    %8242 = vmatprep.mubr.f32.mxu0 0.0
    %8243 = vmatmul.mubr.f32.gmra.mrb[0].mxu0 %v8138
    %v8244 = vpop.f32.mrb[0].mxu0
    %v8245 = vadd.f32 0.0, %v8244
    %v8246 = vpop.f32.mrb[0].mxu0
    %v8247 = vadd.f32 0.0, %v8246
    %8248 = vmatprep.mubr.f32.mxu0 0.0
    %8249 = vmatmul.mubr.f32.gmra.mrb[0].mxu0 %v8140
    %v8250 = vpop.f32.mrb[0].mxu0
    %v8251 = vadd.f32 0.0, %v8250
    %v8252 = vpop.f32.mrb[0].mxu0
    %v8253 = vadd.f32 0.0, %v8252
    %8254 = vdwg.mxu0
    %v8255 = vadd.f32 %v8041, %v8209
    %v8256 = vadd.f32 %v8043, %v8211
    %v8257 = vadd.f32 %v8047, %v8215
    %v8258 = vadd.f32 %v8049, %v8217
    %v8259 = vadd.f32 %v8053, %v8221
    %v8260 = vadd.f32 %v8055, %v8223
    %v8261 = vadd.f32 %v8059, %v8227
    %v8262 = vadd.f32 %v8061, %v8229
    %v8263 = vadd.f32 %v8065, %v8233
    %v8264 = vadd.f32 %v8067, %v8235
    %v8265 = vadd.f32 %v8071, %v8239
    %v8266 = vadd.f32 %v8073, %v8241
    %v8267 = vadd.f32 %v8077, %v8245
    %v8268 = vadd.f32 %v8079, %v8247
    %v8269 = vadd.f32 %v8083, %v8251
    %v8270 = vadd.f32 %v8085, %v8253
    %v8271 = vld [vmem:[#allocation23] sm:$0x3]
    %v8273 = vlaneseq
    %v8274 = vshrl.u32 %v8273, 7
    %v8275 = vsub.s32 0, %v8274
    %v8276 = vrot.slane %v8271, %v8275
    %v8277 = vlaneseq
    %v8278 = vshrl.u32 %v8277, 7
    %v8279 = vsub.s32 1, %v8278
    %v8280 = vrot.slane %v8271, %v8279
    %v8283 = vadd.f32 %v8255, %v8276
    %v8284 = vadd.f32 %v8256, %v8280
    %v8285 = vadd.f32 %v8257, %v8276
    %v8286 = vadd.f32 %v8258, %v8280
    %v8287 = vadd.f32 %v8259, %v8276
    %v8288 = vadd.f32 %v8260, %v8280
    %v8289 = vadd.f32 %v8261, %v8276
    %v8290 = vadd.f32 %v8262, %v8280
    %v8291 = vadd.f32 %v8263, %v8276
    %v8292 = vadd.f32 %v8264, %v8280
    %v8293 = vadd.f32 %v8265, %v8276
    %v8294 = vadd.f32 %v8266, %v8280
    %v8295 = vadd.f32 %v8267, %v8276
    %v8296 = vadd.f32 %v8268, %v8280
    %v8297 = vadd.f32 %v8269, %v8276
    %v8298 = vadd.f32 %v8270, %v8280
    %v8299 = vmax.f32 %v8283, 0.0
    %v8300 = vmax.f32 %v8284, 0.0
    %v8301 = vmax.f32 %v8285, 0.0
    %v8302 = vmax.f32 %v8286, 0.0
    %v8303 = vmax.f32 %v8287, 0.0
    %v8304 = vmax.f32 %v8288, 0.0
    %v8305 = vmax.f32 %v8289, 0.0
    %v8306 = vmax.f32 %v8290, 0.0
    %v8307 = vmax.f32 %v8291, 0.0
    %v8308 = vmax.f32 %v8292, 0.0
    %v8309 = vmax.f32 %v8293, 0.0
    %v8310 = vmax.f32 %v8294, 0.0
    %v8311 = vmax.f32 %v8295, 0.0
    %v8312 = vmax.f32 %v8296, 0.0
    %v8313 = vmax.f32 %v8297, 0.0
    %v8314 = vmax.f32 %v8298, 0.0
    %v8331 = vrot.slane %v8299, 7
    %v8332 = vrot.slane %v8300, 7
    %v8333 = vrot.slane %v8301, 7
    %v8334 = vsel %vm302, %v8331, %v8333
    %v8335 = vrot.slane %v8302, 7
    %v8336 = vsel %vm302, %v8332, %v8335
    %v8337 = vrot.slane %v8303, 7
    %v8338 = vsel %vm302, %v8333, %v8337
    %v8339 = vrot.slane %v8304, 7
    %v8340 = vsel %vm302, %v8335, %v8339
    %v8341 = vrot.slane %v8305, 7
    %v8342 = vsel %vm302, %v8337, %v8341
    %v8343 = vrot.slane %v8306, 7
    %v8344 = vsel %vm302, %v8339, %v8343
    %v8345 = vrot.slane %v8307, 7
    %v8346 = vsel %vm302, %v8341, %v8345
    %v8347 = vrot.slane %v8308, 7
    %v8348 = vsel %vm302, %v8343, %v8347
    %v8349 = vrot.slane %v8309, 7
    %v8350 = vsel %vm302, %v8345, %v8349
    %v8351 = vrot.slane %v8310, 7
    %v8352 = vsel %vm302, %v8347, %v8351
    %v8353 = vrot.slane %v8311, 7
    %v8354 = vsel %vm302, %v8349, %v8353
    %v8355 = vrot.slane %v8312, 7
    %v8356 = vsel %vm302, %v8351, %v8355
    %v8357 = vrot.slane %v8313, 7
    %v8358 = vsel %vm302, %v8353, %v8357
    %v8359 = vrot.slane %v8314, 7
    %v8360 = vsel %vm302, %v8355, %v8359
    %8377 = vst [vmem:[#allocation2] sm:$0xfe] %v8331
    %8378 = vst.msk [vmem:[#allocation2 + $0x8] sm:$0xfe] %vm3967, %v8332
    %8379 = vst [vmem:[#allocation2 + $0x10] sm:$0xff] %v8334
    %8380 = vst.msk [vmem:[#allocation2 + $0x18] sm:$0xff] %vm3970, %v8336
    %8381 = vst [vmem:[#allocation2 + $0x20] sm:$0xff] %v8338
    %8382 = vst.msk [vmem:[#allocation2 + $0x28] sm:$0xff] %vm3970, %v8340
    %8383 = vst [vmem:[#allocation2 + $0x30] sm:$0xff] %v8342
    %8384 = vst.msk [vmem:[#allocation2 + $0x38] sm:$0xff] %vm3970, %v8344
    %8385 = vst [vmem:[#allocation2 + $0x40] sm:$0xff] %v8346
    %8386 = vst.msk [vmem:[#allocation2 + $0x48] sm:$0xff] %vm3970, %v8348
    %8387 = vst [vmem:[#allocation2 + $0x50] sm:$0xff] %v8350
    %8388 = vst.msk [vmem:[#allocation2 + $0x58] sm:$0xff] %vm3970, %v8352
    %8389 = vst [vmem:[#allocation2 + $0x60] sm:$0xff] %v8354
    %8390 = vst.msk [vmem:[#allocation2 + $0x68] sm:$0xff] %vm3970, %v8356
    %8391 = vst [vmem:[#allocation2 + $0x70] sm:$0x1f] %v8358
    %8392 = vst.msk [vmem:[#allocation2 + $0x78] sm:$0x1f] %vm3983, %v8360
    %v8393 = vld [vmem:[#allocation2] sm:$0xff]
    %v8394 = vld [vmem:[#allocation2 + $0x8] sm:$0xff]
    %v8395 = vld [vmem:[#allocation2 + $0x10] sm:$0xff]
    %v8396 = vld [vmem:[#allocation2 + $0x18] sm:$0xff]
    %v8397 = vld [vmem:[#allocation2 + $0x20] sm:$0xff]
    %v8398 = vld [vmem:[#allocation2 + $0x28] sm:$0xff]
    %v8399 = vld [vmem:[#allocation2 + $0x30] sm:$0xff]
    %v8400 = vld [vmem:[#allocation2 + $0x38] sm:$0xff]
    %v8401 = vld [vmem:[#allocation2 + $0x40] sm:$0xff]
    %v8402 = vld [vmem:[#allocation2 + $0x48] sm:$0xff]
    %v8403 = vld [vmem:[#allocation2 + $0x50] sm:$0xff]
    %v8404 = vld [vmem:[#allocation2 + $0x58] sm:$0xff]
    %v8405 = vld [vmem:[#allocation2 + $0x60] sm:$0xff]
    %v8406 = vld [vmem:[#allocation2 + $0x68] sm:$0xff]
    %v8407 = vld [vmem:[#allocation2 + $0x70] sm:$0x3f]
    %v8408 = vld [vmem:[#allocation2 + $0x78] sm:$0x3f]
    %v8409 = vld [vmem:[#allocation24] sm:$0xff]
    %v8410 = vld [vmem:[#allocation24 + $0x8] sm:$0xff]
    %v8411 = vld [vmem:[#allocation24 + $0x10] sm:$0xff]
    %v8412 = vld [vmem:[#allocation24 + $0x18] sm:$0xff]
    %v8413 = vld [vmem:[#allocation24 + $0x20] sm:$0xff]
    %v8414 = vld [vmem:[#allocation24 + $0x28] sm:$0xff]
    %v8415 = vld [vmem:[#allocation24 + $0x30] sm:$0xff]
    %v8416 = vld [vmem:[#allocation24 + $0x38] sm:$0xff]
    %v8417 = vld [vmem:[#allocation24 + $0x40] sm:$0xff]
    %v8418 = vld [vmem:[#allocation24 + $0x48] sm:$0xff]
    %v8419 = vld [vmem:[#allocation24 + $0x50] sm:$0xff]
    %v8420 = vld [vmem:[#allocation24 + $0x58] sm:$0xff]
    %v8421 = vld [vmem:[#allocation24 + $0x60] sm:$0xff]
    %v8422 = vld [vmem:[#allocation24 + $0x68] sm:$0xff]
    %v8423 = vld [vmem:[#allocation24 + $0x70] sm:$0xff]
    %v8424 = vld [vmem:[#allocation24 + $0x78] sm:$0xff]
    %v8425 = vld [vmem:[#allocation24 + $0x80] sm:$0xff]
    %v8426 = vld [vmem:[#allocation24 + $0x88] sm:$0xff]
    %v8427 = vld [vmem:[#allocation24 + $0x90] sm:$0xff]
    %v8428 = vld [vmem:[#allocation24 + $0x98] sm:$0xff]
    %v8429 = vld [vmem:[#allocation24 + $0xa0] sm:$0xff]
    %v8430 = vld [vmem:[#allocation24 + $0xa8] sm:$0xff]
    %v8431 = vld [vmem:[#allocation24 + $0xb0] sm:$0xff]
    %v8432 = vld [vmem:[#allocation24 + $0xb8] sm:$0xff]
    %v8433 = vld [vmem:[#allocation24 + $0xc0] sm:$0xff]
    %v8434 = vld [vmem:[#allocation24 + $0xc8] sm:$0xff]
    %v8435 = vld [vmem:[#allocation24 + $0xd0] sm:$0xff]
    %v8436 = vld [vmem:[#allocation24 + $0xd8] sm:$0xff]
    %v8437 = vld [vmem:[#allocation24 + $0xe0] sm:$0xff]
    %v8438 = vld [vmem:[#allocation24 + $0xe8] sm:$0xff]
    %v8439 = vld [vmem:[#allocation24 + $0xf0] sm:$0xff]
    %v8440 = vld [vmem:[#allocation24 + $0xf8] sm:$0xff]
    %v8441 = vld [vmem:[#allocation24 + $0x100] sm:$0xff]
    %v8442 = vld [vmem:[#allocation24 + $0x108] sm:$0xff]
    %v8443 = vld [vmem:[#allocation24 + $0x110] sm:$0xff]
    %v8444 = vld [vmem:[#allocation24 + $0x118] sm:$0xff]
    %v8445 = vld [vmem:[#allocation24 + $0x120] sm:$0xff]
    %v8446 = vld [vmem:[#allocation24 + $0x128] sm:$0xff]
    %v8447 = vld [vmem:[#allocation24 + $0x130] sm:$0xff]
    %v8448 = vld [vmem:[#allocation24 + $0x138] sm:$0xff]
    %v8449 = vld [vmem:[#allocation24 + $0x140] sm:$0xff]
    %v8450 = vld [vmem:[#allocation24 + $0x148] sm:$0xff]
    %v8451 = vld [vmem:[#allocation24 + $0x150] sm:$0xff]
    %v8452 = vld [vmem:[#allocation24 + $0x158] sm:$0xff]
    %v8453 = vld [vmem:[#allocation24 + $0x160] sm:$0xff]
    %v8454 = vld [vmem:[#allocation24 + $0x168] sm:$0xff]
    %v8455 = vld [vmem:[#allocation24 + $0x170] sm:$0xff]
    %v8456 = vld [vmem:[#allocation24 + $0x178] sm:$0xff]
    %v8457 = vld [vmem:[%s4049] sm:$0xff]
    %v8458 = vld [vmem:[%s4049 + $0x8] sm:$0xff]
    %v8459 = vld [vmem:[%s4049 + $0x10] sm:$0xff]
    %v8460 = vld [vmem:[%s4049 + $0x18] sm:$0xff]
    %v8461 = vld [vmem:[%s4049 + $0x20] sm:$0xff]
    %v8462 = vld [vmem:[%s4049 + $0x28] sm:$0xff]
    %v8463 = vld [vmem:[%s4049 + $0x30] sm:$0xff]
    %v8464 = vld [vmem:[%s4049 + $0x38] sm:$0xff]
    %v8465 = vld [vmem:[%s4049 + $0x40] sm:$0xff]
    %v8466 = vld [vmem:[%s4049 + $0x48] sm:$0xff]
    %v8467 = vld [vmem:[%s4049 + $0x50] sm:$0xff]
    %v8468 = vld [vmem:[%s4049 + $0x58] sm:$0xff]
    %v8469 = vld [vmem:[%s4049 + $0x60] sm:$0xff]
    %v8470 = vld [vmem:[%s4049 + $0x68] sm:$0xff]
    %v8471 = vld [vmem:[%s4049 + $0x70] sm:$0xff]
    %v8472 = vld [vmem:[%s4049 + $0x78] sm:$0xff]
    %v8473 = vld [vmem:[%s4049 + $0x80] sm:$0xff]
    %v8474 = vld [vmem:[%s4049 + $0x88] sm:$0xff]
    %v8475 = vld [vmem:[%s4049 + $0x90] sm:$0xff]
    %v8476 = vld [vmem:[%s4049 + $0x98] sm:$0xff]
    %v8477 = vld [vmem:[%s4049 + $0xa0] sm:$0xff]
    %v8478 = vld [vmem:[%s4049 + $0xa8] sm:$0xff]
    %v8479 = vld [vmem:[%s4049 + $0xb0] sm:$0xff]
    %v8480 = vld [vmem:[%s4049 + $0xb8] sm:$0xff]
    %v8481 = vld [vmem:[%s4049 + $0xc0] sm:$0xff]
    %v8482 = vld [vmem:[%s4049 + $0xc8] sm:$0xff]
    %v8483 = vld [vmem:[%s4049 + $0xd0] sm:$0xff]
    %v8484 = vld [vmem:[%s4049 + $0xd8] sm:$0xff]
    %v8485 = vld [vmem:[%s4049 + $0xe0] sm:$0xff]
    %v8486 = vld [vmem:[%s4049 + $0xe8] sm:$0xff]
    %v8487 = vld [vmem:[%s4049 + $0xf0] sm:$0xff]
    %v8488 = vld [vmem:[%s4049 + $0xf8] sm:$0xff]
    %v8489 = vld [vmem:[%s4049 + $0x100] sm:$0xff]
    %v8490 = vld [vmem:[%s4049 + $0x108] sm:$0xff]
    %v8491 = vld [vmem:[%s4049 + $0x110] sm:$0xff]
    %v8492 = vld [vmem:[%s4049 + $0x118] sm:$0xff]
    %v8493 = vld [vmem:[%s4049 + $0x120] sm:$0xff]
    %v8494 = vld [vmem:[%s4049 + $0x128] sm:$0xff]
    %v8495 = vld [vmem:[%s4049 + $0x130] sm:$0xff]
    %v8496 = vld [vmem:[%s4049 + $0x138] sm:$0xff]
    %v8497 = vld [vmem:[%s4049 + $0x140] sm:$0xff]
    %v8498 = vld [vmem:[%s4049 + $0x148] sm:$0xff]
    %v8499 = vld [vmem:[%s4049 + $0x150] sm:$0xff]
    %v8500 = vld [vmem:[%s4049 + $0x158] sm:$0xff]
    %v8501 = vld [vmem:[%s4049 + $0x160] sm:$0xff]
    %v8502 = vld [vmem:[%s4049 + $0x168] sm:$0xff]
    %v8503 = vld [vmem:[%s4049 + $0x170] sm:$0xff]
    %v8504 = vld [vmem:[%s4049 + $0x178] sm:$0xff]
    %v8521 = vrot.slane %v8393, 1
    %v8522 = vrot.slane %v8395, 1
    %v8523 = vsel %vm356, %v8521, %v8522
    %v8524 = vrot.slane %v8394, 1
    %v8525 = vrot.slane %v8396, 1
    %v8526 = vsel %vm356, %v8524, %v8525
    %v8527 = vrot.slane %v8397, 1
    %v8528 = vsel %vm356, %v8522, %v8527
    %v8529 = vrot.slane %v8398, 1
    %v8530 = vsel %vm356, %v8525, %v8529
    %v8531 = vrot.slane %v8399, 1
    %v8532 = vsel %vm356, %v8527, %v8531
    %v8533 = vrot.slane %v8400, 1
    %v8534 = vsel %vm356, %v8529, %v8533
    %v8535 = vrot.slane %v8401, 1
    %v8536 = vsel %vm356, %v8531, %v8535
    %v8537 = vrot.slane %v8402, 1
    %v8538 = vsel %vm356, %v8533, %v8537
    %v8539 = vrot.slane %v8403, 1
    %v8540 = vsel %vm356, %v8535, %v8539
    %v8541 = vrot.slane %v8404, 1
    %v8542 = vsel %vm356, %v8537, %v8541
    %v8543 = vrot.slane %v8405, 1
    %v8544 = vsel %vm356, %v8539, %v8543
    %v8545 = vrot.slane %v8406, 1
    %v8546 = vsel %vm356, %v8541, %v8545
    %v8547 = vrot.slane %v8407, 1
    %v8548 = vsel %vm356, %v8543, %v8547
    %v8549 = vrot.slane %v8408, 1
    %v8550 = vsel %vm356, %v8545, %v8549
    %v8559 = vsel %vm3970, %v8526, 0
    %v8561 = vsel %vm3970, %v8530, 0
    %v8563 = vsel %vm3970, %v8534, 0
    %v8565 = vsel %vm3970, %v8538, 0
    %v8567 = vsel %vm3970, %v8542, 0
    %v8569 = vsel %vm3970, %v8546, 0
    %v8571 = vsel %vm3970, %v8550, 0
    %v8573 = vsel %vm3970, %v8549, 0
    %8575 = vmatprep.subr.mxu0 %v8458
    %8576 = vmatpush1.msra.mxu0 %v8457
    %8577 = vmatprep.subr.mxu0 %v8460
    %8578 = vmatpush1.msra.mxu0 %v8459
    %8579 = vmatprep.subr.mxu0 %v8462
    %8580 = vmatpush1.msra.mxu0 %v8461
    %8581 = vmatprep.subr.mxu0 %v8464
    %8582 = vmatpush1.msra.mxu0 %v8463
    %8583 = vmatprep.subr.mxu0 %v8466
    %8584 = vmatpush1.msra.mxu0 %v8465
    %8585 = vmatprep.subr.mxu0 %v8468
    %8586 = vmatpush1.msra.mxu0 %v8467
    %8587 = vmatprep.subr.mxu0 %v8470
    %8588 = vmatpush1.msra.mxu0 %v8469
    %8589 = vmatprep.subr.mxu0 %v8472
    %8590 = vmatpush1.msra.mxu0 %v8471
    %8591 = vmatprep.subr.mxu0 %v8474
    %8592 = vmatpush1.msra.mxu0 %v8473
    %8593 = vmatprep.subr.mxu0 %v8476
    %8594 = vmatpush1.msra.mxu0 %v8475
    %8595 = vmatprep.subr.mxu0 %v8478
    %8596 = vmatpush1.msra.mxu0 %v8477
    %8597 = vmatprep.subr.mxu0 %v8480
    %8598 = vmatpush1.msra.mxu0 %v8479
    %8599 = vmatprep.subr.mxu0 %v8482
    %8600 = vmatpush1.msra.mxu0 %v8481
    %8601 = vmatprep.subr.mxu0 %v8484
    %8602 = vmatpush1.msra.mxu0 %v8483
    %8603 = vmatprep.subr.mxu0 %v8486
    %8604 = vmatpush1.msra.mxu0 %v8485
    %8605 = vmatprep.subr.mxu0 %v8488
    %8606 = vmatpush1.msra.mxu0 %v8487
    %8607 = vmatprep.subr.mxu0 %v8490
    %8608 = vmatpush1.msra.mxu0 %v8489
    %8609 = vmatprep.subr.mxu0 %v8492
    %8610 = vmatpush1.msra.mxu0 %v8491
    %8611 = vmatprep.subr.mxu0 %v8494
    %8612 = vmatpush1.msra.mxu0 %v8493
    %8613 = vmatprep.subr.mxu0 %v8496
    %8614 = vmatpush1.msra.mxu0 %v8495
    %8615 = vmatprep.subr.mxu0 %v8498
    %8616 = vmatpush1.msra.mxu0 %v8497
    %8617 = vmatprep.subr.mxu0 %v8500
    %8618 = vmatpush1.msra.mxu0 %v8499
    %8619 = vmatprep.subr.mxu0 %v8502
    %8620 = vmatpush1.msra.mxu0 %v8501
    %8621 = vmatprep.subr.mxu0 %v8504
    %8622 = vmatpush1.msra.mxu0 %v8503
    %8623 = vmatprep.subr.mxu0 0.0
    %8624 = vmatpush1.msra.mxu0 0.0
    %8625 = vmatprep.subr.mxu0 0.0
    %8626 = vmatpush1.msra.mxu0 0.0
    %8627 = vmatprep.subr.mxu0 0.0
    %8628 = vmatpush1.msra.mxu0 0.0
    %8629 = vmatprep.subr.mxu0 0.0
    %8630 = vmatpush1.msra.mxu0 0.0
    %8631 = vmatprep.subr.mxu0 0.0
    %8632 = vmatpush1.msra.mxu0 0.0
    %8633 = vmatprep.subr.mxu0 0.0
    %8634 = vmatpush1.msra.mxu0 0.0
    %8635 = vmatprep.subr.mxu0 0.0
    %8636 = vmatpush1.msra.mxu0 0.0
    %8637 = vmatprep.subr.mxu0 0.0
    %8638 = vmatpush1.msra.mxu0 0.0
    %8639 = vmatprep.mubr.f32.mxu0 %v8559
    %8640 = vmatmul.mubr.f32.gmra.mrb[0].mxu0 %v8523
    %v8641 = vpop.f32.mrb[0].mxu0
    %v8642 = vadd.f32 0.0, %v8641
    %v8643 = vpop.f32.mrb[0].mxu0
    %v8644 = vadd.f32 0.0, %v8643
    %8645 = vmatprep.mubr.f32.mxu0 %v8561
    %8646 = vmatmul.mubr.f32.gmra.mrb[0].mxu0 %v8528
    %v8647 = vpop.f32.mrb[0].mxu0
    %v8648 = vadd.f32 0.0, %v8647
    %v8649 = vpop.f32.mrb[0].mxu0
    %v8650 = vadd.f32 0.0, %v8649
    %8651 = vmatprep.mubr.f32.mxu0 %v8563
    %8652 = vmatmul.mubr.f32.gmra.mrb[0].mxu0 %v8532
    %v8653 = vpop.f32.mrb[0].mxu0
    %v8654 = vadd.f32 0.0, %v8653
    %v8655 = vpop.f32.mrb[0].mxu0
    %v8656 = vadd.f32 0.0, %v8655
    %8657 = vmatprep.mubr.f32.mxu0 %v8565
    %8658 = vmatmul.mubr.f32.gmra.mrb[0].mxu0 %v8536
    %v8659 = vpop.f32.mrb[0].mxu0
    %v8660 = vadd.f32 0.0, %v8659
    %v8661 = vpop.f32.mrb[0].mxu0
    %v8662 = vadd.f32 0.0, %v8661
    %8663 = vmatprep.mubr.f32.mxu0 %v8567
    %8664 = vmatmul.mubr.f32.gmra.mrb[0].mxu0 %v8540
    %v8665 = vpop.f32.mrb[0].mxu0
    %v8666 = vadd.f32 0.0, %v8665
    %v8667 = vpop.f32.mrb[0].mxu0
    %v8668 = vadd.f32 0.0, %v8667
    %8669 = vmatprep.mubr.f32.mxu0 %v8569
    %8670 = vmatmul.mubr.f32.gmra.mrb[0].mxu0 %v8544
    %v8671 = vpop.f32.mrb[0].mxu0
    %v8672 = vadd.f32 0.0, %v8671
    %v8673 = vpop.f32.mrb[0].mxu0
    %v8674 = vadd.f32 0.0, %v8673
    %8675 = vmatprep.mubr.f32.mxu0 %v8571
    %8676 = vmatmul.mubr.f32.gmra.mrb[0].mxu0 %v8548
    %v8677 = vpop.f32.mrb[0].mxu0
    %v8678 = vadd.f32 0.0, %v8677
    %v8679 = vpop.f32.mrb[0].mxu0
    %v8680 = vadd.f32 0.0, %v8679
    %8681 = vmatprep.mubr.f32.mxu0 %v8573
    %8682 = vmatmul.mubr.f32.gmra.mrb[0].mxu0 %v8547
    %v8683 = vpop.f32.mrb[0].mxu0
    %v8684 = vadd.f32 0.0, %v8683
    %v8685 = vpop.f32.mrb[0].mxu0
    %v8686 = vadd.f32 0.0, %v8685
    %8687 = vdwg.mxu0
    %v8688 = vsel %vm3970, %v8394, 0
    %v8690 = vsel %vm3970, %v8396, 0
    %v8692 = vsel %vm3970, %v8398, 0
    %v8694 = vsel %vm3970, %v8400, 0
    %v8696 = vsel %vm3970, %v8402, 0
    %v8698 = vsel %vm3970, %v8404, 0
    %v8700 = vsel %vm3970, %v8406, 0
    %v8702 = vsel %vm3970, %v8408, 0
    %8704 = vmatprep.subr.mxu0 %v8410
    %8705 = vmatpush1.msra.mxu0 %v8409
    %8706 = vmatprep.subr.mxu0 %v8412
    %8707 = vmatpush1.msra.mxu0 %v8411
    %8708 = vmatprep.subr.mxu0 %v8414
    %8709 = vmatpush1.msra.mxu0 %v8413
    %8710 = vmatprep.subr.mxu0 %v8416
    %8711 = vmatpush1.msra.mxu0 %v8415
    %8712 = vmatprep.subr.mxu0 %v8418
    %8713 = vmatpush1.msra.mxu0 %v8417
    %8714 = vmatprep.subr.mxu0 %v8420
    %8715 = vmatpush1.msra.mxu0 %v8419
    %8716 = vmatprep.subr.mxu0 %v8422
    %8717 = vmatpush1.msra.mxu0 %v8421
    %8718 = vmatprep.subr.mxu0 %v8424
    %8719 = vmatpush1.msra.mxu0 %v8423
    %8720 = vmatprep.subr.mxu0 %v8426
    %8721 = vmatpush1.msra.mxu0 %v8425
    %8722 = vmatprep.subr.mxu0 %v8428
    %8723 = vmatpush1.msra.mxu0 %v8427
    %8724 = vmatprep.subr.mxu0 %v8430
    %8725 = vmatpush1.msra.mxu0 %v8429
    %8726 = vmatprep.subr.mxu0 %v8432
    %8727 = vmatpush1.msra.mxu0 %v8431
    %8728 = vmatprep.subr.mxu0 %v8434
    %8729 = vmatpush1.msra.mxu0 %v8433
    %8730 = vmatprep.subr.mxu0 %v8436
    %8731 = vmatpush1.msra.mxu0 %v8435
    %8732 = vmatprep.subr.mxu0 %v8438
    %8733 = vmatpush1.msra.mxu0 %v8437
    %8734 = vmatprep.subr.mxu0 %v8440
    %8735 = vmatpush1.msra.mxu0 %v8439
    %8736 = vmatprep.subr.mxu0 %v8442
    %8737 = vmatpush1.msra.mxu0 %v8441
    %8738 = vmatprep.subr.mxu0 %v8444
    %8739 = vmatpush1.msra.mxu0 %v8443
    %8740 = vmatprep.subr.mxu0 %v8446
    %8741 = vmatpush1.msra.mxu0 %v8445
    %8742 = vmatprep.subr.mxu0 %v8448
    %8743 = vmatpush1.msra.mxu0 %v8447
    %8744 = vmatprep.subr.mxu0 %v8450
    %8745 = vmatpush1.msra.mxu0 %v8449
    %8746 = vmatprep.subr.mxu0 %v8452
    %8747 = vmatpush1.msra.mxu0 %v8451
    %8748 = vmatprep.subr.mxu0 %v8454
    %8749 = vmatpush1.msra.mxu0 %v8453
    %8750 = vmatprep.subr.mxu0 %v8456
    %8751 = vmatpush1.msra.mxu0 %v8455
    %8752 = vmatprep.subr.mxu0 0.0
    %8753 = vmatpush1.msra.mxu0 0.0
    %8754 = vmatprep.subr.mxu0 0.0
    %8755 = vmatpush1.msra.mxu0 0.0
    %8756 = vmatprep.subr.mxu0 0.0
    %8757 = vmatpush1.msra.mxu0 0.0
    %8758 = vmatprep.subr.mxu0 0.0
    %8759 = vmatpush1.msra.mxu0 0.0
    %8760 = vmatprep.subr.mxu0 0.0
    %8761 = vmatpush1.msra.mxu0 0.0
    %8762 = vmatprep.subr.mxu0 0.0
    %8763 = vmatpush1.msra.mxu0 0.0
    %8764 = vmatprep.subr.mxu0 0.0
    %8765 = vmatpush1.msra.mxu0 0.0
    %8766 = vmatprep.subr.mxu0 0.0
    %8767 = vmatpush1.msra.mxu0 0.0
    %8768 = vmatprep.mubr.f32.mxu0 %v8688
    %8769 = vmatmul.mubr.f32.gmra.mrb[0].mxu0 %v8393
    %v8770 = vpop.f32.mrb[0].mxu0
    %v8771 = vadd.f32 %v8642, %v8770
    %v8772 = vpop.f32.mrb[0].mxu0
    %v8773 = vadd.f32 %v8644, %v8772
    %8774 = vmatprep.mubr.f32.mxu0 %v8690
    %8775 = vmatmul.mubr.f32.gmra.mrb[0].mxu0 %v8395
    %v8776 = vpop.f32.mrb[0].mxu0
    %v8777 = vadd.f32 %v8648, %v8776
    %v8778 = vpop.f32.mrb[0].mxu0
    %v8779 = vadd.f32 %v8650, %v8778
    %8780 = vmatprep.mubr.f32.mxu0 %v8692
    %8781 = vmatmul.mubr.f32.gmra.mrb[0].mxu0 %v8397
    %v8782 = vpop.f32.mrb[0].mxu0
    %v8783 = vadd.f32 %v8654, %v8782
    %v8784 = vpop.f32.mrb[0].mxu0
    %v8785 = vadd.f32 %v8656, %v8784
    %8786 = vmatprep.mubr.f32.mxu0 %v8694
    %8787 = vmatmul.mubr.f32.gmra.mrb[0].mxu0 %v8399
    %v8788 = vpop.f32.mrb[0].mxu0
    %v8789 = vadd.f32 %v8660, %v8788
    %v8790 = vpop.f32.mrb[0].mxu0
    %v8791 = vadd.f32 %v8662, %v8790
    %8792 = vmatprep.mubr.f32.mxu0 %v8696
    %8793 = vmatmul.mubr.f32.gmra.mrb[0].mxu0 %v8401
    %v8794 = vpop.f32.mrb[0].mxu0
    %v8795 = vadd.f32 %v8666, %v8794
    %v8796 = vpop.f32.mrb[0].mxu0
    %v8797 = vadd.f32 %v8668, %v8796
    %8798 = vmatprep.mubr.f32.mxu0 %v8698
    %8799 = vmatmul.mubr.f32.gmra.mrb[0].mxu0 %v8403
    %v8800 = vpop.f32.mrb[0].mxu0
    %v8801 = vadd.f32 %v8672, %v8800
    %v8802 = vpop.f32.mrb[0].mxu0
    %v8803 = vadd.f32 %v8674, %v8802
    %8804 = vmatprep.mubr.f32.mxu0 %v8700
    %8805 = vmatmul.mubr.f32.gmra.mrb[0].mxu0 %v8405
    %v8806 = vpop.f32.mrb[0].mxu0
    %v8807 = vadd.f32 %v8678, %v8806
    %v8808 = vpop.f32.mrb[0].mxu0
    %v8809 = vadd.f32 %v8680, %v8808
    %8810 = vmatprep.mubr.f32.mxu0 %v8702
    %8811 = vmatmul.mubr.f32.gmra.mrb[0].mxu0 %v8407
    %v8812 = vpop.f32.mrb[0].mxu0
    %v8813 = vadd.f32 %v8684, %v8812
    %v8814 = vpop.f32.mrb[0].mxu0
    %v8815 = vadd.f32 %v8686, %v8814
    %8816 = vdwg.mxu0
    %v8817 = vld [vmem:[%s4410] sm:$0xff]
    %v8818 = vld [vmem:[%s4410 + $0x8] sm:$0xff]
    %v8819 = vld [vmem:[%s4410 + $0x10] sm:$0xff]
    %v8820 = vld [vmem:[%s4410 + $0x18] sm:$0xff]
    %v8821 = vld [vmem:[%s4410 + $0x20] sm:$0xff]
    %v8822 = vld [vmem:[%s4410 + $0x28] sm:$0xff]
    %v8823 = vld [vmem:[%s4410 + $0x30] sm:$0xff]
    %v8824 = vld [vmem:[%s4410 + $0x38] sm:$0xff]
    %v8825 = vld [vmem:[%s4410 + $0x40] sm:$0xff]
    %v8826 = vld [vmem:[%s4410 + $0x48] sm:$0xff]
    %v8827 = vld [vmem:[%s4410 + $0x50] sm:$0xff]
    %v8828 = vld [vmem:[%s4410 + $0x58] sm:$0xff]
    %v8829 = vld [vmem:[%s4410 + $0x60] sm:$0xff]
    %v8830 = vld [vmem:[%s4410 + $0x68] sm:$0xff]
    %v8831 = vld [vmem:[%s4410 + $0x70] sm:$0xff]
    %v8832 = vld [vmem:[%s4410 + $0x78] sm:$0xff]
    %v8833 = vld [vmem:[%s4410 + $0x80] sm:$0xff]
    %v8834 = vld [vmem:[%s4410 + $0x88] sm:$0xff]
    %v8835 = vld [vmem:[%s4410 + $0x90] sm:$0xff]
    %v8836 = vld [vmem:[%s4410 + $0x98] sm:$0xff]
    %v8837 = vld [vmem:[%s4410 + $0xa0] sm:$0xff]
    %v8838 = vld [vmem:[%s4410 + $0xa8] sm:$0xff]
    %v8839 = vld [vmem:[%s4410 + $0xb0] sm:$0xff]
    %v8840 = vld [vmem:[%s4410 + $0xb8] sm:$0xff]
    %v8841 = vld [vmem:[%s4410 + $0xc0] sm:$0xff]
    %v8842 = vld [vmem:[%s4410 + $0xc8] sm:$0xff]
    %v8843 = vld [vmem:[%s4410 + $0xd0] sm:$0xff]
    %v8844 = vld [vmem:[%s4410 + $0xd8] sm:$0xff]
    %v8845 = vld [vmem:[%s4410 + $0xe0] sm:$0xff]
    %v8846 = vld [vmem:[%s4410 + $0xe8] sm:$0xff]
    %v8847 = vld [vmem:[%s4410 + $0xf0] sm:$0xff]
    %v8848 = vld [vmem:[%s4410 + $0xf8] sm:$0xff]
    %v8849 = vld [vmem:[%s4410 + $0x100] sm:$0xff]
    %v8850 = vld [vmem:[%s4410 + $0x108] sm:$0xff]
    %v8851 = vld [vmem:[%s4410 + $0x110] sm:$0xff]
    %v8852 = vld [vmem:[%s4410 + $0x118] sm:$0xff]
    %v8853 = vld [vmem:[%s4410 + $0x120] sm:$0xff]
    %v8854 = vld [vmem:[%s4410 + $0x128] sm:$0xff]
    %v8855 = vld [vmem:[%s4410 + $0x130] sm:$0xff]
    %v8856 = vld [vmem:[%s4410 + $0x138] sm:$0xff]
    %v8857 = vld [vmem:[%s4410 + $0x140] sm:$0xff]
    %v8858 = vld [vmem:[%s4410 + $0x148] sm:$0xff]
    %v8859 = vld [vmem:[%s4410 + $0x150] sm:$0xff]
    %v8860 = vld [vmem:[%s4410 + $0x158] sm:$0xff]
    %v8861 = vld [vmem:[%s4410 + $0x160] sm:$0xff]
    %v8862 = vld [vmem:[%s4410 + $0x168] sm:$0xff]
    %v8863 = vld [vmem:[%s4410 + $0x170] sm:$0xff]
    %v8864 = vld [vmem:[%s4410 + $0x178] sm:$0xff]
    %v8865 = vrot.slane %v8393, 2
    %v8866 = vrot.slane %v8395, 2
    %v8867 = vsel %vm623, %v8865, %v8866
    %v8868 = vrot.slane %v8394, 2
    %v8869 = vrot.slane %v8396, 2
    %v8870 = vsel %vm623, %v8868, %v8869
    %v8871 = vrot.slane %v8397, 2
    %v8872 = vsel %vm623, %v8866, %v8871
    %v8873 = vrot.slane %v8398, 2
    %v8874 = vsel %vm623, %v8869, %v8873
    %v8875 = vrot.slane %v8399, 2
    %v8876 = vsel %vm623, %v8871, %v8875
    %v8877 = vrot.slane %v8400, 2
    %v8878 = vsel %vm623, %v8873, %v8877
    %v8879 = vrot.slane %v8401, 2
    %v8880 = vsel %vm623, %v8875, %v8879
    %v8881 = vrot.slane %v8402, 2
    %v8882 = vsel %vm623, %v8877, %v8881
    %v8883 = vrot.slane %v8403, 2
    %v8884 = vsel %vm623, %v8879, %v8883
    %v8885 = vrot.slane %v8404, 2
    %v8886 = vsel %vm623, %v8881, %v8885
    %v8887 = vrot.slane %v8405, 2
    %v8888 = vsel %vm623, %v8883, %v8887
    %v8889 = vrot.slane %v8406, 2
    %v8890 = vsel %vm623, %v8885, %v8889
    %v8891 = vrot.slane %v8407, 2
    %v8892 = vsel %vm623, %v8887, %v8891
    %v8893 = vrot.slane %v8408, 2
    %v8894 = vsel %vm623, %v8889, %v8893
    %v8903 = vsel %vm3970, %v8870, 0
    %v8905 = vsel %vm3970, %v8874, 0
    %v8907 = vsel %vm3970, %v8878, 0
    %v8909 = vsel %vm3970, %v8882, 0
    %v8911 = vsel %vm3970, %v8886, 0
    %v8913 = vsel %vm3970, %v8890, 0
    %v8915 = vsel %vm3970, %v8894, 0
    %v8917 = vsel %vm3970, %v8893, 0
    %8919 = vmatprep.subr.mxu0 %v8818
    %8920 = vmatpush1.msra.mxu0 %v8817
    %8921 = vmatprep.subr.mxu0 %v8820
    %8922 = vmatpush1.msra.mxu0 %v8819
    %8923 = vmatprep.subr.mxu0 %v8822
    %8924 = vmatpush1.msra.mxu0 %v8821
    %8925 = vmatprep.subr.mxu0 %v8824
    %8926 = vmatpush1.msra.mxu0 %v8823
    %8927 = vmatprep.subr.mxu0 %v8826
    %8928 = vmatpush1.msra.mxu0 %v8825
    %8929 = vmatprep.subr.mxu0 %v8828
    %8930 = vmatpush1.msra.mxu0 %v8827
    %8931 = vmatprep.subr.mxu0 %v8830
    %8932 = vmatpush1.msra.mxu0 %v8829
    %8933 = vmatprep.subr.mxu0 %v8832
    %8934 = vmatpush1.msra.mxu0 %v8831
    %8935 = vmatprep.subr.mxu0 %v8834
    %8936 = vmatpush1.msra.mxu0 %v8833
    %8937 = vmatprep.subr.mxu0 %v8836
    %8938 = vmatpush1.msra.mxu0 %v8835
    %8939 = vmatprep.subr.mxu0 %v8838
    %8940 = vmatpush1.msra.mxu0 %v8837
    %8941 = vmatprep.subr.mxu0 %v8840
    %8942 = vmatpush1.msra.mxu0 %v8839
    %8943 = vmatprep.subr.mxu0 %v8842
    %8944 = vmatpush1.msra.mxu0 %v8841
    %8945 = vmatprep.subr.mxu0 %v8844
    %8946 = vmatpush1.msra.mxu0 %v8843
    %8947 = vmatprep.subr.mxu0 %v8846
    %8948 = vmatpush1.msra.mxu0 %v8845
    %8949 = vmatprep.subr.mxu0 %v8848
    %8950 = vmatpush1.msra.mxu0 %v8847
    %8951 = vmatprep.subr.mxu0 %v8850
    %8952 = vmatpush1.msra.mxu0 %v8849
    %8953 = vmatprep.subr.mxu0 %v8852
    %8954 = vmatpush1.msra.mxu0 %v8851
    %8955 = vmatprep.subr.mxu0 %v8854
    %8956 = vmatpush1.msra.mxu0 %v8853
    %8957 = vmatprep.subr.mxu0 %v8856
    %8958 = vmatpush1.msra.mxu0 %v8855
    %8959 = vmatprep.subr.mxu0 %v8858
    %8960 = vmatpush1.msra.mxu0 %v8857
    %8961 = vmatprep.subr.mxu0 %v8860
    %8962 = vmatpush1.msra.mxu0 %v8859
    %8963 = vmatprep.subr.mxu0 %v8862
    %8964 = vmatpush1.msra.mxu0 %v8861
    %8965 = vmatprep.subr.mxu0 %v8864
    %8966 = vmatpush1.msra.mxu0 %v8863
    %8967 = vmatprep.subr.mxu0 0.0
    %8968 = vmatpush1.msra.mxu0 0.0
    %8969 = vmatprep.subr.mxu0 0.0
    %8970 = vmatpush1.msra.mxu0 0.0
    %8971 = vmatprep.subr.mxu0 0.0
    %8972 = vmatpush1.msra.mxu0 0.0
    %8973 = vmatprep.subr.mxu0 0.0
    %8974 = vmatpush1.msra.mxu0 0.0
    %8975 = vmatprep.subr.mxu0 0.0
    %8976 = vmatpush1.msra.mxu0 0.0
    %8977 = vmatprep.subr.mxu0 0.0
    %8978 = vmatpush1.msra.mxu0 0.0
    %8979 = vmatprep.subr.mxu0 0.0
    %8980 = vmatpush1.msra.mxu0 0.0
    %8981 = vmatprep.subr.mxu0 0.0
    %8982 = vmatpush1.msra.mxu0 0.0
    %8983 = vmatprep.mubr.f32.mxu0 %v8903
    %8984 = vmatmul.mubr.f32.gmra.mrb[0].mxu0 %v8867
    %v8985 = vpop.f32.mrb[0].mxu0
    %v8986 = vadd.f32 0.0, %v8985
    %v8987 = vpop.f32.mrb[0].mxu0
    %v8988 = vadd.f32 0.0, %v8987
    %8989 = vmatprep.mubr.f32.mxu0 %v8905
    %8990 = vmatmul.mubr.f32.gmra.mrb[0].mxu0 %v8872
    %v8991 = vpop.f32.mrb[0].mxu0
    %v8992 = vadd.f32 0.0, %v8991
    %v8993 = vpop.f32.mrb[0].mxu0
    %v8994 = vadd.f32 0.0, %v8993
    %8995 = vmatprep.mubr.f32.mxu0 %v8907
    %8996 = vmatmul.mubr.f32.gmra.mrb[0].mxu0 %v8876
    %v8997 = vpop.f32.mrb[0].mxu0
    %v8998 = vadd.f32 0.0, %v8997
    %v8999 = vpop.f32.mrb[0].mxu0
    %v9000 = vadd.f32 0.0, %v8999
    %9001 = vmatprep.mubr.f32.mxu0 %v8909
    %9002 = vmatmul.mubr.f32.gmra.mrb[0].mxu0 %v8880
    %v9003 = vpop.f32.mrb[0].mxu0
    %v9004 = vadd.f32 0.0, %v9003
    %v9005 = vpop.f32.mrb[0].mxu0
    %v9006 = vadd.f32 0.0, %v9005
    %9007 = vmatprep.mubr.f32.mxu0 %v8911
    %9008 = vmatmul.mubr.f32.gmra.mrb[0].mxu0 %v8884
    %v9009 = vpop.f32.mrb[0].mxu0
    %v9010 = vadd.f32 0.0, %v9009
    %v9011 = vpop.f32.mrb[0].mxu0
    %v9012 = vadd.f32 0.0, %v9011
    %9013 = vmatprep.mubr.f32.mxu0 %v8913
    %9014 = vmatmul.mubr.f32.gmra.mrb[0].mxu0 %v8888
    %v9015 = vpop.f32.mrb[0].mxu0
    %v9016 = vadd.f32 0.0, %v9015
    %v9017 = vpop.f32.mrb[0].mxu0
    %v9018 = vadd.f32 0.0, %v9017
    %9019 = vmatprep.mubr.f32.mxu0 %v8915
    %9020 = vmatmul.mubr.f32.gmra.mrb[0].mxu0 %v8892
    %v9021 = vpop.f32.mrb[0].mxu0
    %v9022 = vadd.f32 0.0, %v9021
    %v9023 = vpop.f32.mrb[0].mxu0
    %v9024 = vadd.f32 0.0, %v9023
    %9025 = vmatprep.mubr.f32.mxu0 %v8917
    %9026 = vmatmul.mubr.f32.gmra.mrb[0].mxu0 %v8891
    %v9027 = vpop.f32.mrb[0].mxu0
    %v9028 = vadd.f32 0.0, %v9027
    %v9029 = vpop.f32.mrb[0].mxu0
    %v9030 = vadd.f32 0.0, %v9029
    %9031 = vdwg.mxu0
    %v9032 = vadd.f32 %v8771, %v8986
    %v9033 = vadd.f32 %v8773, %v8988
    %v9034 = vadd.f32 %v8777, %v8992
    %v9035 = vadd.f32 %v8779, %v8994
    %v9036 = vadd.f32 %v8783, %v8998
    %v9037 = vadd.f32 %v8785, %v9000
    %v9038 = vadd.f32 %v8789, %v9004
    %v9039 = vadd.f32 %v8791, %v9006
    %v9040 = vadd.f32 %v8795, %v9010
    %v9041 = vadd.f32 %v8797, %v9012
    %v9042 = vadd.f32 %v8801, %v9016
    %v9043 = vadd.f32 %v8803, %v9018
    %v9044 = vadd.f32 %v8807, %v9022
    %v9045 = vadd.f32 %v8809, %v9024
    %v9046 = vadd.f32 %v8813, %v9028
    %v9047 = vadd.f32 %v8815, %v9030
    %v9048 = vld [vmem:[#allocation26] sm:$0x3]
    %v9050 = vlaneseq
    %v9051 = vshrl.u32 %v9050, 7
    %v9052 = vsub.s32 0, %v9051
    %v9053 = vrot.slane %v9048, %v9052
    %v9054 = vlaneseq
    %v9055 = vshrl.u32 %v9054, 7
    %v9056 = vsub.s32 1, %v9055
    %v9057 = vrot.slane %v9048, %v9056
    %v9060 = vadd.f32 %v9032, %v9053
    %v9061 = vadd.f32 %v9033, %v9057
    %v9062 = vadd.f32 %v9034, %v9053
    %v9063 = vadd.f32 %v9035, %v9057
    %v9064 = vadd.f32 %v9036, %v9053
    %v9065 = vadd.f32 %v9037, %v9057
    %v9066 = vadd.f32 %v9038, %v9053
    %v9067 = vadd.f32 %v9039, %v9057
    %v9068 = vadd.f32 %v9040, %v9053
    %v9069 = vadd.f32 %v9041, %v9057
    %v9070 = vadd.f32 %v9042, %v9053
    %v9071 = vadd.f32 %v9043, %v9057
    %v9072 = vadd.f32 %v9044, %v9053
    %v9073 = vadd.f32 %v9045, %v9057
    %v9074 = vadd.f32 %v9046, %v9053
    %v9075 = vadd.f32 %v9047, %v9057
    %v9076 = vmax.f32 %v9060, 0.0
    %v9077 = vmax.f32 %v9061, 0.0
    %v9078 = vmax.f32 %v9062, 0.0
    %v9079 = vmax.f32 %v9063, 0.0
    %v9080 = vmax.f32 %v9064, 0.0
    %v9081 = vmax.f32 %v9065, 0.0
    %v9082 = vmax.f32 %v9066, 0.0
    %v9083 = vmax.f32 %v9067, 0.0
    %v9084 = vmax.f32 %v9068, 0.0
    %v9085 = vmax.f32 %v9069, 0.0
    %v9086 = vmax.f32 %v9070, 0.0
    %v9087 = vmax.f32 %v9071, 0.0
    %v9088 = vmax.f32 %v9072, 0.0
    %v9089 = vmax.f32 %v9073, 0.0
    %v9090 = vmax.f32 %v9074, 0.0
    %v9091 = vmax.f32 %v9075, 0.0
    %v9092 = vadd.f32 %v9076, %v9078
    %v9093 = vadd.f32 %v9092, %v9080
    %v9094 = vadd.f32 %v9093, %v9082
    %v9095 = vadd.f32 %v9094, %v9084
    %v9096 = vadd.f32 %v9095, %v9086
    %v9097 = vadd.f32 %v9096, %v9088
    %v9098 = vsel %vm4692, %v9090, 0.0
    %v9099 = vadd.f32 %v9097, %v9098
    %v9100 = vrot.slane %v9099, 4
    %v9101 = vadd.f32 %v9099, %v9100
    %v9102 = vrot.slane %v9101, 2
    %v9103 = vadd.f32 %v9101, %v9102
    %v9104 = vrot.slane %v9103, 1
    %v9105 = vadd.f32 %v9103, %v9104
    %v9106 = vsel %vm3970, %v9077, 0.0
    %v9107 = vsel %vm3970, %v9079, 0.0
    %v9108 = vadd.f32 %v9106, %v9107
    %v9109 = vsel %vm3970, %v9081, 0.0
    %v9110 = vadd.f32 %v9108, %v9109
    %v9111 = vsel %vm3970, %v9083, 0.0
    %v9112 = vadd.f32 %v9110, %v9111
    %v9113 = vsel %vm3970, %v9085, 0.0
    %v9114 = vadd.f32 %v9112, %v9113
    %v9115 = vsel %vm3970, %v9087, 0.0
    %v9116 = vadd.f32 %v9114, %v9115
    %v9117 = vsel %vm3970, %v9089, 0.0
    %v9118 = vadd.f32 %v9116, %v9117
    %v9119 = vsel %vm4714, %v9091, 0.0
    %v9120 = vadd.f32 %v9118, %v9119
    %v9121 = vrot.slane %v9120, 4
    %v9122 = vadd.f32 %v9120, %v9121
    %v9123 = vrot.slane %v9122, 2
    %v9124 = vadd.f32 %v9122, %v9123
    %v9125 = vrot.slane %v9124, 1
    %v9126 = vadd.f32 %v9124, %v9125
    %v9127 = vmul.f32 %v9105, %v4723
    %v9128 = vmul.f32 %v9126, %v4723
    %v9129 = vsel %vm302, %v4724, %v9127
    %v9130 = vsel %vm302, %v4725, %v9128
    %v9131 = vld [vmem:[%s17] sm:$0xff]
    %v9132 = vld [vmem:[%s17 + $0x8] sm:$0xff]
    %v9133 = vld [vmem:[%s17 + $0x10] sm:$0xff]
    %v9134 = vld [vmem:[%s17 + $0x18] sm:$0xff]
    %v9135 = vld [vmem:[%s17 + $0x20] sm:$0xff]
    %v9136 = vld [vmem:[%s17 + $0x28] sm:$0xff]
    %v9137 = vld [vmem:[%s17 + $0x30] sm:$0xff]
    %v9138 = vld [vmem:[%s17 + $0x38] sm:$0xff]
    %v9139 = vld [vmem:[%s17 + $0x40] sm:$0xff]
    %v9140 = vld [vmem:[%s17 + $0x48] sm:$0xff]
    %v9141 = vld [vmem:[%s17 + $0x50] sm:$0xff]
    %v9142 = vld [vmem:[%s17 + $0x58] sm:$0xff]
    %v9143 = vld [vmem:[%s17 + $0x60] sm:$0xff]
    %v9144 = vld [vmem:[%s17 + $0x68] sm:$0xff]
    %v9145 = vld [vmem:[%s17 + $0x70] sm:$0xff]
    %v9146 = vld [vmem:[%s17 + $0x78] sm:$0xff]
    %v9147 = vld [vmem:[%s17 + $0x80] sm:$0xff]
    %v9148 = vld [vmem:[%s17 + $0x88] sm:$0xff]
    %v9149 = vld [vmem:[%s17 + $0x90] sm:$0xff]
    %v9150 = vld [vmem:[%s17 + $0x98] sm:$0xff]
    %v9151 = vld [vmem:[%s17 + $0xa0] sm:$0xff]
    %v9152 = vld [vmem:[%s17 + $0xa8] sm:$0xff]
    %v9153 = vld [vmem:[%s17 + $0xb0] sm:$0xff]
    %v9154 = vld [vmem:[%s17 + $0xb8] sm:$0xff]
    %v9155 = vld [vmem:[%s18] sm:$0x1]
    %v9157 = vlaneseq
    %v9158 = vshrl.u32 %v9157, 7
    %v9159 = vsub.s32 0, %v9158
    %v9160 = vrot.slane %v9155, %v9159
    %v9163 = vsel %vm3970, %v9130, 0
    %9165 = vmatprep.subr.mxu0 0.0
    %9166 = vmatpush1.msra.mxu0 %v9131
    %9167 = vmatprep.subr.mxu0 0.0
    %9168 = vmatpush1.msra.mxu0 %v9132
    %9169 = vmatprep.subr.mxu0 0.0
    %9170 = vmatpush1.msra.mxu0 %v9133
    %9171 = vmatprep.subr.mxu0 0.0
    %9172 = vmatpush1.msra.mxu0 %v9134
    %9173 = vmatprep.subr.mxu0 0.0
    %9174 = vmatpush1.msra.mxu0 %v9135
    %9175 = vmatprep.subr.mxu0 0.0
    %9176 = vmatpush1.msra.mxu0 %v9136
    %9177 = vmatprep.subr.mxu0 0.0
    %9178 = vmatpush1.msra.mxu0 %v9137
    %9179 = vmatprep.subr.mxu0 0.0
    %9180 = vmatpush1.msra.mxu0 %v9138
    %9181 = vmatprep.subr.mxu0 0.0
    %9182 = vmatpush1.msra.mxu0 %v9139
    %9183 = vmatprep.subr.mxu0 0.0
    %9184 = vmatpush1.msra.mxu0 %v9140
    %9185 = vmatprep.subr.mxu0 0.0
    %9186 = vmatpush1.msra.mxu0 %v9141
    %9187 = vmatprep.subr.mxu0 0.0
    %9188 = vmatpush1.msra.mxu0 %v9142
    %9189 = vmatprep.subr.mxu0 0.0
    %9190 = vmatpush1.msra.mxu0 %v9143
    %9191 = vmatprep.subr.mxu0 0.0
    %9192 = vmatpush1.msra.mxu0 %v9144
    %9193 = vmatprep.subr.mxu0 0.0
    %9194 = vmatpush1.msra.mxu0 %v9145
    %9195 = vmatprep.subr.mxu0 0.0
    %9196 = vmatpush1.msra.mxu0 %v9146
    %9197 = vmatprep.subr.mxu0 0.0
    %9198 = vmatpush1.msra.mxu0 %v9147
    %9199 = vmatprep.subr.mxu0 0.0
    %9200 = vmatpush1.msra.mxu0 %v9148
    %9201 = vmatprep.subr.mxu0 0.0
    %9202 = vmatpush1.msra.mxu0 %v9149
    %9203 = vmatprep.subr.mxu0 0.0
    %9204 = vmatpush1.msra.mxu0 %v9150
    %9205 = vmatprep.subr.mxu0 0.0
    %9206 = vmatpush1.msra.mxu0 %v9151
    %9207 = vmatprep.subr.mxu0 0.0
    %9208 = vmatpush1.msra.mxu0 %v9152
    %9209 = vmatprep.subr.mxu0 0.0
    %9210 = vmatpush1.msra.mxu0 %v9153
    %9211 = vmatprep.subr.mxu0 0.0
    %9212 = vmatpush1.msra.mxu0 %v9154
    %9213 = vmatprep.subr.mxu0 0.0
    %9214 = vmatpush1.msra.mxu0 0.0
    %9215 = vmatprep.subr.mxu0 0.0
    %9216 = vmatpush1.msra.mxu0 0.0
    %9217 = vmatprep.subr.mxu0 0.0
    %9218 = vmatpush1.msra.mxu0 0.0
    %9219 = vmatprep.subr.mxu0 0.0
    %9220 = vmatpush1.msra.mxu0 0.0
    %9221 = vmatprep.subr.mxu0 0.0
    %9222 = vmatpush1.msra.mxu0 0.0
    %9223 = vmatprep.subr.mxu0 0.0
    %9224 = vmatpush1.msra.mxu0 0.0
    %9225 = vmatprep.subr.mxu0 0.0
    %9226 = vmatpush1.msra.mxu0 0.0
    %9227 = vmatprep.subr.mxu0 0.0
    %9228 = vmatpush1.msra.mxu0 0.0
    %9229 = vmatprep.mubr.f32.mxu0 %v9163
    %9230 = vmatmul.mubr.f32.gmra.mrb[0].mxu0 %v9129
    %v9231 = vpop.f32.mrb[0].mxu0
    %v9232 = vadd.f32 %v9160, %v9231
    %v9233 = vpop.f32.mrb[0].mxu0
    %9234 = vdwg.mxu0
    %v9235 = vmax.f32 %v9232, 0.0
    %v9236 = vld [vmem:[#allocation27] sm:$0xff]
    %v9237 = vld [vmem:[#allocation27 + $0x8] sm:$0xff]
    %v9238 = vld [vmem:[#allocation27 + $0x10] sm:$0xff]
    %v9239 = vld [vmem:[#allocation27 + $0x18] sm:$0xff]
    %v9240 = vld [vmem:[#allocation27 + $0x20] sm:$0xff]
    %v9241 = vld [vmem:[#allocation27 + $0x28] sm:$0xff]
    %v9242 = vld [vmem:[#allocation27 + $0x30] sm:$0xff]
    %v9243 = vld [vmem:[#allocation27 + $0x38] sm:$0xff]
    %v9244 = vld [vmem:[%s20] sm:$0x1]
    %v9246 = vlaneseq
    %v9247 = vshrl.u32 %v9246, 7
    %v9248 = vsub.s32 0, %v9247
    %v9249 = vrot.slane %v9244, %v9248
    %v9252 = vsel %vm3970, %v9235, 0
    %9254 = vmatprep.subr.mxu0 0.0
    %9255 = vmatpush1.msra.mxu0 %v9236
    %9256 = vmatprep.subr.mxu0 0.0
    %9257 = vmatpush1.msra.mxu0 %v9237
    %9258 = vmatprep.subr.mxu0 0.0
    %9259 = vmatpush1.msra.mxu0 %v9238
    %9260 = vmatprep.subr.mxu0 0.0
    %9261 = vmatpush1.msra.mxu0 %v9239
    %9262 = vmatprep.subr.mxu0 0.0
    %9263 = vmatpush1.msra.mxu0 %v9240
    %9264 = vmatprep.subr.mxu0 0.0
    %9265 = vmatpush1.msra.mxu0 %v9241
    %9266 = vmatprep.subr.mxu0 0.0
    %9267 = vmatpush1.msra.mxu0 %v9242
    %9268 = vmatprep.subr.mxu0 0.0
    %9269 = vmatpush1.msra.mxu0 %v9243
    %9270 = vmatprep.subr.mxu0 0.0
    %9271 = vmatpush1.msra.mxu0 0.0
    %9272 = vmatprep.subr.mxu0 0.0
    %9273 = vmatpush1.msra.mxu0 0.0
    %9274 = vmatprep.subr.mxu0 0.0
    %9275 = vmatpush1.msra.mxu0 0.0
    %9276 = vmatprep.subr.mxu0 0.0
    %9277 = vmatpush1.msra.mxu0 0.0
    %9278 = vmatprep.subr.mxu0 0.0
    %9279 = vmatpush1.msra.mxu0 0.0
    %9280 = vmatprep.subr.mxu0 0.0
    %9281 = vmatpush1.msra.mxu0 0.0
    %9282 = vmatprep.subr.mxu0 0.0
    %9283 = vmatpush1.msra.mxu0 0.0
    %9284 = vmatprep.subr.mxu0 0.0
    %9285 = vmatpush1.msra.mxu0 0.0
    %9286 = vmatprep.subr.mxu0 0.0
    %9287 = vmatpush1.msra.mxu0 0.0
    %9288 = vmatprep.subr.mxu0 0.0
    %9289 = vmatpush1.msra.mxu0 0.0
    %9290 = vmatprep.subr.mxu0 0.0
    %9291 = vmatpush1.msra.mxu0 0.0
    %9292 = vmatprep.subr.mxu0 0.0
    %9293 = vmatpush1.msra.mxu0 0.0
    %9294 = vmatprep.subr.mxu0 0.0
    %9295 = vmatpush1.msra.mxu0 0.0
    %9296 = vmatprep.subr.mxu0 0.0
    %9297 = vmatpush1.msra.mxu0 0.0
    %9298 = vmatprep.subr.mxu0 0.0
    %9299 = vmatpush1.msra.mxu0 0.0
    %9300 = vmatprep.subr.mxu0 0.0
    %9301 = vmatpush1.msra.mxu0 0.0
    %9302 = vmatprep.subr.mxu0 0.0
    %9303 = vmatpush1.msra.mxu0 0.0
    %9304 = vmatprep.subr.mxu0 0.0
    %9305 = vmatpush1.msra.mxu0 0.0
    %9306 = vmatprep.subr.mxu0 0.0
    %9307 = vmatpush1.msra.mxu0 0.0
    %9308 = vmatprep.subr.mxu0 0.0
    %9309 = vmatpush1.msra.mxu0 0.0
    %9310 = vmatprep.subr.mxu0 0.0
    %9311 = vmatpush1.msra.mxu0 0.0
    %9312 = vmatprep.subr.mxu0 0.0
    %9313 = vmatpush1.msra.mxu0 0.0
    %9314 = vmatprep.subr.mxu0 0.0
    %9315 = vmatpush1.msra.mxu0 0.0
    %9316 = vmatprep.subr.mxu0 0.0
    %9317 = vmatpush1.msra.mxu0 0.0
    %9318 = vmatprep.mubr.f32.mxu0 0.0
    %9319 = vmatmul.mubr.f32.gmra.mrb[0].mxu0 %v9252
    %v9320 = vpop.f32.mrb[0].mxu0
    %v9321 = vadd.f32 %v9249, %v9320
    %v9322 = vpop.f32.mrb[0].mxu0
    %9323 = vdwg.mxu0
    %v9324 = vmax.f32 %v9321, 0.0
    %v9325 = vld [vmem:[%s21] sm:$0xff]
    %v9326 = vld [vmem:[%s21 + $0x8] sm:$0xff]
    %v9327 = vld [vmem:[%s21 + $0x10] sm:$0xff]
    %v9328 = vld [vmem:[%s21 + $0x18] sm:$0xff]
    %v9329 = vld [vmem:[%s21 + $0x20] sm:$0xff]
    %v9330 = vld [vmem:[%s21 + $0x28] sm:$0xff]
    %v9331 = vld [vmem:[%s21 + $0x30] sm:$0xff]
    %v9332 = vld [vmem:[%s21 + $0x38] sm:$0xff]
    %v9333 = vld [vmem:[#allocation3] sm:$0x1]
    %v9335 = vlaneseq
    %v9336 = vshrl.u32 %v9335, 7
    %v9337 = vsub.s32 0, %v9336
    %v9338 = vrot.slane %v9333, %v9337
    %v9341 = vsel %vm3970, %v9324, 0
    %9343 = vmatprep.subr.mxu0 0.0
    %9344 = vmatpush1.msra.mxu0 %v9325
    %9345 = vmatprep.subr.mxu0 0.0
    %9346 = vmatpush1.msra.mxu0 %v9326
    %9347 = vmatprep.subr.mxu0 0.0
    %9348 = vmatpush1.msra.mxu0 %v9327
    %9349 = vmatprep.subr.mxu0 0.0
    %9350 = vmatpush1.msra.mxu0 %v9328
    %9351 = vmatprep.subr.mxu0 0.0
    %9352 = vmatpush1.msra.mxu0 %v9329
    %9353 = vmatprep.subr.mxu0 0.0
    %9354 = vmatpush1.msra.mxu0 %v9330
    %9355 = vmatprep.subr.mxu0 0.0
    %9356 = vmatpush1.msra.mxu0 %v9331
    %9357 = vmatprep.subr.mxu0 0.0
    %9358 = vmatpush1.msra.mxu0 %v9332
    %9359 = vmatprep.subr.mxu0 0.0
    %9360 = vmatpush1.msra.mxu0 0.0
    %9361 = vmatprep.subr.mxu0 0.0
    %9362 = vmatpush1.msra.mxu0 0.0
    %9363 = vmatprep.subr.mxu0 0.0
    %9364 = vmatpush1.msra.mxu0 0.0
    %9365 = vmatprep.subr.mxu0 0.0
    %9366 = vmatpush1.msra.mxu0 0.0
    %9367 = vmatprep.subr.mxu0 0.0
    %9368 = vmatpush1.msra.mxu0 0.0
    %9369 = vmatprep.subr.mxu0 0.0
    %9370 = vmatpush1.msra.mxu0 0.0
    %9371 = vmatprep.subr.mxu0 0.0
    %9372 = vmatpush1.msra.mxu0 0.0
    %9373 = vmatprep.subr.mxu0 0.0
    %9374 = vmatpush1.msra.mxu0 0.0
    %9375 = vmatprep.subr.mxu0 0.0
    %9376 = vmatpush1.msra.mxu0 0.0
    %9377 = vmatprep.subr.mxu0 0.0
    %9378 = vmatpush1.msra.mxu0 0.0
    %9379 = vmatprep.subr.mxu0 0.0
    %9380 = vmatpush1.msra.mxu0 0.0
    %9381 = vmatprep.subr.mxu0 0.0
    %9382 = vmatpush1.msra.mxu0 0.0
    %9383 = vmatprep.subr.mxu0 0.0
    %9384 = vmatpush1.msra.mxu0 0.0
    %9385 = vmatprep.subr.mxu0 0.0
    %9386 = vmatpush1.msra.mxu0 0.0
    %9387 = vmatprep.subr.mxu0 0.0
    %9388 = vmatpush1.msra.mxu0 0.0
    %9389 = vmatprep.subr.mxu0 0.0
    %9390 = vmatpush1.msra.mxu0 0.0
    %9391 = vmatprep.subr.mxu0 0.0
    %9392 = vmatpush1.msra.mxu0 0.0
    %9393 = vmatprep.subr.mxu0 0.0
    %9394 = vmatpush1.msra.mxu0 0.0
    %9395 = vmatprep.subr.mxu0 0.0
    %9396 = vmatpush1.msra.mxu0 0.0
    %9397 = vmatprep.subr.mxu0 0.0
    %9398 = vmatpush1.msra.mxu0 0.0
    %9399 = vmatprep.subr.mxu0 0.0
    %9400 = vmatpush1.msra.mxu0 0.0
    %9401 = vmatprep.subr.mxu0 0.0
    %9402 = vmatpush1.msra.mxu0 0.0
    %9403 = vmatprep.subr.mxu0 0.0
    %9404 = vmatpush1.msra.mxu0 0.0
    %9405 = vmatprep.subr.mxu0 0.0
    %9406 = vmatpush1.msra.mxu0 0.0
    %9407 = vmatprep.mubr.f32.mxu0 0.0
    %9408 = vmatmul.mubr.f32.gmra.mrb[0].mxu0 %v9341
    %v9409 = vpop.f32.mrb[0].mxu0
    %v9410 = vadd.f32 %v9338, %v9409
    %v9411 = vpop.f32.mrb[0].mxu0
    %9412 = vdwg.mxu0
    %v9413 = vxor.u32 %v9410, 2147483648
    %v9414 = vmul.f32 %v9413, 1.442695
    %v9415 = vpow.pop %v9414
    %v9416 = vadd.f32 %v9415, 1.0
    %v9417 = vrcp.pop %v9416
    %v9418 = vmul.f32 1.0, %v9417
    %v9421 = vunpack.c.l.s4 1966171168
    %v9422 = vunpack.c.0.s8 %v9421
    %v9423 = vlaneseq
    %v9424 = vshrl.u32 %v9423, 7
    %v9425 = vsub.s32 %v9422, %v9424
    %v9426 = vrot.slane %v9418, %v9425
    %v9427 = vcombine.high %v9426, %v9426
    %v9429 = vunpack.c.l.s4 1966171168
    %v9430 = vunpack.c.0.s8 %v9429
    %v9431 = vlaneseq
    %v9432 = vshrl.u32 %v9431, 7
    %v9433 = vsub.s32 %v9430, %v9432
    %v9434 = vrot.slane %v9426, %v9433
    %v9436 = vunpack.c.l.s4 1966171168
    %v9437 = vunpack.c.0.s8 %v9436
    %v9438 = vlaneseq
    %v9439 = vshrl.u32 %v9438, 7
    %v9440 = vsub.s32 %v9437, %v9439
    %v9441 = vrot.slane %v9427, %v9440
    %vm9444 = vcmask 0
    %9445 = vst.msk [vmem:[%s23] sm:$0x1] %vm9444, %v9434
    %9446 = vst.msk [vmem:[%s23 + $0x1] sm:$0x1] %vm9444, %v9441
    // Predicated region
    $region158: #{_forward_impl.1} parent=1 // pred_check
      _
    $region159: #{_forward_impl.1} parent=1 // pred_check_branch
      %9448 = sbr.rel (0) target = $region161
    $region160: #{_forward_impl.1} parent=1 // pred_region
      _
    $region161: #{_forward_impl.1} parent=1 // pred_fallthru
      _
    // Predicated region
    $region162: #{_forward_impl.1} parent=1 // pred_check
      _
    $region163: #{_forward_impl.1} parent=1 // pred_check_branch
      %9450 = sbr.rel (0) target = $region165
    $region164: #{_forward_impl.1} parent=1 // pred_region
      _
    $region165: #{_forward_impl.1} parent=1 // pred_fallthru
      _
    %9451 = vsyncpa [#allocation5], 1
    %9452 = vsyncpa [#allocation7], 1
    %9453 = vsyncpa [#allocation10], 1
    %9454 = vsyncpa [#allocation13], 1
    %9455 = vsyncpa [#allocation16], 1
    %9456 = vsyncpa [#allocation19], 1
    %9457 = vsyncpa [#allocation22], 1
    %9458 = vsyncpa [#allocation25], 1
    %9459 = vsyncpa [#allocation28], 1

</llo_original>
